<compile_context>
chip_gen: v5e
topology: v5e:2x2
jax: 0.10.0
libtpu: 0.0.40
codegen_flags: <defaults>
</compile_context>

<pallas_src>
import jax
import jax.numpy as jnp
from jax import lax
from jax.experimental import pallas as pl
from jax.experimental.pallas import tpu as pltpu

_BN_EPS = 1e-5
_COMPUTE_DTYPE = jnp.bfloat16          # MXU operand dtype (f32 accumulate)
_DN2 = (((1,), (0,)), ((), ()))        # (L, K) @ (K, N) contraction
_CPARAMS = pltpu.CompilerParams(dimension_semantics=("parallel",))


# ---------------------------------------------------------------------------
# In-kernel helpers (traced inside each kernel body)
# ---------------------------------------------------------------------------

def _shift_mats(L):
    """0/1 matrices so that (s_lo @ x)[l] = x[l-1] (zero at l=0) and
    (s_hi @ x)[l] = x[l+1] (zero at l=L-1)."""
    r = lax.broadcasted_iota(jnp.int32, (L, L), 0)
    c = lax.broadcasted_iota(jnp.int32, (L, L), 1)
    s_lo = (c == r - 1).astype(jnp.float32)
    s_hi = (c == r + 1).astype(jnp.float32)
    return s_lo, s_hi


def _conv3_acc(x, w_ref, s_lo, s_hi):
    """'same'-padded 3-tap conv along rows.  x: (L, Cin) f32, w: (3, Cin, Cout)."""
    x_lo = lax.dot_general(s_lo, x, _DN2, preferred_element_type=jnp.float32)
    x_hi = lax.dot_general(s_hi, x, _DN2, preferred_element_type=jnp.float32)
    acc = lax.dot_general(x.astype(_COMPUTE_DTYPE), w_ref[1], _DN2,
                          preferred_element_type=jnp.float32)
    acc = acc + lax.dot_general(x_lo.astype(_COMPUTE_DTYPE), w_ref[0], _DN2,
                                preferred_element_type=jnp.float32)
    acc = acc + lax.dot_general(x_hi.astype(_COMPUTE_DTYPE), w_ref[2], _DN2,
                                preferred_element_type=jnp.float32)
    return acc


def _bn_relu(acc, s_ref, t_ref):
    """Folded eval-mode BatchNorm (+ conv bias) followed by ReLU."""
    return jnp.maximum(acc * s_ref[...] + t_ref[...], 0.0)


# ---------------------------------------------------------------------------
# Pallas kernels (one grid step = one batch element; everything stays in VMEM)
# ---------------------------------------------------------------------------

def _down_block_kernel(x_ref, w1_ref, s1_ref, t1_ref, w2_ref, s2_ref, t2_ref,
                       d_ref, p_ref):
    x = x_ref[0].astype(jnp.float32)                      # (L, Cin)
    L = x.shape[0]
    s_lo, s_hi = _shift_mats(L)
    h = _bn_relu(_conv3_acc(x, w1_ref, s_lo, s_hi), s1_ref, t1_ref)
    d = _bn_relu(_conv3_acc(h, w2_ref, s_lo, s_hi), s2_ref, t2_ref)
    d_ref[0] = d.astype(d_ref.dtype)                      # skip connection
    # Fused MaxPool1d(kernel=2, stride=2): even/odd row selection on the MXU.
    lh = L // 2
    rr = lax.broadcasted_iota(jnp.int32, (lh, L), 0)
    cc = lax.broadcasted_iota(jnp.int32, (lh, L), 1)
    sel_even = (cc == 2 * rr).astype(jnp.float32)
    sel_odd = (cc == 2 * rr + 1).astype(jnp.float32)
    even = lax.dot_general(sel_even, d, _DN2, preferred_element_type=jnp.float32)
    odd = lax.dot_general(sel_odd, d, _DN2, preferred_element_type=jnp.float32)
    p_ref[0] = jnp.maximum(even, odd).astype(p_ref.dtype)


def _double_conv_kernel(x_ref, w1_ref, s1_ref, t1_ref, w2_ref, s2_ref, t2_ref,
                        o_ref):
    x = x_ref[0].astype(jnp.float32)
    s_lo, s_hi = _shift_mats(x.shape[0])
    h = _bn_relu(_conv3_acc(x, w1_ref, s_lo, s_hi), s1_ref, t1_ref)
    o_ref[0] = _bn_relu(_conv3_acc(h, w2_ref, s_lo, s_hi),
                        s2_ref, t2_ref).astype(o_ref.dtype)


def _convt2_kernel(x_ref, wt_ref, bt_ref, o_ref):
    # ConvTranspose1d(k=2, s=2): y[2l + k] = x[l] @ wt[k] + b
    x = x_ref[0].astype(_COMPUTE_DTYPE)                   # (Lh, Cin)
    b = bt_ref[...]                                       # (1, Cout)
    y0 = lax.dot_general(x, wt_ref[0], _DN2, preferred_element_type=jnp.float32) + b
    y1 = lax.dot_general(x, wt_ref[1], _DN2, preferred_element_type=jnp.float32) + b
    o_ref[0, :, 0, :] = y0.astype(o_ref.dtype)
    o_ref[0, :, 1, :] = y1.astype(o_ref.dtype)


def _up_block_kernel(skip_ref, u_ref, w1s_ref, w1u_ref, s1_ref, t1_ref,
                     w2_ref, s2_ref, t2_ref, o_ref):
    skip = skip_ref[0].astype(jnp.float32)
    u = u_ref[0].astype(jnp.float32)
    s_lo, s_hi = _shift_mats(skip.shape[0])
    # conv1 over concat([skip, u]) == conv1(skip; w1s) + conv1(u; w1u)
    acc = _conv3_acc(skip, w1s_ref, s_lo, s_hi) + _conv3_acc(u, w1u_ref, s_lo, s_hi)
    h = _bn_relu(acc, s1_ref, t1_ref)
    o_ref[0] = _bn_relu(_conv3_acc(h, w2_ref, s_lo, s_hi),
                        s2_ref, t2_ref).astype(o_ref.dtype)


def _up_final_kernel(skip_ref, u_ref, w1s_ref, w1u_ref, s1_ref, t1_ref,
                     w2_ref, s2_ref, t2_ref, wo_ref, bo_ref, o_ref):
    skip = skip_ref[0].astype(jnp.float32)
    u = u_ref[0].astype(jnp.float32)
    s_lo, s_hi = _shift_mats(skip.shape[0])
    acc = _conv3_acc(skip, w1s_ref, s_lo, s_hi) + _conv3_acc(u, w1u_ref, s_lo, s_hi)
    h = _bn_relu(acc, s1_ref, t1_ref)
    g = _bn_relu(_conv3_acc(h, w2_ref, s_lo, s_hi), s2_ref, t2_ref)
    # Fused final 1x1 conv (Cout = out_channels)
    out = lax.dot_general(g, wo_ref[...], _DN2,
                          preferred_element_type=jnp.float32) + bo_ref[...]
    o_ref[0] = out.astype(o_ref.dtype)


# ---------------------------------------------------------------------------
# pallas_call wrappers (grid over batch, "parallel" for megacore/v7x)
# ---------------------------------------------------------------------------

def _batched_spec(shape):
    block = (1,) + tuple(int(s) for s in shape[1:])
    zeros = (0,) * (len(shape) - 1)
    return pl.BlockSpec(block, lambda b: (b,) + zeros)


def _shared_spec(shape):
    block = tuple(int(s) for s in shape)
    zeros = (0,) * len(shape)
    return pl.BlockSpec(block, lambda b: zeros)


_DC_KEYS = ("w1", "s1", "t1", "w2", "s2", "t2")
_UP_KEYS = ("w1s", "w1u", "s1", "t1", "w2", "s2", "t2")


def down_block(x, p):
    B, L, _ = x.shape
    cout = p["w2"].shape[-1]
    return pl.pallas_call(
        _down_block_kernel,
        grid=(B,),
        out_shape=(jax.ShapeDtypeStruct((B, L, cout), jnp.float32),
                   jax.ShapeDtypeStruct((B, L // 2, cout), jnp.float32)),
        in_specs=[_batched_spec(x.shape)] + [_shared_spec(p[k].shape) for k in _DC_KEYS],
        out_specs=(_batched_spec((B, L, cout)), _batched_spec((B, L // 2, cout))),
        compiler_params=_CPARAMS,
    )(x, *[p[k] for k in _DC_KEYS])


def double_conv(x, p):
    B, L, _ = x.shape
    cout = p["w2"].shape[-1]
    return pl.pallas_call(
        _double_conv_kernel,
        grid=(B,),
        out_shape=jax.ShapeDtypeStruct((B, L, cout), jnp.float32),
        in_specs=[_batched_spec(x.shape)] + [_shared_spec(p[k].shape) for k in _DC_KEYS],
        out_specs=_batched_spec((B, L, cout)),
        compiler_params=_CPARAMS,
    )(x, *[p[k] for k in _DC_KEYS])


def conv_transpose2(x, wt, bt):
    B, Lh, _ = x.shape
    cout = wt.shape[-1]
    y = pl.pallas_call(
        _convt2_kernel,
        grid=(B,),
        out_shape=jax.ShapeDtypeStruct((B, Lh, 2, cout), jnp.float32),
        in_specs=[_batched_spec(x.shape), _shared_spec(wt.shape), _shared_spec(bt.shape)],
        out_specs=_batched_spec((B, Lh, 2, cout)),
        compiler_params=_CPARAMS,
    )(x, wt, bt)
    # (B, Lh, 2, Cout) -> (B, 2*Lh, Cout): row-major contiguous, free reshape.
    return y.reshape(B, 2 * Lh, cout)


def up_block(skip, u, p):
    B, L, _ = skip.shape
    cout = p["w2"].shape[-1]
    return pl.pallas_call(
        _up_block_kernel,
        grid=(B,),
        out_shape=jax.ShapeDtypeStruct((B, L, cout), jnp.float32),
        in_specs=[_batched_spec(skip.shape), _batched_spec(u.shape)]
                 + [_shared_spec(p[k].shape) for k in _UP_KEYS],
        out_specs=_batched_spec((B, L, cout)),
        compiler_params=_CPARAMS,
    )(skip, u, *[p[k] for k in _UP_KEYS])


def up_final_block(skip, u, p, wo, bo):
    B, L, _ = skip.shape
    cout = wo.shape[-1]
    return pl.pallas_call(
        _up_final_kernel,
        grid=(B,),
        out_shape=jax.ShapeDtypeStruct((B, L, cout), jnp.float32),
        in_specs=[_batched_spec(skip.shape), _batched_spec(u.shape)]
                 + [_shared_spec(p[k].shape) for k in _UP_KEYS]
                 + [_shared_spec(wo.shape), _shared_spec(bo.shape)],
        out_specs=_batched_spec((B, L, cout)),
        compiler_params=_CPARAMS,
    )(skip, u, *[p[k] for k in _UP_KEYS], wo, bo)


# ---------------------------------------------------------------------------
# Parameter construction (deterministic, PyTorch-like uniform init)
# ---------------------------------------------------------------------------

def _conv1d_params(key, cin, cout, ksz):
    k1, k2 = jax.random.split(key)
    bound = 1.0 / (cin * ksz) ** 0.5
    w = jax.random.uniform(k1, (cout, cin, ksz), jnp.float32, -bound, bound)
    b = jax.random.uniform(k2, (cout,), jnp.float32, -bound, bound)
    return jnp.transpose(w, (2, 1, 0)), b        # (k, cin, cout)


def _convt1d_params(key, cin, cout, ksz):
    k1, k2 = jax.random.split(key)
    bound = 1.0 / (cout * ksz) ** 0.5
    w = jax.random.uniform(k1, (cin, cout, ksz), jnp.float32, -bound, bound)
    b = jax.random.uniform(k2, (cout,), jnp.float32, -bound, bound)
    return jnp.transpose(w, (2, 0, 1)), b        # (k, cin, cout)


def _bn_fold(bias, cout):
    # eval-mode BN (gamma=1, beta=0, mean=0, var=1) with the conv bias folded in
    scale = (1.0 + _BN_EPS) ** -0.5
    s = jnp.full((1, cout), scale, jnp.float32)
    t = (scale * bias).reshape(1, cout).astype(jnp.float32)
    return s, t


def _double_conv_params(key, cin, cout):
    k1, k2 = jax.random.split(key)
    w1, b1 = _conv1d_params(k1, cin, cout, 3)
    w2, b2 = _conv1d_params(k2, cout, cout, 3)
    s1, t1 = _bn_fold(b1, cout)
    s2, t2 = _bn_fold(b2, cout)
    return dict(w1=w1.astype(_COMPUTE_DTYPE), s1=s1, t1=t1,
                w2=w2.astype(_COMPUTE_DTYPE), s2=s2, t2=t2)


def _up_double_conv_params(key, cin_total, cout, c_skip):
    p = _double_conv_params(key, cin_total, cout)
    w1 = p.pop("w1")
    p["w1s"] = w1[:, :c_skip, :]      # channels from the skip connection
    p["w1u"] = w1[:, c_skip:, :]      # channels from the upsampled path
    return p


def make_vnet_params(key, in_channels=1, out_channels=1):
    keys = jax.random.split(key, 11)
    p = {}
    p["down1"] = _double_conv_params(keys[0], in_channels, 16)
    p["down2"] = _double_conv_params(keys[1], 16, 32)
    p["down3"] = _double_conv_params(keys[2], 32, 64)
    p["bottleneck"] = _double_conv_params(keys[3], 64, 128)

    w, b = _convt1d_params(keys[4], 128, 64, 2)
    p["up3_w"], p["up3_b"] = w.astype(_COMPUTE_DTYPE), b.reshape(1, -1)
    p["upconv3"] = _up_double_conv_params(keys[5], 128, 64, 64)

    w, b = _convt1d_params(keys[6], 64, 32, 2)
    p["up2_w"], p["up2_b"] = w.astype(_COMPUTE_DTYPE), b.reshape(1, -1)
    p["upconv2"] = _up_double_conv_params(keys[7], 64, 32, 32)

    w, b = _convt1d_params(keys[8], 32, 16, 2)
    p["up1_w"], p["up1_b"] = w.astype(_COMPUTE_DTYPE), b.reshape(1, -1)
    p["upconv1"] = _up_double_conv_params(keys[9], 32, 16, 16)

    wo, bo = _conv1d_params(keys[10], 16, out_channels, 1)
    p["out_w"] = wo[0]                     # (16, out_channels), f32
    p["out_b"] = bo.reshape(1, -1)         # (1, out_channels)
    return p


# ---------------------------------------------------------------------------
# Model forward
# ---------------------------------------------------------------------------

@jax.jit
def vnet_forward(x_ncl, params):
    x = jnp.transpose(x_ncl, (0, 2, 1))                    # (B, C, L) -> (B, L, C)

    d1, p1 = down_block(x, params["down1"])
    d2, p2 = down_block(p1, params["down2"])
    d3, p3 = down_block(p2, params["down3"])

    bott = double_conv(p3, params["bottleneck"])
    # Dropout: eval-mode identity (see TODO at top).

    u3 = conv_transpose2(bott, params["up3_w"], params["up3_b"])
    uc3 = up_block(d3, u3, params["upconv3"])

    u2 = conv_transpose2(uc3, params["up2_w"], params["up2_b"])
    uc2 = up_block(d2, u2, params["upconv2"])

    u1 = conv_transpose2(uc2, params["up1_w"], params["up1_b"])
    out = up_final_block(d1, u1, params["upconv1"],
                         params["out_w"], params["out_b"])  # (B, L, 1)

    out_ncl = jnp.transpose(out, (0, 2, 1))                 # (B, 1, L)
    return jnp.squeeze(out_ncl)                             # matches torch .squeeze()


if __name__ == "__main__":
    key = jax.random.PRNGKey(0)
    k_param, k_x = jax.random.split(key)

    B, CIN, L = 2, 1, 16        # L divisible by 8 (three 2x pools)
    x = jax.random.normal(k_x, (B, CIN, L), jnp.float32)   # PyTorch NCL input
    params = make_vnet_params(k_param, in_channels=CIN, out_channels=1)

    y = vnet_forward(x, params)
    jax.block_until_ready(y)
    assert y.shape == (B, L), y.shape
    assert bool(jnp.all(jnp.isfinite(y)))
    print("KERNEL_OK")
</pallas_src>

<mosaic_0001>
module attributes {stable_mosaic.version = 11 : i64} {
  func.func @_down_block_kernel(%arg0: i32, %arg1: memref<1x8x16xf32, #tpu.memory_space<vmem>>, %arg2: memref<3x16x32xbf16, #tpu.memory_space<vmem>>, %arg3: memref<1x32xf32, #tpu.memory_space<vmem>>, %arg4: memref<1x32xf32, #tpu.memory_space<vmem>>, %arg5: memref<3x32x32xbf16, #tpu.memory_space<vmem>>, %arg6: memref<1x32xf32, #tpu.memory_space<vmem>>, %arg7: memref<1x32xf32, #tpu.memory_space<vmem>>, %arg8: memref<1x8x32xf32, #tpu.memory_space<vmem>>, %arg9: memref<1x4x32xf32, #tpu.memory_space<vmem>>) attributes {dimension_semantics = [#tpu.dimension_semantics<parallel>], iteration_bounds = array<i64: 2>, scalar_prefetch = 0 : i64, scratch_operands = 0 : i64, tpu.core_type = #tpu.core_type<tc>, window_params = [{transform_indices = @transform_0, window_bounds = array<i64: 1, 8, 16>}, {pipeline_mode = #tpu.pipeline_mode<synchronous>, transform_indices = @transform_1, window_bounds = array<i64: 3, 16, 32>}, {pipeline_mode = #tpu.pipeline_mode<synchronous>, transform_indices = @transform_2, window_bounds = array<i64: 1, 32>}, {pipeline_mode = #tpu.pipeline_mode<synchronous>, transform_indices = @transform_3, window_bounds = array<i64: 1, 32>}, {pipeline_mode = #tpu.pipeline_mode<synchronous>, transform_indices = @transform_4, window_bounds = array<i64: 3, 32, 32>}, {pipeline_mode = #tpu.pipeline_mode<synchronous>, transform_indices = @transform_5, window_bounds = array<i64: 1, 32>}, {pipeline_mode = #tpu.pipeline_mode<synchronous>, transform_indices = @transform_6, window_bounds = array<i64: 1, 32>}, {transform_indices = @transform_7, window_bounds = array<i64: 1, 8, 32>}, {transform_indices = @transform_8, window_bounds = array<i64: 1, 4, 32>}]} {
    %c0 = arith.constant 0 : index
    %c0_0 = arith.constant 0 : index
    %c0_1 = arith.constant 0 : index
    %0 = vector.load %arg1[%c0, %c0_0, %c0_1] : memref<1x8x16xf32, #tpu.memory_space<vmem>>, vector<1x8x16xf32>
    %1 = vector.shape_cast %0 : vector<1x8x16xf32> to vector<8x16xf32>
    %2 = tpu.iota {dimensions = array<i32: 0>} : vector<8x8xi32>
    %3 = tpu.iota {dimensions = array<i32: 1>} : vector<8x8xi32>
    %c1_i32 = arith.constant 1 : i32
    %4 = vector.broadcast %c1_i32 : i32 to vector<8x8xi32>
    %5 = arith.subi %2, %4 : vector<8x8xi32>
    %6 = arith.cmpi eq, %3, %5 : vector<8x8xi32>
    %7 = arith.extui %6 : vector<8x8xi1> to vector<8x8xi32>
    %8 = arith.sitofp %7 : vector<8x8xi32> to vector<8x8xf32>
    %c1_i32_2 = arith.constant 1 : i32
    %9 = vector.broadcast %c1_i32_2 : i32 to vector<8x8xi32>
    %10 = arith.addi %2, %9 : vector<8x8xi32>
    %11 = arith.cmpi eq, %3, %10 : vector<8x8xi32>
    %12 = arith.extui %11 : vector<8x8xi1> to vector<8x8xi32>
    %13 = arith.sitofp %12 : vector<8x8xi32> to vector<8x8xf32>
    %cst = arith.constant dense<0.000000e+00> : vector<8x16xf32>
    %14 = tpu.matmul %8, %1, %cst {dimension_numbers = #tpu.dot_dimension_numbers<[1], [0], [0], [1], [0, 0, 1, 1], [], []>} : vector<8x8xf32>, vector<8x16xf32>, vector<8x16xf32> -> vector<8x16xf32>
    %cst_3 = arith.constant dense<0.000000e+00> : vector<8x16xf32>
    %15 = tpu.matmul %13, %1, %cst_3 {dimension_numbers = #tpu.dot_dimension_numbers<[1], [0], [0], [1], [0, 0, 1, 1], [], []>} : vector<8x8xf32>, vector<8x16xf32>, vector<8x16xf32> -> vector<8x16xf32>
    %16 = arith.truncf %1 : vector<8x16xf32> to vector<8x16xbf16>
    %c1 = arith.constant 1 : index
    %c0_4 = arith.constant 0 : index
    %c0_5 = arith.constant 0 : index
    %17 = vector.load %arg2[%c1, %c0_4, %c0_5] : memref<3x16x32xbf16, #tpu.memory_space<vmem>>, vector<1x16x32xbf16>
    %18 = vector.shape_cast %17 : vector<1x16x32xbf16> to vector<16x32xbf16>
    %cst_6 = arith.constant dense<0.000000e+00> : vector<8x32xf32>
    %19 = tpu.matmul %16, %18, %cst_6 {dimension_numbers = #tpu.dot_dimension_numbers<[1], [0], [0], [1], [0, 0, 1, 1], [], []>} : vector<8x16xbf16>, vector<16x32xbf16>, vector<8x32xf32> -> vector<8x32xf32>
    %20 = arith.truncf %14 : vector<8x16xf32> to vector<8x16xbf16>
    %c0_7 = arith.constant 0 : index
    %c0_8 = arith.constant 0 : index
    %c0_9 = arith.constant 0 : index
    %21 = vector.load %arg2[%c0_7, %c0_8, %c0_9] : memref<3x16x32xbf16, #tpu.memory_space<vmem>>, vector<1x16x32xbf16>
    %22 = vector.shape_cast %21 : vector<1x16x32xbf16> to vector<16x32xbf16>
    %cst_10 = arith.constant dense<0.000000e+00> : vector<8x32xf32>
    %23 = tpu.matmul %20, %22, %cst_10 {dimension_numbers = #tpu.dot_dimension_numbers<[1], [0], [0], [1], [0, 0, 1, 1], [], []>} : vector<8x16xbf16>, vector<16x32xbf16>, vector<8x32xf32> -> vector<8x32xf32>
    %24 = arith.addf %19, %23 : vector<8x32xf32>
    %25 = arith.truncf %15 : vector<8x16xf32> to vector<8x16xbf16>
    %c2 = arith.constant 2 : index
    %c0_11 = arith.constant 0 : index
    %c0_12 = arith.constant 0 : index
    %26 = vector.load %arg2[%c2, %c0_11, %c0_12] : memref<3x16x32xbf16, #tpu.memory_space<vmem>>, vector<1x16x32xbf16>
    %27 = vector.shape_cast %26 : vector<1x16x32xbf16> to vector<16x32xbf16>
    %cst_13 = arith.constant dense<0.000000e+00> : vector<8x32xf32>
    %28 = tpu.matmul %25, %27, %cst_13 {dimension_numbers = #tpu.dot_dimension_numbers<[1], [0], [0], [1], [0, 0, 1, 1], [], []>} : vector<8x16xbf16>, vector<16x32xbf16>, vector<8x32xf32> -> vector<8x32xf32>
    %29 = arith.addf %24, %28 : vector<8x32xf32>
    %c0_14 = arith.constant 0 : index
    %c0_15 = arith.constant 0 : index
    %30 = vector.load %arg3[%c0_14, %c0_15] : memref<1x32xf32, #tpu.memory_space<vmem>>, vector<1x32xf32>
    %31 = vector.broadcast %30 : vector<1x32xf32> to vector<8x32xf32>
    %32 = arith.mulf %29, %31 : vector<8x32xf32>
    %c0_16 = arith.constant 0 : index
    %c0_17 = arith.constant 0 : index
    %33 = vector.load %arg4[%c0_16, %c0_17] : memref<1x32xf32, #tpu.memory_space<vmem>>, vector<1x32xf32>
    %34 = vector.broadcast %33 : vector<1x32xf32> to vector<8x32xf32>
    %35 = arith.addf %32, %34 : vector<8x32xf32>
    %cst_18 = arith.constant 0.000000e+00 : f32
    %36 = vector.broadcast %cst_18 : f32 to vector<8x32xf32>
    %37 = arith.maximumf %35, %36 : vector<8x32xf32>
    %cst_19 = arith.constant dense<0.000000e+00> : vector<8x32xf32>
    %38 = tpu.matmul %8, %37, %cst_19 {dimension_numbers = #tpu.dot_dimension_numbers<[1], [0], [0], [1], [0, 0, 1, 1], [], []>} : vector<8x8xf32>, vector<8x32xf32>, vector<8x32xf32> -> vector<8x32xf32>
    %cst_20 = arith.constant dense<0.000000e+00> : vector<8x32xf32>
    %39 = tpu.matmul %13, %37, %cst_20 {dimension_numbers = #tpu.dot_dimension_numbers<[1], [0], [0], [1], [0, 0, 1, 1], [], []>} : vector<8x8xf32>, vector<8x32xf32>, vector<8x32xf32> -> vector<8x32xf32>
    %40 = arith.truncf %37 : vector<8x32xf32> to vector<8x32xbf16>
    %c1_21 = arith.constant 1 : index
    %c0_22 = arith.constant 0 : index
    %c0_23 = arith.constant 0 : index
    %41 = vector.load %arg5[%c1_21, %c0_22, %c0_23] : memref<3x32x32xbf16, #tpu.memory_space<vmem>>, vector<1x32x32xbf16>
    %42 = vector.shape_cast %41 : vector<1x32x32xbf16> to vector<32x32xbf16>
    %cst_24 = arith.constant dense<0.000000e+00> : vector<8x32xf32>
    %43 = tpu.matmul %40, %42, %cst_24 {dimension_numbers = #tpu.dot_dimension_numbers<[1], [0], [0], [1], [0, 0, 1, 1], [], []>} : vector<8x32xbf16>, vector<32x32xbf16>, vector<8x32xf32> -> vector<8x32xf32>
    %44 = arith.truncf %38 : vector<8x32xf32> to vector<8x32xbf16>
    %c0_25 = arith.constant 0 : index
    %c0_26 = arith.constant 0 : index
    %c0_27 = arith.constant 0 : index
    %45 = vector.load %arg5[%c0_25, %c0_26, %c0_27] : memref<3x32x32xbf16, #tpu.memory_space<vmem>>, vector<1x32x32xbf16>
    %46 = vector.shape_cast %45 : vector<1x32x32xbf16> to vector<32x32xbf16>
    %cst_28 = arith.constant dense<0.000000e+00> : vector<8x32xf32>
    %47 = tpu.matmul %44, %46, %cst_28 {dimension_numbers = #tpu.dot_dimension_numbers<[1], [0], [0], [1], [0, 0, 1, 1], [], []>} : vector<8x32xbf16>, vector<32x32xbf16>, vector<8x32xf32> -> vector<8x32xf32>
    %48 = arith.addf %43, %47 : vector<8x32xf32>
    %49 = arith.truncf %39 : vector<8x32xf32> to vector<8x32xbf16>
    %c2_29 = arith.constant 2 : index
    %c0_30 = arith.constant 0 : index
    %c0_31 = arith.constant 0 : index
    %50 = vector.load %arg5[%c2_29, %c0_30, %c0_31] : memref<3x32x32xbf16, #tpu.memory_space<vmem>>, vector<1x32x32xbf16>
    %51 = vector.shape_cast %50 : vector<1x32x32xbf16> to vector<32x32xbf16>
    %cst_32 = arith.constant dense<0.000000e+00> : vector<8x32xf32>
    %52 = tpu.matmul %49, %51, %cst_32 {dimension_numbers = #tpu.dot_dimension_numbers<[1], [0], [0], [1], [0, 0, 1, 1], [], []>} : vector<8x32xbf16>, vector<32x32xbf16>, vector<8x32xf32> -> vector<8x32xf32>
    %53 = arith.addf %48, %52 : vector<8x32xf32>
    %c0_33 = arith.constant 0 : index
    %c0_34 = arith.constant 0 : index
    %54 = vector.load %arg6[%c0_33, %c0_34] : memref<1x32xf32, #tpu.memory_space<vmem>>, vector<1x32xf32>
    %55 = vector.broadcast %54 : vector<1x32xf32> to vector<8x32xf32>
    %56 = arith.mulf %53, %55 : vector<8x32xf32>
    %c0_35 = arith.constant 0 : index
    %c0_36 = arith.constant 0 : index
    %57 = vector.load %arg7[%c0_35, %c0_36] : memref<1x32xf32, #tpu.memory_space<vmem>>, vector<1x32xf32>
    %58 = vector.broadcast %57 : vector<1x32xf32> to vector<8x32xf32>
    %59 = arith.addf %56, %58 : vector<8x32xf32>
    %cst_37 = arith.constant 0.000000e+00 : f32
    %60 = vector.broadcast %cst_37 : f32 to vector<8x32xf32>
    %61 = arith.maximumf %59, %60 : vector<8x32xf32>
    %c0_38 = arith.constant 0 : index
    %c0_39 = arith.constant 0 : index
    %c0_40 = arith.constant 0 : index
    %62 = vector.load %arg8[%c0_38, %c0_39, %c0_40] : memref<1x8x32xf32, #tpu.memory_space<vmem>>, vector<1x8x32xf32>
    %63 = vector.shape_cast %62 : vector<1x8x32xf32> to vector<8x32xf32>
    %64 = vector.shape_cast %61 : vector<8x32xf32> to vector<1x8x32xf32>
    tpu.vector_store %arg8[%c0_38, %c0_39, %c0_40], %64 {strides = array<i32>} : memref<1x8x32xf32, #tpu.memory_space<vmem>>, vector<1x8x32xf32>,
    %65 = tpu.iota {dimensions = array<i32: 0>} : vector<4x8xi32>
    %66 = tpu.iota {dimensions = array<i32: 1>} : vector<4x8xi32>
    %c2_i32 = arith.constant 2 : i32
    %67 = vector.broadcast %c2_i32 : i32 to vector<4x8xi32>
    %68 = arith.muli %67, %65 : vector<4x8xi32>
    %69 = arith.cmpi eq, %66, %68 : vector<4x8xi32>
    %70 = arith.extui %69 : vector<4x8xi1> to vector<4x8xi32>
    %71 = arith.sitofp %70 : vector<4x8xi32> to vector<4x8xf32>
    %c2_i32_41 = arith.constant 2 : i32
    %72 = vector.broadcast %c2_i32_41 : i32 to vector<4x8xi32>
    %73 = arith.muli %72, %65 : vector<4x8xi32>
    %c1_i32_42 = arith.constant 1 : i32
    %74 = vector.broadcast %c1_i32_42 : i32 to vector<4x8xi32>
    %75 = arith.addi %73, %74 : vector<4x8xi32>
    %76 = arith.cmpi eq, %66, %75 : vector<4x8xi32>
    %77 = arith.extui %76 : vector<4x8xi1> to vector<4x8xi32>
    %78 = arith.sitofp %77 : vector<4x8xi32> to vector<4x8xf32>
    %cst_43 = arith.constant dense<0.000000e+00> : vector<4x32xf32>
    %79 = tpu.matmul %71, %61, %cst_43 {dimension_numbers = #tpu.dot_dimension_numbers<[1], [0], [0], [1], [0, 0, 1, 1], [], []>} : vector<4x8xf32>, vector<8x32xf32>, vector<4x32xf32> -> vector<4x32xf32>
    %cst_44 = arith.constant dense<0.000000e+00> : vector<4x32xf32>
    %80 = tpu.matmul %78, %61, %cst_44 {dimension_numbers = #tpu.dot_dimension_numbers<[1], [0], [0], [1], [0, 0, 1, 1], [], []>} : vector<4x8xf32>, vector<8x32xf32>, vector<4x32xf32> -> vector<4x32xf32>
    %81 = arith.maximumf %79, %80 : vector<4x32xf32>
    %c0_45 = arith.constant 0 : index
    %c0_46 = arith.constant 0 : index
    %c0_47 = arith.constant 0 : index
    %82 = vector.load %arg9[%c0_45, %c0_46, %c0_47] : memref<1x4x32xf32, #tpu.memory_space<vmem>>, vector<1x4x32xf32>
    %83 = vector.shape_cast %82 : vector<1x4x32xf32> to vector<4x32xf32>
    %84 = vector.shape_cast %81 : vector<4x32xf32> to vector<1x4x32xf32>
    tpu.vector_store %arg9[%c0_45, %c0_46, %c0_47], %84 {strides = array<i32>} : memref<1x4x32xf32, #tpu.memory_space<vmem>>, vector<1x4x32xf32>,
    return
  }
  func.func @transform_0(%arg0: i32) -> (i32, i32, i32) {
    %c0_i32 = arith.constant 0 : i32
    %c0_i32_0 = arith.constant 0 : i32
    %c0_i32_1 = arith.constant 0 : i32
    return %arg0, %c0_i32, %c0_i32_0 : i32, i32, i32
  }
  func.func @transform_1(%arg0: i32) -> (i32, i32, i32) {
    %c0_i32 = arith.constant 0 : i32
    %c0_i32_0 = arith.constant 0 : i32
    %c0_i32_1 = arith.constant 0 : i32
    %c0_i32_2 = arith.constant 0 : i32
    return %c0_i32, %c0_i32_0, %c0_i32_1 : i32, i32, i32
  }
  func.func @transform_2(%arg0: i32) -> (i32, i32) {
    %c0_i32 = arith.constant 0 : i32
    %c0_i32_0 = arith.constant 0 : i32
    %c0_i32_1 = arith.constant 0 : i32
    return %c0_i32, %c0_i32_0 : i32, i32
  }
  func.func @transform_3(%arg0: i32) -> (i32, i32) {
    %c0_i32 = arith.constant 0 : i32
    %c0_i32_0 = arith.constant 0 : i32
    %c0_i32_1 = arith.constant 0 : i32
    return %c0_i32, %c0_i32_0 : i32, i32
  }
  func.func @transform_4(%arg0: i32) -> (i32, i32, i32) {
    %c0_i32 = arith.constant 0 : i32
    %c0_i32_0 = arith.constant 0 : i32
    %c0_i32_1 = arith.constant 0 : i32
    %c0_i32_2 = arith.constant 0 : i32
    return %c0_i32, %c0_i32_0, %c0_i32_1 : i32, i32, i32
  }
  func.func @transform_5(%arg0: i32) -> (i32, i32) {
    %c0_i32 = arith.constant 0 : i32
    %c0_i32_0 = arith.constant 0 : i32
    %c0_i32_1 = arith.constant 0 : i32
    return %c0_i32, %c0_i32_0 : i32, i32
  }
  func.func @transform_6(%arg0: i32) -> (i32, i32) {
    %c0_i32 = arith.constant 0 : i32
    %c0_i32_0 = arith.constant 0 : i32
    %c0_i32_1 = arith.constant 0 : i32
    return %c0_i32, %c0_i32_0 : i32, i32
  }
  func.func @transform_7(%arg0: i32) -> (i32, i32, i32) {
    %c0_i32 = arith.constant 0 : i32
    %c0_i32_0 = arith.constant 0 : i32
    %c0_i32_1 = arith.constant 0 : i32
    return %arg0, %c0_i32, %c0_i32_0 : i32, i32, i32
  }
  func.func @transform_8(%arg0: i32) -> (i32, i32, i32) {
    %c0_i32 = arith.constant 0 : i32
    %c0_i32_0 = arith.constant 0 : i32
    %c0_i32_1 = arith.constant 0 : i32
    return %arg0, %c0_i32, %c0_i32_0 : i32, i32, i32
  }
}

module attributes {stable_mosaic.version = 11 : i64} {
  func.func @_down_block_kernel(%arg0: i32, %arg1: memref<1x16x1xf32, #tpu.memory_space<vmem>>, %arg2: memref<3x1x16xbf16, #tpu.memory_space<vmem>>, %arg3: memref<1x16xf32, #tpu.memory_space<vmem>>, %arg4: memref<1x16xf32, #tpu.memory_space<vmem>>, %arg5: memref<3x16x16xbf16, #tpu.memory_space<vmem>>, %arg6: memref<1x16xf32, #tpu.memory_space<vmem>>, %arg7: memref<1x16xf32, #tpu.memory_space<vmem>>, %arg8: memref<1x16x16xf32, #tpu.memory_space<vmem>>, %arg9: memref<1x8x16xf32, #tpu.memory_space<vmem>>) attributes {dimension_semantics = [#tpu.dimension_semantics<parallel>], iteration_bounds = array<i64: 2>, scalar_prefetch = 0 : i64, scratch_operands = 0 : i64, tpu.core_type = #tpu.core_type<tc>, window_params = [{transform_indices = @transform_0, window_bounds = array<i64: 1, 16, 1>}, {pipeline_mode = #tpu.pipeline_mode<synchronous>, transform_indices = @transform_1, window_bounds = array<i64: 3, 1, 16>}, {pipeline_mode = #tpu.pipeline_mode<synchronous>, transform_indices = @transform_2, window_bounds = array<i64: 1, 16>}, {pipeline_mode = #tpu.pipeline_mode<synchronous>, transform_indices = @transform_3, window_bounds = array<i64: 1, 16>}, {pipeline_mode = #tpu.pipeline_mode<synchronous>, transform_indices = @transform_4, window_bounds = array<i64: 3, 16, 16>}, {pipeline_mode = #tpu.pipeline_mode<synchronous>, transform_indices = @transform_5, window_bounds = array<i64: 1, 16>}, {pipeline_mode = #tpu.pipeline_mode<synchronous>, transform_indices = @transform_6, window_bounds = array<i64: 1, 16>}, {transform_indices = @transform_7, window_bounds = array<i64: 1, 16, 16>}, {transform_indices = @transform_8, window_bounds = array<i64: 1, 8, 16>}]} {
    %c0 = arith.constant 0 : index
    %c0_0 = arith.constant 0 : index
    %c0_1 = arith.constant 0 : index
    %0 = vector.load %arg1[%c0, %c0_0, %c0_1] : memref<1x16x1xf32, #tpu.memory_space<vmem>>, vector<1x16x1xf32>
    %1 = vector.shape_cast %0 : vector<1x16x1xf32> to vector<16x1xf32>
    %2 = tpu.iota {dimensions = array<i32: 0>} : vector<16x16xi32>
    %3 = tpu.iota {dimensions = array<i32: 1>} : vector<16x16xi32>
    %c1_i32 = arith.constant 1 : i32
    %4 = vector.broadcast %c1_i32 : i32 to vector<16x16xi32>
    %5 = arith.subi %2, %4 : vector<16x16xi32>
    %6 = arith.cmpi eq, %3, %5 : vector<16x16xi32>
    %7 = arith.extui %6 : vector<16x16xi1> to vector<16x16xi32>
    %8 = arith.sitofp %7 : vector<16x16xi32> to vector<16x16xf32>
    %c1_i32_2 = arith.constant 1 : i32
    %9 = vector.broadcast %c1_i32_2 : i32 to vector<16x16xi32>
    %10 = arith.addi %2, %9 : vector<16x16xi32>
    %11 = arith.cmpi eq, %3, %10 : vector<16x16xi32>
    %12 = arith.extui %11 : vector<16x16xi1> to vector<16x16xi32>
    %13 = arith.sitofp %12 : vector<16x16xi32> to vector<16x16xf32>
    %cst = arith.constant dense<0.000000e+00> : vector<16x1xf32>
    %14 = tpu.matmul %8, %1, %cst {dimension_numbers = #tpu.dot_dimension_numbers<[1], [0], [0], [1], [0, 0, 1, 1], [], []>} : vector<16x16xf32>, vector<16x1xf32>, vector<16x1xf32> -> vector<16x1xf32>
    %cst_3 = arith.constant dense<0.000000e+00> : vector<16x1xf32>
    %15 = tpu.matmul %13, %1, %cst_3 {dimension_numbers = #tpu.dot_dimension_numbers<[1], [0], [0], [1], [0, 0, 1, 1], [], []>} : vector<16x16xf32>, vector<16x1xf32>, vector<16x1xf32> -> vector<16x1xf32>
    %16 = arith.truncf %1 : vector<16x1xf32> to vector<16x1xbf16>
    %c1 = arith.constant 1 : index
    %c0_4 = arith.constant 0 : index
    %c0_5 = arith.constant 0 : index
    %17 = vector.load %arg2[%c1, %c0_4, %c0_5] : memref<3x1x16xbf16, #tpu.memory_space<vmem>>, vector<1x1x16xbf16>
    %18 = vector.shape_cast %17 : vector<1x1x16xbf16> to vector<1x16xbf16>
    %cst_6 = arith.constant dense<0.000000e+00> : vector<16x16xf32>
    %19 = tpu.matmul %16, %18, %cst_6 {dimension_numbers = #tpu.dot_dimension_numbers<[1], [0], [0], [1], [0, 0, 1, 1], [], []>} : vector<16x1xbf16>, vector<1x16xbf16>, vector<16x16xf32> -> vector<16x16xf32>
    %20 = arith.truncf %14 : vector<16x1xf32> to vector<16x1xbf16>
    %c0_7 = arith.constant 0 : index
    %c0_8 = arith.constant 0 : index
    %c0_9 = arith.constant 0 : index
    %21 = vector.load %arg2[%c0_7, %c0_8, %c0_9] : memref<3x1x16xbf16, #tpu.memory_space<vmem>>, vector<1x1x16xbf16>
    %22 = vector.shape_cast %21 : vector<1x1x16xbf16> to vector<1x16xbf16>
    %cst_10 = arith.constant dense<0.000000e+00> : vector<16x16xf32>
    %23 = tpu.matmul %20, %22, %cst_10 {dimension_numbers = #tpu.dot_dimension_numbers<[1], [0], [0], [1], [0, 0, 1, 1], [], []>} : vector<16x1xbf16>, vector<1x16xbf16>, vector<16x16xf32> -> vector<16x16xf32>
    %24 = arith.addf %19, %23 : vector<16x16xf32>
    %25 = arith.truncf %15 : vector<16x1xf32> to vector<16x1xbf16>
    %c2 = arith.constant 2 : index
    %c0_11 = arith.constant 0 : index
    %c0_12 = arith.constant 0 : index
    %26 = vector.load %arg2[%c2, %c0_11, %c0_12] : memref<3x1x16xbf16, #tpu.memory_space<vmem>>, vector<1x1x16xbf16>
    %27 = vector.shape_cast %26 : vector<1x1x16xbf16> to vector<1x16xbf16>
    %cst_13 = arith.constant dense<0.000000e+00> : vector<16x16xf32>
    %28 = tpu.matmul %25, %27, %cst_13 {dimension_numbers = #tpu.dot_dimension_numbers<[1], [0], [0], [1], [0, 0, 1, 1], [], []>} : vector<16x1xbf16>, vector<1x16xbf16>, vector<16x16xf32> -> vector<16x16xf32>
    %29 = arith.addf %24, %28 : vector<16x16xf32>
    %c0_14 = arith.constant 0 : index
    %c0_15 = arith.constant 0 : index
    %30 = vector.load %arg3[%c0_14, %c0_15] : memref<1x16xf32, #tpu.memory_space<vmem>>, vector<1x16xf32>
    %31 = vector.broadcast %30 : vector<1x16xf32> to vector<16x16xf32>
    %32 = arith.mulf %29, %31 : vector<16x16xf32>
    %c0_16 = arith.constant 0 : index
    %c0_17 = arith.constant 0 : index
    %33 = vector.load %arg4[%c0_16, %c0_17] : memref<1x16xf32, #tpu.memory_space<vmem>>, vector<1x16xf32>
    %34 = vector.broadcast %33 : vector<1x16xf32> to vector<16x16xf32>
    %35 = arith.addf %32, %34 : vector<16x16xf32>
    %cst_18 = arith.constant 0.000000e+00 : f32
    %36 = vector.broadcast %cst_18 : f32 to vector<16x16xf32>
    %37 = arith.maximumf %35, %36 : vector<16x16xf32>
    %cst_19 = arith.constant dense<0.000000e+00> : vector<16x16xf32>
    %38 = tpu.matmul %8, %37, %cst_19 {dimension_numbers = #tpu.dot_dimension_numbers<[1], [0], [0], [1], [0, 0, 1, 1], [], []>} : vector<16x16xf32>, vector<16x16xf32>, vector<16x16xf32> -> vector<16x16xf32>
    %cst_20 = arith.constant dense<0.000000e+00> : vector<16x16xf32>
    %39 = tpu.matmul %13, %37, %cst_20 {dimension_numbers = #tpu.dot_dimension_numbers<[1], [0], [0], [1], [0, 0, 1, 1], [], []>} : vector<16x16xf32>, vector<16x16xf32>, vector<16x16xf32> -> vector<16x16xf32>
    %40 = arith.truncf %37 : vector<16x16xf32> to vector<16x16xbf16>
    %c1_21 = arith.constant 1 : index
    %c0_22 = arith.constant 0 : index
    %c0_23 = arith.constant 0 : index
    %41 = vector.load %arg5[%c1_21, %c0_22, %c0_23] : memref<3x16x16xbf16, #tpu.memory_space<vmem>>, vector<1x16x16xbf16>
    %42 = vector.shape_cast %41 : vector<1x16x16xbf16> to vector<16x16xbf16>
    %cst_24 = arith.constant dense<0.000000e+00> : vector<16x16xf32>
    %43 = tpu.matmul %40, %42, %cst_24 {dimension_numbers = #tpu.dot_dimension_numbers<[1], [0], [0], [1], [0, 0, 1, 1], [], []>} : vector<16x16xbf16>, vector<16x16xbf16>, vector<16x16xf32> -> vector<16x16xf32>
    %44 = arith.truncf %38 : vector<16x16xf32> to vector<16x16xbf16>
    %c0_25 = arith.constant 0 : index
    %c0_26 = arith.constant 0 : index
    %c0_27 = arith.constant 0 : index
    %45 = vector.load %arg5[%c0_25, %c0_26, %c0_27] : memref<3x16x16xbf16, #tpu.memory_space<vmem>>, vector<1x16x16xbf16>
    %46 = vector.shape_cast %45 : vector<1x16x16xbf16> to vector<16x16xbf16>
    %cst_28 = arith.constant dense<0.000000e+00> : vector<16x16xf32>
    %47 = tpu.matmul %44, %46, %cst_28 {dimension_numbers = #tpu.dot_dimension_numbers<[1], [0], [0], [1], [0, 0, 1, 1], [], []>} : vector<16x16xbf16>, vector<16x16xbf16>, vector<16x16xf32> -> vector<16x16xf32>
    %48 = arith.addf %43, %47 : vector<16x16xf32>
    %49 = arith.truncf %39 : vector<16x16xf32> to vector<16x16xbf16>
    %c2_29 = arith.constant 2 : index
    %c0_30 = arith.constant 0 : index
    %c0_31 = arith.constant 0 : index
    %50 = vector.load %arg5[%c2_29, %c0_30, %c0_31] : memref<3x16x16xbf16, #tpu.memory_space<vmem>>, vector<1x16x16xbf16>
    %51 = vector.shape_cast %50 : vector<1x16x16xbf16> to vector<16x16xbf16>
    %cst_32 = arith.constant dense<0.000000e+00> : vector<16x16xf32>
    %52 = tpu.matmul %49, %51, %cst_32 {dimension_numbers = #tpu.dot_dimension_numbers<[1], [0], [0], [1], [0, 0, 1, 1], [], []>} : vector<16x16xbf16>, vector<16x16xbf16>, vector<16x16xf32> -> vector<16x16xf32>
    %53 = arith.addf %48, %52 : vector<16x16xf32>
    %c0_33 = arith.constant 0 : index
    %c0_34 = arith.constant 0 : index
    %54 = vector.load %arg6[%c0_33, %c0_34] : memref<1x16xf32, #tpu.memory_space<vmem>>, vector<1x16xf32>
    %55 = vector.broadcast %54 : vector<1x16xf32> to vector<16x16xf32>
    %56 = arith.mulf %53, %55 : vector<16x16xf32>
    %c0_35 = arith.constant 0 : index
    %c0_36 = arith.constant 0 : index
    %57 = vector.load %arg7[%c0_35, %c0_36] : memref<1x16xf32, #tpu.memory_space<vmem>>, vector<1x16xf32>
    %58 = vector.broadcast %57 : vector<1x16xf32> to vector<16x16xf32>
    %59 = arith.addf %56, %58 : vector<16x16xf32>
    %cst_37 = arith.constant 0.000000e+00 : f32
    %60 = vector.broadcast %cst_37 : f32 to vector<16x16xf32>
    %61 = arith.maximumf %59, %60 : vector<16x16xf32>
    %c0_38 = arith.constant 0 : index
    %c0_39 = arith.constant 0 : index
    %c0_40 = arith.constant 0 : index
    %62 = vector.load %arg8[%c0_38, %c0_39, %c0_40] : memref<1x16x16xf32, #tpu.memory_space<vmem>>, vector<1x16x16xf32>
    %63 = vector.shape_cast %62 : vector<1x16x16xf32> to vector<16x16xf32>
    %64 = vector.shape_cast %61 : vector<16x16xf32> to vector<1x16x16xf32>
    tpu.vector_store %arg8[%c0_38, %c0_39, %c0_40], %64 {strides = array<i32>} : memref<1x16x16xf32, #tpu.memory_space<vmem>>, vector<1x16x16xf32>,
    %65 = tpu.iota {dimensions = array<i32: 0>} : vector<8x16xi32>
    %66 = tpu.iota {dimensions = array<i32: 1>} : vector<8x16xi32>
    %c2_i32 = arith.constant 2 : i32
    %67 = vector.broadcast %c2_i32 : i32 to vector<8x16xi32>
    %68 = arith.muli %67, %65 : vector<8x16xi32>
    %69 = arith.cmpi eq, %66, %68 : vector<8x16xi32>
    %70 = arith.extui %69 : vector<8x16xi1> to vector<8x16xi32>
    %71 = arith.sitofp %70 : vector<8x16xi32> to vector<8x16xf32>
    %c2_i32_41 = arith.constant 2 : i32
    %72 = vector.broadcast %c2_i32_41 : i32 to vector<8x16xi32>
    %73 = arith.muli %72, %65 : vector<8x16xi32>
    %c1_i32_42 = arith.constant 1 : i32
    %74 = vector.broadcast %c1_i32_42 : i32 to vector<8x16xi32>
    %75 = arith.addi %73, %74 : vector<8x16xi32>
    %76 = arith.cmpi eq, %66, %75 : vector<8x16xi32>
    %77 = arith.extui %76 : vector<8x16xi1> to vector<8x16xi32>
    %78 = arith.sitofp %77 : vector<8x16xi32> to vector<8x16xf32>
    %cst_43 = arith.constant dense<0.000000e+00> : vector<8x16xf32>
    %79 = tpu.matmul %71, %61, %cst_43 {dimension_numbers = #tpu.dot_dimension_numbers<[1], [0], [0], [1], [0, 0, 1, 1], [], []>} : vector<8x16xf32>, vector<16x16xf32>, vector<8x16xf32> -> vector<8x16xf32>
    %cst_44 = arith.constant dense<0.000000e+00> : vector<8x16xf32>
    %80 = tpu.matmul %78, %61, %cst_44 {dimension_numbers = #tpu.dot_dimension_numbers<[1], [0], [0], [1], [0, 0, 1, 1], [], []>} : vector<8x16xf32>, vector<16x16xf32>, vector<8x16xf32> -> vector<8x16xf32>
    %81 = arith.maximumf %79, %80 : vector<8x16xf32>
    %c0_45 = arith.constant 0 : index
    %c0_46 = arith.constant 0 : index
    %c0_47 = arith.constant 0 : index
    %82 = vector.load %arg9[%c0_45, %c0_46, %c0_47] : memref<1x8x16xf32, #tpu.memory_space<vmem>>, vector<1x8x16xf32>
    %83 = vector.shape_cast %82 : vector<1x8x16xf32> to vector<8x16xf32>
    %84 = vector.shape_cast %81 : vector<8x16xf32> to vector<1x8x16xf32>
    tpu.vector_store %arg9[%c0_45, %c0_46, %c0_47], %84 {strides = array<i32>} : memref<1x8x16xf32, #tpu.memory_space<vmem>>, vector<1x8x16xf32>,
    return
  }
  func.func @transform_0(%arg0: i32) -> (i32, i32, i32) {
    %c0_i32 = arith.constant 0 : i32
    %c0_i32_0 = arith.constant 0 : i32
    %c0_i32_1 = arith.constant 0 : i32
    return %arg0, %c0_i32, %c0_i32_0 : i32, i32, i32
  }
  func.func @transform_1(%arg0: i32) -> (i32, i32, i32) {
    %c0_i32 = arith.constant 0 : i32
    %c0_i32_0 = arith.constant 0 : i32
    %c0_i32_1 = arith.constant 0 : i32
    %c0_i32_2 = arith.constant 0 : i32
    return %c0_i32, %c0_i32_0, %c0_i32_1 : i32, i32, i32
  }
  func.func @transform_2(%arg0: i32) -> (i32, i32) {
    %c0_i32 = arith.constant 0 : i32
    %c0_i32_0 = arith.constant 0 : i32
    %c0_i32_1 = arith.constant 0 : i32
    return %c0_i32, %c0_i32_0 : i32, i32
  }
  func.func @transform_3(%arg0: i32) -> (i32, i32) {
    %c0_i32 = arith.constant 0 : i32
    %c0_i32_0 = arith.constant 0 : i32
    %c0_i32_1 = arith.constant 0 : i32
    return %c0_i32, %c0_i32_0 : i32, i32
  }
  func.func @transform_4(%arg0: i32) -> (i32, i32, i32) {
    %c0_i32 = arith.constant 0 : i32
    %c0_i32_0 = arith.constant 0 : i32
    %c0_i32_1 = arith.constant 0 : i32
    %c0_i32_2 = arith.constant 0 : i32
    return %c0_i32, %c0_i32_0, %c0_i32_1 : i32, i32, i32
  }
  func.func @transform_5(%arg0: i32) -> (i32, i32) {
    %c0_i32 = arith.constant 0 : i32
    %c0_i32_0 = arith.constant 0 : i32
    %c0_i32_1 = arith.constant 0 : i32
    return %c0_i32, %c0_i32_0 : i32, i32
  }
  func.func @transform_6(%arg0: i32) -> (i32, i32) {
    %c0_i32 = arith.constant 0 : i32
    %c0_i32_0 = arith.constant 0 : i32
    %c0_i32_1 = arith.constant 0 : i32
    return %c0_i32, %c0_i32_0 : i32, i32
  }
  func.func @transform_7(%arg0: i32) -> (i32, i32, i32) {
    %c0_i32 = arith.constant 0 : i32
    %c0_i32_0 = arith.constant 0 : i32
    %c0_i32_1 = arith.constant 0 : i32
    return %arg0, %c0_i32, %c0_i32_0 : i32, i32, i32
  }
  func.func @transform_8(%arg0: i32) -> (i32, i32, i32) {
    %c0_i32 = arith.constant 0 : i32
    %c0_i32_0 = arith.constant 0 : i32
    %c0_i32_1 = arith.constant 0 : i32
    return %arg0, %c0_i32, %c0_i32_0 : i32, i32, i32
  }
}

module attributes {stable_mosaic.version = 11 : i64} {
  func.func @_down_block_kernel(%arg0: i32, %arg1: memref<1x4x32xf32, #tpu.memory_space<vmem>>, %arg2: memref<3x32x64xbf16, #tpu.memory_space<vmem>>, %arg3: memref<1x64xf32, #tpu.memory_space<vmem>>, %arg4: memref<1x64xf32, #tpu.memory_space<vmem>>, %arg5: memref<3x64x64xbf16, #tpu.memory_space<vmem>>, %arg6: memref<1x64xf32, #tpu.memory_space<vmem>>, %arg7: memref<1x64xf32, #tpu.memory_space<vmem>>, %arg8: memref<1x4x64xf32, #tpu.memory_space<vmem>>, %arg9: memref<1x2x64xf32, #tpu.memory_space<vmem>>) attributes {dimension_semantics = [#tpu.dimension_semantics<parallel>], iteration_bounds = array<i64: 2>, scalar_prefetch = 0 : i64, scratch_operands = 0 : i64, tpu.core_type = #tpu.core_type<tc>, window_params = [{transform_indices = @transform_0, window_bounds = array<i64: 1, 4, 32>}, {pipeline_mode = #tpu.pipeline_mode<synchronous>, transform_indices = @transform_1, window_bounds = array<i64: 3, 32, 64>}, {pipeline_mode = #tpu.pipeline_mode<synchronous>, transform_indices = @transform_2, window_bounds = array<i64: 1, 64>}, {pipeline_mode = #tpu.pipeline_mode<synchronous>, transform_indices = @transform_3, window_bounds = array<i64: 1, 64>}, {pipeline_mode = #tpu.pipeline_mode<synchronous>, transform_indices = @transform_4, window_bounds = array<i64: 3, 64, 64>}, {pipeline_mode = #tpu.pipeline_mode<synchronous>, transform_indices = @transform_5, window_bounds = array<i64: 1, 64>}, {pipeline_mode = #tpu.pipeline_mode<synchronous>, transform_indices = @transform_6, window_bounds = array<i64: 1, 64>}, {transform_indices = @transform_7, window_bounds = array<i64: 1, 4, 64>}, {transform_indices = @transform_8, window_bounds = array<i64: 1, 2, 64>}]} {
    %c0 = arith.constant 0 : index
    %c0_0 = arith.constant 0 : index
    %c0_1 = arith.constant 0 : index
    %0 = vector.load %arg1[%c0, %c0_0, %c0_1] : memref<1x4x32xf32, #tpu.memory_space<vmem>>, vector<1x4x32xf32>
    %1 = vector.shape_cast %0 : vector<1x4x32xf32> to vector<4x32xf32>
    %2 = tpu.iota {dimensions = array<i32: 0>} : vector<4x4xi32>
    %3 = tpu.iota {dimensions = array<i32: 1>} : vector<4x4xi32>
    %c1_i32 = arith.constant 1 : i32
    %4 = vector.broadcast %c1_i32 : i32 to vector<4x4xi32>
    %5 = arith.subi %2, %4 : vector<4x4xi32>
    %6 = arith.cmpi eq, %3, %5 : vector<4x4xi32>
    %7 = arith.extui %6 : vector<4x4xi1> to vector<4x4xi32>
    %8 = arith.sitofp %7 : vector<4x4xi32> to vector<4x4xf32>
    %c1_i32_2 = arith.constant 1 : i32
    %9 = vector.broadcast %c1_i32_2 : i32 to vector<4x4xi32>
    %10 = arith.addi %2, %9 : vector<4x4xi32>
    %11 = arith.cmpi eq, %3, %10 : vector<4x4xi32>
    %12 = arith.extui %11 : vector<4x4xi1> to vector<4x4xi32>
    %13 = arith.sitofp %12 : vector<4x4xi32> to vector<4x4xf32>
    %cst = arith.constant dense<0.000000e+00> : vector<4x32xf32>
    %14 = tpu.matmul %8, %1, %cst {dimension_numbers = #tpu.dot_dimension_numbers<[1], [0], [0], [1], [0, 0, 1, 1], [], []>} : vector<4x4xf32>, vector<4x32xf32>, vector<4x32xf32> -> vector<4x32xf32>
    %cst_3 = arith.constant dense<0.000000e+00> : vector<4x32xf32>
    %15 = tpu.matmul %13, %1, %cst_3 {dimension_numbers = #tpu.dot_dimension_numbers<[1], [0], [0], [1], [0, 0, 1, 1], [], []>} : vector<4x4xf32>, vector<4x32xf32>, vector<4x32xf32> -> vector<4x32xf32>
    %16 = arith.truncf %1 : vector<4x32xf32> to vector<4x32xbf16>
    %c1 = arith.constant 1 : index
    %c0_4 = arith.constant 0 : index
    %c0_5 = arith.constant 0 : index
    %17 = vector.load %arg2[%c1, %c0_4, %c0_5] : memref<3x32x64xbf16, #tpu.memory_space<vmem>>, vector<1x32x64xbf16>
    %18 = vector.shape_cast %17 : vector<1x32x64xbf16> to vector<32x64xbf16>
    %cst_6 = arith.constant dense<0.000000e+00> : vector<4x64xf32>
    %19 = tpu.matmul %16, %18, %cst_6 {dimension_numbers = #tpu.dot_dimension_numbers<[1], [0], [0], [1], [0, 0, 1, 1], [], []>} : vector<4x32xbf16>, vector<32x64xbf16>, vector<4x64xf32> -> vector<4x64xf32>
    %20 = arith.truncf %14 : vector<4x32xf32> to vector<4x32xbf16>
    %c0_7 = arith.constant 0 : index
    %c0_8 = arith.constant 0 : index
    %c0_9 = arith.constant 0 : index
    %21 = vector.load %arg2[%c0_7, %c0_8, %c0_9] : memref<3x32x64xbf16, #tpu.memory_space<vmem>>, vector<1x32x64xbf16>
    %22 = vector.shape_cast %21 : vector<1x32x64xbf16> to vector<32x64xbf16>
    %cst_10 = arith.constant dense<0.000000e+00> : vector<4x64xf32>
    %23 = tpu.matmul %20, %22, %cst_10 {dimension_numbers = #tpu.dot_dimension_numbers<[1], [0], [0], [1], [0, 0, 1, 1], [], []>} : vector<4x32xbf16>, vector<32x64xbf16>, vector<4x64xf32> -> vector<4x64xf32>
    %24 = arith.addf %19, %23 : vector<4x64xf32>
    %25 = arith.truncf %15 : vector<4x32xf32> to vector<4x32xbf16>
    %c2 = arith.constant 2 : index
    %c0_11 = arith.constant 0 : index
    %c0_12 = arith.constant 0 : index
    %26 = vector.load %arg2[%c2, %c0_11, %c0_12] : memref<3x32x64xbf16, #tpu.memory_space<vmem>>, vector<1x32x64xbf16>
    %27 = vector.shape_cast %26 : vector<1x32x64xbf16> to vector<32x64xbf16>
    %cst_13 = arith.constant dense<0.000000e+00> : vector<4x64xf32>
    %28 = tpu.matmul %25, %27, %cst_13 {dimension_numbers = #tpu.dot_dimension_numbers<[1], [0], [0], [1], [0, 0, 1, 1], [], []>} : vector<4x32xbf16>, vector<32x64xbf16>, vector<4x64xf32> -> vector<4x64xf32>
    %29 = arith.addf %24, %28 : vector<4x64xf32>
    %c0_14 = arith.constant 0 : index
    %c0_15 = arith.constant 0 : index
    %30 = vector.load %arg3[%c0_14, %c0_15] : memref<1x64xf32, #tpu.memory_space<vmem>>, vector<1x64xf32>
    %31 = vector.broadcast %30 : vector<1x64xf32> to vector<4x64xf32>
    %32 = arith.mulf %29, %31 : vector<4x64xf32>
    %c0_16 = arith.constant 0 : index
    %c0_17 = arith.constant 0 : index
    %33 = vector.load %arg4[%c0_16, %c0_17] : memref<1x64xf32, #tpu.memory_space<vmem>>, vector<1x64xf32>
    %34 = vector.broadcast %33 : vector<1x64xf32> to vector<4x64xf32>
    %35 = arith.addf %32, %34 : vector<4x64xf32>
    %cst_18 = arith.constant 0.000000e+00 : f32
    %36 = vector.broadcast %cst_18 : f32 to vector<4x64xf32>
    %37 = arith.maximumf %35, %36 : vector<4x64xf32>
    %cst_19 = arith.constant dense<0.000000e+00> : vector<4x64xf32>
    %38 = tpu.matmul %8, %37, %cst_19 {dimension_numbers = #tpu.dot_dimension_numbers<[1], [0], [0], [1], [0, 0, 1, 1], [], []>} : vector<4x4xf32>, vector<4x64xf32>, vector<4x64xf32> -> vector<4x64xf32>
    %cst_20 = arith.constant dense<0.000000e+00> : vector<4x64xf32>
    %39 = tpu.matmul %13, %37, %cst_20 {dimension_numbers = #tpu.dot_dimension_numbers<[1], [0], [0], [1], [0, 0, 1, 1], [], []>} : vector<4x4xf32>, vector<4x64xf32>, vector<4x64xf32> -> vector<4x64xf32>
    %40 = arith.truncf %37 : vector<4x64xf32> to vector<4x64xbf16>
    %c1_21 = arith.constant 1 : index
    %c0_22 = arith.constant 0 : index
    %c0_23 = arith.constant 0 : index
    %41 = vector.load %arg5[%c1_21, %c0_22, %c0_23] : memref<3x64x64xbf16, #tpu.memory_space<vmem>>, vector<1x64x64xbf16>
    %42 = vector.shape_cast %41 : vector<1x64x64xbf16> to vector<64x64xbf16>
    %cst_24 = arith.constant dense<0.000000e+00> : vector<4x64xf32>
    %43 = tpu.matmul %40, %42, %cst_24 {dimension_numbers = #tpu.dot_dimension_numbers<[1], [0], [0], [1], [0, 0, 1, 1], [], []>} : vector<4x64xbf16>, vector<64x64xbf16>, vector<4x64xf32> -> vector<4x64xf32>
    %44 = arith.truncf %38 : vector<4x64xf32> to vector<4x64xbf16>
    %c0_25 = arith.constant 0 : index
    %c0_26 = arith.constant 0 : index
    %c0_27 = arith.constant 0 : index
    %45 = vector.load %arg5[%c0_25, %c0_26, %c0_27] : memref<3x64x64xbf16, #tpu.memory_space<vmem>>, vector<1x64x64xbf16>
    %46 = vector.shape_cast %45 : vector<1x64x64xbf16> to vector<64x64xbf16>
    %cst_28 = arith.constant dense<0.000000e+00> : vector<4x64xf32>
    %47 = tpu.matmul %44, %46, %cst_28 {dimension_numbers = #tpu.dot_dimension_numbers<[1], [0], [0], [1], [0, 0, 1, 1], [], []>} : vector<4x64xbf16>, vector<64x64xbf16>, vector<4x64xf32> -> vector<4x64xf32>
    %48 = arith.addf %43, %47 : vector<4x64xf32>
    %49 = arith.truncf %39 : vector<4x64xf32> to vector<4x64xbf16>
    %c2_29 = arith.constant 2 : index
    %c0_30 = arith.constant 0 : index
    %c0_31 = arith.constant 0 : index
    %50 = vector.load %arg5[%c2_29, %c0_30, %c0_31] : memref<3x64x64xbf16, #tpu.memory_space<vmem>>, vector<1x64x64xbf16>
    %51 = vector.shape_cast %50 : vector<1x64x64xbf16> to vector<64x64xbf16>
    %cst_32 = arith.constant dense<0.000000e+00> : vector<4x64xf32>
    %52 = tpu.matmul %49, %51, %cst_32 {dimension_numbers = #tpu.dot_dimension_numbers<[1], [0], [0], [1], [0, 0, 1, 1], [], []>} : vector<4x64xbf16>, vector<64x64xbf16>, vector<4x64xf32> -> vector<4x64xf32>
    %53 = arith.addf %48, %52 : vector<4x64xf32>
    %c0_33 = arith.constant 0 : index
    %c0_34 = arith.constant 0 : index
    %54 = vector.load %arg6[%c0_33, %c0_34] : memref<1x64xf32, #tpu.memory_space<vmem>>, vector<1x64xf32>
    %55 = vector.broadcast %54 : vector<1x64xf32> to vector<4x64xf32>
    %56 = arith.mulf %53, %55 : vector<4x64xf32>
    %c0_35 = arith.constant 0 : index
    %c0_36 = arith.constant 0 : index
    %57 = vector.load %arg7[%c0_35, %c0_36] : memref<1x64xf32, #tpu.memory_space<vmem>>, vector<1x64xf32>
    %58 = vector.broadcast %57 : vector<1x64xf32> to vector<4x64xf32>
    %59 = arith.addf %56, %58 : vector<4x64xf32>
    %cst_37 = arith.constant 0.000000e+00 : f32
    %60 = vector.broadcast %cst_37 : f32 to vector<4x64xf32>
    %61 = arith.maximumf %59, %60 : vector<4x64xf32>
    %c0_38 = arith.constant 0 : index
    %c0_39 = arith.constant 0 : index
    %c0_40 = arith.constant 0 : index
    %62 = vector.load %arg8[%c0_38, %c0_39, %c0_40] : memref<1x4x64xf32, #tpu.memory_space<vmem>>, vector<1x4x64xf32>
    %63 = vector.shape_cast %62 : vector<1x4x64xf32> to vector<4x64xf32>
    %64 = vector.shape_cast %61 : vector<4x64xf32> to vector<1x4x64xf32>
    tpu.vector_store %arg8[%c0_38, %c0_39, %c0_40], %64 {strides = array<i32>} : memref<1x4x64xf32, #tpu.memory_space<vmem>>, vector<1x4x64xf32>,
    %65 = tpu.iota {dimensions = array<i32: 0>} : vector<2x4xi32>
    %66 = tpu.iota {dimensions = array<i32: 1>} : vector<2x4xi32>
    %c2_i32 = arith.constant 2 : i32
    %67 = vector.broadcast %c2_i32 : i32 to vector<2x4xi32>
    %68 = arith.muli %67, %65 : vector<2x4xi32>
    %69 = arith.cmpi eq, %66, %68 : vector<2x4xi32>
    %70 = arith.extui %69 : vector<2x4xi1> to vector<2x4xi32>
    %71 = arith.sitofp %70 : vector<2x4xi32> to vector<2x4xf32>
    %c2_i32_41 = arith.constant 2 : i32
    %72 = vector.broadcast %c2_i32_41 : i32 to vector<2x4xi32>
    %73 = arith.muli %72, %65 : vector<2x4xi32>
    %c1_i32_42 = arith.constant 1 : i32
    %74 = vector.broadcast %c1_i32_42 : i32 to vector<2x4xi32>
    %75 = arith.addi %73, %74 : vector<2x4xi32>
    %76 = arith.cmpi eq, %66, %75 : vector<2x4xi32>
    %77 = arith.extui %76 : vector<2x4xi1> to vector<2x4xi32>
    %78 = arith.sitofp %77 : vector<2x4xi32> to vector<2x4xf32>
    %cst_43 = arith.constant dense<0.000000e+00> : vector<2x64xf32>
    %79 = tpu.matmul %71, %61, %cst_43 {dimension_numbers = #tpu.dot_dimension_numbers<[1], [0], [0], [1], [0, 0, 1, 1], [], []>} : vector<2x4xf32>, vector<4x64xf32>, vector<2x64xf32> -> vector<2x64xf32>
    %cst_44 = arith.constant dense<0.000000e+00> : vector<2x64xf32>
    %80 = tpu.matmul %78, %61, %cst_44 {dimension_numbers = #tpu.dot_dimension_numbers<[1], [0], [0], [1], [0, 0, 1, 1], [], []>} : vector<2x4xf32>, vector<4x64xf32>, vector<2x64xf32> -> vector<2x64xf32>
    %81 = arith.maximumf %79, %80 : vector<2x64xf32>
    %c0_45 = arith.constant 0 : index
    %c0_46 = arith.constant 0 : index
    %c0_47 = arith.constant 0 : index
    %82 = vector.load %arg9[%c0_45, %c0_46, %c0_47] : memref<1x2x64xf32, #tpu.memory_space<vmem>>, vector<1x2x64xf32>
    %83 = vector.shape_cast %82 : vector<1x2x64xf32> to vector<2x64xf32>
    %84 = vector.shape_cast %81 : vector<2x64xf32> to vector<1x2x64xf32>
    tpu.vector_store %arg9[%c0_45, %c0_46, %c0_47], %84 {strides = array<i32>} : memref<1x2x64xf32, #tpu.memory_space<vmem>>, vector<1x2x64xf32>,
    return
  }
  func.func @transform_0(%arg0: i32) -> (i32, i32, i32) {
    %c0_i32 = arith.constant 0 : i32
    %c0_i32_0 = arith.constant 0 : i32
    %c0_i32_1 = arith.constant 0 : i32
    return %arg0, %c0_i32, %c0_i32_0 : i32, i32, i32
  }
  func.func @transform_1(%arg0: i32) -> (i32, i32, i32) {
    %c0_i32 = arith.constant 0 : i32
    %c0_i32_0 = arith.constant 0 : i32
    %c0_i32_1 = arith.constant 0 : i32
    %c0_i32_2 = arith.constant 0 : i32
    return %c0_i32, %c0_i32_0, %c0_i32_1 : i32, i32, i32
  }
  func.func @transform_2(%arg0: i32) -> (i32, i32) {
    %c0_i32 = arith.constant 0 : i32
    %c0_i32_0 = arith.constant 0 : i32
    %c0_i32_1 = arith.constant 0 : i32
    return %c0_i32, %c0_i32_0 : i32, i32
  }
  func.func @transform_3(%arg0: i32) -> (i32, i32) {
    %c0_i32 = arith.constant 0 : i32
    %c0_i32_0 = arith.constant 0 : i32
    %c0_i32_1 = arith.constant 0 : i32
    return %c0_i32, %c0_i32_0 : i32, i32
  }
  func.func @transform_4(%arg0: i32) -> (i32, i32, i32) {
    %c0_i32 = arith.constant 0 : i32
    %c0_i32_0 = arith.constant 0 : i32
    %c0_i32_1 = arith.constant 0 : i32
    %c0_i32_2 = arith.constant 0 : i32
    return %c0_i32, %c0_i32_0, %c0_i32_1 : i32, i32, i32
  }
  func.func @transform_5(%arg0: i32) -> (i32, i32) {
    %c0_i32 = arith.constant 0 : i32
    %c0_i32_0 = arith.constant 0 : i32
    %c0_i32_1 = arith.constant 0 : i32
    return %c0_i32, %c0_i32_0 : i32, i32
  }
  func.func @transform_6(%arg0: i32) -> (i32, i32) {
    %c0_i32 = arith.constant 0 : i32
    %c0_i32_0 = arith.constant 0 : i32
    %c0_i32_1 = arith.constant 0 : i32
    return %c0_i32, %c0_i32_0 : i32, i32
  }
  func.func @transform_7(%arg0: i32) -> (i32, i32, i32) {
    %c0_i32 = arith.constant 0 : i32
    %c0_i32_0 = arith.constant 0 : i32
    %c0_i32_1 = arith.constant 0 : i32
    return %arg0, %c0_i32, %c0_i32_0 : i32, i32, i32
  }
  func.func @transform_8(%arg0: i32) -> (i32, i32, i32) {
    %c0_i32 = arith.constant 0 : i32
    %c0_i32_0 = arith.constant 0 : i32
    %c0_i32_1 = arith.constant 0 : i32
    return %arg0, %c0_i32, %c0_i32_0 : i32, i32, i32
  }
}

module attributes {stable_mosaic.version = 11 : i64} {
  func.func @_double_conv_kernel(%arg0: i32, %arg1: memref<1x2x64xf32, #tpu.memory_space<vmem>>, %arg2: memref<3x64x128xbf16, #tpu.memory_space<vmem>>, %arg3: memref<1x128xf32, #tpu.memory_space<vmem>>, %arg4: memref<1x128xf32, #tpu.memory_space<vmem>>, %arg5: memref<3x128x128xbf16, #tpu.memory_space<vmem>>, %arg6: memref<1x128xf32, #tpu.memory_space<vmem>>, %arg7: memref<1x128xf32, #tpu.memory_space<vmem>>, %arg8: memref<1x2x128xf32, #tpu.memory_space<vmem>>) attributes {dimension_semantics = [#tpu.dimension_semantics<parallel>], iteration_bounds = array<i64: 2>, scalar_prefetch = 0 : i64, scratch_operands = 0 : i64, tpu.core_type = #tpu.core_type<tc>, window_params = [{transform_indices = @transform_0, window_bounds = array<i64: 1, 2, 64>}, {pipeline_mode = #tpu.pipeline_mode<synchronous>, transform_indices = @transform_1, window_bounds = array<i64: 3, 64, 128>}, {pipeline_mode = #tpu.pipeline_mode<synchronous>, transform_indices = @transform_2, window_bounds = array<i64: 1, 128>}, {pipeline_mode = #tpu.pipeline_mode<synchronous>, transform_indices = @transform_3, window_bounds = array<i64: 1, 128>}, {pipeline_mode = #tpu.pipeline_mode<synchronous>, transform_indices = @transform_4, window_bounds = array<i64: 3, 128, 128>}, {pipeline_mode = #tpu.pipeline_mode<synchronous>, transform_indices = @transform_5, window_bounds = array<i64: 1, 128>}, {pipeline_mode = #tpu.pipeline_mode<synchronous>, transform_indices = @transform_6, window_bounds = array<i64: 1, 128>}, {transform_indices = @transform_7, window_bounds = array<i64: 1, 2, 128>}]} {
    %c0 = arith.constant 0 : index
    %c0_0 = arith.constant 0 : index
    %c0_1 = arith.constant 0 : index
    %0 = vector.load %arg1[%c0, %c0_0, %c0_1] : memref<1x2x64xf32, #tpu.memory_space<vmem>>, vector<1x2x64xf32>
    %1 = vector.shape_cast %0 : vector<1x2x64xf32> to vector<2x64xf32>
    %2 = tpu.iota {dimensions = array<i32: 0>} : vector<2x2xi32>
    %3 = tpu.iota {dimensions = array<i32: 1>} : vector<2x2xi32>
    %c1_i32 = arith.constant 1 : i32
    %4 = vector.broadcast %c1_i32 : i32 to vector<2x2xi32>
    %5 = arith.subi %2, %4 : vector<2x2xi32>
    %6 = arith.cmpi eq, %3, %5 : vector<2x2xi32>
    %7 = arith.extui %6 : vector<2x2xi1> to vector<2x2xi32>
    %8 = arith.sitofp %7 : vector<2x2xi32> to vector<2x2xf32>
    %c1_i32_2 = arith.constant 1 : i32
    %9 = vector.broadcast %c1_i32_2 : i32 to vector<2x2xi32>
    %10 = arith.addi %2, %9 : vector<2x2xi32>
    %11 = arith.cmpi eq, %3, %10 : vector<2x2xi32>
    %12 = arith.extui %11 : vector<2x2xi1> to vector<2x2xi32>
    %13 = arith.sitofp %12 : vector<2x2xi32> to vector<2x2xf32>
    %cst = arith.constant dense<0.000000e+00> : vector<2x64xf32>
    %14 = tpu.matmul %8, %1, %cst {dimension_numbers = #tpu.dot_dimension_numbers<[1], [0], [0], [1], [0, 0, 1, 1], [], []>} : vector<2x2xf32>, vector<2x64xf32>, vector<2x64xf32> -> vector<2x64xf32>
    %cst_3 = arith.constant dense<0.000000e+00> : vector<2x64xf32>
    %15 = tpu.matmul %13, %1, %cst_3 {dimension_numbers = #tpu.dot_dimension_numbers<[1], [0], [0], [1], [0, 0, 1, 1], [], []>} : vector<2x2xf32>, vector<2x64xf32>, vector<2x64xf32> -> vector<2x64xf32>
    %16 = arith.truncf %1 : vector<2x64xf32> to vector<2x64xbf16>
    %c1 = arith.constant 1 : index
    %c0_4 = arith.constant 0 : index
    %c0_5 = arith.constant 0 : index
    %17 = vector.load %arg2[%c1, %c0_4, %c0_5] : memref<3x64x128xbf16, #tpu.memory_space<vmem>>, vector<1x64x128xbf16>
    %18 = vector.shape_cast %17 : vector<1x64x128xbf16> to vector<64x128xbf16>
    %cst_6 = arith.constant dense<0.000000e+00> : vector<2x128xf32>
    %19 = tpu.matmul %16, %18, %cst_6 {dimension_numbers = #tpu.dot_dimension_numbers<[1], [0], [0], [1], [0, 0, 1, 1], [], []>} : vector<2x64xbf16>, vector<64x128xbf16>, vector<2x128xf32> -> vector<2x128xf32>
    %20 = arith.truncf %14 : vector<2x64xf32> to vector<2x64xbf16>
    %c0_7 = arith.constant 0 : index
    %c0_8 = arith.constant 0 : index
    %c0_9 = arith.constant 0 : index
    %21 = vector.load %arg2[%c0_7, %c0_8, %c0_9] : memref<3x64x128xbf16, #tpu.memory_space<vmem>>, vector<1x64x128xbf16>
    %22 = vector.shape_cast %21 : vector<1x64x128xbf16> to vector<64x128xbf16>
    %cst_10 = arith.constant dense<0.000000e+00> : vector<2x128xf32>
    %23 = tpu.matmul %20, %22, %cst_10 {dimension_numbers = #tpu.dot_dimension_numbers<[1], [0], [0], [1], [0, 0, 1, 1], [], []>} : vector<2x64xbf16>, vector<64x128xbf16>, vector<2x128xf32> -> vector<2x128xf32>
    %24 = arith.addf %19, %23 : vector<2x128xf32>
    %25 = arith.truncf %15 : vector<2x64xf32> to vector<2x64xbf16>
    %c2 = arith.constant 2 : index
    %c0_11 = arith.constant 0 : index
    %c0_12 = arith.constant 0 : index
    %26 = vector.load %arg2[%c2, %c0_11, %c0_12] : memref<3x64x128xbf16, #tpu.memory_space<vmem>>, vector<1x64x128xbf16>
    %27 = vector.shape_cast %26 : vector<1x64x128xbf16> to vector<64x128xbf16>
    %cst_13 = arith.constant dense<0.000000e+00> : vector<2x128xf32>
    %28 = tpu.matmul %25, %27, %cst_13 {dimension_numbers = #tpu.dot_dimension_numbers<[1], [0], [0], [1], [0, 0, 1, 1], [], []>} : vector<2x64xbf16>, vector<64x128xbf16>, vector<2x128xf32> -> vector<2x128xf32>
    %29 = arith.addf %24, %28 : vector<2x128xf32>
    %c0_14 = arith.constant 0 : index
    %c0_15 = arith.constant 0 : index
    %30 = vector.load %arg3[%c0_14, %c0_15] : memref<1x128xf32, #tpu.memory_space<vmem>>, vector<1x128xf32>
    %31 = vector.broadcast %30 : vector<1x128xf32> to vector<2x128xf32>
    %32 = arith.mulf %29, %31 : vector<2x128xf32>
    %c0_16 = arith.constant 0 : index
    %c0_17 = arith.constant 0 : index
    %33 = vector.load %arg4[%c0_16, %c0_17] : memref<1x128xf32, #tpu.memory_space<vmem>>, vector<1x128xf32>
    %34 = vector.broadcast %33 : vector<1x128xf32> to vector<2x128xf32>
    %35 = arith.addf %32, %34 : vector<2x128xf32>
    %cst_18 = arith.constant 0.000000e+00 : f32
    %36 = vector.broadcast %cst_18 : f32 to vector<2x128xf32>
    %37 = arith.maximumf %35, %36 : vector<2x128xf32>
    %cst_19 = arith.constant dense<0.000000e+00> : vector<2x128xf32>
    %38 = tpu.matmul %8, %37, %cst_19 {dimension_numbers = #tpu.dot_dimension_numbers<[1], [0], [0], [1], [0, 0, 1, 1], [], []>} : vector<2x2xf32>, vector<2x128xf32>, vector<2x128xf32> -> vector<2x128xf32>
    %cst_20 = arith.constant dense<0.000000e+00> : vector<2x128xf32>
    %39 = tpu.matmul %13, %37, %cst_20 {dimension_numbers = #tpu.dot_dimension_numbers<[1], [0], [0], [1], [0, 0, 1, 1], [], []>} : vector<2x2xf32>, vector<2x128xf32>, vector<2x128xf32> -> vector<2x128xf32>
    %40 = arith.truncf %37 : vector<2x128xf32> to vector<2x128xbf16>
    %c1_21 = arith.constant 1 : index
    %c0_22 = arith.constant 0 : index
    %c0_23 = arith.constant 0 : index
    %41 = vector.load %arg5[%c1_21, %c0_22, %c0_23] : memref<3x128x128xbf16, #tpu.memory_space<vmem>>, vector<1x128x128xbf16>
    %42 = vector.shape_cast %41 : vector<1x128x128xbf16> to vector<128x128xbf16>
    %cst_24 = arith.constant dense<0.000000e+00> : vector<2x128xf32>
    %43 = tpu.matmul %40, %42, %cst_24 {dimension_numbers = #tpu.dot_dimension_numbers<[1], [0], [0], [1], [0, 0, 1, 1], [], []>} : vector<2x128xbf16>, vector<128x128xbf16>, vector<2x128xf32> -> vector<2x128xf32>
    %44 = arith.truncf %38 : vector<2x128xf32> to vector<2x128xbf16>
    %c0_25 = arith.constant 0 : index
    %c0_26 = arith.constant 0 : index
    %c0_27 = arith.constant 0 : index
    %45 = vector.load %arg5[%c0_25, %c0_26, %c0_27] : memref<3x128x128xbf16, #tpu.memory_space<vmem>>, vector<1x128x128xbf16>
    %46 = vector.shape_cast %45 : vector<1x128x128xbf16> to vector<128x128xbf16>
    %cst_28 = arith.constant dense<0.000000e+00> : vector<2x128xf32>
    %47 = tpu.matmul %44, %46, %cst_28 {dimension_numbers = #tpu.dot_dimension_numbers<[1], [0], [0], [1], [0, 0, 1, 1], [], []>} : vector<2x128xbf16>, vector<128x128xbf16>, vector<2x128xf32> -> vector<2x128xf32>
    %48 = arith.addf %43, %47 : vector<2x128xf32>
    %49 = arith.truncf %39 : vector<2x128xf32> to vector<2x128xbf16>
    %c2_29 = arith.constant 2 : index
    %c0_30 = arith.constant 0 : index
    %c0_31 = arith.constant 0 : index
    %50 = vector.load %arg5[%c2_29, %c0_30, %c0_31] : memref<3x128x128xbf16, #tpu.memory_space<vmem>>, vector<1x128x128xbf16>
    %51 = vector.shape_cast %50 : vector<1x128x128xbf16> to vector<128x128xbf16>
    %cst_32 = arith.constant dense<0.000000e+00> : vector<2x128xf32>
    %52 = tpu.matmul %49, %51, %cst_32 {dimension_numbers = #tpu.dot_dimension_numbers<[1], [0], [0], [1], [0, 0, 1, 1], [], []>} : vector<2x128xbf16>, vector<128x128xbf16>, vector<2x128xf32> -> vector<2x128xf32>
    %53 = arith.addf %48, %52 : vector<2x128xf32>
    %c0_33 = arith.constant 0 : index
    %c0_34 = arith.constant 0 : index
    %54 = vector.load %arg6[%c0_33, %c0_34] : memref<1x128xf32, #tpu.memory_space<vmem>>, vector<1x128xf32>
    %55 = vector.broadcast %54 : vector<1x128xf32> to vector<2x128xf32>
    %56 = arith.mulf %53, %55 : vector<2x128xf32>
    %c0_35 = arith.constant 0 : index
    %c0_36 = arith.constant 0 : index
    %57 = vector.load %arg7[%c0_35, %c0_36] : memref<1x128xf32, #tpu.memory_space<vmem>>, vector<1x128xf32>
    %58 = vector.broadcast %57 : vector<1x128xf32> to vector<2x128xf32>
    %59 = arith.addf %56, %58 : vector<2x128xf32>
    %cst_37 = arith.constant 0.000000e+00 : f32
    %60 = vector.broadcast %cst_37 : f32 to vector<2x128xf32>
    %61 = arith.maximumf %59, %60 : vector<2x128xf32>
    %c0_38 = arith.constant 0 : index
    %c0_39 = arith.constant 0 : index
    %c0_40 = arith.constant 0 : index
    %62 = vector.load %arg8[%c0_38, %c0_39, %c0_40] : memref<1x2x128xf32, #tpu.memory_space<vmem>>, vector<1x2x128xf32>
    %63 = vector.shape_cast %62 : vector<1x2x128xf32> to vector<2x128xf32>
    %64 = vector.shape_cast %61 : vector<2x128xf32> to vector<1x2x128xf32>
    tpu.vector_store %arg8[%c0_38, %c0_39, %c0_40], %64 {strides = array<i32>} : memref<1x2x128xf32, #tpu.memory_space<vmem>>, vector<1x2x128xf32>,
    return
  }
  func.func @transform_0(%arg0: i32) -> (i32, i32, i32) {
    %c0_i32 = arith.constant 0 : i32
    %c0_i32_0 = arith.constant 0 : i32
    %c0_i32_1 = arith.constant 0 : i32
    return %arg0, %c0_i32, %c0_i32_0 : i32, i32, i32
  }
  func.func @transform_1(%arg0: i32) -> (i32, i32, i32) {
    %c0_i32 = arith.constant 0 : i32
    %c0_i32_0 = arith.constant 0 : i32
    %c0_i32_1 = arith.constant 0 : i32
    %c0_i32_2 = arith.constant 0 : i32
    return %c0_i32, %c0_i32_0, %c0_i32_1 : i32, i32, i32
  }
  func.func @transform_2(%arg0: i32) -> (i32, i32) {
    %c0_i32 = arith.constant 0 : i32
    %c0_i32_0 = arith.constant 0 : i32
    %c0_i32_1 = arith.constant 0 : i32
    return %c0_i32, %c0_i32_0 : i32, i32
  }
  func.func @transform_3(%arg0: i32) -> (i32, i32) {
    %c0_i32 = arith.constant 0 : i32
    %c0_i32_0 = arith.constant 0 : i32
    %c0_i32_1 = arith.constant 0 : i32
    return %c0_i32, %c0_i32_0 : i32, i32
  }
  func.func @transform_4(%arg0: i32) -> (i32, i32, i32) {
    %c0_i32 = arith.constant 0 : i32
    %c0_i32_0 = arith.constant 0 : i32
    %c0_i32_1 = arith.constant 0 : i32
    %c0_i32_2 = arith.constant 0 : i32
    return %c0_i32, %c0_i32_0, %c0_i32_1 : i32, i32, i32
  }
  func.func @transform_5(%arg0: i32) -> (i32, i32) {
    %c0_i32 = arith.constant 0 : i32
    %c0_i32_0 = arith.constant 0 : i32
    %c0_i32_1 = arith.constant 0 : i32
    return %c0_i32, %c0_i32_0 : i32, i32
  }
  func.func @transform_6(%arg0: i32) -> (i32, i32) {
    %c0_i32 = arith.constant 0 : i32
    %c0_i32_0 = arith.constant 0 : i32
    %c0_i32_1 = arith.constant 0 : i32
    return %c0_i32, %c0_i32_0 : i32, i32
  }
  func.func @transform_7(%arg0: i32) -> (i32, i32, i32) {
    %c0_i32 = arith.constant 0 : i32
    %c0_i32_0 = arith.constant 0 : i32
    %c0_i32_1 = arith.constant 0 : i32
    return %arg0, %c0_i32, %c0_i32_0 : i32, i32, i32
  }
}

module attributes {stable_mosaic.version = 11 : i64} {
  func.func @_convt2_kernel(%arg0: i32, %arg1: memref<1x2x128xf32, #tpu.memory_space<vmem>>, %arg2: memref<2x128x64xbf16, #tpu.memory_space<vmem>>, %arg3: memref<1x64xf32, #tpu.memory_space<vmem>>, %arg4: memref<1x2x2x64xf32, #tpu.memory_space<vmem>>) attributes {dimension_semantics = [#tpu.dimension_semantics<parallel>], iteration_bounds = array<i64: 2>, scalar_prefetch = 0 : i64, scratch_operands = 0 : i64, tpu.core_type = #tpu.core_type<tc>, window_params = [{transform_indices = @transform_0, window_bounds = array<i64: 1, 2, 128>}, {pipeline_mode = #tpu.pipeline_mode<synchronous>, transform_indices = @transform_1, window_bounds = array<i64: 2, 128, 64>}, {pipeline_mode = #tpu.pipeline_mode<synchronous>, transform_indices = @transform_2, window_bounds = array<i64: 1, 64>}, {transform_indices = @transform_3, window_bounds = array<i64: 1, 2, 2, 64>}]} {
    %c0 = arith.constant 0 : index
    %c0_0 = arith.constant 0 : index
    %c0_1 = arith.constant 0 : index
    %0 = vector.load %arg1[%c0, %c0_0, %c0_1] : memref<1x2x128xf32, #tpu.memory_space<vmem>>, vector<1x2x128xf32>
    %1 = vector.shape_cast %0 : vector<1x2x128xf32> to vector<2x128xf32>
    %2 = arith.truncf %1 : vector<2x128xf32> to vector<2x128xbf16>
    %c0_2 = arith.constant 0 : index
    %c0_3 = arith.constant 0 : index
    %3 = vector.load %arg3[%c0_2, %c0_3] : memref<1x64xf32, #tpu.memory_space<vmem>>, vector<1x64xf32>
    %c0_4 = arith.constant 0 : index
    %c0_5 = arith.constant 0 : index
    %c0_6 = arith.constant 0 : index
    %4 = vector.load %arg2[%c0_4, %c0_5, %c0_6] : memref<2x128x64xbf16, #tpu.memory_space<vmem>>, vector<1x128x64xbf16>
    %5 = vector.shape_cast %4 : vector<1x128x64xbf16> to vector<128x64xbf16>
    %cst = arith.constant dense<0.000000e+00> : vector<2x64xf32>
    %6 = tpu.matmul %2, %5, %cst {dimension_numbers = #tpu.dot_dimension_numbers<[1], [0], [0], [1], [0, 0, 1, 1], [], []>} : vector<2x128xbf16>, vector<128x64xbf16>, vector<2x64xf32> -> vector<2x64xf32>
    %7 = vector.broadcast %3 : vector<1x64xf32> to vector<2x64xf32>
    %8 = arith.addf %6, %7 : vector<2x64xf32>
    %c1 = arith.constant 1 : index
    %c0_7 = arith.constant 0 : index
    %c0_8 = arith.constant 0 : index
    %9 = vector.load %arg2[%c1, %c0_7, %c0_8] : memref<2x128x64xbf16, #tpu.memory_space<vmem>>, vector<1x128x64xbf16>
    %10 = vector.shape_cast %9 : vector<1x128x64xbf16> to vector<128x64xbf16>
    %cst_9 = arith.constant dense<0.000000e+00> : vector<2x64xf32>
    %11 = tpu.matmul %2, %10, %cst_9 {dimension_numbers = #tpu.dot_dimension_numbers<[1], [0], [0], [1], [0, 0, 1, 1], [], []>} : vector<2x128xbf16>, vector<128x64xbf16>, vector<2x64xf32> -> vector<2x64xf32>
    %12 = vector.broadcast %3 : vector<1x64xf32> to vector<2x64xf32>
    %13 = arith.addf %11, %12 : vector<2x64xf32>
    %c0_10 = arith.constant 0 : index
    %c0_11 = arith.constant 0 : index
    %c0_12 = arith.constant 0 : index
    %c0_13 = arith.constant 0 : index
    %14 = vector.load %arg4[%c0_10, %c0_11, %c0_12, %c0_13] : memref<1x2x2x64xf32, #tpu.memory_space<vmem>>, vector<1x2x1x64xf32>
    %15 = vector.shape_cast %14 : vector<1x2x1x64xf32> to vector<2x64xf32>
    %16 = vector.shape_cast %8 : vector<2x64xf32> to vector<1x2x1x64xf32>
    tpu.vector_store %arg4[%c0_10, %c0_11, %c0_12, %c0_13], %16 {strides = array<i32>} : memref<1x2x2x64xf32, #tpu.memory_space<vmem>>, vector<1x2x1x64xf32>,
    %c0_14 = arith.constant 0 : index
    %c0_15 = arith.constant 0 : index
    %c1_16 = arith.constant 1 : index
    %c0_17 = arith.constant 0 : index
    %17 = vector.load %arg4[%c0_14, %c0_15, %c1_16, %c0_17] : memref<1x2x2x64xf32, #tpu.memory_space<vmem>>, vector<1x2x1x64xf32>
    %18 = vector.shape_cast %17 : vector<1x2x1x64xf32> to vector<2x64xf32>
    %19 = vector.shape_cast %13 : vector<2x64xf32> to vector<1x2x1x64xf32>
    tpu.vector_store %arg4[%c0_14, %c0_15, %c1_16, %c0_17], %19 {strides = array<i32>} : memref<1x2x2x64xf32, #tpu.memory_space<vmem>>, vector<1x2x1x64xf32>,
    return
  }
  func.func @transform_0(%arg0: i32) -> (i32, i32, i32) {
    %c0_i32 = arith.constant 0 : i32
    %c0_i32_0 = arith.constant 0 : i32
    %c0_i32_1 = arith.constant 0 : i32
    return %arg0, %c0_i32, %c0_i32_0 : i32, i32, i32
  }
  func.func @transform_1(%arg0: i32) -> (i32, i32, i32) {
    %c0_i32 = arith.constant 0 : i32
    %c0_i32_0 = arith.constant 0 : i32
    %c0_i32_1 = arith.constant 0 : i32
    %c0_i32_2 = arith.constant 0 : i32
    return %c0_i32, %c0_i32_0, %c0_i32_1 : i32, i32, i32
  }
  func.func @transform_2(%arg0: i32) -> (i32, i32) {
    %c0_i32 = arith.constant 0 : i32
    %c0_i32_0 = arith.constant 0 : i32
    %c0_i32_1 = arith.constant 0 : i32
    return %c0_i32, %c0_i32_0 : i32, i32
  }
  func.func @transform_3(%arg0: i32) -> (i32, i32, i32, i32) {
    %c0_i32 = arith.constant 0 : i32
    %c0_i32_0 = arith.constant 0 : i32
    %c0_i32_1 = arith.constant 0 : i32
    %c0_i32_2 = arith.constant 0 : i32
    return %arg0, %c0_i32, %c0_i32_0, %c0_i32_1 : i32, i32, i32, i32
  }
}

module attributes {stable_mosaic.version = 11 : i64} {
  func.func @_up_block_kernel(%arg0: i32, %arg1: memref<1x4x64xf32, #tpu.memory_space<vmem>>, %arg2: memref<1x4x64xf32, #tpu.memory_space<vmem>>, %arg3: memref<3x64x64xbf16, #tpu.memory_space<vmem>>, %arg4: memref<3x64x64xbf16, #tpu.memory_space<vmem>>, %arg5: memref<1x64xf32, #tpu.memory_space<vmem>>, %arg6: memref<1x64xf32, #tpu.memory_space<vmem>>, %arg7: memref<3x64x64xbf16, #tpu.memory_space<vmem>>, %arg8: memref<1x64xf32, #tpu.memory_space<vmem>>, %arg9: memref<1x64xf32, #tpu.memory_space<vmem>>, %arg10: memref<1x4x64xf32, #tpu.memory_space<vmem>>) attributes {dimension_semantics = [#tpu.dimension_semantics<parallel>], iteration_bounds = array<i64: 2>, scalar_prefetch = 0 : i64, scratch_operands = 0 : i64, tpu.core_type = #tpu.core_type<tc>, window_params = [{transform_indices = @transform_0, window_bounds = array<i64: 1, 4, 64>}, {transform_indices = @transform_1, window_bounds = array<i64: 1, 4, 64>}, {pipeline_mode = #tpu.pipeline_mode<synchronous>, transform_indices = @transform_2, window_bounds = array<i64: 3, 64, 64>}, {pipeline_mode = #tpu.pipeline_mode<synchronous>, transform_indices = @transform_3, window_bounds = array<i64: 3, 64, 64>}, {pipeline_mode = #tpu.pipeline_mode<synchronous>, transform_indices = @transform_4, window_bounds = array<i64: 1, 64>}, {pipeline_mode = #tpu.pipeline_mode<synchronous>, transform_indices = @transform_5, window_bounds = array<i64: 1, 64>}, {pipeline_mode = #tpu.pipeline_mode<synchronous>, transform_indices = @transform_6, window_bounds = array<i64: 3, 64, 64>}, {pipeline_mode = #tpu.pipeline_mode<synchronous>, transform_indices = @transform_7, window_bounds = array<i64: 1, 64>}, {pipeline_mode = #tpu.pipeline_mode<synchronous>, transform_indices = @transform_8, window_bounds = array<i64: 1, 64>}, {transform_indices = @transform_9, window_bounds = array<i64: 1, 4, 64>}]} {
    %c0 = arith.constant 0 : index
    %c0_0 = arith.constant 0 : index
    %c0_1 = arith.constant 0 : index
    %0 = vector.load %arg1[%c0, %c0_0, %c0_1] : memref<1x4x64xf32, #tpu.memory_space<vmem>>, vector<1x4x64xf32>
    %1 = vector.shape_cast %0 : vector<1x4x64xf32> to vector<4x64xf32>
    %c0_2 = arith.constant 0 : index
    %c0_3 = arith.constant 0 : index
    %c0_4 = arith.constant 0 : index
    %2 = vector.load %arg2[%c0_2, %c0_3, %c0_4] : memref<1x4x64xf32, #tpu.memory_space<vmem>>, vector<1x4x64xf32>
    %3 = vector.shape_cast %2 : vector<1x4x64xf32> to vector<4x64xf32>
    %4 = tpu.iota {dimensions = array<i32: 0>} : vector<4x4xi32>
    %5 = tpu.iota {dimensions = array<i32: 1>} : vector<4x4xi32>
    %c1_i32 = arith.constant 1 : i32
    %6 = vector.broadcast %c1_i32 : i32 to vector<4x4xi32>
    %7 = arith.subi %4, %6 : vector<4x4xi32>
    %8 = arith.cmpi eq, %5, %7 : vector<4x4xi32>
    %9 = arith.extui %8 : vector<4x4xi1> to vector<4x4xi32>
    %10 = arith.sitofp %9 : vector<4x4xi32> to vector<4x4xf32>
    %c1_i32_5 = arith.constant 1 : i32
    %11 = vector.broadcast %c1_i32_5 : i32 to vector<4x4xi32>
    %12 = arith.addi %4, %11 : vector<4x4xi32>
    %13 = arith.cmpi eq, %5, %12 : vector<4x4xi32>
    %14 = arith.extui %13 : vector<4x4xi1> to vector<4x4xi32>
    %15 = arith.sitofp %14 : vector<4x4xi32> to vector<4x4xf32>
    %cst = arith.constant dense<0.000000e+00> : vector<4x64xf32>
    %16 = tpu.matmul %10, %1, %cst {dimension_numbers = #tpu.dot_dimension_numbers<[1], [0], [0], [1], [0, 0, 1, 1], [], []>} : vector<4x4xf32>, vector<4x64xf32>, vector<4x64xf32> -> vector<4x64xf32>
    %cst_6 = arith.constant dense<0.000000e+00> : vector<4x64xf32>
    %17 = tpu.matmul %15, %1, %cst_6 {dimension_numbers = #tpu.dot_dimension_numbers<[1], [0], [0], [1], [0, 0, 1, 1], [], []>} : vector<4x4xf32>, vector<4x64xf32>, vector<4x64xf32> -> vector<4x64xf32>
    %18 = arith.truncf %1 : vector<4x64xf32> to vector<4x64xbf16>
    %c1 = arith.constant 1 : index
    %c0_7 = arith.constant 0 : index
    %c0_8 = arith.constant 0 : index
    %19 = vector.load %arg3[%c1, %c0_7, %c0_8] : memref<3x64x64xbf16, #tpu.memory_space<vmem>>, vector<1x64x64xbf16>
    %20 = vector.shape_cast %19 : vector<1x64x64xbf16> to vector<64x64xbf16>
    %cst_9 = arith.constant dense<0.000000e+00> : vector<4x64xf32>
    %21 = tpu.matmul %18, %20, %cst_9 {dimension_numbers = #tpu.dot_dimension_numbers<[1], [0], [0], [1], [0, 0, 1, 1], [], []>} : vector<4x64xbf16>, vector<64x64xbf16>, vector<4x64xf32> -> vector<4x64xf32>
    %22 = arith.truncf %16 : vector<4x64xf32> to vector<4x64xbf16>
    %c0_10 = arith.constant 0 : index
    %c0_11 = arith.constant 0 : index
    %c0_12 = arith.constant 0 : index
    %23 = vector.load %arg3[%c0_10, %c0_11, %c0_12] : memref<3x64x64xbf16, #tpu.memory_space<vmem>>, vector<1x64x64xbf16>
    %24 = vector.shape_cast %23 : vector<1x64x64xbf16> to vector<64x64xbf16>
    %cst_13 = arith.constant dense<0.000000e+00> : vector<4x64xf32>
    %25 = tpu.matmul %22, %24, %cst_13 {dimension_numbers = #tpu.dot_dimension_numbers<[1], [0], [0], [1], [0, 0, 1, 1], [], []>} : vector<4x64xbf16>, vector<64x64xbf16>, vector<4x64xf32> -> vector<4x64xf32>
    %26 = arith.addf %21, %25 : vector<4x64xf32>
    %27 = arith.truncf %17 : vector<4x64xf32> to vector<4x64xbf16>
    %c2 = arith.constant 2 : index
    %c0_14 = arith.constant 0 : index
    %c0_15 = arith.constant 0 : index
    %28 = vector.load %arg3[%c2, %c0_14, %c0_15] : memref<3x64x64xbf16, #tpu.memory_space<vmem>>, vector<1x64x64xbf16>
    %29 = vector.shape_cast %28 : vector<1x64x64xbf16> to vector<64x64xbf16>
    %cst_16 = arith.constant dense<0.000000e+00> : vector<4x64xf32>
    %30 = tpu.matmul %27, %29, %cst_16 {dimension_numbers = #tpu.dot_dimension_numbers<[1], [0], [0], [1], [0, 0, 1, 1], [], []>} : vector<4x64xbf16>, vector<64x64xbf16>, vector<4x64xf32> -> vector<4x64xf32>
    %31 = arith.addf %26, %30 : vector<4x64xf32>
    %cst_17 = arith.constant dense<0.000000e+00> : vector<4x64xf32>
    %32 = tpu.matmul %10, %3, %cst_17 {dimension_numbers = #tpu.dot_dimension_numbers<[1], [0], [0], [1], [0, 0, 1, 1], [], []>} : vector<4x4xf32>, vector<4x64xf32>, vector<4x64xf32> -> vector<4x64xf32>
    %cst_18 = arith.constant dense<0.000000e+00> : vector<4x64xf32>
    %33 = tpu.matmul %15, %3, %cst_18 {dimension_numbers = #tpu.dot_dimension_numbers<[1], [0], [0], [1], [0, 0, 1, 1], [], []>} : vector<4x4xf32>, vector<4x64xf32>, vector<4x64xf32> -> vector<4x64xf32>
    %34 = arith.truncf %3 : vector<4x64xf32> to vector<4x64xbf16>
    %c1_19 = arith.constant 1 : index
    %c0_20 = arith.constant 0 : index
    %c0_21 = arith.constant 0 : index
    %35 = vector.load %arg4[%c1_19, %c0_20, %c0_21] : memref<3x64x64xbf16, #tpu.memory_space<vmem>>, vector<1x64x64xbf16>
    %36 = vector.shape_cast %35 : vector<1x64x64xbf16> to vector<64x64xbf16>
    %cst_22 = arith.constant dense<0.000000e+00> : vector<4x64xf32>
    %37 = tpu.matmul %34, %36, %cst_22 {dimension_numbers = #tpu.dot_dimension_numbers<[1], [0], [0], [1], [0, 0, 1, 1], [], []>} : vector<4x64xbf16>, vector<64x64xbf16>, vector<4x64xf32> -> vector<4x64xf32>
    %38 = arith.truncf %32 : vector<4x64xf32> to vector<4x64xbf16>
    %c0_23 = arith.constant 0 : index
    %c0_24 = arith.constant 0 : index
    %c0_25 = arith.constant 0 : index
    %39 = vector.load %arg4[%c0_23, %c0_24, %c0_25] : memref<3x64x64xbf16, #tpu.memory_space<vmem>>, vector<1x64x64xbf16>
    %40 = vector.shape_cast %39 : vector<1x64x64xbf16> to vector<64x64xbf16>
    %cst_26 = arith.constant dense<0.000000e+00> : vector<4x64xf32>
    %41 = tpu.matmul %38, %40, %cst_26 {dimension_numbers = #tpu.dot_dimension_numbers<[1], [0], [0], [1], [0, 0, 1, 1], [], []>} : vector<4x64xbf16>, vector<64x64xbf16>, vector<4x64xf32> -> vector<4x64xf32>
    %42 = arith.addf %37, %41 : vector<4x64xf32>
    %43 = arith.truncf %33 : vector<4x64xf32> to vector<4x64xbf16>
    %c2_27 = arith.constant 2 : index
    %c0_28 = arith.constant 0 : index
    %c0_29 = arith.constant 0 : index
    %44 = vector.load %arg4[%c2_27, %c0_28, %c0_29] : memref<3x64x64xbf16, #tpu.memory_space<vmem>>, vector<1x64x64xbf16>
    %45 = vector.shape_cast %44 : vector<1x64x64xbf16> to vector<64x64xbf16>
    %cst_30 = arith.constant dense<0.000000e+00> : vector<4x64xf32>
    %46 = tpu.matmul %43, %45, %cst_30 {dimension_numbers = #tpu.dot_dimension_numbers<[1], [0], [0], [1], [0, 0, 1, 1], [], []>} : vector<4x64xbf16>, vector<64x64xbf16>, vector<4x64xf32> -> vector<4x64xf32>
    %47 = arith.addf %42, %46 : vector<4x64xf32>
    %48 = arith.addf %31, %47 : vector<4x64xf32>
    %c0_31 = arith.constant 0 : index
    %c0_32 = arith.constant 0 : index
    %49 = vector.load %arg5[%c0_31, %c0_32] : memref<1x64xf32, #tpu.memory_space<vmem>>, vector<1x64xf32>
    %50 = vector.broadcast %49 : vector<1x64xf32> to vector<4x64xf32>
    %51 = arith.mulf %48, %50 : vector<4x64xf32>
    %c0_33 = arith.constant 0 : index
    %c0_34 = arith.constant 0 : index
    %52 = vector.load %arg6[%c0_33, %c0_34] : memref<1x64xf32, #tpu.memory_space<vmem>>, vector<1x64xf32>
    %53 = vector.broadcast %52 : vector<1x64xf32> to vector<4x64xf32>
    %54 = arith.addf %51, %53 : vector<4x64xf32>
    %cst_35 = arith.constant 0.000000e+00 : f32
    %55 = vector.broadcast %cst_35 : f32 to vector<4x64xf32>
    %56 = arith.maximumf %54, %55 : vector<4x64xf32>
    %cst_36 = arith.constant dense<0.000000e+00> : vector<4x64xf32>
    %57 = tpu.matmul %10, %56, %cst_36 {dimension_numbers = #tpu.dot_dimension_numbers<[1], [0], [0], [1], [0, 0, 1, 1], [], []>} : vector<4x4xf32>, vector<4x64xf32>, vector<4x64xf32> -> vector<4x64xf32>
    %cst_37 = arith.constant dense<0.000000e+00> : vector<4x64xf32>
    %58 = tpu.matmul %15, %56, %cst_37 {dimension_numbers = #tpu.dot_dimension_numbers<[1], [0], [0], [1], [0, 0, 1, 1], [], []>} : vector<4x4xf32>, vector<4x64xf32>, vector<4x64xf32> -> vector<4x64xf32>
    %59 = arith.truncf %56 : vector<4x64xf32> to vector<4x64xbf16>
    %c1_38 = arith.constant 1 : index
    %c0_39 = arith.constant 0 : index
    %c0_40 = arith.constant 0 : index
    %60 = vector.load %arg7[%c1_38, %c0_39, %c0_40] : memref<3x64x64xbf16, #tpu.memory_space<vmem>>, vector<1x64x64xbf16>
    %61 = vector.shape_cast %60 : vector<1x64x64xbf16> to vector<64x64xbf16>
    %cst_41 = arith.constant dense<0.000000e+00> : vector<4x64xf32>
    %62 = tpu.matmul %59, %61, %cst_41 {dimension_numbers = #tpu.dot_dimension_numbers<[1], [0], [0], [1], [0, 0, 1, 1], [], []>} : vector<4x64xbf16>, vector<64x64xbf16>, vector<4x64xf32> -> vector<4x64xf32>
    %63 = arith.truncf %57 : vector<4x64xf32> to vector<4x64xbf16>
    %c0_42 = arith.constant 0 : index
    %c0_43 = arith.constant 0 : index
    %c0_44 = arith.constant 0 : index
    %64 = vector.load %arg7[%c0_42, %c0_43, %c0_44] : memref<3x64x64xbf16, #tpu.memory_space<vmem>>, vector<1x64x64xbf16>
    %65 = vector.shape_cast %64 : vector<1x64x64xbf16> to vector<64x64xbf16>
    %cst_45 = arith.constant dense<0.000000e+00> : vector<4x64xf32>
    %66 = tpu.matmul %63, %65, %cst_45 {dimension_numbers = #tpu.dot_dimension_numbers<[1], [0], [0], [1], [0, 0, 1, 1], [], []>} : vector<4x64xbf16>, vector<64x64xbf16>, vector<4x64xf32> -> vector<4x64xf32>
    %67 = arith.addf %62, %66 : vector<4x64xf32>
    %68 = arith.truncf %58 : vector<4x64xf32> to vector<4x64xbf16>
    %c2_46 = arith.constant 2 : index
    %c0_47 = arith.constant 0 : index
    %c0_48 = arith.constant 0 : index
    %69 = vector.load %arg7[%c2_46, %c0_47, %c0_48] : memref<3x64x64xbf16, #tpu.memory_space<vmem>>, vector<1x64x64xbf16>
    %70 = vector.shape_cast %69 : vector<1x64x64xbf16> to vector<64x64xbf16>
    %cst_49 = arith.constant dense<0.000000e+00> : vector<4x64xf32>
    %71 = tpu.matmul %68, %70, %cst_49 {dimension_numbers = #tpu.dot_dimension_numbers<[1], [0], [0], [1], [0, 0, 1, 1], [], []>} : vector<4x64xbf16>, vector<64x64xbf16>, vector<4x64xf32> -> vector<4x64xf32>
    %72 = arith.addf %67, %71 : vector<4x64xf32>
    %c0_50 = arith.constant 0 : index
    %c0_51 = arith.constant 0 : index
    %73 = vector.load %arg8[%c0_50, %c0_51] : memref<1x64xf32, #tpu.memory_space<vmem>>, vector<1x64xf32>
    %74 = vector.broadcast %73 : vector<1x64xf32> to vector<4x64xf32>
    %75 = arith.mulf %72, %74 : vector<4x64xf32>
    %c0_52 = arith.constant 0 : index
    %c0_53 = arith.constant 0 : index
    %76 = vector.load %arg9[%c0_52, %c0_53] : memref<1x64xf32, #tpu.memory_space<vmem>>, vector<1x64xf32>
    %77 = vector.broadcast %76 : vector<1x64xf32> to vector<4x64xf32>
    %78 = arith.addf %75, %77 : vector<4x64xf32>
    %cst_54 = arith.constant 0.000000e+00 : f32
    %79 = vector.broadcast %cst_54 : f32 to vector<4x64xf32>
    %80 = arith.maximumf %78, %79 : vector<4x64xf32>
    %c0_55 = arith.constant 0 : index
    %c0_56 = arith.constant 0 : index
    %c0_57 = arith.constant 0 : index
    %81 = vector.load %arg10[%c0_55, %c0_56, %c0_57] : memref<1x4x64xf32, #tpu.memory_space<vmem>>, vector<1x4x64xf32>
    %82 = vector.shape_cast %81 : vector<1x4x64xf32> to vector<4x64xf32>
    %83 = vector.shape_cast %80 : vector<4x64xf32> to vector<1x4x64xf32>
    tpu.vector_store %arg10[%c0_55, %c0_56, %c0_57], %83 {strides = array<i32>} : memref<1x4x64xf32, #tpu.memory_space<vmem>>, vector<1x4x64xf32>,
    return
  }
  func.func @transform_0(%arg0: i32) -> (i32, i32, i32) {
    %c0_i32 = arith.constant 0 : i32
    %c0_i32_0 = arith.constant 0 : i32
    %c0_i32_1 = arith.constant 0 : i32
    return %arg0, %c0_i32, %c0_i32_0 : i32, i32, i32
  }
  func.func @transform_1(%arg0: i32) -> (i32, i32, i32) {
    %c0_i32 = arith.constant 0 : i32
    %c0_i32_0 = arith.constant 0 : i32
    %c0_i32_1 = arith.constant 0 : i32
    return %arg0, %c0_i32, %c0_i32_0 : i32, i32, i32
  }
  func.func @transform_2(%arg0: i32) -> (i32, i32, i32) {
    %c0_i32 = arith.constant 0 : i32
    %c0_i32_0 = arith.constant 0 : i32
    %c0_i32_1 = arith.constant 0 : i32
    %c0_i32_2 = arith.constant 0 : i32
    return %c0_i32, %c0_i32_0, %c0_i32_1 : i32, i32, i32
  }
  func.func @transform_3(%arg0: i32) -> (i32, i32, i32) {
    %c0_i32 = arith.constant 0 : i32
    %c0_i32_0 = arith.constant 0 : i32
    %c0_i32_1 = arith.constant 0 : i32
    %c0_i32_2 = arith.constant 0 : i32
    return %c0_i32, %c0_i32_0, %c0_i32_1 : i32, i32, i32
  }
  func.func @transform_4(%arg0: i32) -> (i32, i32) {
    %c0_i32 = arith.constant 0 : i32
    %c0_i32_0 = arith.constant 0 : i32
    %c0_i32_1 = arith.constant 0 : i32
    return %c0_i32, %c0_i32_0 : i32, i32
  }
  func.func @transform_5(%arg0: i32) -> (i32, i32) {
    %c0_i32 = arith.constant 0 : i32
    %c0_i32_0 = arith.constant 0 : i32
    %c0_i32_1 = arith.constant 0 : i32
    return %c0_i32, %c0_i32_0 : i32, i32
  }
  func.func @transform_6(%arg0: i32) -> (i32, i32, i32) {
    %c0_i32 = arith.constant 0 : i32
    %c0_i32_0 = arith.constant 0 : i32
    %c0_i32_1 = arith.constant 0 : i32
    %c0_i32_2 = arith.constant 0 : i32
    return %c0_i32, %c0_i32_0, %c0_i32_1 : i32, i32, i32
  }
  func.func @transform_7(%arg0: i32) -> (i32, i32) {
    %c0_i32 = arith.constant 0 : i32
    %c0_i32_0 = arith.constant 0 : i32
    %c0_i32_1 = arith.constant 0 : i32
    return %c0_i32, %c0_i32_0 : i32, i32
  }
  func.func @transform_8(%arg0: i32) -> (i32, i32) {
    %c0_i32 = arith.constant 0 : i32
    %c0_i32_0 = arith.constant 0 : i32
    %c0_i32_1 = arith.constant 0 : i32
    return %c0_i32, %c0_i32_0 : i32, i32
  }
  func.func @transform_9(%arg0: i32) -> (i32, i32, i32) {
    %c0_i32 = arith.constant 0 : i32
    %c0_i32_0 = arith.constant 0 : i32
    %c0_i32_1 = arith.constant 0 : i32
    return %arg0, %c0_i32, %c0_i32_0 : i32, i32, i32
  }
}

module attributes {stable_mosaic.version = 11 : i64} {
  func.func @_convt2_kernel(%arg0: i32, %arg1: memref<1x4x64xf32, #tpu.memory_space<vmem>>, %arg2: memref<2x64x32xbf16, #tpu.memory_space<vmem>>, %arg3: memref<1x32xf32, #tpu.memory_space<vmem>>, %arg4: memref<1x4x2x32xf32, #tpu.memory_space<vmem>>) attributes {dimension_semantics = [#tpu.dimension_semantics<parallel>], iteration_bounds = array<i64: 2>, scalar_prefetch = 0 : i64, scratch_operands = 0 : i64, tpu.core_type = #tpu.core_type<tc>, window_params = [{transform_indices = @transform_0, window_bounds = array<i64: 1, 4, 64>}, {pipeline_mode = #tpu.pipeline_mode<synchronous>, transform_indices = @transform_1, window_bounds = array<i64: 2, 64, 32>}, {pipeline_mode = #tpu.pipeline_mode<synchronous>, transform_indices = @transform_2, window_bounds = array<i64: 1, 32>}, {transform_indices = @transform_3, window_bounds = array<i64: 1, 4, 2, 32>}]} {
    %c0 = arith.constant 0 : index
    %c0_0 = arith.constant 0 : index
    %c0_1 = arith.constant 0 : index
    %0 = vector.load %arg1[%c0, %c0_0, %c0_1] : memref<1x4x64xf32, #tpu.memory_space<vmem>>, vector<1x4x64xf32>
    %1 = vector.shape_cast %0 : vector<1x4x64xf32> to vector<4x64xf32>
    %2 = arith.truncf %1 : vector<4x64xf32> to vector<4x64xbf16>
    %c0_2 = arith.constant 0 : index
    %c0_3 = arith.constant 0 : index
    %3 = vector.load %arg3[%c0_2, %c0_3] : memref<1x32xf32, #tpu.memory_space<vmem>>, vector<1x32xf32>
    %c0_4 = arith.constant 0 : index
    %c0_5 = arith.constant 0 : index
    %c0_6 = arith.constant 0 : index
    %4 = vector.load %arg2[%c0_4, %c0_5, %c0_6] : memref<2x64x32xbf16, #tpu.memory_space<vmem>>, vector<1x64x32xbf16>
    %5 = vector.shape_cast %4 : vector<1x64x32xbf16> to vector<64x32xbf16>
    %cst = arith.constant dense<0.000000e+00> : vector<4x32xf32>
    %6 = tpu.matmul %2, %5, %cst {dimension_numbers = #tpu.dot_dimension_numbers<[1], [0], [0], [1], [0, 0, 1, 1], [], []>} : vector<4x64xbf16>, vector<64x32xbf16>, vector<4x32xf32> -> vector<4x32xf32>
    %7 = vector.broadcast %3 : vector<1x32xf32> to vector<4x32xf32>
    %8 = arith.addf %6, %7 : vector<4x32xf32>
    %c1 = arith.constant 1 : index
    %c0_7 = arith.constant 0 : index
    %c0_8 = arith.constant 0 : index
    %9 = vector.load %arg2[%c1, %c0_7, %c0_8] : memref<2x64x32xbf16, #tpu.memory_space<vmem>>, vector<1x64x32xbf16>
    %10 = vector.shape_cast %9 : vector<1x64x32xbf16> to vector<64x32xbf16>
    %cst_9 = arith.constant dense<0.000000e+00> : vector<4x32xf32>
    %11 = tpu.matmul %2, %10, %cst_9 {dimension_numbers = #tpu.dot_dimension_numbers<[1], [0], [0], [1], [0, 0, 1, 1], [], []>} : vector<4x64xbf16>, vector<64x32xbf16>, vector<4x32xf32> -> vector<4x32xf32>
    %12 = vector.broadcast %3 : vector<1x32xf32> to vector<4x32xf32>
    %13 = arith.addf %11, %12 : vector<4x32xf32>
    %c0_10 = arith.constant 0 : index
    %c0_11 = arith.constant 0 : index
    %c0_12 = arith.constant 0 : index
    %c0_13 = arith.constant 0 : index
    %14 = vector.load %arg4[%c0_10, %c0_11, %c0_12, %c0_13] : memref<1x4x2x32xf32, #tpu.memory_space<vmem>>, vector<1x4x1x32xf32>
    %15 = vector.shape_cast %14 : vector<1x4x1x32xf32> to vector<4x32xf32>
    %16 = vector.shape_cast %8 : vector<4x32xf32> to vector<1x4x1x32xf32>
    tpu.vector_store %arg4[%c0_10, %c0_11, %c0_12, %c0_13], %16 {strides = array<i32>} : memref<1x4x2x32xf32, #tpu.memory_space<vmem>>, vector<1x4x1x32xf32>,
    %c0_14 = arith.constant 0 : index
    %c0_15 = arith.constant 0 : index
    %c1_16 = arith.constant 1 : index
    %c0_17 = arith.constant 0 : index
    %17 = vector.load %arg4[%c0_14, %c0_15, %c1_16, %c0_17] : memref<1x4x2x32xf32, #tpu.memory_space<vmem>>, vector<1x4x1x32xf32>
    %18 = vector.shape_cast %17 : vector<1x4x1x32xf32> to vector<4x32xf32>
    %19 = vector.shape_cast %13 : vector<4x32xf32> to vector<1x4x1x32xf32>
    tpu.vector_store %arg4[%c0_14, %c0_15, %c1_16, %c0_17], %19 {strides = array<i32>} : memref<1x4x2x32xf32, #tpu.memory_space<vmem>>, vector<1x4x1x32xf32>,
    return
  }
  func.func @transform_0(%arg0: i32) -> (i32, i32, i32) {
    %c0_i32 = arith.constant 0 : i32
    %c0_i32_0 = arith.constant 0 : i32
    %c0_i32_1 = arith.constant 0 : i32
    return %arg0, %c0_i32, %c0_i32_0 : i32, i32, i32
  }
  func.func @transform_1(%arg0: i32) -> (i32, i32, i32) {
    %c0_i32 = arith.constant 0 : i32
    %c0_i32_0 = arith.constant 0 : i32
    %c0_i32_1 = arith.constant 0 : i32
    %c0_i32_2 = arith.constant 0 : i32
    return %c0_i32, %c0_i32_0, %c0_i32_1 : i32, i32, i32
  }
  func.func @transform_2(%arg0: i32) -> (i32, i32) {
    %c0_i32 = arith.constant 0 : i32
    %c0_i32_0 = arith.constant 0 : i32
    %c0_i32_1 = arith.constant 0 : i32
    return %c0_i32, %c0_i32_0 : i32, i32
  }
  func.func @transform_3(%arg0: i32) -> (i32, i32, i32, i32) {
    %c0_i32 = arith.constant 0 : i32
    %c0_i32_0 = arith.constant 0 : i32
    %c0_i32_1 = arith.constant 0 : i32
    %c0_i32_2 = arith.constant 0 : i32
    return %arg0, %c0_i32, %c0_i32_0, %c0_i32_1 : i32, i32, i32, i32
  }
}

module attributes {stable_mosaic.version = 11 : i64} {
  func.func @_up_block_kernel(%arg0: i32, %arg1: memref<1x8x32xf32, #tpu.memory_space<vmem>>, %arg2: memref<1x8x32xf32, #tpu.memory_space<vmem>>, %arg3: memref<3x32x32xbf16, #tpu.memory_space<vmem>>, %arg4: memref<3x32x32xbf16, #tpu.memory_space<vmem>>, %arg5: memref<1x32xf32, #tpu.memory_space<vmem>>, %arg6: memref<1x32xf32, #tpu.memory_space<vmem>>, %arg7: memref<3x32x32xbf16, #tpu.memory_space<vmem>>, %arg8: memref<1x32xf32, #tpu.memory_space<vmem>>, %arg9: memref<1x32xf32, #tpu.memory_space<vmem>>, %arg10: memref<1x8x32xf32, #tpu.memory_space<vmem>>) attributes {dimension_semantics = [#tpu.dimension_semantics<parallel>], iteration_bounds = array<i64: 2>, scalar_prefetch = 0 : i64, scratch_operands = 0 : i64, tpu.core_type = #tpu.core_type<tc>, window_params = [{transform_indices = @transform_0, window_bounds = array<i64: 1, 8, 32>}, {transform_indices = @transform_1, window_bounds = array<i64: 1, 8, 32>}, {pipeline_mode = #tpu.pipeline_mode<synchronous>, transform_indices = @transform_2, window_bounds = array<i64: 3, 32, 32>}, {pipeline_mode = #tpu.pipeline_mode<synchronous>, transform_indices = @transform_3, window_bounds = array<i64: 3, 32, 32>}, {pipeline_mode = #tpu.pipeline_mode<synchronous>, transform_indices = @transform_4, window_bounds = array<i64: 1, 32>}, {pipeline_mode = #tpu.pipeline_mode<synchronous>, transform_indices = @transform_5, window_bounds = array<i64: 1, 32>}, {pipeline_mode = #tpu.pipeline_mode<synchronous>, transform_indices = @transform_6, window_bounds = array<i64: 3, 32, 32>}, {pipeline_mode = #tpu.pipeline_mode<synchronous>, transform_indices = @transform_7, window_bounds = array<i64: 1, 32>}, {pipeline_mode = #tpu.pipeline_mode<synchronous>, transform_indices = @transform_8, window_bounds = array<i64: 1, 32>}, {transform_indices = @transform_9, window_bounds = array<i64: 1, 8, 32>}]} {
    %c0 = arith.constant 0 : index
    %c0_0 = arith.constant 0 : index
    %c0_1 = arith.constant 0 : index
    %0 = vector.load %arg1[%c0, %c0_0, %c0_1] : memref<1x8x32xf32, #tpu.memory_space<vmem>>, vector<1x8x32xf32>
    %1 = vector.shape_cast %0 : vector<1x8x32xf32> to vector<8x32xf32>
    %c0_2 = arith.constant 0 : index
    %c0_3 = arith.constant 0 : index
    %c0_4 = arith.constant 0 : index
    %2 = vector.load %arg2[%c0_2, %c0_3, %c0_4] : memref<1x8x32xf32, #tpu.memory_space<vmem>>, vector<1x8x32xf32>
    %3 = vector.shape_cast %2 : vector<1x8x32xf32> to vector<8x32xf32>
    %4 = tpu.iota {dimensions = array<i32: 0>} : vector<8x8xi32>
    %5 = tpu.iota {dimensions = array<i32: 1>} : vector<8x8xi32>
    %c1_i32 = arith.constant 1 : i32
    %6 = vector.broadcast %c1_i32 : i32 to vector<8x8xi32>
    %7 = arith.subi %4, %6 : vector<8x8xi32>
    %8 = arith.cmpi eq, %5, %7 : vector<8x8xi32>
    %9 = arith.extui %8 : vector<8x8xi1> to vector<8x8xi32>
    %10 = arith.sitofp %9 : vector<8x8xi32> to vector<8x8xf32>
    %c1_i32_5 = arith.constant 1 : i32
    %11 = vector.broadcast %c1_i32_5 : i32 to vector<8x8xi32>
    %12 = arith.addi %4, %11 : vector<8x8xi32>
    %13 = arith.cmpi eq, %5, %12 : vector<8x8xi32>
    %14 = arith.extui %13 : vector<8x8xi1> to vector<8x8xi32>
    %15 = arith.sitofp %14 : vector<8x8xi32> to vector<8x8xf32>
    %cst = arith.constant dense<0.000000e+00> : vector<8x32xf32>
    %16 = tpu.matmul %10, %1, %cst {dimension_numbers = #tpu.dot_dimension_numbers<[1], [0], [0], [1], [0, 0, 1, 1], [], []>} : vector<8x8xf32>, vector<8x32xf32>, vector<8x32xf32> -> vector<8x32xf32>
    %cst_6 = arith.constant dense<0.000000e+00> : vector<8x32xf32>
    %17 = tpu.matmul %15, %1, %cst_6 {dimension_numbers = #tpu.dot_dimension_numbers<[1], [0], [0], [1], [0, 0, 1, 1], [], []>} : vector<8x8xf32>, vector<8x32xf32>, vector<8x32xf32> -> vector<8x32xf32>
    %18 = arith.truncf %1 : vector<8x32xf32> to vector<8x32xbf16>
    %c1 = arith.constant 1 : index
    %c0_7 = arith.constant 0 : index
    %c0_8 = arith.constant 0 : index
    %19 = vector.load %arg3[%c1, %c0_7, %c0_8] : memref<3x32x32xbf16, #tpu.memory_space<vmem>>, vector<1x32x32xbf16>
    %20 = vector.shape_cast %19 : vector<1x32x32xbf16> to vector<32x32xbf16>
    %cst_9 = arith.constant dense<0.000000e+00> : vector<8x32xf32>
    %21 = tpu.matmul %18, %20, %cst_9 {dimension_numbers = #tpu.dot_dimension_numbers<[1], [0], [0], [1], [0, 0, 1, 1], [], []>} : vector<8x32xbf16>, vector<32x32xbf16>, vector<8x32xf32> -> vector<8x32xf32>
    %22 = arith.truncf %16 : vector<8x32xf32> to vector<8x32xbf16>
    %c0_10 = arith.constant 0 : index
    %c0_11 = arith.constant 0 : index
    %c0_12 = arith.constant 0 : index
    %23 = vector.load %arg3[%c0_10, %c0_11, %c0_12] : memref<3x32x32xbf16, #tpu.memory_space<vmem>>, vector<1x32x32xbf16>
    %24 = vector.shape_cast %23 : vector<1x32x32xbf16> to vector<32x32xbf16>
    %cst_13 = arith.constant dense<0.000000e+00> : vector<8x32xf32>
    %25 = tpu.matmul %22, %24, %cst_13 {dimension_numbers = #tpu.dot_dimension_numbers<[1], [0], [0], [1], [0, 0, 1, 1], [], []>} : vector<8x32xbf16>, vector<32x32xbf16>, vector<8x32xf32> -> vector<8x32xf32>
    %26 = arith.addf %21, %25 : vector<8x32xf32>
    %27 = arith.truncf %17 : vector<8x32xf32> to vector<8x32xbf16>
    %c2 = arith.constant 2 : index
    %c0_14 = arith.constant 0 : index
    %c0_15 = arith.constant 0 : index
    %28 = vector.load %arg3[%c2, %c0_14, %c0_15] : memref<3x32x32xbf16, #tpu.memory_space<vmem>>, vector<1x32x32xbf16>
    %29 = vector.shape_cast %28 : vector<1x32x32xbf16> to vector<32x32xbf16>
    %cst_16 = arith.constant dense<0.000000e+00> : vector<8x32xf32>
    %30 = tpu.matmul %27, %29, %cst_16 {dimension_numbers = #tpu.dot_dimension_numbers<[1], [0], [0], [1], [0, 0, 1, 1], [], []>} : vector<8x32xbf16>, vector<32x32xbf16>, vector<8x32xf32> -> vector<8x32xf32>
    %31 = arith.addf %26, %30 : vector<8x32xf32>
    %cst_17 = arith.constant dense<0.000000e+00> : vector<8x32xf32>
    %32 = tpu.matmul %10, %3, %cst_17 {dimension_numbers = #tpu.dot_dimension_numbers<[1], [0], [0], [1], [0, 0, 1, 1], [], []>} : vector<8x8xf32>, vector<8x32xf32>, vector<8x32xf32> -> vector<8x32xf32>
    %cst_18 = arith.constant dense<0.000000e+00> : vector<8x32xf32>
    %33 = tpu.matmul %15, %3, %cst_18 {dimension_numbers = #tpu.dot_dimension_numbers<[1], [0], [0], [1], [0, 0, 1, 1], [], []>} : vector<8x8xf32>, vector<8x32xf32>, vector<8x32xf32> -> vector<8x32xf32>
    %34 = arith.truncf %3 : vector<8x32xf32> to vector<8x32xbf16>
    %c1_19 = arith.constant 1 : index
    %c0_20 = arith.constant 0 : index
    %c0_21 = arith.constant 0 : index
    %35 = vector.load %arg4[%c1_19, %c0_20, %c0_21] : memref<3x32x32xbf16, #tpu.memory_space<vmem>>, vector<1x32x32xbf16>
    %36 = vector.shape_cast %35 : vector<1x32x32xbf16> to vector<32x32xbf16>
    %cst_22 = arith.constant dense<0.000000e+00> : vector<8x32xf32>
    %37 = tpu.matmul %34, %36, %cst_22 {dimension_numbers = #tpu.dot_dimension_numbers<[1], [0], [0], [1], [0, 0, 1, 1], [], []>} : vector<8x32xbf16>, vector<32x32xbf16>, vector<8x32xf32> -> vector<8x32xf32>
    %38 = arith.truncf %32 : vector<8x32xf32> to vector<8x32xbf16>
    %c0_23 = arith.constant 0 : index
    %c0_24 = arith.constant 0 : index
    %c0_25 = arith.constant 0 : index
    %39 = vector.load %arg4[%c0_23, %c0_24, %c0_25] : memref<3x32x32xbf16, #tpu.memory_space<vmem>>, vector<1x32x32xbf16>
    %40 = vector.shape_cast %39 : vector<1x32x32xbf16> to vector<32x32xbf16>
    %cst_26 = arith.constant dense<0.000000e+00> : vector<8x32xf32>
    %41 = tpu.matmul %38, %40, %cst_26 {dimension_numbers = #tpu.dot_dimension_numbers<[1], [0], [0], [1], [0, 0, 1, 1], [], []>} : vector<8x32xbf16>, vector<32x32xbf16>, vector<8x32xf32> -> vector<8x32xf32>
    %42 = arith.addf %37, %41 : vector<8x32xf32>
    %43 = arith.truncf %33 : vector<8x32xf32> to vector<8x32xbf16>
    %c2_27 = arith.constant 2 : index
    %c0_28 = arith.constant 0 : index
    %c0_29 = arith.constant 0 : index
    %44 = vector.load %arg4[%c2_27, %c0_28, %c0_29] : memref<3x32x32xbf16, #tpu.memory_space<vmem>>, vector<1x32x32xbf16>
    %45 = vector.shape_cast %44 : vector<1x32x32xbf16> to vector<32x32xbf16>
    %cst_30 = arith.constant dense<0.000000e+00> : vector<8x32xf32>
    %46 = tpu.matmul %43, %45, %cst_30 {dimension_numbers = #tpu.dot_dimension_numbers<[1], [0], [0], [1], [0, 0, 1, 1], [], []>} : vector<8x32xbf16>, vector<32x32xbf16>, vector<8x32xf32> -> vector<8x32xf32>
    %47 = arith.addf %42, %46 : vector<8x32xf32>
    %48 = arith.addf %31, %47 : vector<8x32xf32>
    %c0_31 = arith.constant 0 : index
    %c0_32 = arith.constant 0 : index
    %49 = vector.load %arg5[%c0_31, %c0_32] : memref<1x32xf32, #tpu.memory_space<vmem>>, vector<1x32xf32>
    %50 = vector.broadcast %49 : vector<1x32xf32> to vector<8x32xf32>
    %51 = arith.mulf %48, %50 : vector<8x32xf32>
    %c0_33 = arith.constant 0 : index
    %c0_34 = arith.constant 0 : index
    %52 = vector.load %arg6[%c0_33, %c0_34] : memref<1x32xf32, #tpu.memory_space<vmem>>, vector<1x32xf32>
    %53 = vector.broadcast %52 : vector<1x32xf32> to vector<8x32xf32>
    %54 = arith.addf %51, %53 : vector<8x32xf32>
    %cst_35 = arith.constant 0.000000e+00 : f32
    %55 = vector.broadcast %cst_35 : f32 to vector<8x32xf32>
    %56 = arith.maximumf %54, %55 : vector<8x32xf32>
    %cst_36 = arith.constant dense<0.000000e+00> : vector<8x32xf32>
    %57 = tpu.matmul %10, %56, %cst_36 {dimension_numbers = #tpu.dot_dimension_numbers<[1], [0], [0], [1], [0, 0, 1, 1], [], []>} : vector<8x8xf32>, vector<8x32xf32>, vector<8x32xf32> -> vector<8x32xf32>
    %cst_37 = arith.constant dense<0.000000e+00> : vector<8x32xf32>
    %58 = tpu.matmul %15, %56, %cst_37 {dimension_numbers = #tpu.dot_dimension_numbers<[1], [0], [0], [1], [0, 0, 1, 1], [], []>} : vector<8x8xf32>, vector<8x32xf32>, vector<8x32xf32> -> vector<8x32xf32>
    %59 = arith.truncf %56 : vector<8x32xf32> to vector<8x32xbf16>
    %c1_38 = arith.constant 1 : index
    %c0_39 = arith.constant 0 : index
    %c0_40 = arith.constant 0 : index
    %60 = vector.load %arg7[%c1_38, %c0_39, %c0_40] : memref<3x32x32xbf16, #tpu.memory_space<vmem>>, vector<1x32x32xbf16>
    %61 = vector.shape_cast %60 : vector<1x32x32xbf16> to vector<32x32xbf16>
    %cst_41 = arith.constant dense<0.000000e+00> : vector<8x32xf32>
    %62 = tpu.matmul %59, %61, %cst_41 {dimension_numbers = #tpu.dot_dimension_numbers<[1], [0], [0], [1], [0, 0, 1, 1], [], []>} : vector<8x32xbf16>, vector<32x32xbf16>, vector<8x32xf32> -> vector<8x32xf32>
    %63 = arith.truncf %57 : vector<8x32xf32> to vector<8x32xbf16>
    %c0_42 = arith.constant 0 : index
    %c0_43 = arith.constant 0 : index
    %c0_44 = arith.constant 0 : index
    %64 = vector.load %arg7[%c0_42, %c0_43, %c0_44] : memref<3x32x32xbf16, #tpu.memory_space<vmem>>, vector<1x32x32xbf16>
    %65 = vector.shape_cast %64 : vector<1x32x32xbf16> to vector<32x32xbf16>
    %cst_45 = arith.constant dense<0.000000e+00> : vector<8x32xf32>
    %66 = tpu.matmul %63, %65, %cst_45 {dimension_numbers = #tpu.dot_dimension_numbers<[1], [0], [0], [1], [0, 0, 1, 1], [], []>} : vector<8x32xbf16>, vector<32x32xbf16>, vector<8x32xf32> -> vector<8x32xf32>
    %67 = arith.addf %62, %66 : vector<8x32xf32>
    %68 = arith.truncf %58 : vector<8x32xf32> to vector<8x32xbf16>
    %c2_46 = arith.constant 2 : index
    %c0_47 = arith.constant 0 : index
    %c0_48 = arith.constant 0 : index
    %69 = vector.load %arg7[%c2_46, %c0_47, %c0_48] : memref<3x32x32xbf16, #tpu.memory_space<vmem>>, vector<1x32x32xbf16>
    %70 = vector.shape_cast %69 : vector<1x32x32xbf16> to vector<32x32xbf16>
    %cst_49 = arith.constant dense<0.000000e+00> : vector<8x32xf32>
    %71 = tpu.matmul %68, %70, %cst_49 {dimension_numbers = #tpu.dot_dimension_numbers<[1], [0], [0], [1], [0, 0, 1, 1], [], []>} : vector<8x32xbf16>, vector<32x32xbf16>, vector<8x32xf32> -> vector<8x32xf32>
    %72 = arith.addf %67, %71 : vector<8x32xf32>
    %c0_50 = arith.constant 0 : index
    %c0_51 = arith.constant 0 : index
    %73 = vector.load %arg8[%c0_50, %c0_51] : memref<1x32xf32, #tpu.memory_space<vmem>>, vector<1x32xf32>
    %74 = vector.broadcast %73 : vector<1x32xf32> to vector<8x32xf32>
    %75 = arith.mulf %72, %74 : vector<8x32xf32>
    %c0_52 = arith.constant 0 : index
    %c0_53 = arith.constant 0 : index
    %76 = vector.load %arg9[%c0_52, %c0_53] : memref<1x32xf32, #tpu.memory_space<vmem>>, vector<1x32xf32>
    %77 = vector.broadcast %76 : vector<1x32xf32> to vector<8x32xf32>
    %78 = arith.addf %75, %77 : vector<8x32xf32>
    %cst_54 = arith.constant 0.000000e+00 : f32
    %79 = vector.broadcast %cst_54 : f32 to vector<8x32xf32>
    %80 = arith.maximumf %78, %79 : vector<8x32xf32>
    %c0_55 = arith.constant 0 : index
    %c0_56 = arith.constant 0 : index
    %c0_57 = arith.constant 0 : index
    %81 = vector.load %arg10[%c0_55, %c0_56, %c0_57] : memref<1x8x32xf32, #tpu.memory_space<vmem>>, vector<1x8x32xf32>
    %82 = vector.shape_cast %81 : vector<1x8x32xf32> to vector<8x32xf32>
    %83 = vector.shape_cast %80 : vector<8x32xf32> to vector<1x8x32xf32>
    tpu.vector_store %arg10[%c0_55, %c0_56, %c0_57], %83 {strides = array<i32>} : memref<1x8x32xf32, #tpu.memory_space<vmem>>, vector<1x8x32xf32>,
    return
  }
  func.func @transform_0(%arg0: i32) -> (i32, i32, i32) {
    %c0_i32 = arith.constant 0 : i32
    %c0_i32_0 = arith.constant 0 : i32
    %c0_i32_1 = arith.constant 0 : i32
    return %arg0, %c0_i32, %c0_i32_0 : i32, i32, i32
  }
  func.func @transform_1(%arg0: i32) -> (i32, i32, i32) {
    %c0_i32 = arith.constant 0 : i32
    %c0_i32_0 = arith.constant 0 : i32
    %c0_i32_1 = arith.constant 0 : i32
    return %arg0, %c0_i32, %c0_i32_0 : i32, i32, i32
  }
  func.func @transform_2(%arg0: i32) -> (i32, i32, i32) {
    %c0_i32 = arith.constant 0 : i32
    %c0_i32_0 = arith.constant 0 : i32
    %c0_i32_1 = arith.constant 0 : i32
    %c0_i32_2 = arith.constant 0 : i32
    return %c0_i32, %c0_i32_0, %c0_i32_1 : i32, i32, i32
  }
  func.func @transform_3(%arg0: i32) -> (i32, i32, i32) {
    %c0_i32 = arith.constant 0 : i32
    %c0_i32_0 = arith.constant 0 : i32
    %c0_i32_1 = arith.constant 0 : i32
    %c0_i32_2 = arith.constant 0 : i32
    return %c0_i32, %c0_i32_0, %c0_i32_1 : i32, i32, i32
  }
  func.func @transform_4(%arg0: i32) -> (i32, i32) {
    %c0_i32 = arith.constant 0 : i32
    %c0_i32_0 = arith.constant 0 : i32
    %c0_i32_1 = arith.constant 0 : i32
    return %c0_i32, %c0_i32_0 : i32, i32
  }
  func.func @transform_5(%arg0: i32) -> (i32, i32) {
    %c0_i32 = arith.constant 0 : i32
    %c0_i32_0 = arith.constant 0 : i32
    %c0_i32_1 = arith.constant 0 : i32
    return %c0_i32, %c0_i32_0 : i32, i32
  }
  func.func @transform_6(%arg0: i32) -> (i32, i32, i32) {
    %c0_i32 = arith.constant 0 : i32
    %c0_i32_0 = arith.constant 0 : i32
    %c0_i32_1 = arith.constant 0 : i32
    %c0_i32_2 = arith.constant 0 : i32
    return %c0_i32, %c0_i32_0, %c0_i32_1 : i32, i32, i32
  }
  func.func @transform_7(%arg0: i32) -> (i32, i32) {
    %c0_i32 = arith.constant 0 : i32
    %c0_i32_0 = arith.constant 0 : i32
    %c0_i32_1 = arith.constant 0 : i32
    return %c0_i32, %c0_i32_0 : i32, i32
  }
  func.func @transform_8(%arg0: i32) -> (i32, i32) {
    %c0_i32 = arith.constant 0 : i32
    %c0_i32_0 = arith.constant 0 : i32
    %c0_i32_1 = arith.constant 0 : i32
    return %c0_i32, %c0_i32_0 : i32, i32
  }
  func.func @transform_9(%arg0: i32) -> (i32, i32, i32) {
    %c0_i32 = arith.constant 0 : i32
    %c0_i32_0 = arith.constant 0 : i32
    %c0_i32_1 = arith.constant 0 : i32
    return %arg0, %c0_i32, %c0_i32_0 : i32, i32, i32
  }
}

module attributes {stable_mosaic.version = 11 : i64} {
  func.func @_convt2_kernel(%arg0: i32, %arg1: memref<1x8x32xf32, #tpu.memory_space<vmem>>, %arg2: memref<2x32x16xbf16, #tpu.memory_space<vmem>>, %arg3: memref<1x16xf32, #tpu.memory_space<vmem>>, %arg4: memref<1x8x2x16xf32, #tpu.memory_space<vmem>>) attributes {dimension_semantics = [#tpu.dimension_semantics<parallel>], iteration_bounds = array<i64: 2>, scalar_prefetch = 0 : i64, scratch_operands = 0 : i64, tpu.core_type = #tpu.core_type<tc>, window_params = [{transform_indices = @transform_0, window_bounds = array<i64: 1, 8, 32>}, {pipeline_mode = #tpu.pipeline_mode<synchronous>, transform_indices = @transform_1, window_bounds = array<i64: 2, 32, 16>}, {pipeline_mode = #tpu.pipeline_mode<synchronous>, transform_indices = @transform_2, window_bounds = array<i64: 1, 16>}, {transform_indices = @transform_3, window_bounds = array<i64: 1, 8, 2, 16>}]} {
    %c0 = arith.constant 0 : index
    %c0_0 = arith.constant 0 : index
    %c0_1 = arith.constant 0 : index
    %0 = vector.load %arg1[%c0, %c0_0, %c0_1] : memref<1x8x32xf32, #tpu.memory_space<vmem>>, vector<1x8x32xf32>
    %1 = vector.shape_cast %0 : vector<1x8x32xf32> to vector<8x32xf32>
    %2 = arith.truncf %1 : vector<8x32xf32> to vector<8x32xbf16>
    %c0_2 = arith.constant 0 : index
    %c0_3 = arith.constant 0 : index
    %3 = vector.load %arg3[%c0_2, %c0_3] : memref<1x16xf32, #tpu.memory_space<vmem>>, vector<1x16xf32>
    %c0_4 = arith.constant 0 : index
    %c0_5 = arith.constant 0 : index
    %c0_6 = arith.constant 0 : index
    %4 = vector.load %arg2[%c0_4, %c0_5, %c0_6] : memref<2x32x16xbf16, #tpu.memory_space<vmem>>, vector<1x32x16xbf16>
    %5 = vector.shape_cast %4 : vector<1x32x16xbf16> to vector<32x16xbf16>
    %cst = arith.constant dense<0.000000e+00> : vector<8x16xf32>
    %6 = tpu.matmul %2, %5, %cst {dimension_numbers = #tpu.dot_dimension_numbers<[1], [0], [0], [1], [0, 0, 1, 1], [], []>} : vector<8x32xbf16>, vector<32x16xbf16>, vector<8x16xf32> -> vector<8x16xf32>
    %7 = vector.broadcast %3 : vector<1x16xf32> to vector<8x16xf32>
    %8 = arith.addf %6, %7 : vector<8x16xf32>
    %c1 = arith.constant 1 : index
    %c0_7 = arith.constant 0 : index
    %c0_8 = arith.constant 0 : index
    %9 = vector.load %arg2[%c1, %c0_7, %c0_8] : memref<2x32x16xbf16, #tpu.memory_space<vmem>>, vector<1x32x16xbf16>
    %10 = vector.shape_cast %9 : vector<1x32x16xbf16> to vector<32x16xbf16>
    %cst_9 = arith.constant dense<0.000000e+00> : vector<8x16xf32>
    %11 = tpu.matmul %2, %10, %cst_9 {dimension_numbers = #tpu.dot_dimension_numbers<[1], [0], [0], [1], [0, 0, 1, 1], [], []>} : vector<8x32xbf16>, vector<32x16xbf16>, vector<8x16xf32> -> vector<8x16xf32>
    %12 = vector.broadcast %3 : vector<1x16xf32> to vector<8x16xf32>
    %13 = arith.addf %11, %12 : vector<8x16xf32>
    %c0_10 = arith.constant 0 : index
    %c0_11 = arith.constant 0 : index
    %c0_12 = arith.constant 0 : index
    %c0_13 = arith.constant 0 : index
    %14 = vector.load %arg4[%c0_10, %c0_11, %c0_12, %c0_13] : memref<1x8x2x16xf32, #tpu.memory_space<vmem>>, vector<1x8x1x16xf32>
    %15 = vector.shape_cast %14 : vector<1x8x1x16xf32> to vector<8x16xf32>
    %16 = vector.shape_cast %8 : vector<8x16xf32> to vector<1x8x1x16xf32>
    tpu.vector_store %arg4[%c0_10, %c0_11, %c0_12, %c0_13], %16 {strides = array<i32>} : memref<1x8x2x16xf32, #tpu.memory_space<vmem>>, vector<1x8x1x16xf32>,
    %c0_14 = arith.constant 0 : index
    %c0_15 = arith.constant 0 : index
    %c1_16 = arith.constant 1 : index
    %c0_17 = arith.constant 0 : index
    %17 = vector.load %arg4[%c0_14, %c0_15, %c1_16, %c0_17] : memref<1x8x2x16xf32, #tpu.memory_space<vmem>>, vector<1x8x1x16xf32>
    %18 = vector.shape_cast %17 : vector<1x8x1x16xf32> to vector<8x16xf32>
    %19 = vector.shape_cast %13 : vector<8x16xf32> to vector<1x8x1x16xf32>
    tpu.vector_store %arg4[%c0_14, %c0_15, %c1_16, %c0_17], %19 {strides = array<i32>} : memref<1x8x2x16xf32, #tpu.memory_space<vmem>>, vector<1x8x1x16xf32>,
    return
  }
  func.func @transform_0(%arg0: i32) -> (i32, i32, i32) {
    %c0_i32 = arith.constant 0 : i32
    %c0_i32_0 = arith.constant 0 : i32
    %c0_i32_1 = arith.constant 0 : i32
    return %arg0, %c0_i32, %c0_i32_0 : i32, i32, i32
  }
  func.func @transform_1(%arg0: i32) -> (i32, i32, i32) {
    %c0_i32 = arith.constant 0 : i32
    %c0_i32_0 = arith.constant 0 : i32
    %c0_i32_1 = arith.constant 0 : i32
    %c0_i32_2 = arith.constant 0 : i32
    return %c0_i32, %c0_i32_0, %c0_i32_1 : i32, i32, i32
  }
  func.func @transform_2(%arg0: i32) -> (i32, i32) {
    %c0_i32 = arith.constant 0 : i32
    %c0_i32_0 = arith.constant 0 : i32
    %c0_i32_1 = arith.constant 0 : i32
    return %c0_i32, %c0_i32_0 : i32, i32
  }
  func.func @transform_3(%arg0: i32) -> (i32, i32, i32, i32) {
    %c0_i32 = arith.constant 0 : i32
    %c0_i32_0 = arith.constant 0 : i32
    %c0_i32_1 = arith.constant 0 : i32
    %c0_i32_2 = arith.constant 0 : i32
    return %arg0, %c0_i32, %c0_i32_0, %c0_i32_1 : i32, i32, i32, i32
  }
}

module attributes {stable_mosaic.version = 11 : i64} {
  func.func @_up_final_kernel(%arg0: i32, %arg1: memref<1x16x16xf32, #tpu.memory_space<vmem>>, %arg2: memref<1x16x16xf32, #tpu.memory_space<vmem>>, %arg3: memref<3x16x16xbf16, #tpu.memory_space<vmem>>, %arg4: memref<3x16x16xbf16, #tpu.memory_space<vmem>>, %arg5: memref<1x16xf32, #tpu.memory_space<vmem>>, %arg6: memref<1x16xf32, #tpu.memory_space<vmem>>, %arg7: memref<3x16x16xbf16, #tpu.memory_space<vmem>>, %arg8: memref<1x16xf32, #tpu.memory_space<vmem>>, %arg9: memref<1x16xf32, #tpu.memory_space<vmem>>, %arg10: memref<16x1xf32, #tpu.memory_space<vmem>>, %arg11: memref<1x1xf32, #tpu.memory_space<vmem>>, %arg12: memref<1x16x1xf32, #tpu.memory_space<vmem>>) attributes {dimension_semantics = [#tpu.dimension_semantics<parallel>], iteration_bounds = array<i64: 2>, scalar_prefetch = 0 : i64, scratch_operands = 0 : i64, tpu.core_type = #tpu.core_type<tc>, window_params = [{transform_indices = @transform_0, window_bounds = array<i64: 1, 16, 16>}, {transform_indices = @transform_1, window_bounds = array<i64: 1, 16, 16>}, {pipeline_mode = #tpu.pipeline_mode<synchronous>, transform_indices = @transform_2, window_bounds = array<i64: 3, 16, 16>}, {pipeline_mode = #tpu.pipeline_mode<synchronous>, transform_indices = @transform_3, window_bounds = array<i64: 3, 16, 16>}, {pipeline_mode = #tpu.pipeline_mode<synchronous>, transform_indices = @transform_4, window_bounds = array<i64: 1, 16>}, {pipeline_mode = #tpu.pipeline_mode<synchronous>, transform_indices = @transform_5, window_bounds = array<i64: 1, 16>}, {pipeline_mode = #tpu.pipeline_mode<synchronous>, transform_indices = @transform_6, window_bounds = array<i64: 3, 16, 16>}, {pipeline_mode = #tpu.pipeline_mode<synchronous>, transform_indices = @transform_7, window_bounds = array<i64: 1, 16>}, {pipeline_mode = #tpu.pipeline_mode<synchronous>, transform_indices = @transform_8, window_bounds = array<i64: 1, 16>}, {pipeline_mode = #tpu.pipeline_mode<synchronous>, transform_indices = @transform_9, window_bounds = array<i64: 16, 1>}, {pipeline_mode = #tpu.pipeline_mode<synchronous>, transform_indices = @transform_10, window_bounds = array<i64: 1, 1>}, {transform_indices = @transform_11, window_bounds = array<i64: 1, 16, 1>}]} {
    %c0 = arith.constant 0 : index
    %c0_0 = arith.constant 0 : index
    %c0_1 = arith.constant 0 : index
    %0 = vector.load %arg1[%c0, %c0_0, %c0_1] : memref<1x16x16xf32, #tpu.memory_space<vmem>>, vector<1x16x16xf32>
    %1 = vector.shape_cast %0 : vector<1x16x16xf32> to vector<16x16xf32>
    %c0_2 = arith.constant 0 : index
    %c0_3 = arith.constant 0 : index
    %c0_4 = arith.constant 0 : index
    %2 = vector.load %arg2[%c0_2, %c0_3, %c0_4] : memref<1x16x16xf32, #tpu.memory_space<vmem>>, vector<1x16x16xf32>
    %3 = vector.shape_cast %2 : vector<1x16x16xf32> to vector<16x16xf32>
    %4 = tpu.iota {dimensions = array<i32: 0>} : vector<16x16xi32>
    %5 = tpu.iota {dimensions = array<i32: 1>} : vector<16x16xi32>
    %c1_i32 = arith.constant 1 : i32
    %6 = vector.broadcast %c1_i32 : i32 to vector<16x16xi32>
    %7 = arith.subi %4, %6 : vector<16x16xi32>
    %8 = arith.cmpi eq, %5, %7 : vector<16x16xi32>
    %9 = arith.extui %8 : vector<16x16xi1> to vector<16x16xi32>
    %10 = arith.sitofp %9 : vector<16x16xi32> to vector<16x16xf32>
    %c1_i32_5 = arith.constant 1 : i32
    %11 = vector.broadcast %c1_i32_5 : i32 to vector<16x16xi32>
    %12 = arith.addi %4, %11 : vector<16x16xi32>
    %13 = arith.cmpi eq, %5, %12 : vector<16x16xi32>
    %14 = arith.extui %13 : vector<16x16xi1> to vector<16x16xi32>
    %15 = arith.sitofp %14 : vector<16x16xi32> to vector<16x16xf32>
    %cst = arith.constant dense<0.000000e+00> : vector<16x16xf32>
    %16 = tpu.matmul %10, %1, %cst {dimension_numbers = #tpu.dot_dimension_numbers<[1], [0], [0], [1], [0, 0, 1, 1], [], []>} : vector<16x16xf32>, vector<16x16xf32>, vector<16x16xf32> -> vector<16x16xf32>
    %cst_6 = arith.constant dense<0.000000e+00> : vector<16x16xf32>
    %17 = tpu.matmul %15, %1, %cst_6 {dimension_numbers = #tpu.dot_dimension_numbers<[1], [0], [0], [1], [0, 0, 1, 1], [], []>} : vector<16x16xf32>, vector<16x16xf32>, vector<16x16xf32> -> vector<16x16xf32>
    %18 = arith.truncf %1 : vector<16x16xf32> to vector<16x16xbf16>
    %c1 = arith.constant 1 : index
    %c0_7 = arith.constant 0 : index
    %c0_8 = arith.constant 0 : index
    %19 = vector.load %arg3[%c1, %c0_7, %c0_8] : memref<3x16x16xbf16, #tpu.memory_space<vmem>>, vector<1x16x16xbf16>
    %20 = vector.shape_cast %19 : vector<1x16x16xbf16> to vector<16x16xbf16>
    %cst_9 = arith.constant dense<0.000000e+00> : vector<16x16xf32>
    %21 = tpu.matmul %18, %20, %cst_9 {dimension_numbers = #tpu.dot_dimension_numbers<[1], [0], [0], [1], [0, 0, 1, 1], [], []>} : vector<16x16xbf16>, vector<16x16xbf16>, vector<16x16xf32> -> vector<16x16xf32>
    %22 = arith.truncf %16 : vector<16x16xf32> to vector<16x16xbf16>
    %c0_10 = arith.constant 0 : index
    %c0_11 = arith.constant 0 : index
    %c0_12 = arith.constant 0 : index
    %23 = vector.load %arg3[%c0_10, %c0_11, %c0_12] : memref<3x16x16xbf16, #tpu.memory_space<vmem>>, vector<1x16x16xbf16>
    %24 = vector.shape_cast %23 : vector<1x16x16xbf16> to vector<16x16xbf16>
    %cst_13 = arith.constant dense<0.000000e+00> : vector<16x16xf32>
    %25 = tpu.matmul %22, %24, %cst_13 {dimension_numbers = #tpu.dot_dimension_numbers<[1], [0], [0], [1], [0, 0, 1, 1], [], []>} : vector<16x16xbf16>, vector<16x16xbf16>, vector<16x16xf32> -> vector<16x16xf32>
    %26 = arith.addf %21, %25 : vector<16x16xf32>
    %27 = arith.truncf %17 : vector<16x16xf32> to vector<16x16xbf16>
    %c2 = arith.constant 2 : index
    %c0_14 = arith.constant 0 : index
    %c0_15 = arith.constant 0 : index
    %28 = vector.load %arg3[%c2, %c0_14, %c0_15] : memref<3x16x16xbf16, #tpu.memory_space<vmem>>, vector<1x16x16xbf16>
    %29 = vector.shape_cast %28 : vector<1x16x16xbf16> to vector<16x16xbf16>
    %cst_16 = arith.constant dense<0.000000e+00> : vector<16x16xf32>
    %30 = tpu.matmul %27, %29, %cst_16 {dimension_numbers = #tpu.dot_dimension_numbers<[1], [0], [0], [1], [0, 0, 1, 1], [], []>} : vector<16x16xbf16>, vector<16x16xbf16>, vector<16x16xf32> -> vector<16x16xf32>
    %31 = arith.addf %26, %30 : vector<16x16xf32>
    %cst_17 = arith.constant dense<0.000000e+00> : vector<16x16xf32>
    %32 = tpu.matmul %10, %3, %cst_17 {dimension_numbers = #tpu.dot_dimension_numbers<[1], [0], [0], [1], [0, 0, 1, 1], [], []>} : vector<16x16xf32>, vector<16x16xf32>, vector<16x16xf32> -> vector<16x16xf32>
    %cst_18 = arith.constant dense<0.000000e+00> : vector<16x16xf32>
    %33 = tpu.matmul %15, %3, %cst_18 {dimension_numbers = #tpu.dot_dimension_numbers<[1], [0], [0], [1], [0, 0, 1, 1], [], []>} : vector<16x16xf32>, vector<16x16xf32>, vector<16x16xf32> -> vector<16x16xf32>
    %34 = arith.truncf %3 : vector<16x16xf32> to vector<16x16xbf16>
    %c1_19 = arith.constant 1 : index
    %c0_20 = arith.constant 0 : index
    %c0_21 = arith.constant 0 : index
    %35 = vector.load %arg4[%c1_19, %c0_20, %c0_21] : memref<3x16x16xbf16, #tpu.memory_space<vmem>>, vector<1x16x16xbf16>
    %36 = vector.shape_cast %35 : vector<1x16x16xbf16> to vector<16x16xbf16>
    %cst_22 = arith.constant dense<0.000000e+00> : vector<16x16xf32>
    %37 = tpu.matmul %34, %36, %cst_22 {dimension_numbers = #tpu.dot_dimension_numbers<[1], [0], [0], [1], [0, 0, 1, 1], [], []>} : vector<16x16xbf16>, vector<16x16xbf16>, vector<16x16xf32> -> vector<16x16xf32>
    %38 = arith.truncf %32 : vector<16x16xf32> to vector<16x16xbf16>
    %c0_23 = arith.constant 0 : index
    %c0_24 = arith.constant 0 : index
    %c0_25 = arith.constant 0 : index
    %39 = vector.load %arg4[%c0_23, %c0_24, %c0_25] : memref<3x16x16xbf16, #tpu.memory_space<vmem>>, vector<1x16x16xbf16>
    %40 = vector.shape_cast %39 : vector<1x16x16xbf16> to vector<16x16xbf16>
    %cst_26 = arith.constant dense<0.000000e+00> : vector<16x16xf32>
    %41 = tpu.matmul %38, %40, %cst_26 {dimension_numbers = #tpu.dot_dimension_numbers<[1], [0], [0], [1], [0, 0, 1, 1], [], []>} : vector<16x16xbf16>, vector<16x16xbf16>, vector<16x16xf32> -> vector<16x16xf32>
    %42 = arith.addf %37, %41 : vector<16x16xf32>
    %43 = arith.truncf %33 : vector<16x16xf32> to vector<16x16xbf16>
    %c2_27 = arith.constant 2 : index
    %c0_28 = arith.constant 0 : index
    %c0_29 = arith.constant 0 : index
    %44 = vector.load %arg4[%c2_27, %c0_28, %c0_29] : memref<3x16x16xbf16, #tpu.memory_space<vmem>>, vector<1x16x16xbf16>
    %45 = vector.shape_cast %44 : vector<1x16x16xbf16> to vector<16x16xbf16>
    %cst_30 = arith.constant dense<0.000000e+00> : vector<16x16xf32>
    %46 = tpu.matmul %43, %45, %cst_30 {dimension_numbers = #tpu.dot_dimension_numbers<[1], [0], [0], [1], [0, 0, 1, 1], [], []>} : vector<16x16xbf16>, vector<16x16xbf16>, vector<16x16xf32> -> vector<16x16xf32>
    %47 = arith.addf %42, %46 : vector<16x16xf32>
    %48 = arith.addf %31, %47 : vector<16x16xf32>
    %c0_31 = arith.constant 0 : index
    %c0_32 = arith.constant 0 : index
    %49 = vector.load %arg5[%c0_31, %c0_32] : memref<1x16xf32, #tpu.memory_space<vmem>>, vector<1x16xf32>
    %50 = vector.broadcast %49 : vector<1x16xf32> to vector<16x16xf32>
    %51 = arith.mulf %48, %50 : vector<16x16xf32>
    %c0_33 = arith.constant 0 : index
    %c0_34 = arith.constant 0 : index
    %52 = vector.load %arg6[%c0_33, %c0_34] : memref<1x16xf32, #tpu.memory_space<vmem>>, vector<1x16xf32>
    %53 = vector.broadcast %52 : vector<1x16xf32> to vector<16x16xf32>
    %54 = arith.addf %51, %53 : vector<16x16xf32>
    %cst_35 = arith.constant 0.000000e+00 : f32
    %55 = vector.broadcast %cst_35 : f32 to vector<16x16xf32>
    %56 = arith.maximumf %54, %55 : vector<16x16xf32>
    %cst_36 = arith.constant dense<0.000000e+00> : vector<16x16xf32>
    %57 = tpu.matmul %10, %56, %cst_36 {dimension_numbers = #tpu.dot_dimension_numbers<[1], [0], [0], [1], [0, 0, 1, 1], [], []>} : vector<16x16xf32>, vector<16x16xf32>, vector<16x16xf32> -> vector<16x16xf32>
    %cst_37 = arith.constant dense<0.000000e+00> : vector<16x16xf32>
    %58 = tpu.matmul %15, %56, %cst_37 {dimension_numbers = #tpu.dot_dimension_numbers<[1], [0], [0], [1], [0, 0, 1, 1], [], []>} : vector<16x16xf32>, vector<16x16xf32>, vector<16x16xf32> -> vector<16x16xf32>
    %59 = arith.truncf %56 : vector<16x16xf32> to vector<16x16xbf16>
    %c1_38 = arith.constant 1 : index
    %c0_39 = arith.constant 0 : index
    %c0_40 = arith.constant 0 : index
    %60 = vector.load %arg7[%c1_38, %c0_39, %c0_40] : memref<3x16x16xbf16, #tpu.memory_space<vmem>>, vector<1x16x16xbf16>
    %61 = vector.shape_cast %60 : vector<1x16x16xbf16> to vector<16x16xbf16>
    %cst_41 = arith.constant dense<0.000000e+00> : vector<16x16xf32>
    %62 = tpu.matmul %59, %61, %cst_41 {dimension_numbers = #tpu.dot_dimension_numbers<[1], [0], [0], [1], [0, 0, 1, 1], [], []>} : vector<16x16xbf16>, vector<16x16xbf16>, vector<16x16xf32> -> vector<16x16xf32>
    %63 = arith.truncf %57 : vector<16x16xf32> to vector<16x16xbf16>
    %c0_42 = arith.constant 0 : index
    %c0_43 = arith.constant 0 : index
    %c0_44 = arith.constant 0 : index
    %64 = vector.load %arg7[%c0_42, %c0_43, %c0_44] : memref<3x16x16xbf16, #tpu.memory_space<vmem>>, vector<1x16x16xbf16>
    %65 = vector.shape_cast %64 : vector<1x16x16xbf16> to vector<16x16xbf16>
    %cst_45 = arith.constant dense<0.000000e+00> : vector<16x16xf32>
    %66 = tpu.matmul %63, %65, %cst_45 {dimension_numbers = #tpu.dot_dimension_numbers<[1], [0], [0], [1], [0, 0, 1, 1], [], []>} : vector<16x16xbf16>, vector<16x16xbf16>, vector<16x16xf32> -> vector<16x16xf32>
    %67 = arith.addf %62, %66 : vector<16x16xf32>
    %68 = arith.truncf %58 : vector<16x16xf32> to vector<16x16xbf16>
    %c2_46 = arith.constant 2 : index
    %c0_47 = arith.constant 0 : index
    %c0_48 = arith.constant 0 : index
    %69 = vector.load %arg7[%c2_46, %c0_47, %c0_48] : memref<3x16x16xbf16, #tpu.memory_space<vmem>>, vector<1x16x16xbf16>
    %70 = vector.shape_cast %69 : vector<1x16x16xbf16> to vector<16x16xbf16>
    %cst_49 = arith.constant dense<0.000000e+00> : vector<16x16xf32>
    %71 = tpu.matmul %68, %70, %cst_49 {dimension_numbers = #tpu.dot_dimension_numbers<[1], [0], [0], [1], [0, 0, 1, 1], [], []>} : vector<16x16xbf16>, vector<16x16xbf16>, vector<16x16xf32> -> vector<16x16xf32>
    %72 = arith.addf %67, %71 : vector<16x16xf32>
    %c0_50 = arith.constant 0 : index
    %c0_51 = arith.constant 0 : index
    %73 = vector.load %arg8[%c0_50, %c0_51] : memref<1x16xf32, #tpu.memory_space<vmem>>, vector<1x16xf32>
    %74 = vector.broadcast %73 : vector<1x16xf32> to vector<16x16xf32>
    %75 = arith.mulf %72, %74 : vector<16x16xf32>
    %c0_52 = arith.constant 0 : index
    %c0_53 = arith.constant 0 : index
    %76 = vector.load %arg9[%c0_52, %c0_53] : memref<1x16xf32, #tpu.memory_space<vmem>>, vector<1x16xf32>
    %77 = vector.broadcast %76 : vector<1x16xf32> to vector<16x16xf32>
    %78 = arith.addf %75, %77 : vector<16x16xf32>
    %cst_54 = arith.constant 0.000000e+00 : f32
    %79 = vector.broadcast %cst_54 : f32 to vector<16x16xf32>
    %80 = arith.maximumf %78, %79 : vector<16x16xf32>
    %c0_55 = arith.constant 0 : index
    %c0_56 = arith.constant 0 : index
    %81 = vector.load %arg10[%c0_55, %c0_56] : memref<16x1xf32, #tpu.memory_space<vmem>>, vector<16x1xf32>
    %cst_57 = arith.constant dense<0.000000e+00> : vector<16x1xf32>
    %82 = tpu.matmul %80, %81, %cst_57 {dimension_numbers = #tpu.dot_dimension_numbers<[1], [0], [0], [1], [0, 0, 1, 1], [], []>} : vector<16x16xf32>, vector<16x1xf32>, vector<16x1xf32> -> vector<16x1xf32>
    %c0_58 = arith.constant 0 : index
    %c0_59 = arith.constant 0 : index
    %83 = vector.load %arg11[%c0_58, %c0_59] : memref<1x1xf32, #tpu.memory_space<vmem>>, vector<1x1xf32>
    %84 = vector.broadcast %83 : vector<1x1xf32> to vector<16x1xf32>
    %85 = arith.addf %82, %84 : vector<16x1xf32>
    %c0_60 = arith.constant 0 : index
    %c0_61 = arith.constant 0 : index
    %c0_62 = arith.constant 0 : index
    %86 = vector.load %arg12[%c0_60, %c0_61, %c0_62] : memref<1x16x1xf32, #tpu.memory_space<vmem>>, vector<1x16x1xf32>
    %87 = vector.shape_cast %86 : vector<1x16x1xf32> to vector<16x1xf32>
    %88 = vector.shape_cast %85 : vector<16x1xf32> to vector<1x16x1xf32>
    tpu.vector_store %arg12[%c0_60, %c0_61, %c0_62], %88 {strides = array<i32>} : memref<1x16x1xf32, #tpu.memory_space<vmem>>, vector<1x16x1xf32>,
    return
  }
  func.func @transform_0(%arg0: i32) -> (i32, i32, i32) {
    %c0_i32 = arith.constant 0 : i32
    %c0_i32_0 = arith.constant 0 : i32
    %c0_i32_1 = arith.constant 0 : i32
    return %arg0, %c0_i32, %c0_i32_0 : i32, i32, i32
  }
  func.func @transform_1(%arg0: i32) -> (i32, i32, i32) {
    %c0_i32 = arith.constant 0 : i32
    %c0_i32_0 = arith.constant 0 : i32
    %c0_i32_1 = arith.constant 0 : i32
    return %arg0, %c0_i32, %c0_i32_0 : i32, i32, i32
  }
  func.func @transform_2(%arg0: i32) -> (i32, i32, i32) {
    %c0_i32 = arith.constant 0 : i32
    %c0_i32_0 = arith.constant 0 : i32
    %c0_i32_1 = arith.constant 0 : i32
    %c0_i32_2 = arith.constant 0 : i32
    return %c0_i32, %c0_i32_0, %c0_i32_1 : i32, i32, i32
  }
  func.func @transform_3(%arg0: i32) -> (i32, i32, i32) {
    %c0_i32 = arith.constant 0 : i32
    %c0_i32_0 = arith.constant 0 : i32
    %c0_i32_1 = arith.constant 0 : i32
    %c0_i32_2 = arith.constant 0 : i32
    return %c0_i32, %c0_i32_0, %c0_i32_1 : i32, i32, i32
  }
  func.func @transform_4(%arg0: i32) -> (i32, i32) {
    %c0_i32 = arith.constant 0 : i32
    %c0_i32_0 = arith.constant 0 : i32
    %c0_i32_1 = arith.constant 0 : i32
    return %c0_i32, %c0_i32_0 : i32, i32
  }
  func.func @transform_5(%arg0: i32) -> (i32, i32) {
    %c0_i32 = arith.constant 0 : i32
    %c0_i32_0 = arith.constant 0 : i32
    %c0_i32_1 = arith.constant 0 : i32
    return %c0_i32, %c0_i32_0 : i32, i32
  }
  func.func @transform_6(%arg0: i32) -> (i32, i32, i32) {
    %c0_i32 = arith.constant 0 : i32
    %c0_i32_0 = arith.constant 0 : i32
    %c0_i32_1 = arith.constant 0 : i32
    %c0_i32_2 = arith.constant 0 : i32
    return %c0_i32, %c0_i32_0, %c0_i32_1 : i32, i32, i32
  }
  func.func @transform_7(%arg0: i32) -> (i32, i32) {
    %c0_i32 = arith.constant 0 : i32
    %c0_i32_0 = arith.constant 0 : i32
    %c0_i32_1 = arith.constant 0 : i32
    return %c0_i32, %c0_i32_0 : i32, i32
  }
  func.func @transform_8(%arg0: i32) -> (i32, i32) {
    %c0_i32 = arith.constant 0 : i32
    %c0_i32_0 = arith.constant 0 : i32
    %c0_i32_1 = arith.constant 0 : i32
    return %c0_i32, %c0_i32_0 : i32, i32
  }
  func.func @transform_9(%arg0: i32) -> (i32, i32) {
    %c0_i32 = arith.constant 0 : i32
    %c0_i32_0 = arith.constant 0 : i32
    %c0_i32_1 = arith.constant 0 : i32
    return %c0_i32, %c0_i32_0 : i32, i32
  }
  func.func @transform_10(%arg0: i32) -> (i32, i32) {
    %c0_i32 = arith.constant 0 : i32
    %c0_i32_0 = arith.constant 0 : i32
    %c0_i32_1 = arith.constant 0 : i32
    return %c0_i32, %c0_i32_0 : i32, i32
  }
  func.func @transform_11(%arg0: i32) -> (i32, i32, i32) {
    %c0_i32 = arith.constant 0 : i32
    %c0_i32_0 = arith.constant 0 : i32
    %c0_i32_1 = arith.constant 0 : i32
    return %arg0, %c0_i32, %c0_i32_0 : i32, i32, i32
  }
}

</mosaic_0001>

<llo_original>
// kernel: vnet_forward.10
$region0: #{vnet_forward.10}
  #allocation0 [shape = 'u32[]', space=smem, size = 0x4, offset = 0x4, fixed_abs, tag = 'smem constant byte address 0x4 - core index']
  #allocation1 [shape = 'u32[72,128]{1,0:T(1,128)}', space=vmem, size = 0x9000, scoped, tag = 'internal scratch']
  %s0 = inlined_call_operand.vmem [shape: f32[2,16,1], index: 0, kind: input, shape index: {}]
  %s1 = inlined_call_operand.vmem [shape: bf16[3,1,16], index: 1, kind: input, shape index: {}]
  %s2 = inlined_call_operand.vmem [shape: f32[1,16], index: 2, kind: input, shape index: {}]
  %s3 = inlined_call_operand.vmem [shape: f32[1,16], index: 3, kind: input, shape index: {}]
  %s4 = inlined_call_operand.vmem [shape: bf16[3,16,16], index: 4, kind: input, shape index: {}]
  %s5 = inlined_call_operand.vmem [shape: f32[1,16], index: 5, kind: input, shape index: {}]
  %s6 = inlined_call_operand.hbm [shape: f32[1,16], index: 6, kind: input, shape index: {}]
  %s7 = inlined_call_operand.vmem [shape: f32[2,16,16], index: 7, kind: output, shape index: {0}]
  %s8 = inlined_call_operand.vmem [shape: f32[2,8,16], index: 8, kind: output, shape index: {1}]
  %9 = xla_tuple %s7, %s8
  %s10 = sld [smem:[#allocation0]]
  $region73: #{vnet_forward.10} parent=0
    _
  %s12 = ssub.s32 1, %s10
  %s13 = scalar_select 0, %s12, %s10
  $region1: #{vnet_forward.10} parent=0
    #allocation2 [shape = 'u8[512]{0}', space=vmem, size = 0x400, scoped, tag = 'input window, operand 6, single buffered']
    #allocation3 [shape = 's32[2]{0}', space=sflag, size = 0x8, scoped, tag = 'scoped memory for vnet_forward.10']
    %14 = vsyncpa [#allocation3], 0
    loop: start=0, step=1, limit=4
    $region2: #{vnet_forward.10} parent=1 // loop_pre_header
      _
    $region3: #{vnet_forward.10} parent=1 // loop_header
      %s16 = sphi 0, %s20
      %p17 = scmp.ge.s32.totalorder %s16, 4
      %s26 = sphi 0, %s28
      %s29 = sphi 0, %s26
      %s30 = sphi 0, %s29
      %s46 = sphi 0, %s30
      %s50 = sphi 0, %s50
      %s52 = sphi 0, %s50
      %s53 = sphi 0, %s52
      %s67 = sphi 0, %s53
      %s71 = sphi 0, %s71
      %s73 = sphi 0, %s71
      %s74 = sphi 0, %s73
      %s88 = sphi 0, %s74
      %s92 = sphi 0, %s92
      %s94 = sphi 0, %s92
      %s95 = sphi 0, %s94
      %s109 = sphi 0, %s95
      %s113 = sphi 0, %s113
      %s115 = sphi 0, %s113
      %s116 = sphi 0, %s115
      %s130 = sphi 0, %s116
      %s134 = sphi 0, %s134
      %s136 = sphi 0, %s134
      %s137 = sphi 0, %s136
      %s151 = sphi 0, %s137
      %s155 = sphi 0, %s155
      %s157 = sphi 0, %s155
      %s158 = sphi 0, %s157
      %s172 = sphi 0, %s158
      %s178 = sphi 0, %s180
      %s181 = sphi 0, %s178
      %s182 = sphi 0, %s181
      %s198 = sphi 0, %s182
      %s204 = sphi 0, %s206
      %s207 = sphi 0, %s204
      %s208 = sphi 0, %s207
      %s224 = sphi 0, %s208
    $region4: #{vnet_forward.10} parent=1 // loop_header_branch
      %19 = sbr.rel (%p17) target = $region8
    $region5: #{vnet_forward.10} parent=1 // loop_body
      %s21 = ssub.s32 %s16, 1
      %s22 = ssub.s32 %s16, 2
      %s23 = sadd.s32 %s16, 1
      %s24 = ssub.s32 %s16, %s23
      %p25 = scmp.eq.s32.totalorder %s24, 0
      %s27 = sadd.s32 %s26, 1
      %s28 = scalar_select %p25, %s26, %s27
      %p31 = pneg %p25
      %p32 = scmp.eq.s32.totalorder %s16, 1
      %p33 = por %p31, %p32
      %p34 = scmp.ne.s32.totalorder %s26, %s29
      %p35 = scmp.eq.s32.totalorder %s16, 0
      %p36 = por %p34, %p35
      %p37 = scmp.ne.s32.totalorder %s26, %s29
      %p38 = scmp.eq.s32.totalorder %s21, 1
      %p39 = por %p37, %p38
      %p40 = scmp.ne.s32.totalorder %s29, %s30
      %p41 = scmp.eq.s32.totalorder %s21, 0
      %p42 = por %p40, %p41
      %p43 = scmp.ne.s32.totalorder %s29, %s30
      %p44 = scmp.eq.s32.totalorder %s22, 1
      %p45 = por %p43, %p44
      %p47 = scmp.ne.s32.totalorder %s30, %s46
      %p48 = scmp.eq.s32.totalorder %s22, 0
      %p49 = por %p47, %p48
      %s51 = sadd.s32 %s50, 1
      %p54 = scmp.eq.s32.totalorder %s16, 1
      %p55 = scmp.ne.s32.totalorder %s50, %s52
      %p56 = scmp.eq.s32.totalorder %s16, 0
      %p57 = por %p55, %p56
      %p58 = scmp.ne.s32.totalorder %s50, %s52
      %p59 = scmp.eq.s32.totalorder %s21, 1
      %p60 = por %p58, %p59
      %p61 = scmp.ne.s32.totalorder %s52, %s53
      %p62 = scmp.eq.s32.totalorder %s21, 0
      %p63 = por %p61, %p62
      %p64 = scmp.ne.s32.totalorder %s52, %s53
      %p65 = scmp.eq.s32.totalorder %s22, 1
      %p66 = por %p64, %p65
      %p68 = scmp.ne.s32.totalorder %s53, %s67
      %p69 = scmp.eq.s32.totalorder %s22, 0
      %p70 = por %p68, %p69
      %s72 = sadd.s32 %s71, 1
      %p75 = scmp.eq.s32.totalorder %s16, 1
      %p76 = scmp.ne.s32.totalorder %s71, %s73
      %p77 = scmp.eq.s32.totalorder %s16, 0
      %p78 = por %p76, %p77
      %p79 = scmp.ne.s32.totalorder %s71, %s73
      %p80 = scmp.eq.s32.totalorder %s21, 1
      %p81 = por %p79, %p80
      %p82 = scmp.ne.s32.totalorder %s73, %s74
      %p83 = scmp.eq.s32.totalorder %s21, 0
      %p84 = por %p82, %p83
      %p85 = scmp.ne.s32.totalorder %s73, %s74
      %p86 = scmp.eq.s32.totalorder %s22, 1
      %p87 = por %p85, %p86
      %p89 = scmp.ne.s32.totalorder %s74, %s88
      %p90 = scmp.eq.s32.totalorder %s22, 0
      %p91 = por %p89, %p90
      %s93 = sadd.s32 %s92, 1
      %p96 = scmp.eq.s32.totalorder %s16, 1
      %p97 = scmp.ne.s32.totalorder %s92, %s94
      %p98 = scmp.eq.s32.totalorder %s16, 0
      %p99 = por %p97, %p98
      %p100 = scmp.ne.s32.totalorder %s92, %s94
      %p101 = scmp.eq.s32.totalorder %s21, 1
      %p102 = por %p100, %p101
      %p103 = scmp.ne.s32.totalorder %s94, %s95
      %p104 = scmp.eq.s32.totalorder %s21, 0
      %p105 = por %p103, %p104
      %p106 = scmp.ne.s32.totalorder %s94, %s95
      %p107 = scmp.eq.s32.totalorder %s22, 1
      %p108 = por %p106, %p107
      %p110 = scmp.ne.s32.totalorder %s95, %s109
      %p111 = scmp.eq.s32.totalorder %s22, 0
      %p112 = por %p110, %p111
      %s114 = sadd.s32 %s113, 1
      %p117 = scmp.eq.s32.totalorder %s16, 1
      %p118 = scmp.ne.s32.totalorder %s113, %s115
      %p119 = scmp.eq.s32.totalorder %s16, 0
      %p120 = por %p118, %p119
      %p121 = scmp.ne.s32.totalorder %s113, %s115
      %p122 = scmp.eq.s32.totalorder %s21, 1
      %p123 = por %p121, %p122
      %p124 = scmp.ne.s32.totalorder %s115, %s116
      %p125 = scmp.eq.s32.totalorder %s21, 0
      %p126 = por %p124, %p125
      %p127 = scmp.ne.s32.totalorder %s115, %s116
      %p128 = scmp.eq.s32.totalorder %s22, 1
      %p129 = por %p127, %p128
      %p131 = scmp.ne.s32.totalorder %s116, %s130
      %p132 = scmp.eq.s32.totalorder %s22, 0
      %p133 = por %p131, %p132
      %s135 = sadd.s32 %s134, 1
      %p138 = scmp.eq.s32.totalorder %s16, 1
      %p139 = scmp.ne.s32.totalorder %s134, %s136
      %p140 = scmp.eq.s32.totalorder %s16, 0
      %p141 = por %p139, %p140
      %p142 = scmp.ne.s32.totalorder %s134, %s136
      %p143 = scmp.eq.s32.totalorder %s21, 1
      %p144 = por %p142, %p143
      %p145 = scmp.ne.s32.totalorder %s136, %s137
      %p146 = scmp.eq.s32.totalorder %s21, 0
      %p147 = por %p145, %p146
      %p148 = scmp.ne.s32.totalorder %s136, %s137
      %p149 = scmp.eq.s32.totalorder %s22, 1
      %p150 = por %p148, %p149
      %p152 = scmp.ne.s32.totalorder %s137, %s151
      %p153 = scmp.eq.s32.totalorder %s22, 0
      %p154 = por %p152, %p153
      %s156 = sadd.s32 %s155, 1
      %p159 = scmp.eq.s32.totalorder %s16, 1
      %p160 = scmp.ne.s32.totalorder %s155, %s157
      %p161 = scmp.eq.s32.totalorder %s16, 0
      %p162 = por %p160, %p161
      %p163 = scmp.ne.s32.totalorder %s155, %s157
      %p164 = scmp.eq.s32.totalorder %s21, 1
      %p165 = por %p163, %p164
      %p166 = scmp.ne.s32.totalorder %s157, %s158
      %p167 = scmp.eq.s32.totalorder %s21, 0
      %p168 = por %p166, %p167
      %p169 = scmp.ne.s32.totalorder %s157, %s158
      %p170 = scmp.eq.s32.totalorder %s22, 1
      %p171 = por %p169, %p170
      %p173 = scmp.ne.s32.totalorder %s158, %s172
      %p174 = scmp.eq.s32.totalorder %s22, 0
      %p175 = por %p173, %p174
      %s176 = ssub.s32 %s16, %s23
      %p177 = scmp.eq.s32.totalorder %s176, 0
      %s179 = sadd.s32 %s178, 1
      %s180 = scalar_select %p177, %s178, %s179
      %p183 = pneg %p177
      %p184 = scmp.eq.s32.totalorder %s16, 1
      %p185 = por %p183, %p184
      %p186 = scmp.ne.s32.totalorder %s178, %s181
      %p187 = scmp.eq.s32.totalorder %s16, 0
      %p188 = por %p186, %p187
      %p189 = scmp.ne.s32.totalorder %s178, %s181
      %p190 = scmp.eq.s32.totalorder %s21, 1
      %p191 = por %p189, %p190
      %p192 = scmp.ne.s32.totalorder %s181, %s182
      %p193 = scmp.eq.s32.totalorder %s21, 0
      %p194 = por %p192, %p193
      %p195 = scmp.ne.s32.totalorder %s181, %s182
      %p196 = scmp.eq.s32.totalorder %s22, 1
      %p197 = por %p195, %p196
      %p199 = scmp.ne.s32.totalorder %s182, %s198
      %p200 = scmp.eq.s32.totalorder %s22, 0
      %p201 = por %p199, %p200
      %s202 = ssub.s32 %s16, %s23
      %p203 = scmp.eq.s32.totalorder %s202, 0
      %s205 = sadd.s32 %s204, 1
      %s206 = scalar_select %p203, %s204, %s205
      %p209 = pneg %p203
      %p210 = scmp.eq.s32.totalorder %s16, 1
      %p211 = por %p209, %p210
      %p212 = scmp.ne.s32.totalorder %s204, %s207
      %p213 = scmp.eq.s32.totalorder %s16, 0
      %p214 = por %p212, %p213
      %p215 = scmp.ne.s32.totalorder %s204, %s207
      %p216 = scmp.eq.s32.totalorder %s21, 1
      %p217 = por %p215, %p216
      %p218 = scmp.ne.s32.totalorder %s207, %s208
      %p219 = scmp.eq.s32.totalorder %s21, 0
      %p220 = por %p218, %p219
      %p221 = scmp.ne.s32.totalorder %s207, %s208
      %p222 = scmp.eq.s32.totalorder %s22, 1
      %p223 = por %p221, %p222
      %p225 = scmp.ne.s32.totalorder %s208, %s224
      %p226 = scmp.eq.s32.totalorder %s22, 0
      %p227 = por %p225, %p226
      %p228 = scmp.le.s32.totalorder 1, %s16
      %p229 = scmp.lt.s32.totalorder %s16, 3
      %p230 = pnand %p228, %p229
      %p231 = pneg %p230
      // Predicated region
      $region9: #{vnet_forward.10} parent=5 // pred_check
        _
      $region10: #{vnet_forward.10} parent=5 // pred_check_branch
        %233 = sbr.rel (%p230) target = $region12
      $region11: #{vnet_forward.10} parent=5 // pred_region
        %s234 = ssub.s32 %s16, 1
        // Predicated region
        $region13: #{vnet_forward.10} parent=11 // pred_check
          %p235 = pneg %p63
        $region14: #{vnet_forward.10} parent=11 // pred_check_branch
          %237 = sbr.rel (%p235) target = $region16
        $region15: #{vnet_forward.10} parent=11 // pred_region
          _
        $region16: #{vnet_forward.10} parent=11 // pred_fallthru
          _
        // Predicated region
        $region17: #{vnet_forward.10} parent=11 // pred_check
          %p238 = pneg %p84
        $region18: #{vnet_forward.10} parent=11 // pred_check_branch
          %240 = sbr.rel (%p238) target = $region20
        $region19: #{vnet_forward.10} parent=11 // pred_region
          _
        $region20: #{vnet_forward.10} parent=11 // pred_fallthru
          _
        // Predicated region
        $region21: #{vnet_forward.10} parent=11 // pred_check
          %p241 = pneg %p105
        $region22: #{vnet_forward.10} parent=11 // pred_check_branch
          %243 = sbr.rel (%p241) target = $region24
        $region23: #{vnet_forward.10} parent=11 // pred_region
          _
        $region24: #{vnet_forward.10} parent=11 // pred_fallthru
          _
        // Predicated region
        $region25: #{vnet_forward.10} parent=11 // pred_check
          %p244 = pneg %p126
        $region26: #{vnet_forward.10} parent=11 // pred_check_branch
          %246 = sbr.rel (%p244) target = $region28
        $region27: #{vnet_forward.10} parent=11 // pred_region
          _
        $region28: #{vnet_forward.10} parent=11 // pred_fallthru
          _
        // Predicated region
        $region29: #{vnet_forward.10} parent=11 // pred_check
          %p247 = pneg %p147
        $region30: #{vnet_forward.10} parent=11 // pred_check_branch
          %249 = sbr.rel (%p247) target = $region32
        $region31: #{vnet_forward.10} parent=11 // pred_region
          _
        $region32: #{vnet_forward.10} parent=11 // pred_fallthru
          _
        // Predicated region
        $region33: #{vnet_forward.10} parent=11 // pred_check
          %p250 = pneg %p168
        $region34: #{vnet_forward.10} parent=11 // pred_check_branch
          %252 = sbr.rel (%p250) target = $region36
        $region35: #{vnet_forward.10} parent=11 // pred_region
          %254 = vsyncadd [#allocation3], 0
          %s256 = sshll.u32 %s6, 4
          %s257 = int_to_ptr.hbm [resolvable:$true] %s256
          %s258 = sshll.u32 [#allocation2], 4
          %s259 = int_to_ptr.vmem [resolvable:$true] %s258
          %261 = dma.hbm_to_vmem [thread:$0]  %s257, 16, %s259, [#allocation3]
        $region36: #{vnet_forward.10} parent=11 // pred_fallthru
          _
      $region12: #{vnet_forward.10} parent=5 // pred_fallthru
        _
      %p262 = scmp.lt.s32.totalorder %s16, 2
      // Predicated region
      $region37: #{vnet_forward.10} parent=5 // pred_check
        %p263 = pneg %p262
      $region38: #{vnet_forward.10} parent=5 // pred_check_branch
        %265 = sbr.rel (%p263) target = $region40
      $region39: #{vnet_forward.10} parent=5 // pred_region
        // Predicated region
        $region41: #{vnet_forward.10} parent=39 // pred_check
          %p266 = pneg %p36
        $region42: #{vnet_forward.10} parent=39 // pred_check_branch
          %268 = sbr.rel (%p266) target = $region44
        $region43: #{vnet_forward.10} parent=39 // pred_region
          %p269 = scmp.lt.s32.totalorder %s16, 1
          %s270 = scalar_select %p269, %s16, 1
          %s271 = smul.addr %s270, 2
          %s272 = smul.addr %s271, 8
          %s273 = scalar_lea.vmem %s0, %s272
        $region44: #{vnet_forward.10} parent=39 // pred_fallthru
          _
      $region40: #{vnet_forward.10} parent=5 // pred_fallthru
        _
      %p274 = scmp.le.s32.totalorder 1, %s16
      %p275 = scmp.lt.s32.totalorder %s16, 3
      %p276 = pnand %p274, %p275
      %p277 = pneg %p276
      // Predicated region
      $region45: #{vnet_forward.10} parent=5 // pred_check
        _
      $region46: #{vnet_forward.10} parent=5 // pred_check_branch
        %279 = sbr.rel (%p276) target = $region48
      $region47: #{vnet_forward.10} parent=5 // pred_region
        %s280 = ssub.s32 %s16, 1
        // Predicated region
        $region49: #{vnet_forward.10} parent=47 // pred_check
          %p281 = pneg %p168
        $region50: #{vnet_forward.10} parent=47 // pred_check_branch
          %283 = sbr.rel (%p281) target = $region52
        $region51: #{vnet_forward.10} parent=47 // pred_region
          %285 = dma.done [#allocation3], 16
        $region52: #{vnet_forward.10} parent=47 // pred_fallthru
          _
        %p286 = scmp.lt.s32.totalorder %s21, 1
        %s287 = scalar_select %p286, %s21, 1
        %s288 = smul.addr %s287, 2
        %s289 = smul.addr %s288, 8
        %s290 = scalar_lea.vmem %s0, %s289
        %p291 = pneg %p42
        %p292 = pneg %p39
        %p293 = pneg %p63
        %p294 = pneg %p60
        %p295 = pneg %p84
        %p296 = pneg %p81
        %p297 = pneg %p105
        %p298 = pneg %p102
        %p299 = pneg %p126
        %p300 = pneg %p123
        %p301 = pneg %p147
        %p302 = pneg %p144
        %p303 = pneg %p168
        %p304 = pneg %p165
        %p305 = pneg %p194
        %p306 = pneg %p191
        %p307 = scmp.lt.s32.totalorder %s21, 1
        %s308 = scalar_select %p307, %s21, 1
        %s309 = smul.addr %s308, 2
        %s310 = smul.addr %s309, 8
        %s311 = scalar_lea.vmem %s7, %s310
        %p312 = pneg %p220
        %p313 = pneg %p217
        %p314 = scmp.lt.s32.totalorder %s21, 1
        %s315 = scalar_select %p314, %s21, 1
        %s316 = smul.addr %s315, 8
        %s317 = scalar_lea.vmem %s8, %s316
        %p318 = scmp.lt.s32.totalorder %s21, 1
        %s319 = scalar_select %p318, %s21, 1
        %s320 = smul.addr %s319, 2
        %s321 = smul.addr %s320, 8
        %s322 = scalar_lea.vmem %s0, %s321
        %p323 = scmp.lt.s32.totalorder %s21, 1
        %s324 = scalar_select %p323, %s21, 1
        %s325 = smul.addr %s324, 2
        %s326 = smul.addr %s325, 8
        %s327 = scalar_lea.vmem %s7, %s326
        %p328 = scmp.lt.s32.totalorder %s21, 1
        %s329 = scalar_select %p328, %s21, 1
        %s330 = smul.addr %s329, 8
        %s331 = scalar_lea.vmem %s8, %s330
        %v333 = vld [vmem:[%s322] sm:$0xff]
        %v334 = vld [vmem:[%s322 + $0x8] sm:$0xff]
        %v335 = vlaneseq
        %v336 = vshrl.u32 %v335, 7
        %v337 = vadd.s32 %v336, 8
        %v338 = vlaneseq
        %v339 = vand.u32 %v338, 127
        %v340 = vsub.s32 %v336, 1
        %v341 = vsub.s32 %v337, 1
        %vm342 = vcmp.eq.s32.totalorder %v339, %v340
        %vm343 = vcmp.eq.s32.totalorder %v339, %v341
        %v344 = vsel %vm342, 1, 0
        %v345 = vsel %vm343, 1, 0
        %v346 = vcvt.s32.f32 %v344
        %v347 = vcvt.s32.f32 %v345
        %v348 = vadd.s32 %v336, 1
        %v349 = vadd.s32 %v337, 1
        %vm350 = vcmp.eq.s32.totalorder %v339, %v348
        %vm351 = vcmp.eq.s32.totalorder %v339, %v349
        %v352 = vsel %vm350, 1, 0
        %v353 = vsel %vm351, 1, 0
        %v354 = vcvt.s32.f32 %v352
        %v355 = vcvt.s32.f32 %v353
        %vm356 = vcmask 130048
        %v358 = vsel %vm356, %v346, 0
        %v361 = vsel %vm356, %v347, 0
        %363 = vmatpush.msra.mxu0 0.0
        %364 = vmatpush.msra.mxu0 0.0
        %365 = vmatpush.msra.mxu0 0.0
        %366 = vmatpush.msra.mxu0 0.0
        %367 = vmatpush.msra.mxu0 0.0
        %368 = vmatpush.msra.mxu0 0.0
        %369 = vmatpush.msra.mxu0 0.0
        %370 = vmatpush.msra.mxu0 0.0
        %371 = vmatpush.msra.mxu0 0.0
        %372 = vmatpush.msra.mxu0 0.0
        %373 = vmatpush.msra.mxu0 0.0
        %374 = vmatpush.msra.mxu0 0.0
        %375 = vmatpush.msra.mxu0 0.0
        %376 = vmatpush.msra.mxu0 0.0
        %377 = vmatpush.msra.mxu0 %v334
        %378 = vmatpush.msra.mxu0 %v333
        %379 = vmatmul.f32.gmra.mxu0 %v358
        %v380 = vpop.f32.mrf.mxu0
        %v381 = vadd.f32 0.0, %v380
        %382 = vmatmul.f32.gmra.mxu0 %v361
        %v383 = vpop.f32.mrf.mxu0
        %v384 = vadd.f32 0.0, %v383
        %385 = vdwg.mxu0
        %v387 = vsel %vm356, %v354, 0
        %v390 = vsel %vm356, %v355, 0
        %392 = vmatpush.msra.mxu0 0.0
        %393 = vmatpush.msra.mxu0 0.0
        %394 = vmatpush.msra.mxu0 0.0
        %395 = vmatpush.msra.mxu0 0.0
        %396 = vmatpush.msra.mxu0 0.0
        %397 = vmatpush.msra.mxu0 0.0
        %398 = vmatpush.msra.mxu0 0.0
        %399 = vmatpush.msra.mxu0 0.0
        %400 = vmatpush.msra.mxu0 0.0
        %401 = vmatpush.msra.mxu0 0.0
        %402 = vmatpush.msra.mxu0 0.0
        %403 = vmatpush.msra.mxu0 0.0
        %404 = vmatpush.msra.mxu0 0.0
        %405 = vmatpush.msra.mxu0 0.0
        %406 = vmatpush.msra.mxu0 %v334
        %407 = vmatpush.msra.mxu0 %v333
        %408 = vmatmul.f32.gmra.mxu0 %v387
        %v409 = vpop.f32.mrf.mxu0
        %v410 = vadd.f32 0.0, %v409
        %411 = vmatmul.f32.gmra.mxu0 %v390
        %v412 = vpop.f32.mrf.mxu0
        %v413 = vadd.f32 0.0, %v412
        %414 = vdwg.mxu0
        %v415 = vpack.c.bf16 %v334, %v333
        %s416 = scalar_lea.vmem %s1, 1
        %v417 = vld [vmem:[%s416] sm:$0x1]
        %v418 = vpack.c.bf16 %v384, %v381
        %v419 = vld [vmem:[%s1] sm:$0x1]
        %vm420 = vcmask 7168
        %v422 = vsel %vm420, %v418, 0
        %vm424 = vcmask 1040384
        %v425 = vsel 0, 4294967295, 65535
        %v426 = vsel %vm424, %v425, 0
        %v428 = vand.u32 %v419, %v426
        %430 = vmatpush.bf16.msra.mxu0 0
        %431 = vmatpush.bf16.msra.mxu0 0
        %432 = vmatpush.bf16.msra.mxu0 0
        %433 = vmatpush.bf16.msra.mxu0 0
        %434 = vmatpush.bf16.msra.mxu0 0
        %435 = vmatpush.bf16.msra.mxu0 0
        %436 = vmatpush.bf16.msra.mxu0 0
        %437 = vmatpush.bf16.msra.mxu0 %v428
        %438 = vmatmul.bf16.gmra.mxu0 %v422
        %v439 = vpop.f32.mrf.mxu0
        %v440 = vadd.f32 0.0, %v439
        %v441 = vpop.f32.mrf.mxu0
        %v442 = vadd.f32 0.0, %v441
        %443 = vdwg.mxu0
        %v445 = vsel %vm420, %v415, 0
        %v448 = vand.u32 %v417, %v426
        %450 = vmatpush.bf16.msra.mxu0 0
        %451 = vmatpush.bf16.msra.mxu0 0
        %452 = vmatpush.bf16.msra.mxu0 0
        %453 = vmatpush.bf16.msra.mxu0 0
        %454 = vmatpush.bf16.msra.mxu0 0
        %455 = vmatpush.bf16.msra.mxu0 0
        %456 = vmatpush.bf16.msra.mxu0 0
        %457 = vmatpush.bf16.msra.mxu0 %v448
        %458 = vmatmul.bf16.gmra.mxu0 %v445
        %v459 = vpop.f32.mrf.mxu0
        %v460 = vadd.f32 %v440, %v459
        %v461 = vpop.f32.mrf.mxu0
        %v462 = vadd.f32 %v442, %v461
        %463 = vdwg.mxu0
        %v464 = vpack.c.bf16 %v413, %v410
        %s465 = scalar_lea.vmem %s1, 2
        %v466 = vld [vmem:[%s465] sm:$0x1]
        %v468 = vsel %vm420, %v464, 0
        %v471 = vand.u32 %v466, %v426
        %473 = vmatpush.bf16.msra.mxu0 0
        %474 = vmatpush.bf16.msra.mxu0 0
        %475 = vmatpush.bf16.msra.mxu0 0
        %476 = vmatpush.bf16.msra.mxu0 0
        %477 = vmatpush.bf16.msra.mxu0 0
        %478 = vmatpush.bf16.msra.mxu0 0
        %479 = vmatpush.bf16.msra.mxu0 0
        %480 = vmatpush.bf16.msra.mxu0 %v471
        %481 = vmatmul.bf16.gmra.mxu0 %v468
        %v482 = vpop.f32.mrf.mxu0
        %v483 = vadd.f32 0.0, %v482
        %v484 = vpop.f32.mrf.mxu0
        %v485 = vadd.f32 0.0, %v484
        %486 = vdwg.mxu0
        %v487 = vadd.f32 %v460, %v483
        %v488 = vadd.f32 %v462, %v485
        %v489 = vld [vmem:[%s2] sm:$0x1]
        %v491 = vperm.slane %v489, 0
        %v493 = vmul.f32 %v487, %v491
        %v494 = vmul.f32 %v488, %v491
        %v495 = vld [vmem:[%s3] sm:$0x1]
        %v497 = vperm.slane %v495, 0
        %v499 = vadd.f32 %v493, %v497
        %v500 = vadd.f32 %v494, %v497
        %v501 = vmax.f32 %v499, 0.0
        %v502 = vmax.f32 %v500, 0.0
        %503 = vmatpush.msra.mxu0 0.0
        %504 = vmatpush.msra.mxu0 0.0
        %505 = vmatpush.msra.mxu0 0.0
        %506 = vmatpush.msra.mxu0 0.0
        %507 = vmatpush.msra.mxu0 0.0
        %508 = vmatpush.msra.mxu0 0.0
        %509 = vmatpush.msra.mxu0 0.0
        %510 = vmatpush.msra.mxu0 0.0
        %511 = vmatpush.msra.mxu0 0.0
        %512 = vmatpush.msra.mxu0 0.0
        %513 = vmatpush.msra.mxu0 0.0
        %514 = vmatpush.msra.mxu0 0.0
        %515 = vmatpush.msra.mxu0 0.0
        %516 = vmatpush.msra.mxu0 0.0
        %517 = vmatpush.msra.mxu0 %v502
        %518 = vmatpush.msra.mxu0 %v501
        %519 = vmatmul.f32.gmra.mxu0 %v358
        %v520 = vpop.f32.mrf.mxu0
        %v521 = vadd.f32 0.0, %v520
        %522 = vmatmul.f32.gmra.mxu0 %v361
        %v523 = vpop.f32.mrf.mxu0
        %v524 = vadd.f32 0.0, %v523
        %525 = vdwg.mxu0
        %526 = vmatpush.msra.mxu0 0.0
        %527 = vmatpush.msra.mxu0 0.0
        %528 = vmatpush.msra.mxu0 0.0
        %529 = vmatpush.msra.mxu0 0.0
        %530 = vmatpush.msra.mxu0 0.0
        %531 = vmatpush.msra.mxu0 0.0
        %532 = vmatpush.msra.mxu0 0.0
        %533 = vmatpush.msra.mxu0 0.0
        %534 = vmatpush.msra.mxu0 0.0
        %535 = vmatpush.msra.mxu0 0.0
        %536 = vmatpush.msra.mxu0 0.0
        %537 = vmatpush.msra.mxu0 0.0
        %538 = vmatpush.msra.mxu0 0.0
        %539 = vmatpush.msra.mxu0 0.0
        %540 = vmatpush.msra.mxu0 %v502
        %541 = vmatpush.msra.mxu0 %v501
        %542 = vmatmul.f32.gmra.mxu0 %v387
        %v543 = vpop.f32.mrf.mxu0
        %v544 = vadd.f32 0.0, %v543
        %545 = vmatmul.f32.gmra.mxu0 %v390
        %v546 = vpop.f32.mrf.mxu0
        %v547 = vadd.f32 0.0, %v546
        %548 = vdwg.mxu0
        %v549 = vpack.c.bf16 %v502, %v501
        %s550 = scalar_lea.vmem %s4, 8
        %v551 = vld [vmem:[%s550] sm:$0xf]
        %v552 = vld [vmem:[%s550 + $0x4] sm:$0xf]
        %v553 = vpack.c.bf16 %v524, %v521
        %v554 = vld [vmem:[%s4] sm:$0xf]
        %v555 = vld [vmem:[%s4 + $0x4] sm:$0xf]
        %v558 = vunpack.c.l.b16 %v554
        %v559 = vunpack.c.l.b16 %v555
        %v560 = vpack.c.b16 %v559, %v558
        %v563 = vsel %vm356, %v553, 0
        %565 = vmatpush.bf16.msra.mxu0 0
        %566 = vmatpush.bf16.msra.mxu0 0
        %567 = vmatpush.bf16.msra.mxu0 0
        %568 = vmatpush.bf16.msra.mxu0 0
        %569 = vmatpush.bf16.msra.mxu0 0
        %570 = vmatpush.bf16.msra.mxu0 0
        %571 = vmatpush.bf16.msra.mxu0 0
        %572 = vmatpush.bf16.msra.mxu0 %v560
        %573 = vmatmul.bf16.gmra.mxu0 %v563
        %v574 = vpop.f32.mrf.mxu0
        %v575 = vadd.f32 0.0, %v574
        %v576 = vpop.f32.mrf.mxu0
        %v577 = vadd.f32 0.0, %v576
        %578 = vdwg.mxu0
        %v581 = vunpack.c.l.b16 %v551
        %v582 = vunpack.c.l.b16 %v552
        %v583 = vpack.c.b16 %v582, %v581
        %v586 = vsel %vm356, %v549, 0
        %588 = vmatpush.bf16.msra.mxu0 0
        %589 = vmatpush.bf16.msra.mxu0 0
        %590 = vmatpush.bf16.msra.mxu0 0
        %591 = vmatpush.bf16.msra.mxu0 0
        %592 = vmatpush.bf16.msra.mxu0 0
        %593 = vmatpush.bf16.msra.mxu0 0
        %594 = vmatpush.bf16.msra.mxu0 0
        %595 = vmatpush.bf16.msra.mxu0 %v583
        %596 = vmatmul.bf16.gmra.mxu0 %v586
        %v597 = vpop.f32.mrf.mxu0
        %v598 = vadd.f32 %v575, %v597
        %v599 = vpop.f32.mrf.mxu0
        %v600 = vadd.f32 %v577, %v599
        %601 = vdwg.mxu0
        %v602 = vpack.c.bf16 %v547, %v544
        %s603 = scalar_lea.vmem %s4, 16
        %v604 = vld [vmem:[%s603] sm:$0xf]
        %v605 = vld [vmem:[%s603 + $0x4] sm:$0xf]
        %v608 = vunpack.c.l.b16 %v604
        %v609 = vunpack.c.l.b16 %v605
        %v610 = vpack.c.b16 %v609, %v608
        %v613 = vsel %vm356, %v602, 0
        %615 = vmatpush.bf16.msra.mxu0 0
        %616 = vmatpush.bf16.msra.mxu0 0
        %617 = vmatpush.bf16.msra.mxu0 0
        %618 = vmatpush.bf16.msra.mxu0 0
        %619 = vmatpush.bf16.msra.mxu0 0
        %620 = vmatpush.bf16.msra.mxu0 0
        %621 = vmatpush.bf16.msra.mxu0 0
        %622 = vmatpush.bf16.msra.mxu0 %v610
        %623 = vmatmul.bf16.gmra.mxu0 %v613
        %v624 = vpop.f32.mrf.mxu0
        %v625 = vadd.f32 0.0, %v624
        %v626 = vpop.f32.mrf.mxu0
        %v627 = vadd.f32 0.0, %v626
        %628 = vdwg.mxu0
        %v629 = vadd.f32 %v598, %v625
        %v630 = vadd.f32 %v600, %v627
        %v631 = vld [vmem:[%s5] sm:$0x1]
        %v633 = vperm.slane %v631, 0
        %v635 = vmul.f32 %v629, %v633
        %v636 = vmul.f32 %v630, %v633
        %v637 = vld [vmem:[#allocation2] sm:$0x1]
        %v639 = vperm.slane %v637, 0
        %v641 = vadd.f32 %v635, %v639
        %v642 = vadd.f32 %v636, %v639
        %v643 = vmax.f32 %v641, 0.0
        %v644 = vmax.f32 %v642, 0.0
        %645 = vst.msk [vmem:[%s327] sm:$0xff] %vm356, %v643
        %646 = vst.msk [vmem:[%s327 + $0x8] sm:$0xff] %vm356, %v644
        %v647 = vmul.u32 %v336, 2
        %vm648 = vcmp.eq.s32.totalorder %v339, %v647
        %v649 = vsel %vm648, 1, 0
        %v650 = vcvt.s32.f32 %v649
        %v651 = vadd.s32 %v647, 1
        %vm652 = vcmp.eq.s32.totalorder %v339, %v651
        %v653 = vsel %vm652, 1, 0
        %v654 = vcvt.s32.f32 %v653
        %v656 = vsel %vm356, %v650, 0
        %658 = vmatpush.msra.mxu0 0.0
        %659 = vmatpush.msra.mxu0 0.0
        %660 = vmatpush.msra.mxu0 0.0
        %661 = vmatpush.msra.mxu0 0.0
        %662 = vmatpush.msra.mxu0 0.0
        %663 = vmatpush.msra.mxu0 0.0
        %664 = vmatpush.msra.mxu0 0.0
        %665 = vmatpush.msra.mxu0 0.0
        %666 = vmatpush.msra.mxu0 0.0
        %667 = vmatpush.msra.mxu0 0.0
        %668 = vmatpush.msra.mxu0 0.0
        %669 = vmatpush.msra.mxu0 0.0
        %670 = vmatpush.msra.mxu0 0.0
        %671 = vmatpush.msra.mxu0 0.0
        %672 = vmatpush.msra.mxu0 %v644
        %673 = vmatpush.msra.mxu0 %v643
        %674 = vmatmul.f32.gmra.mxu0 %v656
        %v675 = vpop.f32.mrf.mxu0
        %v676 = vadd.f32 0.0, %v675
        %677 = vdwg.mxu0
        %v679 = vsel %vm356, %v654, 0
        %681 = vmatpush.msra.mxu0 0.0
        %682 = vmatpush.msra.mxu0 0.0
        %683 = vmatpush.msra.mxu0 0.0
        %684 = vmatpush.msra.mxu0 0.0
        %685 = vmatpush.msra.mxu0 0.0
        %686 = vmatpush.msra.mxu0 0.0
        %687 = vmatpush.msra.mxu0 0.0
        %688 = vmatpush.msra.mxu0 0.0
        %689 = vmatpush.msra.mxu0 0.0
        %690 = vmatpush.msra.mxu0 0.0
        %691 = vmatpush.msra.mxu0 0.0
        %692 = vmatpush.msra.mxu0 0.0
        %693 = vmatpush.msra.mxu0 0.0
        %694 = vmatpush.msra.mxu0 0.0
        %695 = vmatpush.msra.mxu0 %v644
        %696 = vmatpush.msra.mxu0 %v643
        %697 = vmatmul.f32.gmra.mxu0 %v679
        %v698 = vpop.f32.mrf.mxu0
        %v699 = vadd.f32 0.0, %v698
        %700 = vdwg.mxu0
        %v701 = vmax.f32 %v676, %v699
        %702 = vst.msk [vmem:[%s331] sm:$0xff] %vm356, %v701
        %p703 = scmp.lt.s32.totalorder %s21, 1
        %s704 = scalar_select %p703, %s21, 1
        %s705 = smul.addr %s704, 2
        %s706 = smul.addr %s705, 8
        %s707 = scalar_lea.vmem %s7, %s706
        %p708 = scmp.lt.s32.totalorder %s21, 1
        %s709 = scalar_select %p708, %s21, 1
        %s710 = smul.addr %s709, 8
        %s711 = scalar_lea.vmem %s8, %s710
        // Predicated region
        $region53: #{vnet_forward.10} parent=47 // pred_check
          %p712 = pneg %p191
        $region54: #{vnet_forward.10} parent=47 // pred_check_branch
          %714 = sbr.rel (%p712) target = $region56
        $region55: #{vnet_forward.10} parent=47 // pred_region
          _
        $region56: #{vnet_forward.10} parent=47 // pred_fallthru
          _
        // Predicated region
        $region57: #{vnet_forward.10} parent=47 // pred_check
          %p715 = pneg %p217
        $region58: #{vnet_forward.10} parent=47 // pred_check_branch
          %717 = sbr.rel (%p715) target = $region60
        $region59: #{vnet_forward.10} parent=47 // pred_region
          _
        $region60: #{vnet_forward.10} parent=47 // pred_fallthru
          _
      $region48: #{vnet_forward.10} parent=5 // pred_fallthru
        _
      %p718 = scmp.le.s32.totalorder 2, %s16
      // Predicated region
      $region61: #{vnet_forward.10} parent=5 // pred_check
        %p719 = pneg %p718
      $region62: #{vnet_forward.10} parent=5 // pred_check_branch
        %721 = sbr.rel (%p719) target = $region64
      $region63: #{vnet_forward.10} parent=5 // pred_region
        %s722 = ssub.s32 %s16, 2
        // Predicated region
        $region65: #{vnet_forward.10} parent=63 // pred_check
          %p723 = pneg %p197
        $region66: #{vnet_forward.10} parent=63 // pred_check_branch
          %725 = sbr.rel (%p723) target = $region68
        $region67: #{vnet_forward.10} parent=63 // pred_region
          %p726 = scmp.lt.s32.totalorder %s22, 1
          %s727 = scalar_select %p726, %s22, 1
          %s728 = smul.addr %s727, 2
          %s729 = smul.addr %s728, 8
          %s730 = scalar_lea.vmem %s7, %s729
        $region68: #{vnet_forward.10} parent=63 // pred_fallthru
          _
        // Predicated region
        $region69: #{vnet_forward.10} parent=63 // pred_check
          %p731 = pneg %p223
        $region70: #{vnet_forward.10} parent=63 // pred_check_branch
          %733 = sbr.rel (%p731) target = $region72
        $region71: #{vnet_forward.10} parent=63 // pred_region
          %p734 = scmp.lt.s32.totalorder %s22, 1
          %s735 = scalar_select %p734, %s22, 1
          %s736 = smul.addr %s735, 8
          %s737 = scalar_lea.vmem %s8, %s736
        $region72: #{vnet_forward.10} parent=63 // pred_fallthru
          _
      $region64: #{vnet_forward.10} parent=5 // pred_fallthru
        _
    $region6: #{vnet_forward.10} parent=1 // loop_footer
      %s20 = sadd.s32 1, %s16
    $region7: #{vnet_forward.10} parent=1 // loop_footer_branch
      %15 = sbr.rel target = $region3
    $region8: #{vnet_forward.10} parent=1 // loop_exit
      _
    %738 = vsyncpa [#allocation3], 1
    %s739 = scalar_lea.sflag [#allocation3], 1
    %740 = vsyncpa %s739, 1

// kernel: vnet_forward.11
$region0: #{vnet_forward.11}
  #allocation0 [shape = 'u32[]', space=smem, size = 0x4, offset = 0x4, fixed_abs, tag = 'smem constant byte address 0x4 - core index']
  #allocation1 [shape = 'u32[72,128]{1,0:T(1,128)}', space=vmem, size = 0x9000, scoped, tag = 'internal scratch']
  %s0 = inlined_call_operand.vmem [shape: f32[2,8,16], index: 0, kind: input, shape index: {}]
  %s1 = inlined_call_operand.hbm [shape: bf16[3,16,32], index: 1, kind: input, shape index: {}]
  %s2 = inlined_call_operand.hbm [shape: f32[1,32], index: 2, kind: input, shape index: {}]
  %s3 = inlined_call_operand.hbm [shape: f32[1,32], index: 3, kind: input, shape index: {}]
  %s4 = inlined_call_operand.hbm [shape: bf16[3,32,32], index: 4, kind: input, shape index: {}]
  %s5 = inlined_call_operand.hbm [shape: f32[1,32], index: 5, kind: input, shape index: {}]
  %s6 = inlined_call_operand.hbm [shape: f32[1,32], index: 6, kind: input, shape index: {}]
  %s7 = inlined_call_operand.vmem [shape: f32[2,8,32], index: 7, kind: output, shape index: {0}]
  %s8 = inlined_call_operand.vmem [shape: f32[2,4,32], index: 8, kind: output, shape index: {1}]
  %9 = xla_tuple %s7, %s8
  %s10 = sld [smem:[#allocation0]]
  $region93: #{vnet_forward.11} parent=0
    _
  %s12 = ssub.s32 1, %s10
  %s13 = scalar_select 0, %s12, %s10
  $region1: #{vnet_forward.11} parent=0
    #allocation2 [shape = 'u8[12288]{0}', space=vmem, size = 0x3000, scoped, tag = 'input window, operand 1, single buffered']
    #allocation3 [shape = 's32[2]{0}', space=sflag, size = 0x8, scoped, tag = 'scoped memory for vnet_forward.11']
    #allocation4 [shape = 'u8[512]{0}', space=vmem, size = 0x400, scoped, tag = 'input window, operand 2, single buffered']
    #allocation5 [shape = 's32[1]{0}', space=sflag, size = 0x4, scoped, tag = 'scoped memory for vnet_forward.11']
    #allocation6 [shape = 'u8[512]{0}', space=vmem, size = 0x400, scoped, tag = 'input window, operand 3, single buffered']
    #allocation7 [shape = 'u8[24576]{0}', space=vmem, size = 0x6000, scoped, tag = 'input window, operand 4, single buffered']
    #allocation8 [shape = 's32[1]{0}', space=sflag, size = 0x4, scoped, tag = 'scoped memory for vnet_forward.11']
    #allocation9 [shape = 'u8[512]{0}', space=vmem, size = 0x400, scoped, tag = 'input window, operand 5, single buffered']
    #allocation10 [shape = 'u8[512]{0}', space=vmem, size = 0x400, scoped, tag = 'input window, operand 6, single buffered']
    #allocation11 [shape = 's32[1]{0}', space=sflag, size = 0x4, scoped, tag = 'scoped memory for vnet_forward.11']
    %14 = vsyncpa [#allocation3], 0
    %15 = vsyncpa [#allocation5], 0
    %16 = vsyncpa [#allocation8], 0
    %17 = vsyncpa [#allocation11], 0
    loop: start=0, step=1, limit=4
    $region2: #{vnet_forward.11} parent=1 // loop_pre_header
      _
    $region3: #{vnet_forward.11} parent=1 // loop_header
      %s19 = sphi 0, %s23
      %p20 = scmp.ge.s32.totalorder %s19, 4
      %s29 = sphi 0, %s31
      %s32 = sphi 0, %s29
      %s33 = sphi 0, %s32
      %s49 = sphi 0, %s33
      %s53 = sphi 0, %s53
      %s55 = sphi 0, %s53
      %s56 = sphi 0, %s55
      %s70 = sphi 0, %s56
      %s74 = sphi 0, %s74
      %s76 = sphi 0, %s74
      %s77 = sphi 0, %s76
      %s91 = sphi 0, %s77
      %s95 = sphi 0, %s95
      %s97 = sphi 0, %s95
      %s98 = sphi 0, %s97
      %s112 = sphi 0, %s98
      %s116 = sphi 0, %s116
      %s118 = sphi 0, %s116
      %s119 = sphi 0, %s118
      %s133 = sphi 0, %s119
      %s137 = sphi 0, %s137
      %s139 = sphi 0, %s137
      %s140 = sphi 0, %s139
      %s154 = sphi 0, %s140
      %s158 = sphi 0, %s158
      %s160 = sphi 0, %s158
      %s161 = sphi 0, %s160
      %s175 = sphi 0, %s161
      %s181 = sphi 0, %s183
      %s184 = sphi 0, %s181
      %s185 = sphi 0, %s184
      %s201 = sphi 0, %s185
      %s207 = sphi 0, %s209
      %s210 = sphi 0, %s207
      %s211 = sphi 0, %s210
      %s227 = sphi 0, %s211
    $region4: #{vnet_forward.11} parent=1 // loop_header_branch
      %22 = sbr.rel (%p20) target = $region8
    $region5: #{vnet_forward.11} parent=1 // loop_body
      %s24 = ssub.s32 %s19, 1
      %s25 = ssub.s32 %s19, 2
      %s26 = sadd.s32 %s19, 1
      %s27 = ssub.s32 %s19, %s26
      %p28 = scmp.eq.s32.totalorder %s27, 0
      %s30 = sadd.s32 %s29, 1
      %s31 = scalar_select %p28, %s29, %s30
      %p34 = pneg %p28
      %p35 = scmp.eq.s32.totalorder %s19, 1
      %p36 = por %p34, %p35
      %p37 = scmp.ne.s32.totalorder %s29, %s32
      %p38 = scmp.eq.s32.totalorder %s19, 0
      %p39 = por %p37, %p38
      %p40 = scmp.ne.s32.totalorder %s29, %s32
      %p41 = scmp.eq.s32.totalorder %s24, 1
      %p42 = por %p40, %p41
      %p43 = scmp.ne.s32.totalorder %s32, %s33
      %p44 = scmp.eq.s32.totalorder %s24, 0
      %p45 = por %p43, %p44
      %p46 = scmp.ne.s32.totalorder %s32, %s33
      %p47 = scmp.eq.s32.totalorder %s25, 1
      %p48 = por %p46, %p47
      %p50 = scmp.ne.s32.totalorder %s33, %s49
      %p51 = scmp.eq.s32.totalorder %s25, 0
      %p52 = por %p50, %p51
      %s54 = sadd.s32 %s53, 1
      %p57 = scmp.eq.s32.totalorder %s19, 1
      %p58 = scmp.ne.s32.totalorder %s53, %s55
      %p59 = scmp.eq.s32.totalorder %s19, 0
      %p60 = por %p58, %p59
      %p61 = scmp.ne.s32.totalorder %s53, %s55
      %p62 = scmp.eq.s32.totalorder %s24, 1
      %p63 = por %p61, %p62
      %p64 = scmp.ne.s32.totalorder %s55, %s56
      %p65 = scmp.eq.s32.totalorder %s24, 0
      %p66 = por %p64, %p65
      %p67 = scmp.ne.s32.totalorder %s55, %s56
      %p68 = scmp.eq.s32.totalorder %s25, 1
      %p69 = por %p67, %p68
      %p71 = scmp.ne.s32.totalorder %s56, %s70
      %p72 = scmp.eq.s32.totalorder %s25, 0
      %p73 = por %p71, %p72
      %s75 = sadd.s32 %s74, 1
      %p78 = scmp.eq.s32.totalorder %s19, 1
      %p79 = scmp.ne.s32.totalorder %s74, %s76
      %p80 = scmp.eq.s32.totalorder %s19, 0
      %p81 = por %p79, %p80
      %p82 = scmp.ne.s32.totalorder %s74, %s76
      %p83 = scmp.eq.s32.totalorder %s24, 1
      %p84 = por %p82, %p83
      %p85 = scmp.ne.s32.totalorder %s76, %s77
      %p86 = scmp.eq.s32.totalorder %s24, 0
      %p87 = por %p85, %p86
      %p88 = scmp.ne.s32.totalorder %s76, %s77
      %p89 = scmp.eq.s32.totalorder %s25, 1
      %p90 = por %p88, %p89
      %p92 = scmp.ne.s32.totalorder %s77, %s91
      %p93 = scmp.eq.s32.totalorder %s25, 0
      %p94 = por %p92, %p93
      %s96 = sadd.s32 %s95, 1
      %p99 = scmp.eq.s32.totalorder %s19, 1
      %p100 = scmp.ne.s32.totalorder %s95, %s97
      %p101 = scmp.eq.s32.totalorder %s19, 0
      %p102 = por %p100, %p101
      %p103 = scmp.ne.s32.totalorder %s95, %s97
      %p104 = scmp.eq.s32.totalorder %s24, 1
      %p105 = por %p103, %p104
      %p106 = scmp.ne.s32.totalorder %s97, %s98
      %p107 = scmp.eq.s32.totalorder %s24, 0
      %p108 = por %p106, %p107
      %p109 = scmp.ne.s32.totalorder %s97, %s98
      %p110 = scmp.eq.s32.totalorder %s25, 1
      %p111 = por %p109, %p110
      %p113 = scmp.ne.s32.totalorder %s98, %s112
      %p114 = scmp.eq.s32.totalorder %s25, 0
      %p115 = por %p113, %p114
      %s117 = sadd.s32 %s116, 1
      %p120 = scmp.eq.s32.totalorder %s19, 1
      %p121 = scmp.ne.s32.totalorder %s116, %s118
      %p122 = scmp.eq.s32.totalorder %s19, 0
      %p123 = por %p121, %p122
      %p124 = scmp.ne.s32.totalorder %s116, %s118
      %p125 = scmp.eq.s32.totalorder %s24, 1
      %p126 = por %p124, %p125
      %p127 = scmp.ne.s32.totalorder %s118, %s119
      %p128 = scmp.eq.s32.totalorder %s24, 0
      %p129 = por %p127, %p128
      %p130 = scmp.ne.s32.totalorder %s118, %s119
      %p131 = scmp.eq.s32.totalorder %s25, 1
      %p132 = por %p130, %p131
      %p134 = scmp.ne.s32.totalorder %s119, %s133
      %p135 = scmp.eq.s32.totalorder %s25, 0
      %p136 = por %p134, %p135
      %s138 = sadd.s32 %s137, 1
      %p141 = scmp.eq.s32.totalorder %s19, 1
      %p142 = scmp.ne.s32.totalorder %s137, %s139
      %p143 = scmp.eq.s32.totalorder %s19, 0
      %p144 = por %p142, %p143
      %p145 = scmp.ne.s32.totalorder %s137, %s139
      %p146 = scmp.eq.s32.totalorder %s24, 1
      %p147 = por %p145, %p146
      %p148 = scmp.ne.s32.totalorder %s139, %s140
      %p149 = scmp.eq.s32.totalorder %s24, 0
      %p150 = por %p148, %p149
      %p151 = scmp.ne.s32.totalorder %s139, %s140
      %p152 = scmp.eq.s32.totalorder %s25, 1
      %p153 = por %p151, %p152
      %p155 = scmp.ne.s32.totalorder %s140, %s154
      %p156 = scmp.eq.s32.totalorder %s25, 0
      %p157 = por %p155, %p156
      %s159 = sadd.s32 %s158, 1
      %p162 = scmp.eq.s32.totalorder %s19, 1
      %p163 = scmp.ne.s32.totalorder %s158, %s160
      %p164 = scmp.eq.s32.totalorder %s19, 0
      %p165 = por %p163, %p164
      %p166 = scmp.ne.s32.totalorder %s158, %s160
      %p167 = scmp.eq.s32.totalorder %s24, 1
      %p168 = por %p166, %p167
      %p169 = scmp.ne.s32.totalorder %s160, %s161
      %p170 = scmp.eq.s32.totalorder %s24, 0
      %p171 = por %p169, %p170
      %p172 = scmp.ne.s32.totalorder %s160, %s161
      %p173 = scmp.eq.s32.totalorder %s25, 1
      %p174 = por %p172, %p173
      %p176 = scmp.ne.s32.totalorder %s161, %s175
      %p177 = scmp.eq.s32.totalorder %s25, 0
      %p178 = por %p176, %p177
      %s179 = ssub.s32 %s19, %s26
      %p180 = scmp.eq.s32.totalorder %s179, 0
      %s182 = sadd.s32 %s181, 1
      %s183 = scalar_select %p180, %s181, %s182
      %p186 = pneg %p180
      %p187 = scmp.eq.s32.totalorder %s19, 1
      %p188 = por %p186, %p187
      %p189 = scmp.ne.s32.totalorder %s181, %s184
      %p190 = scmp.eq.s32.totalorder %s19, 0
      %p191 = por %p189, %p190
      %p192 = scmp.ne.s32.totalorder %s181, %s184
      %p193 = scmp.eq.s32.totalorder %s24, 1
      %p194 = por %p192, %p193
      %p195 = scmp.ne.s32.totalorder %s184, %s185
      %p196 = scmp.eq.s32.totalorder %s24, 0
      %p197 = por %p195, %p196
      %p198 = scmp.ne.s32.totalorder %s184, %s185
      %p199 = scmp.eq.s32.totalorder %s25, 1
      %p200 = por %p198, %p199
      %p202 = scmp.ne.s32.totalorder %s185, %s201
      %p203 = scmp.eq.s32.totalorder %s25, 0
      %p204 = por %p202, %p203
      %s205 = ssub.s32 %s19, %s26
      %p206 = scmp.eq.s32.totalorder %s205, 0
      %s208 = sadd.s32 %s207, 1
      %s209 = scalar_select %p206, %s207, %s208
      %p212 = pneg %p206
      %p213 = scmp.eq.s32.totalorder %s19, 1
      %p214 = por %p212, %p213
      %p215 = scmp.ne.s32.totalorder %s207, %s210
      %p216 = scmp.eq.s32.totalorder %s19, 0
      %p217 = por %p215, %p216
      %p218 = scmp.ne.s32.totalorder %s207, %s210
      %p219 = scmp.eq.s32.totalorder %s24, 1
      %p220 = por %p218, %p219
      %p221 = scmp.ne.s32.totalorder %s210, %s211
      %p222 = scmp.eq.s32.totalorder %s24, 0
      %p223 = por %p221, %p222
      %p224 = scmp.ne.s32.totalorder %s210, %s211
      %p225 = scmp.eq.s32.totalorder %s25, 1
      %p226 = por %p224, %p225
      %p228 = scmp.ne.s32.totalorder %s211, %s227
      %p229 = scmp.eq.s32.totalorder %s25, 0
      %p230 = por %p228, %p229
      %p231 = scmp.le.s32.totalorder 1, %s19
      %p232 = scmp.lt.s32.totalorder %s19, 3
      %p233 = pnand %p231, %p232
      %p234 = pneg %p233
      // Predicated region
      $region9: #{vnet_forward.11} parent=5 // pred_check
        _
      $region10: #{vnet_forward.11} parent=5 // pred_check_branch
        %236 = sbr.rel (%p233) target = $region12
      $region11: #{vnet_forward.11} parent=5 // pred_region
        %s237 = ssub.s32 %s19, 1
        // Predicated region
        $region13: #{vnet_forward.11} parent=11 // pred_check
          %p238 = pneg %p66
        $region14: #{vnet_forward.11} parent=11 // pred_check_branch
          %240 = sbr.rel (%p238) target = $region16
        $region15: #{vnet_forward.11} parent=11 // pred_region
          %242 = vsyncadd [#allocation3], 0
          %s243 = sshll.u32 %s1, 4
          %s244 = int_to_ptr.hbm [resolvable:$true] %s243
          %s245 = sshll.u32 [#allocation2], 4
          %s246 = int_to_ptr.vmem [resolvable:$true] %s245
          %251 = dma.hbm_to_vmem [thread:$0]  %s244, 384, %s246, [#allocation3], 64, 64, 4
        $region16: #{vnet_forward.11} parent=11 // pred_fallthru
          _
        // Predicated region
        $region17: #{vnet_forward.11} parent=11 // pred_check
          %p252 = pneg %p87
        $region18: #{vnet_forward.11} parent=11 // pred_check_branch
          %254 = sbr.rel (%p252) target = $region20
        $region19: #{vnet_forward.11} parent=11 // pred_region
          %256 = vsyncadd [#allocation5], 0
          %s258 = sshll.u32 %s2, 4
          %s259 = int_to_ptr.hbm [resolvable:$true] %s258
          %s260 = sshll.u32 [#allocation4], 4
          %s261 = int_to_ptr.vmem [resolvable:$true] %s260
          %263 = dma.hbm_to_vmem [thread:$0]  %s259, 16, %s261, [#allocation5]
        $region20: #{vnet_forward.11} parent=11 // pred_fallthru
          _
        // Predicated region
        $region21: #{vnet_forward.11} parent=11 // pred_check
          %p264 = pneg %p108
        $region22: #{vnet_forward.11} parent=11 // pred_check_branch
          %266 = sbr.rel (%p264) target = $region24
        $region23: #{vnet_forward.11} parent=11 // pred_region
          %268 = vsyncadd [#allocation5], 0
          %s270 = sshll.u32 %s3, 4
          %s271 = int_to_ptr.hbm [resolvable:$true] %s270
          %s272 = sshll.u32 [#allocation6], 4
          %s273 = int_to_ptr.vmem [resolvable:$true] %s272
          %275 = dma.hbm_to_vmem [thread:$0]  %s271, 16, %s273, [#allocation5]
        $region24: #{vnet_forward.11} parent=11 // pred_fallthru
          _
        // Predicated region
        $region25: #{vnet_forward.11} parent=11 // pred_check
          %p276 = pneg %p129
        $region26: #{vnet_forward.11} parent=11 // pred_check_branch
          %278 = sbr.rel (%p276) target = $region28
        $region27: #{vnet_forward.11} parent=11 // pred_region
          %280 = vsyncadd [#allocation8], 0
          %s281 = sshll.u32 %s4, 4
          %s282 = int_to_ptr.hbm [resolvable:$true] %s281
          %s283 = sshll.u32 [#allocation7], 4
          %s284 = int_to_ptr.vmem [resolvable:$true] %s283
          %289 = dma.hbm_to_vmem [thread:$0]  %s282, 768, %s284, [#allocation8], 64, 64, 4
        $region28: #{vnet_forward.11} parent=11 // pred_fallthru
          _
        // Predicated region
        $region29: #{vnet_forward.11} parent=11 // pred_check
          %p290 = pneg %p150
        $region30: #{vnet_forward.11} parent=11 // pred_check_branch
          %292 = sbr.rel (%p290) target = $region32
        $region31: #{vnet_forward.11} parent=11 // pred_region
          %294 = vsyncadd [#allocation8], 0
          %s296 = sshll.u32 %s5, 4
          %s297 = int_to_ptr.hbm [resolvable:$true] %s296
          %s298 = sshll.u32 [#allocation9], 4
          %s299 = int_to_ptr.vmem [resolvable:$true] %s298
          %301 = dma.hbm_to_vmem [thread:$0]  %s297, 16, %s299, [#allocation8]
        $region32: #{vnet_forward.11} parent=11 // pred_fallthru
          _
        // Predicated region
        $region33: #{vnet_forward.11} parent=11 // pred_check
          %p302 = pneg %p171
        $region34: #{vnet_forward.11} parent=11 // pred_check_branch
          %304 = sbr.rel (%p302) target = $region36
        $region35: #{vnet_forward.11} parent=11 // pred_region
          %306 = vsyncadd [#allocation11], 0
          %s308 = sshll.u32 %s6, 4
          %s309 = int_to_ptr.hbm [resolvable:$true] %s308
          %s310 = sshll.u32 [#allocation10], 4
          %s311 = int_to_ptr.vmem [resolvable:$true] %s310
          %313 = dma.hbm_to_vmem [thread:$0]  %s309, 16, %s311, [#allocation11]
        $region36: #{vnet_forward.11} parent=11 // pred_fallthru
          _
      $region12: #{vnet_forward.11} parent=5 // pred_fallthru
        _
      %p314 = scmp.lt.s32.totalorder %s19, 2
      // Predicated region
      $region37: #{vnet_forward.11} parent=5 // pred_check
        %p315 = pneg %p314
      $region38: #{vnet_forward.11} parent=5 // pred_check_branch
        %317 = sbr.rel (%p315) target = $region40
      $region39: #{vnet_forward.11} parent=5 // pred_region
        // Predicated region
        $region41: #{vnet_forward.11} parent=39 // pred_check
          %p318 = pneg %p39
        $region42: #{vnet_forward.11} parent=39 // pred_check_branch
          %320 = sbr.rel (%p318) target = $region44
        $region43: #{vnet_forward.11} parent=39 // pred_region
          %p321 = scmp.lt.s32.totalorder %s19, 1
          %s322 = scalar_select %p321, %s19, 1
          %s323 = smul.addr %s322, 8
          %s324 = scalar_lea.vmem %s0, %s323
        $region44: #{vnet_forward.11} parent=39 // pred_fallthru
          _
      $region40: #{vnet_forward.11} parent=5 // pred_fallthru
        _
      %p325 = scmp.le.s32.totalorder 1, %s19
      %p326 = scmp.lt.s32.totalorder %s19, 3
      %p327 = pnand %p325, %p326
      %p328 = pneg %p327
      // Predicated region
      $region45: #{vnet_forward.11} parent=5 // pred_check
        _
      $region46: #{vnet_forward.11} parent=5 // pred_check_branch
        %330 = sbr.rel (%p327) target = $region48
      $region47: #{vnet_forward.11} parent=5 // pred_region
        %s331 = ssub.s32 %s19, 1
        // Predicated region
        $region49: #{vnet_forward.11} parent=47 // pred_check
          %p332 = pneg %p66
        $region50: #{vnet_forward.11} parent=47 // pred_check_branch
          %334 = sbr.rel (%p332) target = $region52
        $region51: #{vnet_forward.11} parent=47 // pred_region
          %336 = dma.done [#allocation3], 384
        $region52: #{vnet_forward.11} parent=47 // pred_fallthru
          _
        // Predicated region
        $region53: #{vnet_forward.11} parent=47 // pred_check
          %p337 = pneg %p87
        $region54: #{vnet_forward.11} parent=47 // pred_check_branch
          %339 = sbr.rel (%p337) target = $region56
        $region55: #{vnet_forward.11} parent=47 // pred_region
          %341 = dma.done [#allocation5], 16
        $region56: #{vnet_forward.11} parent=47 // pred_fallthru
          _
        // Predicated region
        $region57: #{vnet_forward.11} parent=47 // pred_check
          %p342 = pneg %p108
        $region58: #{vnet_forward.11} parent=47 // pred_check_branch
          %344 = sbr.rel (%p342) target = $region60
        $region59: #{vnet_forward.11} parent=47 // pred_region
          %346 = dma.done [#allocation5], 16
        $region60: #{vnet_forward.11} parent=47 // pred_fallthru
          _
        // Predicated region
        $region61: #{vnet_forward.11} parent=47 // pred_check
          %p347 = pneg %p129
        $region62: #{vnet_forward.11} parent=47 // pred_check_branch
          %349 = sbr.rel (%p347) target = $region64
        $region63: #{vnet_forward.11} parent=47 // pred_region
          %351 = dma.done [#allocation8], 768
        $region64: #{vnet_forward.11} parent=47 // pred_fallthru
          _
        // Predicated region
        $region65: #{vnet_forward.11} parent=47 // pred_check
          %p352 = pneg %p150
        $region66: #{vnet_forward.11} parent=47 // pred_check_branch
          %354 = sbr.rel (%p352) target = $region68
        $region67: #{vnet_forward.11} parent=47 // pred_region
          %356 = dma.done [#allocation8], 16
        $region68: #{vnet_forward.11} parent=47 // pred_fallthru
          _
        // Predicated region
        $region69: #{vnet_forward.11} parent=47 // pred_check
          %p357 = pneg %p171
        $region70: #{vnet_forward.11} parent=47 // pred_check_branch
          %359 = sbr.rel (%p357) target = $region72
        $region71: #{vnet_forward.11} parent=47 // pred_region
          %361 = dma.done [#allocation11], 16
        $region72: #{vnet_forward.11} parent=47 // pred_fallthru
          _
        %p362 = scmp.lt.s32.totalorder %s24, 1
        %s363 = scalar_select %p362, %s24, 1
        %s364 = smul.addr %s363, 8
        %s365 = scalar_lea.vmem %s0, %s364
        %p366 = pneg %p45
        %p367 = pneg %p42
        %p368 = pneg %p66
        %p369 = pneg %p63
        %p370 = pneg %p87
        %p371 = pneg %p84
        %p372 = pneg %p108
        %p373 = pneg %p105
        %p374 = pneg %p129
        %p375 = pneg %p126
        %p376 = pneg %p150
        %p377 = pneg %p147
        %p378 = pneg %p171
        %p379 = pneg %p168
        %p380 = pneg %p197
        %p381 = pneg %p194
        %p382 = scmp.lt.s32.totalorder %s24, 1
        %s383 = scalar_select %p382, %s24, 1
        %s384 = smul.addr %s383, 8
        %s385 = scalar_lea.vmem %s7, %s384
        %p386 = pneg %p223
        %p387 = pneg %p220
        %p388 = scmp.lt.s32.totalorder %s24, 1
        %s389 = scalar_select %p388, %s24, 1
        %s390 = smul.addr %s389, 4
        %s391 = scalar_lea.vmem %s8, %s390
        %p392 = scmp.lt.s32.totalorder %s24, 1
        %s393 = scalar_select %p392, %s24, 1
        %s394 = smul.addr %s393, 8
        %s395 = scalar_lea.vmem %s0, %s394
        %p396 = scmp.lt.s32.totalorder %s24, 1
        %s397 = scalar_select %p396, %s24, 1
        %s398 = smul.addr %s397, 8
        %s399 = scalar_lea.vmem %s7, %s398
        %p400 = scmp.lt.s32.totalorder %s24, 1
        %s401 = scalar_select %p400, %s24, 1
        %s402 = smul.addr %s401, 4
        %s403 = scalar_lea.vmem %s8, %s402
        %v405 = vld [vmem:[%s395] sm:$0xff]
        %v406 = vlaneseq
        %v407 = vshrl.u32 %v406, 7
        %v408 = vlaneseq
        %v409 = vand.u32 %v408, 127
        %v410 = vsub.s32 %v407, 1
        %vm411 = vcmp.eq.s32.totalorder %v409, %v410
        %v412 = vsel %vm411, 1, 0
        %v413 = vcvt.s32.f32 %v412
        %v414 = vadd.s32 %v407, 1
        %vm415 = vcmp.eq.s32.totalorder %v409, %v414
        %v416 = vsel %vm415, 1, 0
        %v417 = vcvt.s32.f32 %v416
        %vm418 = vcmask 64512
        %v420 = vsel %vm418, %v413, 0
        %422 = vmatpush.msra.mxu0 0.0
        %423 = vmatpush.msra.mxu0 0.0
        %424 = vmatpush.msra.mxu0 0.0
        %425 = vmatpush.msra.mxu0 0.0
        %426 = vmatpush.msra.mxu0 0.0
        %427 = vmatpush.msra.mxu0 0.0
        %428 = vmatpush.msra.mxu0 0.0
        %429 = vmatpush.msra.mxu0 0.0
        %430 = vmatpush.msra.mxu0 0.0
        %431 = vmatpush.msra.mxu0 0.0
        %432 = vmatpush.msra.mxu0 0.0
        %433 = vmatpush.msra.mxu0 0.0
        %434 = vmatpush.msra.mxu0 0.0
        %435 = vmatpush.msra.mxu0 0.0
        %436 = vmatpush.msra.mxu0 0.0
        %437 = vmatpush.msra.mxu0 %v405
        %438 = vmatmul.f32.gmra.mxu0 %v420
        %v439 = vpop.f32.mrf.mxu0
        %v440 = vadd.f32 0.0, %v439
        %441 = vdwg.mxu0
        %v443 = vsel %vm418, %v417, 0
        %445 = vmatpush.msra.mxu0 0.0
        %446 = vmatpush.msra.mxu0 0.0
        %447 = vmatpush.msra.mxu0 0.0
        %448 = vmatpush.msra.mxu0 0.0
        %449 = vmatpush.msra.mxu0 0.0
        %450 = vmatpush.msra.mxu0 0.0
        %451 = vmatpush.msra.mxu0 0.0
        %452 = vmatpush.msra.mxu0 0.0
        %453 = vmatpush.msra.mxu0 0.0
        %454 = vmatpush.msra.mxu0 0.0
        %455 = vmatpush.msra.mxu0 0.0
        %456 = vmatpush.msra.mxu0 0.0
        %457 = vmatpush.msra.mxu0 0.0
        %458 = vmatpush.msra.mxu0 0.0
        %459 = vmatpush.msra.mxu0 0.0
        %460 = vmatpush.msra.mxu0 %v405
        %461 = vmatmul.f32.gmra.mxu0 %v443
        %v462 = vpop.f32.mrf.mxu0
        %v463 = vadd.f32 0.0, %v462
        %464 = vdwg.mxu0
        %v465 = vpack.c.bf16 %v405, %v405
        %s466 = scalar_lea.vmem [#allocation2], 8
        %v467 = vld [vmem:[%s466] sm:$0xf]
        %v468 = vld [vmem:[%s466 + $0x4] sm:$0xf]
        %v469 = vpack.c.bf16 %v440, %v440
        %v470 = vld [vmem:[#allocation2] sm:$0xf]
        %v471 = vld [vmem:[#allocation2 + $0x4] sm:$0xf]
        %v474 = vunpack.c.l.b16 %v470
        %v475 = vunpack.c.l.b16 %v471
        %v476 = vpack.c.b16 %v475, %v474
        %vm478 = vcmask 130048
        %v480 = vsel %vm478, %v469, 0
        %482 = vmatpush.bf16.msra.mxu0 0
        %483 = vmatpush.bf16.msra.mxu0 0
        %484 = vmatpush.bf16.msra.mxu0 0
        %485 = vmatpush.bf16.msra.mxu0 0
        %486 = vmatpush.bf16.msra.mxu0 0
        %487 = vmatpush.bf16.msra.mxu0 0
        %488 = vmatpush.bf16.msra.mxu0 0
        %489 = vmatpush.bf16.msra.mxu0 %v476
        %490 = vmatmul.bf16.gmra.mxu0 %v480
        %v491 = vpop.f32.mrf.mxu0
        %v492 = vadd.f32 0.0, %v491
        %v493 = vpop.f32.mrf.mxu0
        %494 = vdwg.mxu0
        %v497 = vunpack.c.l.b16 %v467
        %v498 = vunpack.c.l.b16 %v468
        %v499 = vpack.c.b16 %v498, %v497
        %v502 = vsel %vm478, %v465, 0
        %504 = vmatpush.bf16.msra.mxu0 0
        %505 = vmatpush.bf16.msra.mxu0 0
        %506 = vmatpush.bf16.msra.mxu0 0
        %507 = vmatpush.bf16.msra.mxu0 0
        %508 = vmatpush.bf16.msra.mxu0 0
        %509 = vmatpush.bf16.msra.mxu0 0
        %510 = vmatpush.bf16.msra.mxu0 0
        %511 = vmatpush.bf16.msra.mxu0 %v499
        %512 = vmatmul.bf16.gmra.mxu0 %v502
        %v513 = vpop.f32.mrf.mxu0
        %v514 = vadd.f32 %v492, %v513
        %v515 = vpop.f32.mrf.mxu0
        %516 = vdwg.mxu0
        %v517 = vpack.c.bf16 %v463, %v463
        %s518 = scalar_lea.vmem [#allocation2], 16
        %v519 = vld [vmem:[%s518] sm:$0xf]
        %v520 = vld [vmem:[%s518 + $0x4] sm:$0xf]
        %v523 = vunpack.c.l.b16 %v519
        %v524 = vunpack.c.l.b16 %v520
        %v525 = vpack.c.b16 %v524, %v523
        %v528 = vsel %vm478, %v517, 0
        %530 = vmatpush.bf16.msra.mxu0 0
        %531 = vmatpush.bf16.msra.mxu0 0
        %532 = vmatpush.bf16.msra.mxu0 0
        %533 = vmatpush.bf16.msra.mxu0 0
        %534 = vmatpush.bf16.msra.mxu0 0
        %535 = vmatpush.bf16.msra.mxu0 0
        %536 = vmatpush.bf16.msra.mxu0 0
        %537 = vmatpush.bf16.msra.mxu0 %v525
        %538 = vmatmul.bf16.gmra.mxu0 %v528
        %v539 = vpop.f32.mrf.mxu0
        %v540 = vadd.f32 0.0, %v539
        %v541 = vpop.f32.mrf.mxu0
        %542 = vdwg.mxu0
        %v543 = vadd.f32 %v514, %v540
        %v544 = vld [vmem:[#allocation4] sm:$0x1]
        %v546 = vperm.slane %v544, 0
        %v548 = vmul.f32 %v543, %v546
        %v549 = vld [vmem:[#allocation6] sm:$0x1]
        %v551 = vperm.slane %v549, 0
        %v553 = vadd.f32 %v548, %v551
        %v554 = vmax.f32 %v553, 0.0
        %555 = vmatpush.msra.mxu0 0.0
        %556 = vmatpush.msra.mxu0 0.0
        %557 = vmatpush.msra.mxu0 0.0
        %558 = vmatpush.msra.mxu0 0.0
        %559 = vmatpush.msra.mxu0 0.0
        %560 = vmatpush.msra.mxu0 0.0
        %561 = vmatpush.msra.mxu0 0.0
        %562 = vmatpush.msra.mxu0 0.0
        %563 = vmatpush.msra.mxu0 0.0
        %564 = vmatpush.msra.mxu0 0.0
        %565 = vmatpush.msra.mxu0 0.0
        %566 = vmatpush.msra.mxu0 0.0
        %567 = vmatpush.msra.mxu0 0.0
        %568 = vmatpush.msra.mxu0 0.0
        %569 = vmatpush.msra.mxu0 0.0
        %570 = vmatpush.msra.mxu0 %v554
        %571 = vmatmul.f32.gmra.mxu0 %v420
        %v572 = vpop.f32.mrf.mxu0
        %v573 = vadd.f32 0.0, %v572
        %574 = vdwg.mxu0
        %575 = vmatpush.msra.mxu0 0.0
        %576 = vmatpush.msra.mxu0 0.0
        %577 = vmatpush.msra.mxu0 0.0
        %578 = vmatpush.msra.mxu0 0.0
        %579 = vmatpush.msra.mxu0 0.0
        %580 = vmatpush.msra.mxu0 0.0
        %581 = vmatpush.msra.mxu0 0.0
        %582 = vmatpush.msra.mxu0 0.0
        %583 = vmatpush.msra.mxu0 0.0
        %584 = vmatpush.msra.mxu0 0.0
        %585 = vmatpush.msra.mxu0 0.0
        %586 = vmatpush.msra.mxu0 0.0
        %587 = vmatpush.msra.mxu0 0.0
        %588 = vmatpush.msra.mxu0 0.0
        %589 = vmatpush.msra.mxu0 0.0
        %590 = vmatpush.msra.mxu0 %v554
        %591 = vmatmul.f32.gmra.mxu0 %v443
        %v592 = vpop.f32.mrf.mxu0
        %v593 = vadd.f32 0.0, %v592
        %594 = vdwg.mxu0
        %v595 = vpack.c.bf16 %v554, %v554
        %s596 = scalar_lea.vmem [#allocation7], 16
        %v597 = vld [vmem:[%s596] sm:$0xf]
        %v598 = vld [vmem:[%s596 + $0x4] sm:$0xf]
        %v599 = vld [vmem:[%s596 + $0x8] sm:$0xf]
        %v600 = vld [vmem:[%s596 + $0xc] sm:$0xf]
        %v601 = vpack.c.bf16 %v573, %v573
        %v602 = vld [vmem:[#allocation7] sm:$0xf]
        %v603 = vld [vmem:[#allocation7 + $0x4] sm:$0xf]
        %v604 = vld [vmem:[#allocation7 + $0x8] sm:$0xf]
        %v605 = vld [vmem:[#allocation7 + $0xc] sm:$0xf]
        %v610 = vunpack.c.l.b16 %v602
        %v611 = vunpack.c.l.b16 %v603
        %v612 = vunpack.c.l.b16 %v604
        %v613 = vunpack.c.l.b16 %v605
        %v614 = vpack.c.b16 %v611, %v610
        %v615 = vpack.c.b16 %v613, %v612
        %vm618 = vcmask 261120
        %v620 = vsel %vm618, %v601, 0
        %622 = vmatpush.bf16.msra.mxu0 0
        %623 = vmatpush.bf16.msra.mxu0 0
        %624 = vmatpush.bf16.msra.mxu0 0
        %625 = vmatpush.bf16.msra.mxu0 0
        %626 = vmatpush.bf16.msra.mxu0 0
        %627 = vmatpush.bf16.msra.mxu0 0
        %628 = vmatpush.bf16.msra.mxu0 %v615
        %629 = vmatpush.bf16.msra.mxu0 %v614
        %630 = vmatmul.bf16.gmra.mxu0 %v620
        %v631 = vpop.f32.mrf.mxu0
        %v632 = vadd.f32 0.0, %v631
        %v633 = vpop.f32.mrf.mxu0
        %634 = vdwg.mxu0
        %v639 = vunpack.c.l.b16 %v597
        %v640 = vunpack.c.l.b16 %v598
        %v641 = vunpack.c.l.b16 %v599
        %v642 = vunpack.c.l.b16 %v600
        %v643 = vpack.c.b16 %v640, %v639
        %v644 = vpack.c.b16 %v642, %v641
        %v648 = vsel %vm618, %v595, 0
        %650 = vmatpush.bf16.msra.mxu0 0
        %651 = vmatpush.bf16.msra.mxu0 0
        %652 = vmatpush.bf16.msra.mxu0 0
        %653 = vmatpush.bf16.msra.mxu0 0
        %654 = vmatpush.bf16.msra.mxu0 0
        %655 = vmatpush.bf16.msra.mxu0 0
        %656 = vmatpush.bf16.msra.mxu0 %v644
        %657 = vmatpush.bf16.msra.mxu0 %v643
        %658 = vmatmul.bf16.gmra.mxu0 %v648
        %v659 = vpop.f32.mrf.mxu0
        %v660 = vadd.f32 %v632, %v659
        %v661 = vpop.f32.mrf.mxu0
        %662 = vdwg.mxu0
        %v663 = vpack.c.bf16 %v593, %v593
        %s664 = scalar_lea.vmem [#allocation7], 32
        %v665 = vld [vmem:[%s664] sm:$0xf]
        %v666 = vld [vmem:[%s664 + $0x4] sm:$0xf]
        %v667 = vld [vmem:[%s664 + $0x8] sm:$0xf]
        %v668 = vld [vmem:[%s664 + $0xc] sm:$0xf]
        %v673 = vunpack.c.l.b16 %v665
        %v674 = vunpack.c.l.b16 %v666
        %v675 = vunpack.c.l.b16 %v667
        %v676 = vunpack.c.l.b16 %v668
        %v677 = vpack.c.b16 %v674, %v673
        %v678 = vpack.c.b16 %v676, %v675
        %v682 = vsel %vm618, %v663, 0
        %684 = vmatpush.bf16.msra.mxu0 0
        %685 = vmatpush.bf16.msra.mxu0 0
        %686 = vmatpush.bf16.msra.mxu0 0
        %687 = vmatpush.bf16.msra.mxu0 0
        %688 = vmatpush.bf16.msra.mxu0 0
        %689 = vmatpush.bf16.msra.mxu0 0
        %690 = vmatpush.bf16.msra.mxu0 %v678
        %691 = vmatpush.bf16.msra.mxu0 %v677
        %692 = vmatmul.bf16.gmra.mxu0 %v682
        %v693 = vpop.f32.mrf.mxu0
        %v694 = vadd.f32 0.0, %v693
        %v695 = vpop.f32.mrf.mxu0
        %696 = vdwg.mxu0
        %v697 = vadd.f32 %v660, %v694
        %v698 = vld [vmem:[#allocation9] sm:$0x1]
        %v700 = vperm.slane %v698, 0
        %v702 = vmul.f32 %v697, %v700
        %v703 = vld [vmem:[#allocation10] sm:$0x1]
        %v705 = vperm.slane %v703, 0
        %v707 = vadd.f32 %v702, %v705
        %v708 = vmax.f32 %v707, 0.0
        %709 = vst.msk [vmem:[%s399] sm:$0xff] %vm618, %v708
        %v710 = vmul.u32 %v407, 2
        %vm711 = vcmp.eq.s32.totalorder %v409, %v710
        %v712 = vsel %vm711, 1, 0
        %v713 = vcvt.s32.f32 %v712
        %v714 = vadd.s32 %v710, 1
        %vm715 = vcmp.eq.s32.totalorder %v409, %v714
        %v716 = vsel %vm715, 1, 0
        %v717 = vcvt.s32.f32 %v716
        %v719 = vsel %vm418, %v713, 0
        %721 = vmatpush.msra.mxu0 0.0
        %722 = vmatpush.msra.mxu0 0.0
        %723 = vmatpush.msra.mxu0 0.0
        %724 = vmatpush.msra.mxu0 0.0
        %725 = vmatpush.msra.mxu0 0.0
        %726 = vmatpush.msra.mxu0 0.0
        %727 = vmatpush.msra.mxu0 0.0
        %728 = vmatpush.msra.mxu0 0.0
        %729 = vmatpush.msra.mxu0 0.0
        %730 = vmatpush.msra.mxu0 0.0
        %731 = vmatpush.msra.mxu0 0.0
        %732 = vmatpush.msra.mxu0 0.0
        %733 = vmatpush.msra.mxu0 0.0
        %734 = vmatpush.msra.mxu0 0.0
        %735 = vmatpush.msra.mxu0 0.0
        %736 = vmatpush.msra.mxu0 %v708
        %737 = vmatmul.f32.gmra.mxu0 %v719
        %v738 = vpop.f32.mrf.mxu0
        %v739 = vadd.f32 0.0, %v738
        %740 = vdwg.mxu0
        %v742 = vsel %vm418, %v717, 0
        %744 = vmatpush.msra.mxu0 0.0
        %745 = vmatpush.msra.mxu0 0.0
        %746 = vmatpush.msra.mxu0 0.0
        %747 = vmatpush.msra.mxu0 0.0
        %748 = vmatpush.msra.mxu0 0.0
        %749 = vmatpush.msra.mxu0 0.0
        %750 = vmatpush.msra.mxu0 0.0
        %751 = vmatpush.msra.mxu0 0.0
        %752 = vmatpush.msra.mxu0 0.0
        %753 = vmatpush.msra.mxu0 0.0
        %754 = vmatpush.msra.mxu0 0.0
        %755 = vmatpush.msra.mxu0 0.0
        %756 = vmatpush.msra.mxu0 0.0
        %757 = vmatpush.msra.mxu0 0.0
        %758 = vmatpush.msra.mxu0 0.0
        %759 = vmatpush.msra.mxu0 %v708
        %760 = vmatmul.f32.gmra.mxu0 %v742
        %v761 = vpop.f32.mrf.mxu0
        %v762 = vadd.f32 0.0, %v761
        %763 = vdwg.mxu0
        %v764 = vmax.f32 %v739, %v762
        %vm765 = vcmask 257024
        %766 = vst.msk [vmem:[%s403] sm:$0xf] %vm765, %v764
        %p767 = scmp.lt.s32.totalorder %s24, 1
        %s768 = scalar_select %p767, %s24, 1
        %s769 = smul.addr %s768, 8
        %s770 = scalar_lea.vmem %s7, %s769
        %p771 = scmp.lt.s32.totalorder %s24, 1
        %s772 = scalar_select %p771, %s24, 1
        %s773 = smul.addr %s772, 4
        %s774 = scalar_lea.vmem %s8, %s773
        // Predicated region
        $region73: #{vnet_forward.11} parent=47 // pred_check
          %p775 = pneg %p194
        $region74: #{vnet_forward.11} parent=47 // pred_check_branch
          %777 = sbr.rel (%p775) target = $region76
        $region75: #{vnet_forward.11} parent=47 // pred_region
          _
        $region76: #{vnet_forward.11} parent=47 // pred_fallthru
          _
        // Predicated region
        $region77: #{vnet_forward.11} parent=47 // pred_check
          %p778 = pneg %p220
        $region78: #{vnet_forward.11} parent=47 // pred_check_branch
          %780 = sbr.rel (%p778) target = $region80
        $region79: #{vnet_forward.11} parent=47 // pred_region
          _
        $region80: #{vnet_forward.11} parent=47 // pred_fallthru
          _
      $region48: #{vnet_forward.11} parent=5 // pred_fallthru
        _
      %p781 = scmp.le.s32.totalorder 2, %s19
      // Predicated region
      $region81: #{vnet_forward.11} parent=5 // pred_check
        %p782 = pneg %p781
      $region82: #{vnet_forward.11} parent=5 // pred_check_branch
        %784 = sbr.rel (%p782) target = $region84
      $region83: #{vnet_forward.11} parent=5 // pred_region
        %s785 = ssub.s32 %s19, 2
        // Predicated region
        $region85: #{vnet_forward.11} parent=83 // pred_check
          %p786 = pneg %p200
        $region86: #{vnet_forward.11} parent=83 // pred_check_branch
          %788 = sbr.rel (%p786) target = $region88
        $region87: #{vnet_forward.11} parent=83 // pred_region
          %p789 = scmp.lt.s32.totalorder %s25, 1
          %s790 = scalar_select %p789, %s25, 1
          %s791 = smul.addr %s790, 8
          %s792 = scalar_lea.vmem %s7, %s791
        $region88: #{vnet_forward.11} parent=83 // pred_fallthru
          _
        // Predicated region
        $region89: #{vnet_forward.11} parent=83 // pred_check
          %p793 = pneg %p226
        $region90: #{vnet_forward.11} parent=83 // pred_check_branch
          %795 = sbr.rel (%p793) target = $region92
        $region91: #{vnet_forward.11} parent=83 // pred_region
          %p796 = scmp.lt.s32.totalorder %s25, 1
          %s797 = scalar_select %p796, %s25, 1
          %s798 = smul.addr %s797, 4
          %s799 = scalar_lea.vmem %s8, %s798
        $region92: #{vnet_forward.11} parent=83 // pred_fallthru
          _
      $region84: #{vnet_forward.11} parent=5 // pred_fallthru
        _
    $region6: #{vnet_forward.11} parent=1 // loop_footer
      %s23 = sadd.s32 1, %s19
    $region7: #{vnet_forward.11} parent=1 // loop_footer_branch
      %18 = sbr.rel target = $region3
    $region8: #{vnet_forward.11} parent=1 // loop_exit
      _
    %800 = vsyncpa [#allocation3], 1
    %s801 = scalar_lea.sflag [#allocation3], 1
    %802 = vsyncpa %s801, 1
    %803 = vsyncpa [#allocation5], 1
    %804 = vsyncpa [#allocation8], 1
    %805 = vsyncpa [#allocation11], 1

// kernel: vnet_forward.12
$region0: #{vnet_forward.12}
  #allocation0 [shape = 'u32[]', space=smem, size = 0x4, offset = 0x4, fixed_abs, tag = 'smem constant byte address 0x4 - core index']
  #allocation1 [shape = 'u32[72,128]{1,0:T(1,128)}', space=vmem, size = 0x9000, scoped, tag = 'internal scratch']
  %s0 = inlined_call_operand.vmem [shape: f32[2,4,32], index: 0, kind: input, shape index: {}]
  %s1 = inlined_call_operand.hbm [shape: bf16[3,32,64], index: 1, kind: input, shape index: {}]
  %s2 = inlined_call_operand.hbm [shape: f32[1,64], index: 2, kind: input, shape index: {}]
  %s3 = inlined_call_operand.hbm [shape: f32[1,64], index: 3, kind: input, shape index: {}]
  %s4 = inlined_call_operand.hbm [shape: bf16[3,64,64], index: 4, kind: input, shape index: {}]
  %s5 = inlined_call_operand.hbm [shape: f32[1,64], index: 5, kind: input, shape index: {}]
  %s6 = inlined_call_operand.hbm [shape: f32[1,64], index: 6, kind: input, shape index: {}]
  %s7 = inlined_call_operand.vmem [shape: f32[2,4,64], index: 7, kind: output, shape index: {0}]
  %s8 = inlined_call_operand.vmem [shape: f32[2,2,64], index: 8, kind: output, shape index: {1}]
  %9 = xla_tuple %s7, %s8
  %s10 = sld [smem:[#allocation0]]
  $region93: #{vnet_forward.12} parent=0
    _
  %s12 = ssub.s32 1, %s10
  %s13 = scalar_select 0, %s12, %s10
  $region1: #{vnet_forward.12} parent=0
    #allocation2 [shape = 'u8[24576]{0}', space=vmem, size = 0x6000, scoped, tag = 'input window, operand 1, single buffered']
    #allocation3 [shape = 's32[2]{0}', space=sflag, size = 0x8, scoped, tag = 'scoped memory for vnet_forward.12']
    #allocation4 [shape = 'u8[512]{0}', space=vmem, size = 0x400, scoped, tag = 'input window, operand 2, single buffered']
    #allocation5 [shape = 's32[1]{0}', space=sflag, size = 0x4, scoped, tag = 'scoped memory for vnet_forward.12']
    #allocation6 [shape = 'u8[512]{0}', space=vmem, size = 0x400, scoped, tag = 'input window, operand 3, single buffered']
    #allocation7 [shape = 'u8[49152]{0}', space=vmem, size = 0xc000, scoped, tag = 'input window, operand 4, single buffered']
    #allocation8 [shape = 's32[1]{0}', space=sflag, size = 0x4, scoped, tag = 'scoped memory for vnet_forward.12']
    #allocation9 [shape = 'u8[512]{0}', space=vmem, size = 0x400, scoped, tag = 'input window, operand 5, single buffered']
    #allocation10 [shape = 'u8[512]{0}', space=vmem, size = 0x400, scoped, tag = 'input window, operand 6, single buffered']
    #allocation11 [shape = 's32[1]{0}', space=sflag, size = 0x4, scoped, tag = 'scoped memory for vnet_forward.12']
    %14 = vsyncpa [#allocation3], 0
    %15 = vsyncpa [#allocation5], 0
    %16 = vsyncpa [#allocation8], 0
    %17 = vsyncpa [#allocation11], 0
    loop: start=0, step=1, limit=4
    $region2: #{vnet_forward.12} parent=1 // loop_pre_header
      _
    $region3: #{vnet_forward.12} parent=1 // loop_header
      %s19 = sphi 0, %s23
      %p20 = scmp.ge.s32.totalorder %s19, 4
      %s29 = sphi 0, %s31
      %s32 = sphi 0, %s29
      %s33 = sphi 0, %s32
      %s49 = sphi 0, %s33
      %s53 = sphi 0, %s53
      %s55 = sphi 0, %s53
      %s56 = sphi 0, %s55
      %s70 = sphi 0, %s56
      %s74 = sphi 0, %s74
      %s76 = sphi 0, %s74
      %s77 = sphi 0, %s76
      %s91 = sphi 0, %s77
      %s95 = sphi 0, %s95
      %s97 = sphi 0, %s95
      %s98 = sphi 0, %s97
      %s112 = sphi 0, %s98
      %s116 = sphi 0, %s116
      %s118 = sphi 0, %s116
      %s119 = sphi 0, %s118
      %s133 = sphi 0, %s119
      %s137 = sphi 0, %s137
      %s139 = sphi 0, %s137
      %s140 = sphi 0, %s139
      %s154 = sphi 0, %s140
      %s158 = sphi 0, %s158
      %s160 = sphi 0, %s158
      %s161 = sphi 0, %s160
      %s175 = sphi 0, %s161
      %s181 = sphi 0, %s183
      %s184 = sphi 0, %s181
      %s185 = sphi 0, %s184
      %s201 = sphi 0, %s185
      %s207 = sphi 0, %s209
      %s210 = sphi 0, %s207
      %s211 = sphi 0, %s210
      %s227 = sphi 0, %s211
    $region4: #{vnet_forward.12} parent=1 // loop_header_branch
      %22 = sbr.rel (%p20) target = $region8
    $region5: #{vnet_forward.12} parent=1 // loop_body
      %s24 = ssub.s32 %s19, 1
      %s25 = ssub.s32 %s19, 2
      %s26 = sadd.s32 %s19, 1
      %s27 = ssub.s32 %s19, %s26
      %p28 = scmp.eq.s32.totalorder %s27, 0
      %s30 = sadd.s32 %s29, 1
      %s31 = scalar_select %p28, %s29, %s30
      %p34 = pneg %p28
      %p35 = scmp.eq.s32.totalorder %s19, 1
      %p36 = por %p34, %p35
      %p37 = scmp.ne.s32.totalorder %s29, %s32
      %p38 = scmp.eq.s32.totalorder %s19, 0
      %p39 = por %p37, %p38
      %p40 = scmp.ne.s32.totalorder %s29, %s32
      %p41 = scmp.eq.s32.totalorder %s24, 1
      %p42 = por %p40, %p41
      %p43 = scmp.ne.s32.totalorder %s32, %s33
      %p44 = scmp.eq.s32.totalorder %s24, 0
      %p45 = por %p43, %p44
      %p46 = scmp.ne.s32.totalorder %s32, %s33
      %p47 = scmp.eq.s32.totalorder %s25, 1
      %p48 = por %p46, %p47
      %p50 = scmp.ne.s32.totalorder %s33, %s49
      %p51 = scmp.eq.s32.totalorder %s25, 0
      %p52 = por %p50, %p51
      %s54 = sadd.s32 %s53, 1
      %p57 = scmp.eq.s32.totalorder %s19, 1
      %p58 = scmp.ne.s32.totalorder %s53, %s55
      %p59 = scmp.eq.s32.totalorder %s19, 0
      %p60 = por %p58, %p59
      %p61 = scmp.ne.s32.totalorder %s53, %s55
      %p62 = scmp.eq.s32.totalorder %s24, 1
      %p63 = por %p61, %p62
      %p64 = scmp.ne.s32.totalorder %s55, %s56
      %p65 = scmp.eq.s32.totalorder %s24, 0
      %p66 = por %p64, %p65
      %p67 = scmp.ne.s32.totalorder %s55, %s56
      %p68 = scmp.eq.s32.totalorder %s25, 1
      %p69 = por %p67, %p68
      %p71 = scmp.ne.s32.totalorder %s56, %s70
      %p72 = scmp.eq.s32.totalorder %s25, 0
      %p73 = por %p71, %p72
      %s75 = sadd.s32 %s74, 1
      %p78 = scmp.eq.s32.totalorder %s19, 1
      %p79 = scmp.ne.s32.totalorder %s74, %s76
      %p80 = scmp.eq.s32.totalorder %s19, 0
      %p81 = por %p79, %p80
      %p82 = scmp.ne.s32.totalorder %s74, %s76
      %p83 = scmp.eq.s32.totalorder %s24, 1
      %p84 = por %p82, %p83
      %p85 = scmp.ne.s32.totalorder %s76, %s77
      %p86 = scmp.eq.s32.totalorder %s24, 0
      %p87 = por %p85, %p86
      %p88 = scmp.ne.s32.totalorder %s76, %s77
      %p89 = scmp.eq.s32.totalorder %s25, 1
      %p90 = por %p88, %p89
      %p92 = scmp.ne.s32.totalorder %s77, %s91
      %p93 = scmp.eq.s32.totalorder %s25, 0
      %p94 = por %p92, %p93
      %s96 = sadd.s32 %s95, 1
      %p99 = scmp.eq.s32.totalorder %s19, 1
      %p100 = scmp.ne.s32.totalorder %s95, %s97
      %p101 = scmp.eq.s32.totalorder %s19, 0
      %p102 = por %p100, %p101
      %p103 = scmp.ne.s32.totalorder %s95, %s97
      %p104 = scmp.eq.s32.totalorder %s24, 1
      %p105 = por %p103, %p104
      %p106 = scmp.ne.s32.totalorder %s97, %s98
      %p107 = scmp.eq.s32.totalorder %s24, 0
      %p108 = por %p106, %p107
      %p109 = scmp.ne.s32.totalorder %s97, %s98
      %p110 = scmp.eq.s32.totalorder %s25, 1
      %p111 = por %p109, %p110
      %p113 = scmp.ne.s32.totalorder %s98, %s112
      %p114 = scmp.eq.s32.totalorder %s25, 0
      %p115 = por %p113, %p114
      %s117 = sadd.s32 %s116, 1
      %p120 = scmp.eq.s32.totalorder %s19, 1
      %p121 = scmp.ne.s32.totalorder %s116, %s118
      %p122 = scmp.eq.s32.totalorder %s19, 0
      %p123 = por %p121, %p122
      %p124 = scmp.ne.s32.totalorder %s116, %s118
      %p125 = scmp.eq.s32.totalorder %s24, 1
      %p126 = por %p124, %p125
      %p127 = scmp.ne.s32.totalorder %s118, %s119
      %p128 = scmp.eq.s32.totalorder %s24, 0
      %p129 = por %p127, %p128
      %p130 = scmp.ne.s32.totalorder %s118, %s119
      %p131 = scmp.eq.s32.totalorder %s25, 1
      %p132 = por %p130, %p131
      %p134 = scmp.ne.s32.totalorder %s119, %s133
      %p135 = scmp.eq.s32.totalorder %s25, 0
      %p136 = por %p134, %p135
      %s138 = sadd.s32 %s137, 1
      %p141 = scmp.eq.s32.totalorder %s19, 1
      %p142 = scmp.ne.s32.totalorder %s137, %s139
      %p143 = scmp.eq.s32.totalorder %s19, 0
      %p144 = por %p142, %p143
      %p145 = scmp.ne.s32.totalorder %s137, %s139
      %p146 = scmp.eq.s32.totalorder %s24, 1
      %p147 = por %p145, %p146
      %p148 = scmp.ne.s32.totalorder %s139, %s140
      %p149 = scmp.eq.s32.totalorder %s24, 0
      %p150 = por %p148, %p149
      %p151 = scmp.ne.s32.totalorder %s139, %s140
      %p152 = scmp.eq.s32.totalorder %s25, 1
      %p153 = por %p151, %p152
      %p155 = scmp.ne.s32.totalorder %s140, %s154
      %p156 = scmp.eq.s32.totalorder %s25, 0
      %p157 = por %p155, %p156
      %s159 = sadd.s32 %s158, 1
      %p162 = scmp.eq.s32.totalorder %s19, 1
      %p163 = scmp.ne.s32.totalorder %s158, %s160
      %p164 = scmp.eq.s32.totalorder %s19, 0
      %p165 = por %p163, %p164
      %p166 = scmp.ne.s32.totalorder %s158, %s160
      %p167 = scmp.eq.s32.totalorder %s24, 1
      %p168 = por %p166, %p167
      %p169 = scmp.ne.s32.totalorder %s160, %s161
      %p170 = scmp.eq.s32.totalorder %s24, 0
      %p171 = por %p169, %p170
      %p172 = scmp.ne.s32.totalorder %s160, %s161
      %p173 = scmp.eq.s32.totalorder %s25, 1
      %p174 = por %p172, %p173
      %p176 = scmp.ne.s32.totalorder %s161, %s175
      %p177 = scmp.eq.s32.totalorder %s25, 0
      %p178 = por %p176, %p177
      %s179 = ssub.s32 %s19, %s26
      %p180 = scmp.eq.s32.totalorder %s179, 0
      %s182 = sadd.s32 %s181, 1
      %s183 = scalar_select %p180, %s181, %s182
      %p186 = pneg %p180
      %p187 = scmp.eq.s32.totalorder %s19, 1
      %p188 = por %p186, %p187
      %p189 = scmp.ne.s32.totalorder %s181, %s184
      %p190 = scmp.eq.s32.totalorder %s19, 0
      %p191 = por %p189, %p190
      %p192 = scmp.ne.s32.totalorder %s181, %s184
      %p193 = scmp.eq.s32.totalorder %s24, 1
      %p194 = por %p192, %p193
      %p195 = scmp.ne.s32.totalorder %s184, %s185
      %p196 = scmp.eq.s32.totalorder %s24, 0
      %p197 = por %p195, %p196
      %p198 = scmp.ne.s32.totalorder %s184, %s185
      %p199 = scmp.eq.s32.totalorder %s25, 1
      %p200 = por %p198, %p199
      %p202 = scmp.ne.s32.totalorder %s185, %s201
      %p203 = scmp.eq.s32.totalorder %s25, 0
      %p204 = por %p202, %p203
      %s205 = ssub.s32 %s19, %s26
      %p206 = scmp.eq.s32.totalorder %s205, 0
      %s208 = sadd.s32 %s207, 1
      %s209 = scalar_select %p206, %s207, %s208
      %p212 = pneg %p206
      %p213 = scmp.eq.s32.totalorder %s19, 1
      %p214 = por %p212, %p213
      %p215 = scmp.ne.s32.totalorder %s207, %s210
      %p216 = scmp.eq.s32.totalorder %s19, 0
      %p217 = por %p215, %p216
      %p218 = scmp.ne.s32.totalorder %s207, %s210
      %p219 = scmp.eq.s32.totalorder %s24, 1
      %p220 = por %p218, %p219
      %p221 = scmp.ne.s32.totalorder %s210, %s211
      %p222 = scmp.eq.s32.totalorder %s24, 0
      %p223 = por %p221, %p222
      %p224 = scmp.ne.s32.totalorder %s210, %s211
      %p225 = scmp.eq.s32.totalorder %s25, 1
      %p226 = por %p224, %p225
      %p228 = scmp.ne.s32.totalorder %s211, %s227
      %p229 = scmp.eq.s32.totalorder %s25, 0
      %p230 = por %p228, %p229
      %p231 = scmp.le.s32.totalorder 1, %s19
      %p232 = scmp.lt.s32.totalorder %s19, 3
      %p233 = pnand %p231, %p232
      %p234 = pneg %p233
      // Predicated region
      $region9: #{vnet_forward.12} parent=5 // pred_check
        _
      $region10: #{vnet_forward.12} parent=5 // pred_check_branch
        %236 = sbr.rel (%p233) target = $region12
      $region11: #{vnet_forward.12} parent=5 // pred_region
        %s237 = ssub.s32 %s19, 1
        // Predicated region
        $region13: #{vnet_forward.12} parent=11 // pred_check
          %p238 = pneg %p66
        $region14: #{vnet_forward.12} parent=11 // pred_check_branch
          %240 = sbr.rel (%p238) target = $region16
        $region15: #{vnet_forward.12} parent=11 // pred_region
          %242 = vsyncadd [#allocation3], 0
          %s243 = sshll.u32 %s1, 4
          %s244 = int_to_ptr.hbm [resolvable:$true] %s243
          %s245 = sshll.u32 [#allocation2], 4
          %s246 = int_to_ptr.vmem [resolvable:$true] %s245
          %251 = dma.hbm_to_vmem [thread:$0]  %s244, 768, %s246, [#allocation3], 64, 64, 4
        $region16: #{vnet_forward.12} parent=11 // pred_fallthru
          _
        // Predicated region
        $region17: #{vnet_forward.12} parent=11 // pred_check
          %p252 = pneg %p87
        $region18: #{vnet_forward.12} parent=11 // pred_check_branch
          %254 = sbr.rel (%p252) target = $region20
        $region19: #{vnet_forward.12} parent=11 // pred_region
          %256 = vsyncadd [#allocation5], 0
          %s258 = sshll.u32 %s2, 4
          %s259 = int_to_ptr.hbm [resolvable:$true] %s258
          %s260 = sshll.u32 [#allocation4], 4
          %s261 = int_to_ptr.vmem [resolvable:$true] %s260
          %263 = dma.hbm_to_vmem [thread:$0]  %s259, 16, %s261, [#allocation5]
        $region20: #{vnet_forward.12} parent=11 // pred_fallthru
          _
        // Predicated region
        $region21: #{vnet_forward.12} parent=11 // pred_check
          %p264 = pneg %p108
        $region22: #{vnet_forward.12} parent=11 // pred_check_branch
          %266 = sbr.rel (%p264) target = $region24
        $region23: #{vnet_forward.12} parent=11 // pred_region
          %268 = vsyncadd [#allocation5], 0
          %s270 = sshll.u32 %s3, 4
          %s271 = int_to_ptr.hbm [resolvable:$true] %s270
          %s272 = sshll.u32 [#allocation6], 4
          %s273 = int_to_ptr.vmem [resolvable:$true] %s272
          %275 = dma.hbm_to_vmem [thread:$0]  %s271, 16, %s273, [#allocation5]
        $region24: #{vnet_forward.12} parent=11 // pred_fallthru
          _
        // Predicated region
        $region25: #{vnet_forward.12} parent=11 // pred_check
          %p276 = pneg %p129
        $region26: #{vnet_forward.12} parent=11 // pred_check_branch
          %278 = sbr.rel (%p276) target = $region28
        $region27: #{vnet_forward.12} parent=11 // pred_region
          %280 = vsyncadd [#allocation8], 0
          %s281 = sshll.u32 %s4, 4
          %s282 = int_to_ptr.hbm [resolvable:$true] %s281
          %s283 = sshll.u32 [#allocation7], 4
          %s284 = int_to_ptr.vmem [resolvable:$true] %s283
          %289 = dma.hbm_to_vmem [thread:$0]  %s282, 1536, %s284, [#allocation8], 64, 64, 4
        $region28: #{vnet_forward.12} parent=11 // pred_fallthru
          _
        // Predicated region
        $region29: #{vnet_forward.12} parent=11 // pred_check
          %p290 = pneg %p150
        $region30: #{vnet_forward.12} parent=11 // pred_check_branch
          %292 = sbr.rel (%p290) target = $region32
        $region31: #{vnet_forward.12} parent=11 // pred_region
          %294 = vsyncadd [#allocation8], 0
          %s296 = sshll.u32 %s5, 4
          %s297 = int_to_ptr.hbm [resolvable:$true] %s296
          %s298 = sshll.u32 [#allocation9], 4
          %s299 = int_to_ptr.vmem [resolvable:$true] %s298
          %301 = dma.hbm_to_vmem [thread:$0]  %s297, 16, %s299, [#allocation8]
        $region32: #{vnet_forward.12} parent=11 // pred_fallthru
          _
        // Predicated region
        $region33: #{vnet_forward.12} parent=11 // pred_check
          %p302 = pneg %p171
        $region34: #{vnet_forward.12} parent=11 // pred_check_branch
          %304 = sbr.rel (%p302) target = $region36
        $region35: #{vnet_forward.12} parent=11 // pred_region
          %306 = vsyncadd [#allocation11], 0
          %s308 = sshll.u32 %s6, 4
          %s309 = int_to_ptr.hbm [resolvable:$true] %s308
          %s310 = sshll.u32 [#allocation10], 4
          %s311 = int_to_ptr.vmem [resolvable:$true] %s310
          %313 = dma.hbm_to_vmem [thread:$0]  %s309, 16, %s311, [#allocation11]
        $region36: #{vnet_forward.12} parent=11 // pred_fallthru
          _
      $region12: #{vnet_forward.12} parent=5 // pred_fallthru
        _
      %p314 = scmp.lt.s32.totalorder %s19, 2
      // Predicated region
      $region37: #{vnet_forward.12} parent=5 // pred_check
        %p315 = pneg %p314
      $region38: #{vnet_forward.12} parent=5 // pred_check_branch
        %317 = sbr.rel (%p315) target = $region40
      $region39: #{vnet_forward.12} parent=5 // pred_region
        // Predicated region
        $region41: #{vnet_forward.12} parent=39 // pred_check
          %p318 = pneg %p39
        $region42: #{vnet_forward.12} parent=39 // pred_check_branch
          %320 = sbr.rel (%p318) target = $region44
        $region43: #{vnet_forward.12} parent=39 // pred_region
          %p321 = scmp.lt.s32.totalorder %s19, 1
          %s322 = scalar_select %p321, %s19, 1
          %s323 = smul.addr %s322, 4
          %s324 = scalar_lea.vmem %s0, %s323
        $region44: #{vnet_forward.12} parent=39 // pred_fallthru
          _
      $region40: #{vnet_forward.12} parent=5 // pred_fallthru
        _
      %p325 = scmp.le.s32.totalorder 1, %s19
      %p326 = scmp.lt.s32.totalorder %s19, 3
      %p327 = pnand %p325, %p326
      %p328 = pneg %p327
      // Predicated region
      $region45: #{vnet_forward.12} parent=5 // pred_check
        _
      $region46: #{vnet_forward.12} parent=5 // pred_check_branch
        %330 = sbr.rel (%p327) target = $region48
      $region47: #{vnet_forward.12} parent=5 // pred_region
        %s331 = ssub.s32 %s19, 1
        // Predicated region
        $region49: #{vnet_forward.12} parent=47 // pred_check
          %p332 = pneg %p66
        $region50: #{vnet_forward.12} parent=47 // pred_check_branch
          %334 = sbr.rel (%p332) target = $region52
        $region51: #{vnet_forward.12} parent=47 // pred_region
          %336 = dma.done [#allocation3], 768
        $region52: #{vnet_forward.12} parent=47 // pred_fallthru
          _
        // Predicated region
        $region53: #{vnet_forward.12} parent=47 // pred_check
          %p337 = pneg %p87
        $region54: #{vnet_forward.12} parent=47 // pred_check_branch
          %339 = sbr.rel (%p337) target = $region56
        $region55: #{vnet_forward.12} parent=47 // pred_region
          %341 = dma.done [#allocation5], 16
        $region56: #{vnet_forward.12} parent=47 // pred_fallthru
          _
        // Predicated region
        $region57: #{vnet_forward.12} parent=47 // pred_check
          %p342 = pneg %p108
        $region58: #{vnet_forward.12} parent=47 // pred_check_branch
          %344 = sbr.rel (%p342) target = $region60
        $region59: #{vnet_forward.12} parent=47 // pred_region
          %346 = dma.done [#allocation5], 16
        $region60: #{vnet_forward.12} parent=47 // pred_fallthru
          _
        // Predicated region
        $region61: #{vnet_forward.12} parent=47 // pred_check
          %p347 = pneg %p129
        $region62: #{vnet_forward.12} parent=47 // pred_check_branch
          %349 = sbr.rel (%p347) target = $region64
        $region63: #{vnet_forward.12} parent=47 // pred_region
          %351 = dma.done [#allocation8], 1536
        $region64: #{vnet_forward.12} parent=47 // pred_fallthru
          _
        // Predicated region
        $region65: #{vnet_forward.12} parent=47 // pred_check
          %p352 = pneg %p150
        $region66: #{vnet_forward.12} parent=47 // pred_check_branch
          %354 = sbr.rel (%p352) target = $region68
        $region67: #{vnet_forward.12} parent=47 // pred_region
          %356 = dma.done [#allocation8], 16
        $region68: #{vnet_forward.12} parent=47 // pred_fallthru
          _
        // Predicated region
        $region69: #{vnet_forward.12} parent=47 // pred_check
          %p357 = pneg %p171
        $region70: #{vnet_forward.12} parent=47 // pred_check_branch
          %359 = sbr.rel (%p357) target = $region72
        $region71: #{vnet_forward.12} parent=47 // pred_region
          %361 = dma.done [#allocation11], 16
        $region72: #{vnet_forward.12} parent=47 // pred_fallthru
          _
        %p362 = scmp.lt.s32.totalorder %s24, 1
        %s363 = scalar_select %p362, %s24, 1
        %s364 = smul.addr %s363, 4
        %s365 = scalar_lea.vmem %s0, %s364
        %p366 = pneg %p45
        %p367 = pneg %p42
        %p368 = pneg %p66
        %p369 = pneg %p63
        %p370 = pneg %p87
        %p371 = pneg %p84
        %p372 = pneg %p108
        %p373 = pneg %p105
        %p374 = pneg %p129
        %p375 = pneg %p126
        %p376 = pneg %p150
        %p377 = pneg %p147
        %p378 = pneg %p171
        %p379 = pneg %p168
        %p380 = pneg %p197
        %p381 = pneg %p194
        %p382 = scmp.lt.s32.totalorder %s24, 1
        %s383 = scalar_select %p382, %s24, 1
        %s384 = smul.addr %s383, 4
        %s385 = scalar_lea.vmem %s7, %s384
        %p386 = pneg %p223
        %p387 = pneg %p220
        %p388 = scmp.lt.s32.totalorder %s24, 1
        %s389 = scalar_select %p388, %s24, 1
        %s390 = smul.addr %s389, 2
        %s391 = scalar_lea.vmem %s8, %s390
        %p392 = scmp.lt.s32.totalorder %s24, 1
        %s393 = scalar_select %p392, %s24, 1
        %s394 = smul.addr %s393, 4
        %s395 = scalar_lea.vmem %s0, %s394
        %p396 = scmp.lt.s32.totalorder %s24, 1
        %s397 = scalar_select %p396, %s24, 1
        %s398 = smul.addr %s397, 4
        %s399 = scalar_lea.vmem %s7, %s398
        %p400 = scmp.lt.s32.totalorder %s24, 1
        %s401 = scalar_select %p400, %s24, 1
        %s402 = smul.addr %s401, 2
        %s403 = scalar_lea.vmem %s8, %s402
        %v405 = vld [vmem:[%s395] sm:$0xf]
        %v406 = vlaneseq
        %v407 = vshrl.u32 %v406, 7
        %v408 = vlaneseq
        %v409 = vand.u32 %v408, 127
        %v410 = vsub.s32 %v407, 1
        %vm411 = vcmp.eq.s32.totalorder %v409, %v410
        %v412 = vsel %vm411, 1, 0
        %v413 = vcvt.s32.f32 %v412
        %v414 = vadd.s32 %v407, 1
        %vm415 = vcmp.eq.s32.totalorder %v409, %v414
        %v416 = vsel %vm415, 1, 0
        %v417 = vcvt.s32.f32 %v416
        %vm418 = vcmask 31744
        %v420 = vsel %vm418, %v413, 0
        %vm422 = vcmask 1043456
        %v424 = vsel %vm422, %v405, 0
        %426 = vmatpush.msra.mxu0 0.0
        %427 = vmatpush.msra.mxu0 0.0
        %428 = vmatpush.msra.mxu0 0.0
        %429 = vmatpush.msra.mxu0 0.0
        %430 = vmatpush.msra.mxu0 0.0
        %431 = vmatpush.msra.mxu0 0.0
        %432 = vmatpush.msra.mxu0 0.0
        %433 = vmatpush.msra.mxu0 0.0
        %434 = vmatpush.msra.mxu0 0.0
        %435 = vmatpush.msra.mxu0 0.0
        %436 = vmatpush.msra.mxu0 0.0
        %437 = vmatpush.msra.mxu0 0.0
        %438 = vmatpush.msra.mxu0 0.0
        %439 = vmatpush.msra.mxu0 0.0
        %440 = vmatpush.msra.mxu0 0.0
        %441 = vmatpush.msra.mxu0 %v424
        %442 = vmatmul.f32.gmra.mxu0 %v420
        %v443 = vpop.f32.mrf.mxu0
        %v444 = vadd.f32 0.0, %v443
        %445 = vdwg.mxu0
        %v447 = vsel %vm418, %v417, 0
        %449 = vmatpush.msra.mxu0 0.0
        %450 = vmatpush.msra.mxu0 0.0
        %451 = vmatpush.msra.mxu0 0.0
        %452 = vmatpush.msra.mxu0 0.0
        %453 = vmatpush.msra.mxu0 0.0
        %454 = vmatpush.msra.mxu0 0.0
        %455 = vmatpush.msra.mxu0 0.0
        %456 = vmatpush.msra.mxu0 0.0
        %457 = vmatpush.msra.mxu0 0.0
        %458 = vmatpush.msra.mxu0 0.0
        %459 = vmatpush.msra.mxu0 0.0
        %460 = vmatpush.msra.mxu0 0.0
        %461 = vmatpush.msra.mxu0 0.0
        %462 = vmatpush.msra.mxu0 0.0
        %463 = vmatpush.msra.mxu0 0.0
        %464 = vmatpush.msra.mxu0 %v424
        %465 = vmatmul.f32.gmra.mxu0 %v447
        %v466 = vpop.f32.mrf.mxu0
        %v467 = vadd.f32 0.0, %v466
        %468 = vdwg.mxu0
        %v469 = vpack.c.bf16 %v405, %v405
        %s470 = scalar_lea.vmem [#allocation2], 16
        %v471 = vld [vmem:[%s470] sm:$0xf]
        %v472 = vld [vmem:[%s470 + $0x4] sm:$0xf]
        %v473 = vld [vmem:[%s470 + $0x8] sm:$0xf]
        %v474 = vld [vmem:[%s470 + $0xc] sm:$0xf]
        %v475 = vpack.c.bf16 %v444, %v444
        %v476 = vld [vmem:[#allocation2] sm:$0xf]
        %v477 = vld [vmem:[#allocation2 + $0x4] sm:$0xf]
        %v478 = vld [vmem:[#allocation2 + $0x8] sm:$0xf]
        %v479 = vld [vmem:[#allocation2 + $0xc] sm:$0xf]
        %v484 = vunpack.c.l.b16 %v476
        %v485 = vunpack.c.l.b16 %v477
        %v486 = vunpack.c.l.b16 %v478
        %v487 = vunpack.c.l.b16 %v479
        %v488 = vpack.c.b16 %v485, %v484
        %v489 = vpack.c.b16 %v487, %v486
        %vm492 = vcmask 261120
        %v494 = vsel %vm492, %v475, 0
        %496 = vmatpush.bf16.msra.mxu0 0
        %497 = vmatpush.bf16.msra.mxu0 0
        %498 = vmatpush.bf16.msra.mxu0 0
        %499 = vmatpush.bf16.msra.mxu0 0
        %500 = vmatpush.bf16.msra.mxu0 0
        %501 = vmatpush.bf16.msra.mxu0 0
        %502 = vmatpush.bf16.msra.mxu0 %v489
        %503 = vmatpush.bf16.msra.mxu0 %v488
        %504 = vmatmul.bf16.gmra.mxu0 %v494
        %v505 = vpop.f32.mrf.mxu0
        %v506 = vadd.f32 0.0, %v505
        %v507 = vpop.f32.mrf.mxu0
        %508 = vdwg.mxu0
        %v513 = vunpack.c.l.b16 %v471
        %v514 = vunpack.c.l.b16 %v472
        %v515 = vunpack.c.l.b16 %v473
        %v516 = vunpack.c.l.b16 %v474
        %v517 = vpack.c.b16 %v514, %v513
        %v518 = vpack.c.b16 %v516, %v515
        %v522 = vsel %vm492, %v469, 0
        %524 = vmatpush.bf16.msra.mxu0 0
        %525 = vmatpush.bf16.msra.mxu0 0
        %526 = vmatpush.bf16.msra.mxu0 0
        %527 = vmatpush.bf16.msra.mxu0 0
        %528 = vmatpush.bf16.msra.mxu0 0
        %529 = vmatpush.bf16.msra.mxu0 0
        %530 = vmatpush.bf16.msra.mxu0 %v518
        %531 = vmatpush.bf16.msra.mxu0 %v517
        %532 = vmatmul.bf16.gmra.mxu0 %v522
        %v533 = vpop.f32.mrf.mxu0
        %v534 = vadd.f32 %v506, %v533
        %v535 = vpop.f32.mrf.mxu0
        %536 = vdwg.mxu0
        %v537 = vpack.c.bf16 %v467, %v467
        %s538 = scalar_lea.vmem [#allocation2], 32
        %v539 = vld [vmem:[%s538] sm:$0xf]
        %v540 = vld [vmem:[%s538 + $0x4] sm:$0xf]
        %v541 = vld [vmem:[%s538 + $0x8] sm:$0xf]
        %v542 = vld [vmem:[%s538 + $0xc] sm:$0xf]
        %v547 = vunpack.c.l.b16 %v539
        %v548 = vunpack.c.l.b16 %v540
        %v549 = vunpack.c.l.b16 %v541
        %v550 = vunpack.c.l.b16 %v542
        %v551 = vpack.c.b16 %v548, %v547
        %v552 = vpack.c.b16 %v550, %v549
        %v556 = vsel %vm492, %v537, 0
        %558 = vmatpush.bf16.msra.mxu0 0
        %559 = vmatpush.bf16.msra.mxu0 0
        %560 = vmatpush.bf16.msra.mxu0 0
        %561 = vmatpush.bf16.msra.mxu0 0
        %562 = vmatpush.bf16.msra.mxu0 0
        %563 = vmatpush.bf16.msra.mxu0 0
        %564 = vmatpush.bf16.msra.mxu0 %v552
        %565 = vmatpush.bf16.msra.mxu0 %v551
        %566 = vmatmul.bf16.gmra.mxu0 %v556
        %v567 = vpop.f32.mrf.mxu0
        %v568 = vadd.f32 0.0, %v567
        %v569 = vpop.f32.mrf.mxu0
        %570 = vdwg.mxu0
        %v571 = vadd.f32 %v534, %v568
        %v572 = vld [vmem:[#allocation4] sm:$0x1]
        %v574 = vperm.slane %v572, 0
        %v576 = vmul.f32 %v571, %v574
        %v577 = vld [vmem:[#allocation6] sm:$0x1]
        %v579 = vperm.slane %v577, 0
        %v581 = vadd.f32 %v576, %v579
        %v582 = vmax.f32 %v581, 0.0
        %v584 = vsel %vm422, %v582, 0
        %586 = vmatpush.msra.mxu0 0.0
        %587 = vmatpush.msra.mxu0 0.0
        %588 = vmatpush.msra.mxu0 0.0
        %589 = vmatpush.msra.mxu0 0.0
        %590 = vmatpush.msra.mxu0 0.0
        %591 = vmatpush.msra.mxu0 0.0
        %592 = vmatpush.msra.mxu0 0.0
        %593 = vmatpush.msra.mxu0 0.0
        %594 = vmatpush.msra.mxu0 0.0
        %595 = vmatpush.msra.mxu0 0.0
        %596 = vmatpush.msra.mxu0 0.0
        %597 = vmatpush.msra.mxu0 0.0
        %598 = vmatpush.msra.mxu0 0.0
        %599 = vmatpush.msra.mxu0 0.0
        %600 = vmatpush.msra.mxu0 0.0
        %601 = vmatpush.msra.mxu0 %v584
        %602 = vmatmul.f32.gmra.mxu0 %v420
        %v603 = vpop.f32.mrf.mxu0
        %v604 = vadd.f32 0.0, %v603
        %605 = vdwg.mxu0
        %606 = vmatpush.msra.mxu0 0.0
        %607 = vmatpush.msra.mxu0 0.0
        %608 = vmatpush.msra.mxu0 0.0
        %609 = vmatpush.msra.mxu0 0.0
        %610 = vmatpush.msra.mxu0 0.0
        %611 = vmatpush.msra.mxu0 0.0
        %612 = vmatpush.msra.mxu0 0.0
        %613 = vmatpush.msra.mxu0 0.0
        %614 = vmatpush.msra.mxu0 0.0
        %615 = vmatpush.msra.mxu0 0.0
        %616 = vmatpush.msra.mxu0 0.0
        %617 = vmatpush.msra.mxu0 0.0
        %618 = vmatpush.msra.mxu0 0.0
        %619 = vmatpush.msra.mxu0 0.0
        %620 = vmatpush.msra.mxu0 0.0
        %621 = vmatpush.msra.mxu0 %v584
        %622 = vmatmul.f32.gmra.mxu0 %v447
        %v623 = vpop.f32.mrf.mxu0
        %v624 = vadd.f32 0.0, %v623
        %625 = vdwg.mxu0
        %v626 = vpack.c.bf16 %v582, %v582
        %s627 = scalar_lea.vmem [#allocation7], 32
        %v628 = vld [vmem:[%s627] sm:$0xf]
        %v629 = vld [vmem:[%s627 + $0x4] sm:$0xf]
        %v630 = vld [vmem:[%s627 + $0x8] sm:$0xf]
        %v631 = vld [vmem:[%s627 + $0xc] sm:$0xf]
        %v632 = vld [vmem:[%s627 + $0x10] sm:$0xf]
        %v633 = vld [vmem:[%s627 + $0x14] sm:$0xf]
        %v634 = vld [vmem:[%s627 + $0x18] sm:$0xf]
        %v635 = vld [vmem:[%s627 + $0x1c] sm:$0xf]
        %v636 = vpack.c.bf16 %v604, %v604
        %v637 = vld [vmem:[#allocation7] sm:$0xf]
        %v638 = vld [vmem:[#allocation7 + $0x4] sm:$0xf]
        %v639 = vld [vmem:[#allocation7 + $0x8] sm:$0xf]
        %v640 = vld [vmem:[#allocation7 + $0xc] sm:$0xf]
        %v641 = vld [vmem:[#allocation7 + $0x10] sm:$0xf]
        %v642 = vld [vmem:[#allocation7 + $0x14] sm:$0xf]
        %v643 = vld [vmem:[#allocation7 + $0x18] sm:$0xf]
        %v644 = vld [vmem:[#allocation7 + $0x1c] sm:$0xf]
        %v653 = vunpack.c.l.b16 %v637
        %v654 = vunpack.c.l.b16 %v638
        %v655 = vunpack.c.l.b16 %v639
        %v656 = vunpack.c.l.b16 %v640
        %v657 = vunpack.c.l.b16 %v641
        %v658 = vunpack.c.l.b16 %v642
        %v659 = vunpack.c.l.b16 %v643
        %v660 = vunpack.c.l.b16 %v644
        %v661 = vpack.c.b16 %v654, %v653
        %v662 = vpack.c.b16 %v656, %v655
        %v663 = vpack.c.b16 %v658, %v657
        %v664 = vpack.c.b16 %v660, %v659
        %vm669 = vcmask 523264
        %v671 = vsel %vm669, %v636, 0
        %673 = vmatpush.bf16.msra.mxu0 0
        %674 = vmatpush.bf16.msra.mxu0 0
        %675 = vmatpush.bf16.msra.mxu0 0
        %676 = vmatpush.bf16.msra.mxu0 0
        %677 = vmatpush.bf16.msra.mxu0 %v664
        %678 = vmatpush.bf16.msra.mxu0 %v663
        %679 = vmatpush.bf16.msra.mxu0 %v662
        %680 = vmatpush.bf16.msra.mxu0 %v661
        %681 = vmatmul.bf16.gmra.mxu0 %v671
        %v682 = vpop.f32.mrf.mxu0
        %v683 = vadd.f32 0.0, %v682
        %v684 = vpop.f32.mrf.mxu0
        %685 = vdwg.mxu0
        %v694 = vunpack.c.l.b16 %v628
        %v695 = vunpack.c.l.b16 %v629
        %v696 = vunpack.c.l.b16 %v630
        %v697 = vunpack.c.l.b16 %v631
        %v698 = vunpack.c.l.b16 %v632
        %v699 = vunpack.c.l.b16 %v633
        %v700 = vunpack.c.l.b16 %v634
        %v701 = vunpack.c.l.b16 %v635
        %v702 = vpack.c.b16 %v695, %v694
        %v703 = vpack.c.b16 %v697, %v696
        %v704 = vpack.c.b16 %v699, %v698
        %v705 = vpack.c.b16 %v701, %v700
        %v711 = vsel %vm669, %v626, 0
        %713 = vmatpush.bf16.msra.mxu0 0
        %714 = vmatpush.bf16.msra.mxu0 0
        %715 = vmatpush.bf16.msra.mxu0 0
        %716 = vmatpush.bf16.msra.mxu0 0
        %717 = vmatpush.bf16.msra.mxu0 %v705
        %718 = vmatpush.bf16.msra.mxu0 %v704
        %719 = vmatpush.bf16.msra.mxu0 %v703
        %720 = vmatpush.bf16.msra.mxu0 %v702
        %721 = vmatmul.bf16.gmra.mxu0 %v711
        %v722 = vpop.f32.mrf.mxu0
        %v723 = vadd.f32 %v683, %v722
        %v724 = vpop.f32.mrf.mxu0
        %725 = vdwg.mxu0
        %v726 = vpack.c.bf16 %v624, %v624
        %s727 = scalar_lea.vmem [#allocation7], 64
        %v728 = vld [vmem:[%s727] sm:$0xf]
        %v729 = vld [vmem:[%s727 + $0x4] sm:$0xf]
        %v730 = vld [vmem:[%s727 + $0x8] sm:$0xf]
        %v731 = vld [vmem:[%s727 + $0xc] sm:$0xf]
        %v732 = vld [vmem:[%s727 + $0x10] sm:$0xf]
        %v733 = vld [vmem:[%s727 + $0x14] sm:$0xf]
        %v734 = vld [vmem:[%s727 + $0x18] sm:$0xf]
        %v735 = vld [vmem:[%s727 + $0x1c] sm:$0xf]
        %v744 = vunpack.c.l.b16 %v728
        %v745 = vunpack.c.l.b16 %v729
        %v746 = vunpack.c.l.b16 %v730
        %v747 = vunpack.c.l.b16 %v731
        %v748 = vunpack.c.l.b16 %v732
        %v749 = vunpack.c.l.b16 %v733
        %v750 = vunpack.c.l.b16 %v734
        %v751 = vunpack.c.l.b16 %v735
        %v752 = vpack.c.b16 %v745, %v744
        %v753 = vpack.c.b16 %v747, %v746
        %v754 = vpack.c.b16 %v749, %v748
        %v755 = vpack.c.b16 %v751, %v750
        %v761 = vsel %vm669, %v726, 0
        %763 = vmatpush.bf16.msra.mxu0 0
        %764 = vmatpush.bf16.msra.mxu0 0
        %765 = vmatpush.bf16.msra.mxu0 0
        %766 = vmatpush.bf16.msra.mxu0 0
        %767 = vmatpush.bf16.msra.mxu0 %v755
        %768 = vmatpush.bf16.msra.mxu0 %v754
        %769 = vmatpush.bf16.msra.mxu0 %v753
        %770 = vmatpush.bf16.msra.mxu0 %v752
        %771 = vmatmul.bf16.gmra.mxu0 %v761
        %v772 = vpop.f32.mrf.mxu0
        %v773 = vadd.f32 0.0, %v772
        %v774 = vpop.f32.mrf.mxu0
        %775 = vdwg.mxu0
        %v776 = vadd.f32 %v723, %v773
        %v777 = vld [vmem:[#allocation9] sm:$0x1]
        %v779 = vperm.slane %v777, 0
        %v781 = vmul.f32 %v776, %v779
        %v782 = vld [vmem:[#allocation10] sm:$0x1]
        %v784 = vperm.slane %v782, 0
        %v786 = vadd.f32 %v781, %v784
        %v787 = vmax.f32 %v786, 0.0
        %vm788 = vcmask 519168
        %789 = vst.msk [vmem:[%s399] sm:$0xf] %vm788, %v787
        %v790 = vmul.u32 %v407, 2
        %vm791 = vcmp.eq.s32.totalorder %v409, %v790
        %v792 = vsel %vm791, 1, 0
        %v793 = vcvt.s32.f32 %v792
        %v794 = vadd.s32 %v790, 1
        %vm795 = vcmp.eq.s32.totalorder %v409, %v794
        %v796 = vsel %vm795, 1, 0
        %v797 = vcvt.s32.f32 %v796
        %v799 = vsel %vm418, %v793, 0
        %v802 = vsel %vm422, %v787, 0
        %804 = vmatpush.msra.mxu0 0.0
        %805 = vmatpush.msra.mxu0 0.0
        %806 = vmatpush.msra.mxu0 0.0
        %807 = vmatpush.msra.mxu0 0.0
        %808 = vmatpush.msra.mxu0 0.0
        %809 = vmatpush.msra.mxu0 0.0
        %810 = vmatpush.msra.mxu0 0.0
        %811 = vmatpush.msra.mxu0 0.0
        %812 = vmatpush.msra.mxu0 0.0
        %813 = vmatpush.msra.mxu0 0.0
        %814 = vmatpush.msra.mxu0 0.0
        %815 = vmatpush.msra.mxu0 0.0
        %816 = vmatpush.msra.mxu0 0.0
        %817 = vmatpush.msra.mxu0 0.0
        %818 = vmatpush.msra.mxu0 0.0
        %819 = vmatpush.msra.mxu0 %v802
        %820 = vmatmul.f32.gmra.mxu0 %v799
        %v821 = vpop.f32.mrf.mxu0
        %v822 = vadd.f32 0.0, %v821
        %823 = vdwg.mxu0
        %v825 = vsel %vm418, %v797, 0
        %827 = vmatpush.msra.mxu0 0.0
        %828 = vmatpush.msra.mxu0 0.0
        %829 = vmatpush.msra.mxu0 0.0
        %830 = vmatpush.msra.mxu0 0.0
        %831 = vmatpush.msra.mxu0 0.0
        %832 = vmatpush.msra.mxu0 0.0
        %833 = vmatpush.msra.mxu0 0.0
        %834 = vmatpush.msra.mxu0 0.0
        %835 = vmatpush.msra.mxu0 0.0
        %836 = vmatpush.msra.mxu0 0.0
        %837 = vmatpush.msra.mxu0 0.0
        %838 = vmatpush.msra.mxu0 0.0
        %839 = vmatpush.msra.mxu0 0.0
        %840 = vmatpush.msra.mxu0 0.0
        %841 = vmatpush.msra.mxu0 0.0
        %842 = vmatpush.msra.mxu0 %v802
        %843 = vmatmul.f32.gmra.mxu0 %v825
        %v844 = vpop.f32.mrf.mxu0
        %v845 = vadd.f32 0.0, %v844
        %846 = vdwg.mxu0
        %v847 = vmax.f32 %v822, %v845
        %vm848 = vcmask 517120
        %849 = vst.msk [vmem:[%s403] sm:$0x3] %vm848, %v847
        %p850 = scmp.lt.s32.totalorder %s24, 1
        %s851 = scalar_select %p850, %s24, 1
        %s852 = smul.addr %s851, 4
        %s853 = scalar_lea.vmem %s7, %s852
        %p854 = scmp.lt.s32.totalorder %s24, 1
        %s855 = scalar_select %p854, %s24, 1
        %s856 = smul.addr %s855, 2
        %s857 = scalar_lea.vmem %s8, %s856
        // Predicated region
        $region73: #{vnet_forward.12} parent=47 // pred_check
          %p858 = pneg %p194
        $region74: #{vnet_forward.12} parent=47 // pred_check_branch
          %860 = sbr.rel (%p858) target = $region76
        $region75: #{vnet_forward.12} parent=47 // pred_region
          _
        $region76: #{vnet_forward.12} parent=47 // pred_fallthru
          _
        // Predicated region
        $region77: #{vnet_forward.12} parent=47 // pred_check
          %p861 = pneg %p220
        $region78: #{vnet_forward.12} parent=47 // pred_check_branch
          %863 = sbr.rel (%p861) target = $region80
        $region79: #{vnet_forward.12} parent=47 // pred_region
          _
        $region80: #{vnet_forward.12} parent=47 // pred_fallthru
          _
      $region48: #{vnet_forward.12} parent=5 // pred_fallthru
        _
      %p864 = scmp.le.s32.totalorder 2, %s19
      // Predicated region
      $region81: #{vnet_forward.12} parent=5 // pred_check
        %p865 = pneg %p864
      $region82: #{vnet_forward.12} parent=5 // pred_check_branch
        %867 = sbr.rel (%p865) target = $region84
      $region83: #{vnet_forward.12} parent=5 // pred_region
        %s868 = ssub.s32 %s19, 2
        // Predicated region
        $region85: #{vnet_forward.12} parent=83 // pred_check
          %p869 = pneg %p200
        $region86: #{vnet_forward.12} parent=83 // pred_check_branch
          %871 = sbr.rel (%p869) target = $region88
        $region87: #{vnet_forward.12} parent=83 // pred_region
          %p872 = scmp.lt.s32.totalorder %s25, 1
          %s873 = scalar_select %p872, %s25, 1
          %s874 = smul.addr %s873, 4
          %s875 = scalar_lea.vmem %s7, %s874
        $region88: #{vnet_forward.12} parent=83 // pred_fallthru
          _
        // Predicated region
        $region89: #{vnet_forward.12} parent=83 // pred_check
          %p876 = pneg %p226
        $region90: #{vnet_forward.12} parent=83 // pred_check_branch
          %878 = sbr.rel (%p876) target = $region92
        $region91: #{vnet_forward.12} parent=83 // pred_region
          %p879 = scmp.lt.s32.totalorder %s25, 1
          %s880 = scalar_select %p879, %s25, 1
          %s881 = smul.addr %s880, 2
          %s882 = scalar_lea.vmem %s8, %s881
        $region92: #{vnet_forward.12} parent=83 // pred_fallthru
          _
      $region84: #{vnet_forward.12} parent=5 // pred_fallthru
        _
    $region6: #{vnet_forward.12} parent=1 // loop_footer
      %s23 = sadd.s32 1, %s19
    $region7: #{vnet_forward.12} parent=1 // loop_footer_branch
      %18 = sbr.rel target = $region3
    $region8: #{vnet_forward.12} parent=1 // loop_exit
      _
    %883 = vsyncpa [#allocation3], 1
    %s884 = scalar_lea.sflag [#allocation3], 1
    %885 = vsyncpa %s884, 1
    %886 = vsyncpa [#allocation5], 1
    %887 = vsyncpa [#allocation8], 1
    %888 = vsyncpa [#allocation11], 1

// kernel: vnet_forward.13
$region0: #{vnet_forward.13}
  #allocation0 [shape = 'u32[]', space=smem, size = 0x4, offset = 0x4, fixed_abs, tag = 'smem constant byte address 0x4 - core index']
  #allocation1 [shape = 'u32[72,128]{1,0:T(1,128)}', space=vmem, size = 0x9000, scoped, tag = 'internal scratch']
  %s0 = inlined_call_operand.vmem [shape: f32[2,2,64], index: 0, kind: input, shape index: {}]
  %s1 = inlined_call_operand.hbm [shape: bf16[3,64,128], index: 1, kind: input, shape index: {}]
  %s2 = inlined_call_operand.hbm [shape: f32[1,128], index: 2, kind: input, shape index: {}]
  %s3 = inlined_call_operand.hbm [shape: f32[1,128], index: 3, kind: input, shape index: {}]
  %s4 = inlined_call_operand.hbm [shape: bf16[3,128,128], index: 4, kind: input, shape index: {}]
  %s5 = inlined_call_operand.hbm [shape: f32[1,128], index: 5, kind: input, shape index: {}]
  %s6 = inlined_call_operand.hbm [shape: f32[1,128], index: 6, kind: input, shape index: {}]
  %s7 = inlined_call_operand.vmem [shape: f32[2,2,128], index: 7, kind: output, shape index: {}]
  %s8 = sld [smem:[#allocation0]]
  $region85: #{vnet_forward.13} parent=0
    _
  %s10 = ssub.s32 1, %s8
  %s11 = scalar_select 0, %s10, %s8
  $region1: #{vnet_forward.13} parent=0
    #allocation2 [shape = 'u8[49152]{0}', space=vmem, size = 0xc000, scoped, tag = 'input window, operand 1, single buffered']
    #allocation3 [shape = 's32[2]{0}', space=sflag, size = 0x8, scoped, tag = 'scoped memory for vnet_forward.13']
    #allocation4 [shape = 'u8[512]{0}', space=vmem, size = 0x400, scoped, tag = 'input window, operand 2, single buffered']
    #allocation5 [shape = 's32[1]{0}', space=sflag, size = 0x4, scoped, tag = 'scoped memory for vnet_forward.13']
    #allocation6 [shape = 'u8[512]{0}', space=vmem, size = 0x400, scoped, tag = 'input window, operand 3, single buffered']
    #allocation7 [shape = 'u8[98304]{0}', space=vmem, size = 0x18000, scoped, tag = 'input window, operand 4, single buffered']
    #allocation8 [shape = 's32[1]{0}', space=sflag, size = 0x4, scoped, tag = 'scoped memory for vnet_forward.13']
    #allocation9 [shape = 'u8[512]{0}', space=vmem, size = 0x400, scoped, tag = 'input window, operand 5, single buffered']
    #allocation10 [shape = 'u8[512]{0}', space=vmem, size = 0x400, scoped, tag = 'input window, operand 6, single buffered']
    #allocation11 [shape = 's32[1]{0}', space=sflag, size = 0x4, scoped, tag = 'scoped memory for vnet_forward.13']
    %12 = vsyncpa [#allocation3], 0
    %13 = vsyncpa [#allocation5], 0
    %14 = vsyncpa [#allocation8], 0
    %15 = vsyncpa [#allocation11], 0
    loop: start=0, step=1, limit=4
    $region2: #{vnet_forward.13} parent=1 // loop_pre_header
      _
    $region3: #{vnet_forward.13} parent=1 // loop_header
      %s17 = sphi 0, %s21
      %p18 = scmp.ge.s32.totalorder %s17, 4
      %s27 = sphi 0, %s29
      %s30 = sphi 0, %s27
      %s31 = sphi 0, %s30
      %s47 = sphi 0, %s31
      %s51 = sphi 0, %s51
      %s53 = sphi 0, %s51
      %s54 = sphi 0, %s53
      %s68 = sphi 0, %s54
      %s72 = sphi 0, %s72
      %s74 = sphi 0, %s72
      %s75 = sphi 0, %s74
      %s89 = sphi 0, %s75
      %s93 = sphi 0, %s93
      %s95 = sphi 0, %s93
      %s96 = sphi 0, %s95
      %s110 = sphi 0, %s96
      %s114 = sphi 0, %s114
      %s116 = sphi 0, %s114
      %s117 = sphi 0, %s116
      %s131 = sphi 0, %s117
      %s135 = sphi 0, %s135
      %s137 = sphi 0, %s135
      %s138 = sphi 0, %s137
      %s152 = sphi 0, %s138
      %s156 = sphi 0, %s156
      %s158 = sphi 0, %s156
      %s159 = sphi 0, %s158
      %s173 = sphi 0, %s159
      %s179 = sphi 0, %s181
      %s182 = sphi 0, %s179
      %s183 = sphi 0, %s182
      %s199 = sphi 0, %s183
    $region4: #{vnet_forward.13} parent=1 // loop_header_branch
      %20 = sbr.rel (%p18) target = $region8
    $region5: #{vnet_forward.13} parent=1 // loop_body
      %s22 = ssub.s32 %s17, 1
      %s23 = ssub.s32 %s17, 2
      %s24 = sadd.s32 %s17, 1
      %s25 = ssub.s32 %s17, %s24
      %p26 = scmp.eq.s32.totalorder %s25, 0
      %s28 = sadd.s32 %s27, 1
      %s29 = scalar_select %p26, %s27, %s28
      %p32 = pneg %p26
      %p33 = scmp.eq.s32.totalorder %s17, 1
      %p34 = por %p32, %p33
      %p35 = scmp.ne.s32.totalorder %s27, %s30
      %p36 = scmp.eq.s32.totalorder %s17, 0
      %p37 = por %p35, %p36
      %p38 = scmp.ne.s32.totalorder %s27, %s30
      %p39 = scmp.eq.s32.totalorder %s22, 1
      %p40 = por %p38, %p39
      %p41 = scmp.ne.s32.totalorder %s30, %s31
      %p42 = scmp.eq.s32.totalorder %s22, 0
      %p43 = por %p41, %p42
      %p44 = scmp.ne.s32.totalorder %s30, %s31
      %p45 = scmp.eq.s32.totalorder %s23, 1
      %p46 = por %p44, %p45
      %p48 = scmp.ne.s32.totalorder %s31, %s47
      %p49 = scmp.eq.s32.totalorder %s23, 0
      %p50 = por %p48, %p49
      %s52 = sadd.s32 %s51, 1
      %p55 = scmp.eq.s32.totalorder %s17, 1
      %p56 = scmp.ne.s32.totalorder %s51, %s53
      %p57 = scmp.eq.s32.totalorder %s17, 0
      %p58 = por %p56, %p57
      %p59 = scmp.ne.s32.totalorder %s51, %s53
      %p60 = scmp.eq.s32.totalorder %s22, 1
      %p61 = por %p59, %p60
      %p62 = scmp.ne.s32.totalorder %s53, %s54
      %p63 = scmp.eq.s32.totalorder %s22, 0
      %p64 = por %p62, %p63
      %p65 = scmp.ne.s32.totalorder %s53, %s54
      %p66 = scmp.eq.s32.totalorder %s23, 1
      %p67 = por %p65, %p66
      %p69 = scmp.ne.s32.totalorder %s54, %s68
      %p70 = scmp.eq.s32.totalorder %s23, 0
      %p71 = por %p69, %p70
      %s73 = sadd.s32 %s72, 1
      %p76 = scmp.eq.s32.totalorder %s17, 1
      %p77 = scmp.ne.s32.totalorder %s72, %s74
      %p78 = scmp.eq.s32.totalorder %s17, 0
      %p79 = por %p77, %p78
      %p80 = scmp.ne.s32.totalorder %s72, %s74
      %p81 = scmp.eq.s32.totalorder %s22, 1
      %p82 = por %p80, %p81
      %p83 = scmp.ne.s32.totalorder %s74, %s75
      %p84 = scmp.eq.s32.totalorder %s22, 0
      %p85 = por %p83, %p84
      %p86 = scmp.ne.s32.totalorder %s74, %s75
      %p87 = scmp.eq.s32.totalorder %s23, 1
      %p88 = por %p86, %p87
      %p90 = scmp.ne.s32.totalorder %s75, %s89
      %p91 = scmp.eq.s32.totalorder %s23, 0
      %p92 = por %p90, %p91
      %s94 = sadd.s32 %s93, 1
      %p97 = scmp.eq.s32.totalorder %s17, 1
      %p98 = scmp.ne.s32.totalorder %s93, %s95
      %p99 = scmp.eq.s32.totalorder %s17, 0
      %p100 = por %p98, %p99
      %p101 = scmp.ne.s32.totalorder %s93, %s95
      %p102 = scmp.eq.s32.totalorder %s22, 1
      %p103 = por %p101, %p102
      %p104 = scmp.ne.s32.totalorder %s95, %s96
      %p105 = scmp.eq.s32.totalorder %s22, 0
      %p106 = por %p104, %p105
      %p107 = scmp.ne.s32.totalorder %s95, %s96
      %p108 = scmp.eq.s32.totalorder %s23, 1
      %p109 = por %p107, %p108
      %p111 = scmp.ne.s32.totalorder %s96, %s110
      %p112 = scmp.eq.s32.totalorder %s23, 0
      %p113 = por %p111, %p112
      %s115 = sadd.s32 %s114, 1
      %p118 = scmp.eq.s32.totalorder %s17, 1
      %p119 = scmp.ne.s32.totalorder %s114, %s116
      %p120 = scmp.eq.s32.totalorder %s17, 0
      %p121 = por %p119, %p120
      %p122 = scmp.ne.s32.totalorder %s114, %s116
      %p123 = scmp.eq.s32.totalorder %s22, 1
      %p124 = por %p122, %p123
      %p125 = scmp.ne.s32.totalorder %s116, %s117
      %p126 = scmp.eq.s32.totalorder %s22, 0
      %p127 = por %p125, %p126
      %p128 = scmp.ne.s32.totalorder %s116, %s117
      %p129 = scmp.eq.s32.totalorder %s23, 1
      %p130 = por %p128, %p129
      %p132 = scmp.ne.s32.totalorder %s117, %s131
      %p133 = scmp.eq.s32.totalorder %s23, 0
      %p134 = por %p132, %p133
      %s136 = sadd.s32 %s135, 1
      %p139 = scmp.eq.s32.totalorder %s17, 1
      %p140 = scmp.ne.s32.totalorder %s135, %s137
      %p141 = scmp.eq.s32.totalorder %s17, 0
      %p142 = por %p140, %p141
      %p143 = scmp.ne.s32.totalorder %s135, %s137
      %p144 = scmp.eq.s32.totalorder %s22, 1
      %p145 = por %p143, %p144
      %p146 = scmp.ne.s32.totalorder %s137, %s138
      %p147 = scmp.eq.s32.totalorder %s22, 0
      %p148 = por %p146, %p147
      %p149 = scmp.ne.s32.totalorder %s137, %s138
      %p150 = scmp.eq.s32.totalorder %s23, 1
      %p151 = por %p149, %p150
      %p153 = scmp.ne.s32.totalorder %s138, %s152
      %p154 = scmp.eq.s32.totalorder %s23, 0
      %p155 = por %p153, %p154
      %s157 = sadd.s32 %s156, 1
      %p160 = scmp.eq.s32.totalorder %s17, 1
      %p161 = scmp.ne.s32.totalorder %s156, %s158
      %p162 = scmp.eq.s32.totalorder %s17, 0
      %p163 = por %p161, %p162
      %p164 = scmp.ne.s32.totalorder %s156, %s158
      %p165 = scmp.eq.s32.totalorder %s22, 1
      %p166 = por %p164, %p165
      %p167 = scmp.ne.s32.totalorder %s158, %s159
      %p168 = scmp.eq.s32.totalorder %s22, 0
      %p169 = por %p167, %p168
      %p170 = scmp.ne.s32.totalorder %s158, %s159
      %p171 = scmp.eq.s32.totalorder %s23, 1
      %p172 = por %p170, %p171
      %p174 = scmp.ne.s32.totalorder %s159, %s173
      %p175 = scmp.eq.s32.totalorder %s23, 0
      %p176 = por %p174, %p175
      %s177 = ssub.s32 %s17, %s24
      %p178 = scmp.eq.s32.totalorder %s177, 0
      %s180 = sadd.s32 %s179, 1
      %s181 = scalar_select %p178, %s179, %s180
      %p184 = pneg %p178
      %p185 = scmp.eq.s32.totalorder %s17, 1
      %p186 = por %p184, %p185
      %p187 = scmp.ne.s32.totalorder %s179, %s182
      %p188 = scmp.eq.s32.totalorder %s17, 0
      %p189 = por %p187, %p188
      %p190 = scmp.ne.s32.totalorder %s179, %s182
      %p191 = scmp.eq.s32.totalorder %s22, 1
      %p192 = por %p190, %p191
      %p193 = scmp.ne.s32.totalorder %s182, %s183
      %p194 = scmp.eq.s32.totalorder %s22, 0
      %p195 = por %p193, %p194
      %p196 = scmp.ne.s32.totalorder %s182, %s183
      %p197 = scmp.eq.s32.totalorder %s23, 1
      %p198 = por %p196, %p197
      %p200 = scmp.ne.s32.totalorder %s183, %s199
      %p201 = scmp.eq.s32.totalorder %s23, 0
      %p202 = por %p200, %p201
      %p203 = scmp.le.s32.totalorder 1, %s17
      %p204 = scmp.lt.s32.totalorder %s17, 3
      %p205 = pnand %p203, %p204
      %p206 = pneg %p205
      // Predicated region
      $region9: #{vnet_forward.13} parent=5 // pred_check
        _
      $region10: #{vnet_forward.13} parent=5 // pred_check_branch
        %208 = sbr.rel (%p205) target = $region12
      $region11: #{vnet_forward.13} parent=5 // pred_region
        %s209 = ssub.s32 %s17, 1
        // Predicated region
        $region13: #{vnet_forward.13} parent=11 // pred_check
          %p210 = pneg %p64
        $region14: #{vnet_forward.13} parent=11 // pred_check_branch
          %212 = sbr.rel (%p210) target = $region16
        $region15: #{vnet_forward.13} parent=11 // pred_region
          %214 = vsyncadd [#allocation3], 0
          %s215 = sshll.u32 %s1, 4
          %s216 = int_to_ptr.hbm [resolvable:$true] %s215
          %s217 = sshll.u32 [#allocation2], 4
          %s218 = int_to_ptr.vmem [resolvable:$true] %s217
          %223 = dma.hbm_to_vmem [thread:$0]  %s216, 1536, %s218, [#allocation3], 64, 64, 4
        $region16: #{vnet_forward.13} parent=11 // pred_fallthru
          _
        // Predicated region
        $region17: #{vnet_forward.13} parent=11 // pred_check
          %p224 = pneg %p85
        $region18: #{vnet_forward.13} parent=11 // pred_check_branch
          %226 = sbr.rel (%p224) target = $region20
        $region19: #{vnet_forward.13} parent=11 // pred_region
          %228 = vsyncadd [#allocation5], 0
          %s230 = sshll.u32 %s2, 4
          %s231 = int_to_ptr.hbm [resolvable:$true] %s230
          %s232 = sshll.u32 [#allocation4], 4
          %s233 = int_to_ptr.vmem [resolvable:$true] %s232
          %235 = dma.hbm_to_vmem [thread:$0]  %s231, 16, %s233, [#allocation5]
        $region20: #{vnet_forward.13} parent=11 // pred_fallthru
          _
        // Predicated region
        $region21: #{vnet_forward.13} parent=11 // pred_check
          %p236 = pneg %p106
        $region22: #{vnet_forward.13} parent=11 // pred_check_branch
          %238 = sbr.rel (%p236) target = $region24
        $region23: #{vnet_forward.13} parent=11 // pred_region
          %240 = vsyncadd [#allocation5], 0
          %s242 = sshll.u32 %s3, 4
          %s243 = int_to_ptr.hbm [resolvable:$true] %s242
          %s244 = sshll.u32 [#allocation6], 4
          %s245 = int_to_ptr.vmem [resolvable:$true] %s244
          %247 = dma.hbm_to_vmem [thread:$0]  %s243, 16, %s245, [#allocation5]
        $region24: #{vnet_forward.13} parent=11 // pred_fallthru
          _
        // Predicated region
        $region25: #{vnet_forward.13} parent=11 // pred_check
          %p248 = pneg %p127
        $region26: #{vnet_forward.13} parent=11 // pred_check_branch
          %250 = sbr.rel (%p248) target = $region28
        $region27: #{vnet_forward.13} parent=11 // pred_region
          %252 = vsyncadd [#allocation8], 0
          %s253 = sshll.u32 %s4, 4
          %s254 = int_to_ptr.hbm [resolvable:$true] %s253
          %s255 = sshll.u32 [#allocation7], 4
          %s256 = int_to_ptr.vmem [resolvable:$true] %s255
          %261 = dma.hbm_to_vmem [thread:$0]  %s254, 3072, %s256, [#allocation8], 64, 64, 4
        $region28: #{vnet_forward.13} parent=11 // pred_fallthru
          _
        // Predicated region
        $region29: #{vnet_forward.13} parent=11 // pred_check
          %p262 = pneg %p148
        $region30: #{vnet_forward.13} parent=11 // pred_check_branch
          %264 = sbr.rel (%p262) target = $region32
        $region31: #{vnet_forward.13} parent=11 // pred_region
          %266 = vsyncadd [#allocation8], 0
          %s268 = sshll.u32 %s5, 4
          %s269 = int_to_ptr.hbm [resolvable:$true] %s268
          %s270 = sshll.u32 [#allocation9], 4
          %s271 = int_to_ptr.vmem [resolvable:$true] %s270
          %273 = dma.hbm_to_vmem [thread:$0]  %s269, 16, %s271, [#allocation8]
        $region32: #{vnet_forward.13} parent=11 // pred_fallthru
          _
        // Predicated region
        $region33: #{vnet_forward.13} parent=11 // pred_check
          %p274 = pneg %p169
        $region34: #{vnet_forward.13} parent=11 // pred_check_branch
          %276 = sbr.rel (%p274) target = $region36
        $region35: #{vnet_forward.13} parent=11 // pred_region
          %278 = vsyncadd [#allocation11], 0
          %s280 = sshll.u32 %s6, 4
          %s281 = int_to_ptr.hbm [resolvable:$true] %s280
          %s282 = sshll.u32 [#allocation10], 4
          %s283 = int_to_ptr.vmem [resolvable:$true] %s282
          %285 = dma.hbm_to_vmem [thread:$0]  %s281, 16, %s283, [#allocation11]
        $region36: #{vnet_forward.13} parent=11 // pred_fallthru
          _
      $region12: #{vnet_forward.13} parent=5 // pred_fallthru
        _
      %p286 = scmp.lt.s32.totalorder %s17, 2
      // Predicated region
      $region37: #{vnet_forward.13} parent=5 // pred_check
        %p287 = pneg %p286
      $region38: #{vnet_forward.13} parent=5 // pred_check_branch
        %289 = sbr.rel (%p287) target = $region40
      $region39: #{vnet_forward.13} parent=5 // pred_region
        // Predicated region
        $region41: #{vnet_forward.13} parent=39 // pred_check
          %p290 = pneg %p37
        $region42: #{vnet_forward.13} parent=39 // pred_check_branch
          %292 = sbr.rel (%p290) target = $region44
        $region43: #{vnet_forward.13} parent=39 // pred_region
          %p293 = scmp.lt.s32.totalorder %s17, 1
          %s294 = scalar_select %p293, %s17, 1
          %s295 = smul.addr %s294, 2
          %s296 = scalar_lea.vmem %s0, %s295
        $region44: #{vnet_forward.13} parent=39 // pred_fallthru
          _
      $region40: #{vnet_forward.13} parent=5 // pred_fallthru
        _
      %p297 = scmp.le.s32.totalorder 1, %s17
      %p298 = scmp.lt.s32.totalorder %s17, 3
      %p299 = pnand %p297, %p298
      %p300 = pneg %p299
      // Predicated region
      $region45: #{vnet_forward.13} parent=5 // pred_check
        _
      $region46: #{vnet_forward.13} parent=5 // pred_check_branch
        %302 = sbr.rel (%p299) target = $region48
      $region47: #{vnet_forward.13} parent=5 // pred_region
        %s303 = ssub.s32 %s17, 1
        // Predicated region
        $region49: #{vnet_forward.13} parent=47 // pred_check
          %p304 = pneg %p64
        $region50: #{vnet_forward.13} parent=47 // pred_check_branch
          %306 = sbr.rel (%p304) target = $region52
        $region51: #{vnet_forward.13} parent=47 // pred_region
          %308 = dma.done [#allocation3], 1536
        $region52: #{vnet_forward.13} parent=47 // pred_fallthru
          _
        // Predicated region
        $region53: #{vnet_forward.13} parent=47 // pred_check
          %p309 = pneg %p85
        $region54: #{vnet_forward.13} parent=47 // pred_check_branch
          %311 = sbr.rel (%p309) target = $region56
        $region55: #{vnet_forward.13} parent=47 // pred_region
          %313 = dma.done [#allocation5], 16
        $region56: #{vnet_forward.13} parent=47 // pred_fallthru
          _
        // Predicated region
        $region57: #{vnet_forward.13} parent=47 // pred_check
          %p314 = pneg %p106
        $region58: #{vnet_forward.13} parent=47 // pred_check_branch
          %316 = sbr.rel (%p314) target = $region60
        $region59: #{vnet_forward.13} parent=47 // pred_region
          %318 = dma.done [#allocation5], 16
        $region60: #{vnet_forward.13} parent=47 // pred_fallthru
          _
        // Predicated region
        $region61: #{vnet_forward.13} parent=47 // pred_check
          %p319 = pneg %p127
        $region62: #{vnet_forward.13} parent=47 // pred_check_branch
          %321 = sbr.rel (%p319) target = $region64
        $region63: #{vnet_forward.13} parent=47 // pred_region
          %323 = dma.done [#allocation8], 3072
        $region64: #{vnet_forward.13} parent=47 // pred_fallthru
          _
        // Predicated region
        $region65: #{vnet_forward.13} parent=47 // pred_check
          %p324 = pneg %p148
        $region66: #{vnet_forward.13} parent=47 // pred_check_branch
          %326 = sbr.rel (%p324) target = $region68
        $region67: #{vnet_forward.13} parent=47 // pred_region
          %328 = dma.done [#allocation8], 16
        $region68: #{vnet_forward.13} parent=47 // pred_fallthru
          _
        // Predicated region
        $region69: #{vnet_forward.13} parent=47 // pred_check
          %p329 = pneg %p169
        $region70: #{vnet_forward.13} parent=47 // pred_check_branch
          %331 = sbr.rel (%p329) target = $region72
        $region71: #{vnet_forward.13} parent=47 // pred_region
          %333 = dma.done [#allocation11], 16
        $region72: #{vnet_forward.13} parent=47 // pred_fallthru
          _
        %p334 = scmp.lt.s32.totalorder %s22, 1
        %s335 = scalar_select %p334, %s22, 1
        %s336 = smul.addr %s335, 2
        %s337 = scalar_lea.vmem %s0, %s336
        %p338 = pneg %p43
        %p339 = pneg %p40
        %p340 = pneg %p64
        %p341 = pneg %p61
        %p342 = pneg %p85
        %p343 = pneg %p82
        %p344 = pneg %p106
        %p345 = pneg %p103
        %p346 = pneg %p127
        %p347 = pneg %p124
        %p348 = pneg %p148
        %p349 = pneg %p145
        %p350 = pneg %p169
        %p351 = pneg %p166
        %p352 = pneg %p195
        %p353 = pneg %p192
        %p354 = scmp.lt.s32.totalorder %s22, 1
        %s355 = scalar_select %p354, %s22, 1
        %s356 = smul.addr %s355, 2
        %s357 = scalar_lea.vmem %s7, %s356
        %p358 = scmp.lt.s32.totalorder %s22, 1
        %s359 = scalar_select %p358, %s22, 1
        %s360 = smul.addr %s359, 2
        %s361 = scalar_lea.vmem %s0, %s360
        %p362 = scmp.lt.s32.totalorder %s22, 1
        %s363 = scalar_select %p362, %s22, 1
        %s364 = smul.addr %s363, 2
        %s365 = scalar_lea.vmem %s7, %s364
        %v367 = vld [vmem:[%s361] sm:$0x3]
        %v368 = vlaneseq
        %v369 = vshrl.u32 %v368, 7
        %v370 = vlaneseq
        %v371 = vand.u32 %v370, 127
        %v372 = vsub.s32 %v369, 1
        %vm373 = vcmp.eq.s32.totalorder %v371, %v372
        %v374 = vsel %vm373, 1, 0
        %v375 = vcvt.s32.f32 %v374
        %v376 = vadd.s32 %v369, 1
        %vm377 = vcmp.eq.s32.totalorder %v371, %v376
        %v378 = vsel %vm377, 1, 0
        %v379 = vcvt.s32.f32 %v378
        %vm380 = vcmask 15360
        %v382 = vsel %vm380, %v375, 0
        %vm384 = vcmask 1041408
        %v386 = vsel %vm384, %v367, 0
        %388 = vmatpush.msra.mxu0 0.0
        %389 = vmatpush.msra.mxu0 0.0
        %390 = vmatpush.msra.mxu0 0.0
        %391 = vmatpush.msra.mxu0 0.0
        %392 = vmatpush.msra.mxu0 0.0
        %393 = vmatpush.msra.mxu0 0.0
        %394 = vmatpush.msra.mxu0 0.0
        %395 = vmatpush.msra.mxu0 0.0
        %396 = vmatpush.msra.mxu0 0.0
        %397 = vmatpush.msra.mxu0 0.0
        %398 = vmatpush.msra.mxu0 0.0
        %399 = vmatpush.msra.mxu0 0.0
        %400 = vmatpush.msra.mxu0 0.0
        %401 = vmatpush.msra.mxu0 0.0
        %402 = vmatpush.msra.mxu0 0.0
        %403 = vmatpush.msra.mxu0 %v386
        %404 = vmatmul.f32.gmra.mxu0 %v382
        %v405 = vpop.f32.mrf.mxu0
        %v406 = vadd.f32 0.0, %v405
        %407 = vdwg.mxu0
        %v409 = vsel %vm380, %v379, 0
        %411 = vmatpush.msra.mxu0 0.0
        %412 = vmatpush.msra.mxu0 0.0
        %413 = vmatpush.msra.mxu0 0.0
        %414 = vmatpush.msra.mxu0 0.0
        %415 = vmatpush.msra.mxu0 0.0
        %416 = vmatpush.msra.mxu0 0.0
        %417 = vmatpush.msra.mxu0 0.0
        %418 = vmatpush.msra.mxu0 0.0
        %419 = vmatpush.msra.mxu0 0.0
        %420 = vmatpush.msra.mxu0 0.0
        %421 = vmatpush.msra.mxu0 0.0
        %422 = vmatpush.msra.mxu0 0.0
        %423 = vmatpush.msra.mxu0 0.0
        %424 = vmatpush.msra.mxu0 0.0
        %425 = vmatpush.msra.mxu0 0.0
        %426 = vmatpush.msra.mxu0 %v386
        %427 = vmatmul.f32.gmra.mxu0 %v409
        %v428 = vpop.f32.mrf.mxu0
        %v429 = vadd.f32 0.0, %v428
        %430 = vdwg.mxu0
        %v431 = vpack.c.bf16 %v367, %v367
        %s432 = scalar_lea.vmem [#allocation2], 32
        %v433 = vld [vmem:[%s432] sm:$0xf]
        %v434 = vld [vmem:[%s432 + $0x4] sm:$0xf]
        %v435 = vld [vmem:[%s432 + $0x8] sm:$0xf]
        %v436 = vld [vmem:[%s432 + $0xc] sm:$0xf]
        %v437 = vld [vmem:[%s432 + $0x10] sm:$0xf]
        %v438 = vld [vmem:[%s432 + $0x14] sm:$0xf]
        %v439 = vld [vmem:[%s432 + $0x18] sm:$0xf]
        %v440 = vld [vmem:[%s432 + $0x1c] sm:$0xf]
        %v441 = vpack.c.bf16 %v406, %v406
        %v442 = vld [vmem:[#allocation2] sm:$0xf]
        %v443 = vld [vmem:[#allocation2 + $0x4] sm:$0xf]
        %v444 = vld [vmem:[#allocation2 + $0x8] sm:$0xf]
        %v445 = vld [vmem:[#allocation2 + $0xc] sm:$0xf]
        %v446 = vld [vmem:[#allocation2 + $0x10] sm:$0xf]
        %v447 = vld [vmem:[#allocation2 + $0x14] sm:$0xf]
        %v448 = vld [vmem:[#allocation2 + $0x18] sm:$0xf]
        %v449 = vld [vmem:[#allocation2 + $0x1c] sm:$0xf]
        %v458 = vunpack.c.l.b16 %v442
        %v459 = vunpack.c.l.b16 %v443
        %v460 = vunpack.c.l.b16 %v444
        %v461 = vunpack.c.l.b16 %v445
        %v462 = vunpack.c.l.b16 %v446
        %v463 = vunpack.c.l.b16 %v447
        %v464 = vunpack.c.l.b16 %v448
        %v465 = vunpack.c.l.b16 %v449
        %v466 = vpack.c.b16 %v459, %v458
        %v467 = vpack.c.b16 %v461, %v460
        %v468 = vpack.c.b16 %v463, %v462
        %v469 = vpack.c.b16 %v465, %v464
        %vm474 = vcmask 523264
        %v476 = vsel %vm474, %v441, 0
        %478 = vmatpush.bf16.msra.mxu0 0
        %479 = vmatpush.bf16.msra.mxu0 0
        %480 = vmatpush.bf16.msra.mxu0 0
        %481 = vmatpush.bf16.msra.mxu0 0
        %482 = vmatpush.bf16.msra.mxu0 %v469
        %483 = vmatpush.bf16.msra.mxu0 %v468
        %484 = vmatpush.bf16.msra.mxu0 %v467
        %485 = vmatpush.bf16.msra.mxu0 %v466
        %486 = vmatmul.bf16.gmra.mxu0 %v476
        %v487 = vpop.f32.mrf.mxu0
        %v488 = vadd.f32 0.0, %v487
        %v489 = vpop.f32.mrf.mxu0
        %490 = vdwg.mxu0
        %v499 = vunpack.c.l.b16 %v433
        %v500 = vunpack.c.l.b16 %v434
        %v501 = vunpack.c.l.b16 %v435
        %v502 = vunpack.c.l.b16 %v436
        %v503 = vunpack.c.l.b16 %v437
        %v504 = vunpack.c.l.b16 %v438
        %v505 = vunpack.c.l.b16 %v439
        %v506 = vunpack.c.l.b16 %v440
        %v507 = vpack.c.b16 %v500, %v499
        %v508 = vpack.c.b16 %v502, %v501
        %v509 = vpack.c.b16 %v504, %v503
        %v510 = vpack.c.b16 %v506, %v505
        %v516 = vsel %vm474, %v431, 0
        %518 = vmatpush.bf16.msra.mxu0 0
        %519 = vmatpush.bf16.msra.mxu0 0
        %520 = vmatpush.bf16.msra.mxu0 0
        %521 = vmatpush.bf16.msra.mxu0 0
        %522 = vmatpush.bf16.msra.mxu0 %v510
        %523 = vmatpush.bf16.msra.mxu0 %v509
        %524 = vmatpush.bf16.msra.mxu0 %v508
        %525 = vmatpush.bf16.msra.mxu0 %v507
        %526 = vmatmul.bf16.gmra.mxu0 %v516
        %v527 = vpop.f32.mrf.mxu0
        %v528 = vadd.f32 %v488, %v527
        %v529 = vpop.f32.mrf.mxu0
        %530 = vdwg.mxu0
        %v531 = vpack.c.bf16 %v429, %v429
        %s532 = scalar_lea.vmem [#allocation2], 64
        %v533 = vld [vmem:[%s532] sm:$0xf]
        %v534 = vld [vmem:[%s532 + $0x4] sm:$0xf]
        %v535 = vld [vmem:[%s532 + $0x8] sm:$0xf]
        %v536 = vld [vmem:[%s532 + $0xc] sm:$0xf]
        %v537 = vld [vmem:[%s532 + $0x10] sm:$0xf]
        %v538 = vld [vmem:[%s532 + $0x14] sm:$0xf]
        %v539 = vld [vmem:[%s532 + $0x18] sm:$0xf]
        %v540 = vld [vmem:[%s532 + $0x1c] sm:$0xf]
        %v549 = vunpack.c.l.b16 %v533
        %v550 = vunpack.c.l.b16 %v534
        %v551 = vunpack.c.l.b16 %v535
        %v552 = vunpack.c.l.b16 %v536
        %v553 = vunpack.c.l.b16 %v537
        %v554 = vunpack.c.l.b16 %v538
        %v555 = vunpack.c.l.b16 %v539
        %v556 = vunpack.c.l.b16 %v540
        %v557 = vpack.c.b16 %v550, %v549
        %v558 = vpack.c.b16 %v552, %v551
        %v559 = vpack.c.b16 %v554, %v553
        %v560 = vpack.c.b16 %v556, %v555
        %v566 = vsel %vm474, %v531, 0
        %568 = vmatpush.bf16.msra.mxu0 0
        %569 = vmatpush.bf16.msra.mxu0 0
        %570 = vmatpush.bf16.msra.mxu0 0
        %571 = vmatpush.bf16.msra.mxu0 0
        %572 = vmatpush.bf16.msra.mxu0 %v560
        %573 = vmatpush.bf16.msra.mxu0 %v559
        %574 = vmatpush.bf16.msra.mxu0 %v558
        %575 = vmatpush.bf16.msra.mxu0 %v557
        %576 = vmatmul.bf16.gmra.mxu0 %v566
        %v577 = vpop.f32.mrf.mxu0
        %v578 = vadd.f32 0.0, %v577
        %v579 = vpop.f32.mrf.mxu0
        %580 = vdwg.mxu0
        %v581 = vadd.f32 %v528, %v578
        %v582 = vld [vmem:[#allocation4] sm:$0x1]
        %v584 = vperm.slane %v582, 0
        %v586 = vmul.f32 %v581, %v584
        %v587 = vld [vmem:[#allocation6] sm:$0x1]
        %v589 = vperm.slane %v587, 0
        %v591 = vadd.f32 %v586, %v589
        %v592 = vmax.f32 %v591, 0.0
        %v594 = vsel %vm384, %v592, 0
        %596 = vmatpush.msra.mxu0 0.0
        %597 = vmatpush.msra.mxu0 0.0
        %598 = vmatpush.msra.mxu0 0.0
        %599 = vmatpush.msra.mxu0 0.0
        %600 = vmatpush.msra.mxu0 0.0
        %601 = vmatpush.msra.mxu0 0.0
        %602 = vmatpush.msra.mxu0 0.0
        %603 = vmatpush.msra.mxu0 0.0
        %604 = vmatpush.msra.mxu0 0.0
        %605 = vmatpush.msra.mxu0 0.0
        %606 = vmatpush.msra.mxu0 0.0
        %607 = vmatpush.msra.mxu0 0.0
        %608 = vmatpush.msra.mxu0 0.0
        %609 = vmatpush.msra.mxu0 0.0
        %610 = vmatpush.msra.mxu0 0.0
        %611 = vmatpush.msra.mxu0 %v594
        %612 = vmatmul.f32.gmra.mxu0 %v382
        %v613 = vpop.f32.mrf.mxu0
        %v614 = vadd.f32 0.0, %v613
        %615 = vdwg.mxu0
        %616 = vmatpush.msra.mxu0 0.0
        %617 = vmatpush.msra.mxu0 0.0
        %618 = vmatpush.msra.mxu0 0.0
        %619 = vmatpush.msra.mxu0 0.0
        %620 = vmatpush.msra.mxu0 0.0
        %621 = vmatpush.msra.mxu0 0.0
        %622 = vmatpush.msra.mxu0 0.0
        %623 = vmatpush.msra.mxu0 0.0
        %624 = vmatpush.msra.mxu0 0.0
        %625 = vmatpush.msra.mxu0 0.0
        %626 = vmatpush.msra.mxu0 0.0
        %627 = vmatpush.msra.mxu0 0.0
        %628 = vmatpush.msra.mxu0 0.0
        %629 = vmatpush.msra.mxu0 0.0
        %630 = vmatpush.msra.mxu0 0.0
        %631 = vmatpush.msra.mxu0 %v594
        %632 = vmatmul.f32.gmra.mxu0 %v409
        %v633 = vpop.f32.mrf.mxu0
        %v634 = vadd.f32 0.0, %v633
        %635 = vdwg.mxu0
        %v636 = vpack.c.bf16 %v592, %v592
        %s637 = scalar_lea.vmem [#allocation7], 64
        %v638 = vld [vmem:[%s637] sm:$0xf]
        %v639 = vld [vmem:[%s637 + $0x4] sm:$0xf]
        %v640 = vld [vmem:[%s637 + $0x8] sm:$0xf]
        %v641 = vld [vmem:[%s637 + $0xc] sm:$0xf]
        %v642 = vld [vmem:[%s637 + $0x10] sm:$0xf]
        %v643 = vld [vmem:[%s637 + $0x14] sm:$0xf]
        %v644 = vld [vmem:[%s637 + $0x18] sm:$0xf]
        %v645 = vld [vmem:[%s637 + $0x1c] sm:$0xf]
        %v646 = vld [vmem:[%s637 + $0x20] sm:$0xf]
        %v647 = vld [vmem:[%s637 + $0x24] sm:$0xf]
        %v648 = vld [vmem:[%s637 + $0x28] sm:$0xf]
        %v649 = vld [vmem:[%s637 + $0x2c] sm:$0xf]
        %v650 = vld [vmem:[%s637 + $0x30] sm:$0xf]
        %v651 = vld [vmem:[%s637 + $0x34] sm:$0xf]
        %v652 = vld [vmem:[%s637 + $0x38] sm:$0xf]
        %v653 = vld [vmem:[%s637 + $0x3c] sm:$0xf]
        %v654 = vpack.c.bf16 %v614, %v614
        %v655 = vld [vmem:[#allocation7] sm:$0xf]
        %v656 = vld [vmem:[#allocation7 + $0x4] sm:$0xf]
        %v657 = vld [vmem:[#allocation7 + $0x8] sm:$0xf]
        %v658 = vld [vmem:[#allocation7 + $0xc] sm:$0xf]
        %v659 = vld [vmem:[#allocation7 + $0x10] sm:$0xf]
        %v660 = vld [vmem:[#allocation7 + $0x14] sm:$0xf]
        %v661 = vld [vmem:[#allocation7 + $0x18] sm:$0xf]
        %v662 = vld [vmem:[#allocation7 + $0x1c] sm:$0xf]
        %v663 = vld [vmem:[#allocation7 + $0x20] sm:$0xf]
        %v664 = vld [vmem:[#allocation7 + $0x24] sm:$0xf]
        %v665 = vld [vmem:[#allocation7 + $0x28] sm:$0xf]
        %v666 = vld [vmem:[#allocation7 + $0x2c] sm:$0xf]
        %v667 = vld [vmem:[#allocation7 + $0x30] sm:$0xf]
        %v668 = vld [vmem:[#allocation7 + $0x34] sm:$0xf]
        %v669 = vld [vmem:[#allocation7 + $0x38] sm:$0xf]
        %v670 = vld [vmem:[#allocation7 + $0x3c] sm:$0xf]
        %v687 = vunpack.c.l.b16 %v655
        %v688 = vunpack.c.l.b16 %v656
        %v689 = vunpack.c.l.b16 %v657
        %v690 = vunpack.c.l.b16 %v658
        %v691 = vunpack.c.l.b16 %v659
        %v692 = vunpack.c.l.b16 %v660
        %v693 = vunpack.c.l.b16 %v661
        %v694 = vunpack.c.l.b16 %v662
        %v695 = vunpack.c.l.b16 %v663
        %v696 = vunpack.c.l.b16 %v664
        %v697 = vunpack.c.l.b16 %v665
        %v698 = vunpack.c.l.b16 %v666
        %v699 = vunpack.c.l.b16 %v667
        %v700 = vunpack.c.l.b16 %v668
        %v701 = vunpack.c.l.b16 %v669
        %v702 = vunpack.c.l.b16 %v670
        %v703 = vpack.c.b16 %v688, %v687
        %v704 = vpack.c.b16 %v690, %v689
        %v705 = vpack.c.b16 %v692, %v691
        %v706 = vpack.c.b16 %v694, %v693
        %v707 = vpack.c.b16 %v696, %v695
        %v708 = vpack.c.b16 %v698, %v697
        %v709 = vpack.c.b16 %v700, %v699
        %v710 = vpack.c.b16 %v702, %v701
        %719 = vmatpush.bf16.msra.mxu0 %v710
        %720 = vmatpush.bf16.msra.mxu0 %v709
        %721 = vmatpush.bf16.msra.mxu0 %v708
        %722 = vmatpush.bf16.msra.mxu0 %v707
        %723 = vmatpush.bf16.msra.mxu0 %v706
        %724 = vmatpush.bf16.msra.mxu0 %v705
        %725 = vmatpush.bf16.msra.mxu0 %v704
        %726 = vmatpush.bf16.msra.mxu0 %v703
        %727 = vmatmul.bf16.gmra.mxu0 %v654
        %v728 = vpop.f32.mrf.mxu0
        %v729 = vadd.f32 0.0, %v728
        %v730 = vpop.f32.mrf.mxu0
        %731 = vdwg.mxu0
        %v748 = vunpack.c.l.b16 %v638
        %v749 = vunpack.c.l.b16 %v639
        %v750 = vunpack.c.l.b16 %v640
        %v751 = vunpack.c.l.b16 %v641
        %v752 = vunpack.c.l.b16 %v642
        %v753 = vunpack.c.l.b16 %v643
        %v754 = vunpack.c.l.b16 %v644
        %v755 = vunpack.c.l.b16 %v645
        %v756 = vunpack.c.l.b16 %v646
        %v757 = vunpack.c.l.b16 %v647
        %v758 = vunpack.c.l.b16 %v648
        %v759 = vunpack.c.l.b16 %v649
        %v760 = vunpack.c.l.b16 %v650
        %v761 = vunpack.c.l.b16 %v651
        %v762 = vunpack.c.l.b16 %v652
        %v763 = vunpack.c.l.b16 %v653
        %v764 = vpack.c.b16 %v749, %v748
        %v765 = vpack.c.b16 %v751, %v750
        %v766 = vpack.c.b16 %v753, %v752
        %v767 = vpack.c.b16 %v755, %v754
        %v768 = vpack.c.b16 %v757, %v756
        %v769 = vpack.c.b16 %v759, %v758
        %v770 = vpack.c.b16 %v761, %v760
        %v771 = vpack.c.b16 %v763, %v762
        %780 = vmatpush.bf16.msra.mxu0 %v771
        %781 = vmatpush.bf16.msra.mxu0 %v770
        %782 = vmatpush.bf16.msra.mxu0 %v769
        %783 = vmatpush.bf16.msra.mxu0 %v768
        %784 = vmatpush.bf16.msra.mxu0 %v767
        %785 = vmatpush.bf16.msra.mxu0 %v766
        %786 = vmatpush.bf16.msra.mxu0 %v765
        %787 = vmatpush.bf16.msra.mxu0 %v764
        %788 = vmatmul.bf16.gmra.mxu0 %v636
        %v789 = vpop.f32.mrf.mxu0
        %v790 = vadd.f32 %v729, %v789
        %v791 = vpop.f32.mrf.mxu0
        %792 = vdwg.mxu0
        %v793 = vpack.c.bf16 %v634, %v634
        %s794 = scalar_lea.vmem [#allocation7], 128
        %v795 = vld [vmem:[%s794] sm:$0xf]
        %v796 = vld [vmem:[%s794 + $0x4] sm:$0xf]
        %v797 = vld [vmem:[%s794 + $0x8] sm:$0xf]
        %v798 = vld [vmem:[%s794 + $0xc] sm:$0xf]
        %v799 = vld [vmem:[%s794 + $0x10] sm:$0xf]
        %v800 = vld [vmem:[%s794 + $0x14] sm:$0xf]
        %v801 = vld [vmem:[%s794 + $0x18] sm:$0xf]
        %v802 = vld [vmem:[%s794 + $0x1c] sm:$0xf]
        %v803 = vld [vmem:[%s794 + $0x20] sm:$0xf]
        %v804 = vld [vmem:[%s794 + $0x24] sm:$0xf]
        %v805 = vld [vmem:[%s794 + $0x28] sm:$0xf]
        %v806 = vld [vmem:[%s794 + $0x2c] sm:$0xf]
        %v807 = vld [vmem:[%s794 + $0x30] sm:$0xf]
        %v808 = vld [vmem:[%s794 + $0x34] sm:$0xf]
        %v809 = vld [vmem:[%s794 + $0x38] sm:$0xf]
        %v810 = vld [vmem:[%s794 + $0x3c] sm:$0xf]
        %v827 = vunpack.c.l.b16 %v795
        %v828 = vunpack.c.l.b16 %v796
        %v829 = vunpack.c.l.b16 %v797
        %v830 = vunpack.c.l.b16 %v798
        %v831 = vunpack.c.l.b16 %v799
        %v832 = vunpack.c.l.b16 %v800
        %v833 = vunpack.c.l.b16 %v801
        %v834 = vunpack.c.l.b16 %v802
        %v835 = vunpack.c.l.b16 %v803
        %v836 = vunpack.c.l.b16 %v804
        %v837 = vunpack.c.l.b16 %v805
        %v838 = vunpack.c.l.b16 %v806
        %v839 = vunpack.c.l.b16 %v807
        %v840 = vunpack.c.l.b16 %v808
        %v841 = vunpack.c.l.b16 %v809
        %v842 = vunpack.c.l.b16 %v810
        %v843 = vpack.c.b16 %v828, %v827
        %v844 = vpack.c.b16 %v830, %v829
        %v845 = vpack.c.b16 %v832, %v831
        %v846 = vpack.c.b16 %v834, %v833
        %v847 = vpack.c.b16 %v836, %v835
        %v848 = vpack.c.b16 %v838, %v837
        %v849 = vpack.c.b16 %v840, %v839
        %v850 = vpack.c.b16 %v842, %v841
        %859 = vmatpush.bf16.msra.mxu0 %v850
        %860 = vmatpush.bf16.msra.mxu0 %v849
        %861 = vmatpush.bf16.msra.mxu0 %v848
        %862 = vmatpush.bf16.msra.mxu0 %v847
        %863 = vmatpush.bf16.msra.mxu0 %v846
        %864 = vmatpush.bf16.msra.mxu0 %v845
        %865 = vmatpush.bf16.msra.mxu0 %v844
        %866 = vmatpush.bf16.msra.mxu0 %v843
        %867 = vmatmul.bf16.gmra.mxu0 %v793
        %v868 = vpop.f32.mrf.mxu0
        %v869 = vadd.f32 0.0, %v868
        %v870 = vpop.f32.mrf.mxu0
        %871 = vdwg.mxu0
        %v872 = vadd.f32 %v790, %v869
        %v873 = vld [vmem:[#allocation9] sm:$0x1]
        %v875 = vperm.slane %v873, 0
        %v877 = vmul.f32 %v872, %v875
        %v878 = vld [vmem:[#allocation10] sm:$0x1]
        %v880 = vperm.slane %v878, 0
        %v882 = vadd.f32 %v877, %v880
        %v883 = vmax.f32 %v882, 0.0
        %884 = vst [vmem:[%s365] sm:$0x3] %v883
        %p885 = scmp.lt.s32.totalorder %s22, 1
        %s886 = scalar_select %p885, %s22, 1
        %s887 = smul.addr %s886, 2
        %s888 = scalar_lea.vmem %s7, %s887
        // Predicated region
        $region73: #{vnet_forward.13} parent=47 // pred_check
          %p889 = pneg %p192
        $region74: #{vnet_forward.13} parent=47 // pred_check_branch
          %891 = sbr.rel (%p889) target = $region76
        $region75: #{vnet_forward.13} parent=47 // pred_region
          _
        $region76: #{vnet_forward.13} parent=47 // pred_fallthru
          _
      $region48: #{vnet_forward.13} parent=5 // pred_fallthru
        _
      %p892 = scmp.le.s32.totalorder 2, %s17
      // Predicated region
      $region77: #{vnet_forward.13} parent=5 // pred_check
        %p893 = pneg %p892
      $region78: #{vnet_forward.13} parent=5 // pred_check_branch
        %895 = sbr.rel (%p893) target = $region80
      $region79: #{vnet_forward.13} parent=5 // pred_region
        %s896 = ssub.s32 %s17, 2
        // Predicated region
        $region81: #{vnet_forward.13} parent=79 // pred_check
          %p897 = pneg %p198
        $region82: #{vnet_forward.13} parent=79 // pred_check_branch
          %899 = sbr.rel (%p897) target = $region84
        $region83: #{vnet_forward.13} parent=79 // pred_region
          %p900 = scmp.lt.s32.totalorder %s23, 1
          %s901 = scalar_select %p900, %s23, 1
          %s902 = smul.addr %s901, 2
          %s903 = scalar_lea.vmem %s7, %s902
        $region84: #{vnet_forward.13} parent=79 // pred_fallthru
          _
      $region80: #{vnet_forward.13} parent=5 // pred_fallthru
        _
    $region6: #{vnet_forward.13} parent=1 // loop_footer
      %s21 = sadd.s32 1, %s17
    $region7: #{vnet_forward.13} parent=1 // loop_footer_branch
      %16 = sbr.rel target = $region3
    $region8: #{vnet_forward.13} parent=1 // loop_exit
      _
    %904 = vsyncpa [#allocation3], 1
    %s905 = scalar_lea.sflag [#allocation3], 1
    %906 = vsyncpa %s905, 1
    %907 = vsyncpa [#allocation5], 1
    %908 = vsyncpa [#allocation8], 1
    %909 = vsyncpa [#allocation11], 1

// kernel: vnet_forward.14
$region0: #{vnet_forward.14}
  #allocation0 [shape = 'u32[]', space=smem, size = 0x4, offset = 0x4, fixed_abs, tag = 'smem constant byte address 0x4 - core index']
  #allocation1 [shape = 'u32[72,128]{1,0:T(1,128)}', space=vmem, size = 0x9000, scoped, tag = 'internal scratch']
  %s0 = inlined_call_operand.vmem [shape: f32[2,2,128], index: 0, kind: input, shape index: {}]
  %s1 = inlined_call_operand.vmem [shape: bf16[2,128,64], index: 1, kind: input, shape index: {}]
  %s2 = inlined_call_operand.vmem [shape: f32[1,64], index: 2, kind: input, shape index: {}]
  %s3 = inlined_call_operand.vmem [shape: f32[2,2,2,64], index: 3, kind: output, shape index: {}]
  %s4 = sld [smem:[#allocation0]]
  $region45: #{vnet_forward.14} parent=0
    _
  %s6 = ssub.s32 1, %s4
  %s7 = scalar_select 0, %s6, %s4
  loop: start=0, step=1, limit=4
  $region2: #{vnet_forward.14} parent=0 // loop_pre_header
    _
  $region3: #{vnet_forward.14} parent=0 // loop_header
    %s9 = sphi 0, %s13
    %p10 = scmp.ge.s32.totalorder %s9, 4
    %s19 = sphi 0, %s21
    %s22 = sphi 0, %s19
    %s23 = sphi 0, %s22
    %s39 = sphi 0, %s23
    %s43 = sphi 0, %s43
    %s45 = sphi 0, %s43
    %s46 = sphi 0, %s45
    %s60 = sphi 0, %s46
    %s64 = sphi 0, %s64
    %s66 = sphi 0, %s64
    %s67 = sphi 0, %s66
    %s81 = sphi 0, %s67
    %s87 = sphi 0, %s89
    %s90 = sphi 0, %s87
    %s91 = sphi 0, %s90
    %s107 = sphi 0, %s91
  $region4: #{vnet_forward.14} parent=0 // loop_header_branch
    %12 = sbr.rel (%p10) target = $region8
  $region5: #{vnet_forward.14} parent=0 // loop_body
    %s14 = ssub.s32 %s9, 1
    %s15 = ssub.s32 %s9, 2
    %s16 = sadd.s32 %s9, 1
    %s17 = ssub.s32 %s9, %s16
    %p18 = scmp.eq.s32.totalorder %s17, 0
    %s20 = sadd.s32 %s19, 1
    %s21 = scalar_select %p18, %s19, %s20
    %p24 = pneg %p18
    %p25 = scmp.eq.s32.totalorder %s9, 1
    %p26 = por %p24, %p25
    %p27 = scmp.ne.s32.totalorder %s19, %s22
    %p28 = scmp.eq.s32.totalorder %s9, 0
    %p29 = por %p27, %p28
    %p30 = scmp.ne.s32.totalorder %s19, %s22
    %p31 = scmp.eq.s32.totalorder %s14, 1
    %p32 = por %p30, %p31
    %p33 = scmp.ne.s32.totalorder %s22, %s23
    %p34 = scmp.eq.s32.totalorder %s14, 0
    %p35 = por %p33, %p34
    %p36 = scmp.ne.s32.totalorder %s22, %s23
    %p37 = scmp.eq.s32.totalorder %s15, 1
    %p38 = por %p36, %p37
    %p40 = scmp.ne.s32.totalorder %s23, %s39
    %p41 = scmp.eq.s32.totalorder %s15, 0
    %p42 = por %p40, %p41
    %s44 = sadd.s32 %s43, 1
    %p47 = scmp.eq.s32.totalorder %s9, 1
    %p48 = scmp.ne.s32.totalorder %s43, %s45
    %p49 = scmp.eq.s32.totalorder %s9, 0
    %p50 = por %p48, %p49
    %p51 = scmp.ne.s32.totalorder %s43, %s45
    %p52 = scmp.eq.s32.totalorder %s14, 1
    %p53 = por %p51, %p52
    %p54 = scmp.ne.s32.totalorder %s45, %s46
    %p55 = scmp.eq.s32.totalorder %s14, 0
    %p56 = por %p54, %p55
    %p57 = scmp.ne.s32.totalorder %s45, %s46
    %p58 = scmp.eq.s32.totalorder %s15, 1
    %p59 = por %p57, %p58
    %p61 = scmp.ne.s32.totalorder %s46, %s60
    %p62 = scmp.eq.s32.totalorder %s15, 0
    %p63 = por %p61, %p62
    %s65 = sadd.s32 %s64, 1
    %p68 = scmp.eq.s32.totalorder %s9, 1
    %p69 = scmp.ne.s32.totalorder %s64, %s66
    %p70 = scmp.eq.s32.totalorder %s9, 0
    %p71 = por %p69, %p70
    %p72 = scmp.ne.s32.totalorder %s64, %s66
    %p73 = scmp.eq.s32.totalorder %s14, 1
    %p74 = por %p72, %p73
    %p75 = scmp.ne.s32.totalorder %s66, %s67
    %p76 = scmp.eq.s32.totalorder %s14, 0
    %p77 = por %p75, %p76
    %p78 = scmp.ne.s32.totalorder %s66, %s67
    %p79 = scmp.eq.s32.totalorder %s15, 1
    %p80 = por %p78, %p79
    %p82 = scmp.ne.s32.totalorder %s67, %s81
    %p83 = scmp.eq.s32.totalorder %s15, 0
    %p84 = por %p82, %p83
    %s85 = ssub.s32 %s9, %s16
    %p86 = scmp.eq.s32.totalorder %s85, 0
    %s88 = sadd.s32 %s87, 1
    %s89 = scalar_select %p86, %s87, %s88
    %p92 = pneg %p86
    %p93 = scmp.eq.s32.totalorder %s9, 1
    %p94 = por %p92, %p93
    %p95 = scmp.ne.s32.totalorder %s87, %s90
    %p96 = scmp.eq.s32.totalorder %s9, 0
    %p97 = por %p95, %p96
    %p98 = scmp.ne.s32.totalorder %s87, %s90
    %p99 = scmp.eq.s32.totalorder %s14, 1
    %p100 = por %p98, %p99
    %p101 = scmp.ne.s32.totalorder %s90, %s91
    %p102 = scmp.eq.s32.totalorder %s14, 0
    %p103 = por %p101, %p102
    %p104 = scmp.ne.s32.totalorder %s90, %s91
    %p105 = scmp.eq.s32.totalorder %s15, 1
    %p106 = por %p104, %p105
    %p108 = scmp.ne.s32.totalorder %s91, %s107
    %p109 = scmp.eq.s32.totalorder %s15, 0
    %p110 = por %p108, %p109
    %p111 = scmp.le.s32.totalorder 1, %s9
    %p112 = scmp.lt.s32.totalorder %s9, 3
    %p113 = pnand %p111, %p112
    %p114 = pneg %p113
    // Predicated region
    $region9: #{vnet_forward.14} parent=5 // pred_check
      _
    $region10: #{vnet_forward.14} parent=5 // pred_check_branch
      %116 = sbr.rel (%p113) target = $region12
    $region11: #{vnet_forward.14} parent=5 // pred_region
      %s117 = ssub.s32 %s9, 1
      // Predicated region
      $region13: #{vnet_forward.14} parent=11 // pred_check
        %p118 = pneg %p56
      $region14: #{vnet_forward.14} parent=11 // pred_check_branch
        %120 = sbr.rel (%p118) target = $region16
      $region15: #{vnet_forward.14} parent=11 // pred_region
        _
      $region16: #{vnet_forward.14} parent=11 // pred_fallthru
        _
      // Predicated region
      $region17: #{vnet_forward.14} parent=11 // pred_check
        %p121 = pneg %p77
      $region18: #{vnet_forward.14} parent=11 // pred_check_branch
        %123 = sbr.rel (%p121) target = $region20
      $region19: #{vnet_forward.14} parent=11 // pred_region
        _
      $region20: #{vnet_forward.14} parent=11 // pred_fallthru
        _
    $region12: #{vnet_forward.14} parent=5 // pred_fallthru
      _
    %p124 = scmp.lt.s32.totalorder %s9, 2
    // Predicated region
    $region21: #{vnet_forward.14} parent=5 // pred_check
      %p125 = pneg %p124
    $region22: #{vnet_forward.14} parent=5 // pred_check_branch
      %127 = sbr.rel (%p125) target = $region24
    $region23: #{vnet_forward.14} parent=5 // pred_region
      // Predicated region
      $region25: #{vnet_forward.14} parent=23 // pred_check
        %p128 = pneg %p29
      $region26: #{vnet_forward.14} parent=23 // pred_check_branch
        %130 = sbr.rel (%p128) target = $region28
      $region27: #{vnet_forward.14} parent=23 // pred_region
        %p131 = scmp.lt.s32.totalorder %s9, 1
        %s132 = scalar_select %p131, %s9, 1
        %s133 = smul.addr %s132, 2
        %s134 = scalar_lea.vmem %s0, %s133
      $region28: #{vnet_forward.14} parent=23 // pred_fallthru
        _
    $region24: #{vnet_forward.14} parent=5 // pred_fallthru
      _
    %p135 = scmp.le.s32.totalorder 1, %s9
    %p136 = scmp.lt.s32.totalorder %s9, 3
    %p137 = pnand %p135, %p136
    %p138 = pneg %p137
    // Predicated region
    $region29: #{vnet_forward.14} parent=5 // pred_check
      _
    $region30: #{vnet_forward.14} parent=5 // pred_check_branch
      %140 = sbr.rel (%p137) target = $region32
    $region31: #{vnet_forward.14} parent=5 // pred_region
      %s141 = ssub.s32 %s9, 1
      %p142 = scmp.lt.s32.totalorder %s14, 1
      %s143 = scalar_select %p142, %s14, 1
      %s144 = smul.addr %s143, 2
      %s145 = scalar_lea.vmem %s0, %s144
      %p146 = pneg %p35
      %p147 = pneg %p32
      %p148 = pneg %p56
      %p149 = pneg %p53
      %p150 = pneg %p77
      %p151 = pneg %p74
      %p152 = pneg %p103
      %p153 = pneg %p100
      %p154 = scmp.lt.s32.totalorder %s14, 1
      %s155 = scalar_select %p154, %s14, 1
      %s156 = smul.addr %s155, 2
      %s157 = smul.addr %s156, 2
      %s158 = scalar_lea.vmem %s3, %s157
      %p159 = scmp.lt.s32.totalorder %s14, 1
      %s160 = scalar_select %p159, %s14, 1
      %s161 = smul.addr %s160, 2
      %s162 = scalar_lea.vmem %s0, %s161
      %p163 = scmp.lt.s32.totalorder %s14, 1
      %s164 = scalar_select %p163, %s14, 1
      %s165 = smul.addr %s164, 2
      %s166 = smul.addr %s165, 2
      %s167 = scalar_lea.vmem %s3, %s166
      %v168 = vld [vmem:[%s162] sm:$0x3]
      %v169 = vpack.c.bf16 %v168, %v168
      %v170 = vld [vmem:[%s2] sm:$0x1]
      %v171 = vld [vmem:[%s1] sm:$0xf]
      %v172 = vld [vmem:[%s1 + $0x4] sm:$0xf]
      %v173 = vld [vmem:[%s1 + $0x8] sm:$0xf]
      %v174 = vld [vmem:[%s1 + $0xc] sm:$0xf]
      %v175 = vld [vmem:[%s1 + $0x10] sm:$0xf]
      %v176 = vld [vmem:[%s1 + $0x14] sm:$0xf]
      %v177 = vld [vmem:[%s1 + $0x18] sm:$0xf]
      %v178 = vld [vmem:[%s1 + $0x1c] sm:$0xf]
      %v179 = vld [vmem:[%s1 + $0x20] sm:$0xf]
      %v180 = vld [vmem:[%s1 + $0x24] sm:$0xf]
      %v181 = vld [vmem:[%s1 + $0x28] sm:$0xf]
      %v182 = vld [vmem:[%s1 + $0x2c] sm:$0xf]
      %v183 = vld [vmem:[%s1 + $0x30] sm:$0xf]
      %v184 = vld [vmem:[%s1 + $0x34] sm:$0xf]
      %v185 = vld [vmem:[%s1 + $0x38] sm:$0xf]
      %v186 = vld [vmem:[%s1 + $0x3c] sm:$0xf]
      %v188 = vperm.slane %v170, 0
      %v206 = vunpack.c.l.b16 %v171
      %v207 = vunpack.c.l.b16 %v172
      %v208 = vunpack.c.l.b16 %v173
      %v209 = vunpack.c.l.b16 %v174
      %v210 = vunpack.c.l.b16 %v175
      %v211 = vunpack.c.l.b16 %v176
      %v212 = vunpack.c.l.b16 %v177
      %v213 = vunpack.c.l.b16 %v178
      %v214 = vunpack.c.l.b16 %v179
      %v215 = vunpack.c.l.b16 %v180
      %v216 = vunpack.c.l.b16 %v181
      %v217 = vunpack.c.l.b16 %v182
      %v218 = vunpack.c.l.b16 %v183
      %v219 = vunpack.c.l.b16 %v184
      %v220 = vunpack.c.l.b16 %v185
      %v221 = vunpack.c.l.b16 %v186
      %v222 = vpack.c.b16 %v207, %v206
      %v223 = vpack.c.b16 %v209, %v208
      %v224 = vpack.c.b16 %v211, %v210
      %v225 = vpack.c.b16 %v213, %v212
      %v226 = vpack.c.b16 %v215, %v214
      %v227 = vpack.c.b16 %v217, %v216
      %v228 = vpack.c.b16 %v219, %v218
      %v229 = vpack.c.b16 %v221, %v220
      %238 = vmatpush.bf16.msra.mxu0 %v229
      %239 = vmatpush.bf16.msra.mxu0 %v228
      %240 = vmatpush.bf16.msra.mxu0 %v227
      %241 = vmatpush.bf16.msra.mxu0 %v226
      %242 = vmatpush.bf16.msra.mxu0 %v225
      %243 = vmatpush.bf16.msra.mxu0 %v224
      %244 = vmatpush.bf16.msra.mxu0 %v223
      %245 = vmatpush.bf16.msra.mxu0 %v222
      %246 = vmatmul.bf16.gmra.mxu0 %v169
      %v247 = vpop.f32.mrf.mxu0
      %v248 = vadd.f32 %v188, %v247
      %v249 = vpop.f32.mrf.mxu0
      %250 = vdwg.mxu0
      %s251 = scalar_lea.vmem %s1, 64
      %v252 = vld [vmem:[%s251] sm:$0xf]
      %v253 = vld [vmem:[%s251 + $0x4] sm:$0xf]
      %v254 = vld [vmem:[%s251 + $0x8] sm:$0xf]
      %v255 = vld [vmem:[%s251 + $0xc] sm:$0xf]
      %v256 = vld [vmem:[%s251 + $0x10] sm:$0xf]
      %v257 = vld [vmem:[%s251 + $0x14] sm:$0xf]
      %v258 = vld [vmem:[%s251 + $0x18] sm:$0xf]
      %v259 = vld [vmem:[%s251 + $0x1c] sm:$0xf]
      %v260 = vld [vmem:[%s251 + $0x20] sm:$0xf]
      %v261 = vld [vmem:[%s251 + $0x24] sm:$0xf]
      %v262 = vld [vmem:[%s251 + $0x28] sm:$0xf]
      %v263 = vld [vmem:[%s251 + $0x2c] sm:$0xf]
      %v264 = vld [vmem:[%s251 + $0x30] sm:$0xf]
      %v265 = vld [vmem:[%s251 + $0x34] sm:$0xf]
      %v266 = vld [vmem:[%s251 + $0x38] sm:$0xf]
      %v267 = vld [vmem:[%s251 + $0x3c] sm:$0xf]
      %v284 = vunpack.c.l.b16 %v252
      %v285 = vunpack.c.l.b16 %v253
      %v286 = vunpack.c.l.b16 %v254
      %v287 = vunpack.c.l.b16 %v255
      %v288 = vunpack.c.l.b16 %v256
      %v289 = vunpack.c.l.b16 %v257
      %v290 = vunpack.c.l.b16 %v258
      %v291 = vunpack.c.l.b16 %v259
      %v292 = vunpack.c.l.b16 %v260
      %v293 = vunpack.c.l.b16 %v261
      %v294 = vunpack.c.l.b16 %v262
      %v295 = vunpack.c.l.b16 %v263
      %v296 = vunpack.c.l.b16 %v264
      %v297 = vunpack.c.l.b16 %v265
      %v298 = vunpack.c.l.b16 %v266
      %v299 = vunpack.c.l.b16 %v267
      %v300 = vpack.c.b16 %v285, %v284
      %v301 = vpack.c.b16 %v287, %v286
      %v302 = vpack.c.b16 %v289, %v288
      %v303 = vpack.c.b16 %v291, %v290
      %v304 = vpack.c.b16 %v293, %v292
      %v305 = vpack.c.b16 %v295, %v294
      %v306 = vpack.c.b16 %v297, %v296
      %v307 = vpack.c.b16 %v299, %v298
      %316 = vmatpush.bf16.msra.mxu0 %v307
      %317 = vmatpush.bf16.msra.mxu0 %v306
      %318 = vmatpush.bf16.msra.mxu0 %v305
      %319 = vmatpush.bf16.msra.mxu0 %v304
      %320 = vmatpush.bf16.msra.mxu0 %v303
      %321 = vmatpush.bf16.msra.mxu0 %v302
      %322 = vmatpush.bf16.msra.mxu0 %v301
      %323 = vmatpush.bf16.msra.mxu0 %v300
      %324 = vmatmul.bf16.gmra.mxu0 %v169
      %v325 = vpop.f32.mrf.mxu0
      %v326 = vadd.f32 %v188, %v325
      %v327 = vpop.f32.mrf.mxu0
      %328 = vdwg.mxu0
      %v330 = vrot.slane %v248, 1
      %vm332 = vcmask 516096
      %333 = vst.msk [vmem:[%s167] sm:$0x1] %vm332, %v248
      %334 = vst.msk [vmem:[%s167 + $0x2] sm:$0x1] %vm332, %v330
      %v336 = vrot.slane %v326, 1
      %338 = vst.msk [vmem:[%s167 + $0x1] sm:$0x1] %vm332, %v326
      %339 = vst.msk [vmem:[%s167 + $0x3] sm:$0x1] %vm332, %v336
      %p340 = scmp.lt.s32.totalorder %s14, 1
      %s341 = scalar_select %p340, %s14, 1
      %s342 = smul.addr %s341, 2
      %s343 = smul.addr %s342, 2
      %s344 = scalar_lea.vmem %s3, %s343
      // Predicated region
      $region33: #{vnet_forward.14} parent=31 // pred_check
        %p345 = pneg %p100
      $region34: #{vnet_forward.14} parent=31 // pred_check_branch
        %347 = sbr.rel (%p345) target = $region36
      $region35: #{vnet_forward.14} parent=31 // pred_region
        _
      $region36: #{vnet_forward.14} parent=31 // pred_fallthru
        _
    $region32: #{vnet_forward.14} parent=5 // pred_fallthru
      _
    %p348 = scmp.le.s32.totalorder 2, %s9
    // Predicated region
    $region37: #{vnet_forward.14} parent=5 // pred_check
      %p349 = pneg %p348
    $region38: #{vnet_forward.14} parent=5 // pred_check_branch
      %351 = sbr.rel (%p349) target = $region40
    $region39: #{vnet_forward.14} parent=5 // pred_region
      %s352 = ssub.s32 %s9, 2
      // Predicated region
      $region41: #{vnet_forward.14} parent=39 // pred_check
        %p353 = pneg %p106
      $region42: #{vnet_forward.14} parent=39 // pred_check_branch
        %355 = sbr.rel (%p353) target = $region44
      $region43: #{vnet_forward.14} parent=39 // pred_region
        %p356 = scmp.lt.s32.totalorder %s15, 1
        %s357 = scalar_select %p356, %s15, 1
        %s358 = smul.addr %s357, 2
        %s359 = smul.addr %s358, 2
        %s360 = scalar_lea.vmem %s3, %s359
      $region44: #{vnet_forward.14} parent=39 // pred_fallthru
        _
    $region40: #{vnet_forward.14} parent=5 // pred_fallthru
      _
  $region6: #{vnet_forward.14} parent=0 // loop_footer
    %s13 = sadd.s32 1, %s9
  $region7: #{vnet_forward.14} parent=0 // loop_footer_branch
    %8 = sbr.rel target = $region3
  $region8: #{vnet_forward.14} parent=0 // loop_exit
    _

// kernel: vnet_forward.16
$region0: #{vnet_forward.16}
  #allocation0 [shape = 'u32[]', space=smem, size = 0x4, offset = 0x4, fixed_abs, tag = 'smem constant byte address 0x4 - core index']
  #allocation1 [shape = 'u32[72,128]{1,0:T(1,128)}', space=vmem, size = 0x9000, scoped, tag = 'internal scratch']
  %s0 = inlined_call_operand.vmem [shape: f32[2,4,64], index: 0, kind: input, shape index: {}]
  %s1 = inlined_call_operand.vmem [shape: bf16[2,64,32], index: 1, kind: input, shape index: {}]
  %s2 = inlined_call_operand.hbm [shape: f32[1,32], index: 2, kind: input, shape index: {}]
  %s3 = inlined_call_operand.vmem [shape: f32[2,4,2,32], index: 3, kind: output, shape index: {}]
  %s4 = sld [smem:[#allocation0]]
  $region49: #{vnet_forward.16} parent=0
    _
  %s6 = ssub.s32 1, %s4
  %s7 = scalar_select 0, %s6, %s4
  $region1: #{vnet_forward.16} parent=0
    #allocation2 [shape = 'u8[512]{0}', space=vmem, size = 0x400, scoped, tag = 'input window, operand 2, single buffered']
    #allocation3 [shape = 's32[2]{0}', space=sflag, size = 0x8, scoped, tag = 'scoped memory for vnet_forward.16']
    %8 = vsyncpa [#allocation3], 0
    loop: start=0, step=1, limit=4
    $region2: #{vnet_forward.16} parent=1 // loop_pre_header
      _
    $region3: #{vnet_forward.16} parent=1 // loop_header
      %s10 = sphi 0, %s14
      %p11 = scmp.ge.s32.totalorder %s10, 4
      %s20 = sphi 0, %s22
      %s23 = sphi 0, %s20
      %s24 = sphi 0, %s23
      %s40 = sphi 0, %s24
      %s44 = sphi 0, %s44
      %s46 = sphi 0, %s44
      %s47 = sphi 0, %s46
      %s61 = sphi 0, %s47
      %s65 = sphi 0, %s65
      %s67 = sphi 0, %s65
      %s68 = sphi 0, %s67
      %s82 = sphi 0, %s68
      %s88 = sphi 0, %s90
      %s91 = sphi 0, %s88
      %s92 = sphi 0, %s91
      %s108 = sphi 0, %s92
    $region4: #{vnet_forward.16} parent=1 // loop_header_branch
      %13 = sbr.rel (%p11) target = $region8
    $region5: #{vnet_forward.16} parent=1 // loop_body
      %s15 = ssub.s32 %s10, 1
      %s16 = ssub.s32 %s10, 2
      %s17 = sadd.s32 %s10, 1
      %s18 = ssub.s32 %s10, %s17
      %p19 = scmp.eq.s32.totalorder %s18, 0
      %s21 = sadd.s32 %s20, 1
      %s22 = scalar_select %p19, %s20, %s21
      %p25 = pneg %p19
      %p26 = scmp.eq.s32.totalorder %s10, 1
      %p27 = por %p25, %p26
      %p28 = scmp.ne.s32.totalorder %s20, %s23
      %p29 = scmp.eq.s32.totalorder %s10, 0
      %p30 = por %p28, %p29
      %p31 = scmp.ne.s32.totalorder %s20, %s23
      %p32 = scmp.eq.s32.totalorder %s15, 1
      %p33 = por %p31, %p32
      %p34 = scmp.ne.s32.totalorder %s23, %s24
      %p35 = scmp.eq.s32.totalorder %s15, 0
      %p36 = por %p34, %p35
      %p37 = scmp.ne.s32.totalorder %s23, %s24
      %p38 = scmp.eq.s32.totalorder %s16, 1
      %p39 = por %p37, %p38
      %p41 = scmp.ne.s32.totalorder %s24, %s40
      %p42 = scmp.eq.s32.totalorder %s16, 0
      %p43 = por %p41, %p42
      %s45 = sadd.s32 %s44, 1
      %p48 = scmp.eq.s32.totalorder %s10, 1
      %p49 = scmp.ne.s32.totalorder %s44, %s46
      %p50 = scmp.eq.s32.totalorder %s10, 0
      %p51 = por %p49, %p50
      %p52 = scmp.ne.s32.totalorder %s44, %s46
      %p53 = scmp.eq.s32.totalorder %s15, 1
      %p54 = por %p52, %p53
      %p55 = scmp.ne.s32.totalorder %s46, %s47
      %p56 = scmp.eq.s32.totalorder %s15, 0
      %p57 = por %p55, %p56
      %p58 = scmp.ne.s32.totalorder %s46, %s47
      %p59 = scmp.eq.s32.totalorder %s16, 1
      %p60 = por %p58, %p59
      %p62 = scmp.ne.s32.totalorder %s47, %s61
      %p63 = scmp.eq.s32.totalorder %s16, 0
      %p64 = por %p62, %p63
      %s66 = sadd.s32 %s65, 1
      %p69 = scmp.eq.s32.totalorder %s10, 1
      %p70 = scmp.ne.s32.totalorder %s65, %s67
      %p71 = scmp.eq.s32.totalorder %s10, 0
      %p72 = por %p70, %p71
      %p73 = scmp.ne.s32.totalorder %s65, %s67
      %p74 = scmp.eq.s32.totalorder %s15, 1
      %p75 = por %p73, %p74
      %p76 = scmp.ne.s32.totalorder %s67, %s68
      %p77 = scmp.eq.s32.totalorder %s15, 0
      %p78 = por %p76, %p77
      %p79 = scmp.ne.s32.totalorder %s67, %s68
      %p80 = scmp.eq.s32.totalorder %s16, 1
      %p81 = por %p79, %p80
      %p83 = scmp.ne.s32.totalorder %s68, %s82
      %p84 = scmp.eq.s32.totalorder %s16, 0
      %p85 = por %p83, %p84
      %s86 = ssub.s32 %s10, %s17
      %p87 = scmp.eq.s32.totalorder %s86, 0
      %s89 = sadd.s32 %s88, 1
      %s90 = scalar_select %p87, %s88, %s89
      %p93 = pneg %p87
      %p94 = scmp.eq.s32.totalorder %s10, 1
      %p95 = por %p93, %p94
      %p96 = scmp.ne.s32.totalorder %s88, %s91
      %p97 = scmp.eq.s32.totalorder %s10, 0
      %p98 = por %p96, %p97
      %p99 = scmp.ne.s32.totalorder %s88, %s91
      %p100 = scmp.eq.s32.totalorder %s15, 1
      %p101 = por %p99, %p100
      %p102 = scmp.ne.s32.totalorder %s91, %s92
      %p103 = scmp.eq.s32.totalorder %s15, 0
      %p104 = por %p102, %p103
      %p105 = scmp.ne.s32.totalorder %s91, %s92
      %p106 = scmp.eq.s32.totalorder %s16, 1
      %p107 = por %p105, %p106
      %p109 = scmp.ne.s32.totalorder %s92, %s108
      %p110 = scmp.eq.s32.totalorder %s16, 0
      %p111 = por %p109, %p110
      %p112 = scmp.le.s32.totalorder 1, %s10
      %p113 = scmp.lt.s32.totalorder %s10, 3
      %p114 = pnand %p112, %p113
      %p115 = pneg %p114
      // Predicated region
      $region9: #{vnet_forward.16} parent=5 // pred_check
        _
      $region10: #{vnet_forward.16} parent=5 // pred_check_branch
        %117 = sbr.rel (%p114) target = $region12
      $region11: #{vnet_forward.16} parent=5 // pred_region
        %s118 = ssub.s32 %s10, 1
        // Predicated region
        $region13: #{vnet_forward.16} parent=11 // pred_check
          %p119 = pneg %p57
        $region14: #{vnet_forward.16} parent=11 // pred_check_branch
          %121 = sbr.rel (%p119) target = $region16
        $region15: #{vnet_forward.16} parent=11 // pred_region
          _
        $region16: #{vnet_forward.16} parent=11 // pred_fallthru
          _
        // Predicated region
        $region17: #{vnet_forward.16} parent=11 // pred_check
          %p122 = pneg %p78
        $region18: #{vnet_forward.16} parent=11 // pred_check_branch
          %124 = sbr.rel (%p122) target = $region20
        $region19: #{vnet_forward.16} parent=11 // pred_region
          %126 = vsyncadd [#allocation3], 0
          %s128 = sshll.u32 %s2, 4
          %s129 = int_to_ptr.hbm [resolvable:$true] %s128
          %s130 = sshll.u32 [#allocation2], 4
          %s131 = int_to_ptr.vmem [resolvable:$true] %s130
          %133 = dma.hbm_to_vmem [thread:$0]  %s129, 16, %s131, [#allocation3]
        $region20: #{vnet_forward.16} parent=11 // pred_fallthru
          _
      $region12: #{vnet_forward.16} parent=5 // pred_fallthru
        _
      %p134 = scmp.lt.s32.totalorder %s10, 2
      // Predicated region
      $region21: #{vnet_forward.16} parent=5 // pred_check
        %p135 = pneg %p134
      $region22: #{vnet_forward.16} parent=5 // pred_check_branch
        %137 = sbr.rel (%p135) target = $region24
      $region23: #{vnet_forward.16} parent=5 // pred_region
        // Predicated region
        $region25: #{vnet_forward.16} parent=23 // pred_check
          %p138 = pneg %p30
        $region26: #{vnet_forward.16} parent=23 // pred_check_branch
          %140 = sbr.rel (%p138) target = $region28
        $region27: #{vnet_forward.16} parent=23 // pred_region
          %p141 = scmp.lt.s32.totalorder %s10, 1
          %s142 = scalar_select %p141, %s10, 1
          %s143 = smul.addr %s142, 4
          %s144 = scalar_lea.vmem %s0, %s143
        $region28: #{vnet_forward.16} parent=23 // pred_fallthru
          _
      $region24: #{vnet_forward.16} parent=5 // pred_fallthru
        _
      %p145 = scmp.le.s32.totalorder 1, %s10
      %p146 = scmp.lt.s32.totalorder %s10, 3
      %p147 = pnand %p145, %p146
      %p148 = pneg %p147
      // Predicated region
      $region29: #{vnet_forward.16} parent=5 // pred_check
        _
      $region30: #{vnet_forward.16} parent=5 // pred_check_branch
        %150 = sbr.rel (%p147) target = $region32
      $region31: #{vnet_forward.16} parent=5 // pred_region
        %s151 = ssub.s32 %s10, 1
        // Predicated region
        $region33: #{vnet_forward.16} parent=31 // pred_check
          %p152 = pneg %p78
        $region34: #{vnet_forward.16} parent=31 // pred_check_branch
          %154 = sbr.rel (%p152) target = $region36
        $region35: #{vnet_forward.16} parent=31 // pred_region
          %156 = dma.done [#allocation3], 16
        $region36: #{vnet_forward.16} parent=31 // pred_fallthru
          _
        %p157 = scmp.lt.s32.totalorder %s15, 1
        %s158 = scalar_select %p157, %s15, 1
        %s159 = smul.addr %s158, 4
        %s160 = scalar_lea.vmem %s0, %s159
        %p161 = pneg %p36
        %p162 = pneg %p33
        %p163 = pneg %p57
        %p164 = pneg %p54
        %p165 = pneg %p78
        %p166 = pneg %p75
        %p167 = pneg %p104
        %p168 = pneg %p101
        %p169 = scmp.lt.s32.totalorder %s15, 1
        %s170 = scalar_select %p169, %s15, 1
        %s171 = smul.addr %s170, 4
        %s172 = smul.addr %s171, 2
        %s173 = scalar_lea.vmem %s3, %s172
        %p174 = scmp.lt.s32.totalorder %s15, 1
        %s175 = scalar_select %p174, %s15, 1
        %s176 = smul.addr %s175, 4
        %s177 = scalar_lea.vmem %s0, %s176
        %p178 = scmp.lt.s32.totalorder %s15, 1
        %s179 = scalar_select %p178, %s15, 1
        %s180 = smul.addr %s179, 4
        %s181 = smul.addr %s180, 2
        %s182 = scalar_lea.vmem %s3, %s181
        %v184 = vld [vmem:[%s177] sm:$0xf]
        %v185 = vpack.c.bf16 %v184, %v184
        %v186 = vld [vmem:[#allocation2] sm:$0x1]
        %v187 = vld [vmem:[%s1] sm:$0xf]
        %v188 = vld [vmem:[%s1 + $0x4] sm:$0xf]
        %v189 = vld [vmem:[%s1 + $0x8] sm:$0xf]
        %v190 = vld [vmem:[%s1 + $0xc] sm:$0xf]
        %v191 = vld [vmem:[%s1 + $0x10] sm:$0xf]
        %v192 = vld [vmem:[%s1 + $0x14] sm:$0xf]
        %v193 = vld [vmem:[%s1 + $0x18] sm:$0xf]
        %v194 = vld [vmem:[%s1 + $0x1c] sm:$0xf]
        %v196 = vperm.slane %v186, 0
        %v206 = vunpack.c.l.b16 %v187
        %v207 = vunpack.c.l.b16 %v188
        %v208 = vunpack.c.l.b16 %v189
        %v209 = vunpack.c.l.b16 %v190
        %v210 = vunpack.c.l.b16 %v191
        %v211 = vunpack.c.l.b16 %v192
        %v212 = vunpack.c.l.b16 %v193
        %v213 = vunpack.c.l.b16 %v194
        %v214 = vpack.c.b16 %v207, %v206
        %v215 = vpack.c.b16 %v209, %v208
        %v216 = vpack.c.b16 %v211, %v210
        %v217 = vpack.c.b16 %v213, %v212
        %vm222 = vcmask 523264
        %v224 = vsel %vm222, %v185, 0
        %226 = vmatpush.bf16.msra.mxu0 0
        %227 = vmatpush.bf16.msra.mxu0 0
        %228 = vmatpush.bf16.msra.mxu0 0
        %229 = vmatpush.bf16.msra.mxu0 0
        %230 = vmatpush.bf16.msra.mxu0 %v217
        %231 = vmatpush.bf16.msra.mxu0 %v216
        %232 = vmatpush.bf16.msra.mxu0 %v215
        %233 = vmatpush.bf16.msra.mxu0 %v214
        %234 = vmatmul.bf16.gmra.mxu0 %v224
        %v235 = vpop.f32.mrf.mxu0
        %v236 = vadd.f32 %v196, %v235
        %v237 = vpop.f32.mrf.mxu0
        %238 = vdwg.mxu0
        %s239 = scalar_lea.vmem %s1, 32
        %v240 = vld [vmem:[%s239] sm:$0xf]
        %v241 = vld [vmem:[%s239 + $0x4] sm:$0xf]
        %v242 = vld [vmem:[%s239 + $0x8] sm:$0xf]
        %v243 = vld [vmem:[%s239 + $0xc] sm:$0xf]
        %v244 = vld [vmem:[%s239 + $0x10] sm:$0xf]
        %v245 = vld [vmem:[%s239 + $0x14] sm:$0xf]
        %v246 = vld [vmem:[%s239 + $0x18] sm:$0xf]
        %v247 = vld [vmem:[%s239 + $0x1c] sm:$0xf]
        %v256 = vunpack.c.l.b16 %v240
        %v257 = vunpack.c.l.b16 %v241
        %v258 = vunpack.c.l.b16 %v242
        %v259 = vunpack.c.l.b16 %v243
        %v260 = vunpack.c.l.b16 %v244
        %v261 = vunpack.c.l.b16 %v245
        %v262 = vunpack.c.l.b16 %v246
        %v263 = vunpack.c.l.b16 %v247
        %v264 = vpack.c.b16 %v257, %v256
        %v265 = vpack.c.b16 %v259, %v258
        %v266 = vpack.c.b16 %v261, %v260
        %v267 = vpack.c.b16 %v263, %v262
        %272 = vmatpush.bf16.msra.mxu0 0
        %273 = vmatpush.bf16.msra.mxu0 0
        %274 = vmatpush.bf16.msra.mxu0 0
        %275 = vmatpush.bf16.msra.mxu0 0
        %276 = vmatpush.bf16.msra.mxu0 %v267
        %277 = vmatpush.bf16.msra.mxu0 %v266
        %278 = vmatpush.bf16.msra.mxu0 %v265
        %279 = vmatpush.bf16.msra.mxu0 %v264
        %280 = vmatmul.bf16.gmra.mxu0 %v224
        %v281 = vpop.f32.mrf.mxu0
        %v282 = vadd.f32 %v196, %v281
        %v283 = vpop.f32.mrf.mxu0
        %284 = vdwg.mxu0
        %v286 = vrot.slane %v236, 1
        %v287 = vrot.slane %v236, 2
        %v288 = vrot.slane %v236, 3
        %vm292 = vcmask 253952
        %293 = vst.msk [vmem:[%s182] sm:$0x1] %vm292, %v236
        %294 = vst.msk [vmem:[%s182 + $0x2] sm:$0x1] %vm292, %v286
        %295 = vst.msk [vmem:[%s182 + $0x4] sm:$0x1] %vm292, %v287
        %296 = vst.msk [vmem:[%s182 + $0x6] sm:$0x1] %vm292, %v288
        %v298 = vrot.slane %v282, 1
        %v299 = vrot.slane %v282, 2
        %v300 = vrot.slane %v282, 3
        %304 = vst.msk [vmem:[%s182 + $0x1] sm:$0x1] %vm292, %v282
        %305 = vst.msk [vmem:[%s182 + $0x3] sm:$0x1] %vm292, %v298
        %306 = vst.msk [vmem:[%s182 + $0x5] sm:$0x1] %vm292, %v299
        %307 = vst.msk [vmem:[%s182 + $0x7] sm:$0x1] %vm292, %v300
        %p308 = scmp.lt.s32.totalorder %s15, 1
        %s309 = scalar_select %p308, %s15, 1
        %s310 = smul.addr %s309, 4
        %s311 = smul.addr %s310, 2
        %s312 = scalar_lea.vmem %s3, %s311
        // Predicated region
        $region37: #{vnet_forward.16} parent=31 // pred_check
          %p313 = pneg %p101
        $region38: #{vnet_forward.16} parent=31 // pred_check_branch
          %315 = sbr.rel (%p313) target = $region40
        $region39: #{vnet_forward.16} parent=31 // pred_region
          _
        $region40: #{vnet_forward.16} parent=31 // pred_fallthru
          _
      $region32: #{vnet_forward.16} parent=5 // pred_fallthru
        _
      %p316 = scmp.le.s32.totalorder 2, %s10
      // Predicated region
      $region41: #{vnet_forward.16} parent=5 // pred_check
        %p317 = pneg %p316
      $region42: #{vnet_forward.16} parent=5 // pred_check_branch
        %319 = sbr.rel (%p317) target = $region44
      $region43: #{vnet_forward.16} parent=5 // pred_region
        %s320 = ssub.s32 %s10, 2
        // Predicated region
        $region45: #{vnet_forward.16} parent=43 // pred_check
          %p321 = pneg %p107
        $region46: #{vnet_forward.16} parent=43 // pred_check_branch
          %323 = sbr.rel (%p321) target = $region48
        $region47: #{vnet_forward.16} parent=43 // pred_region
          %p324 = scmp.lt.s32.totalorder %s16, 1
          %s325 = scalar_select %p324, %s16, 1
          %s326 = smul.addr %s325, 4
          %s327 = smul.addr %s326, 2
          %s328 = scalar_lea.vmem %s3, %s327
        $region48: #{vnet_forward.16} parent=43 // pred_fallthru
          _
      $region44: #{vnet_forward.16} parent=5 // pred_fallthru
        _
    $region6: #{vnet_forward.16} parent=1 // loop_footer
      %s14 = sadd.s32 1, %s10
    $region7: #{vnet_forward.16} parent=1 // loop_footer_branch
      %9 = sbr.rel target = $region3
    $region8: #{vnet_forward.16} parent=1 // loop_exit
      _
    %329 = vsyncpa [#allocation3], 1
    %s330 = scalar_lea.sflag [#allocation3], 1
    %331 = vsyncpa %s330, 1

// kernel: vnet_forward.15
$region0: #{vnet_forward.15}
  #allocation0 [shape = 'u32[]', space=smem, size = 0x4, offset = 0x4, fixed_abs, tag = 'smem constant byte address 0x4 - core index']
  #allocation1 [shape = 'u32[72,128]{1,0:T(1,128)}', space=vmem, size = 0x9000, scoped, tag = 'internal scratch']
  %s0 = inlined_call_operand.vmem [shape: f32[2,4,64], index: 0, kind: input, shape index: {}]
  %s1 = inlined_call_operand.vmem [shape: f32[2,4,64], index: 1, kind: input, shape index: {}]
  %s2 = inlined_call_operand.vmem [shape: bf16[3,64,64], index: 2, kind: input, shape index: {}]
  %s3 = inlined_call_operand.hbm [shape: bf16[3,64,64], index: 3, kind: input, shape index: {}]
  %s4 = inlined_call_operand.vmem [shape: f32[1,64], index: 4, kind: input, shape index: {}]
  %s5 = inlined_call_operand.vmem [shape: f32[1,64], index: 5, kind: input, shape index: {}]
  %s6 = inlined_call_operand.hbm [shape: bf16[3,64,64], index: 6, kind: input, shape index: {}]
  %s7 = inlined_call_operand.vmem [shape: f32[1,64], index: 7, kind: input, shape index: {}]
  %s8 = inlined_call_operand.vmem [shape: f32[1,64], index: 8, kind: input, shape index: {}]
  %s9 = inlined_call_operand.vmem [shape: f32[2,4,64], index: 9, kind: output, shape index: {}]
  %s10 = sld [smem:[#allocation0]]
  $region77: #{vnet_forward.15} parent=0
    _
  %s12 = ssub.s32 1, %s10
  %s13 = scalar_select 0, %s12, %s10
  $region1: #{vnet_forward.15} parent=0
    #allocation2 [shape = 'u8[49152]{0}', space=vmem, size = 0xc000, scoped, tag = 'input window, operand 3, single buffered']
    #allocation3 [shape = 's32[2]{0}', space=sflag, size = 0x8, scoped, tag = 'scoped memory for vnet_forward.15']
    #allocation4 [shape = 'u8[49152]{0}', space=vmem, size = 0xc000, scoped, tag = 'input window, operand 6, single buffered']
    #allocation5 [shape = 's32[1]{0}', space=sflag, size = 0x4, scoped, tag = 'scoped memory for vnet_forward.15']
    %14 = vsyncpa [#allocation3], 0
    %15 = vsyncpa [#allocation5], 0
    loop: start=0, step=1, limit=4
    $region2: #{vnet_forward.15} parent=1 // loop_pre_header
      _
    $region3: #{vnet_forward.15} parent=1 // loop_header
      %s17 = sphi 0, %s21
      %p18 = scmp.ge.s32.totalorder %s17, 4
      %s27 = sphi 0, %s29
      %s30 = sphi 0, %s27
      %s31 = sphi 0, %s30
      %s47 = sphi 0, %s31
      %s53 = sphi 0, %s55
      %s56 = sphi 0, %s53
      %s57 = sphi 0, %s56
      %s73 = sphi 0, %s57
      %s77 = sphi 0, %s77
      %s79 = sphi 0, %s77
      %s80 = sphi 0, %s79
      %s94 = sphi 0, %s80
      %s98 = sphi 0, %s98
      %s100 = sphi 0, %s98
      %s101 = sphi 0, %s100
      %s115 = sphi 0, %s101
      %s119 = sphi 0, %s119
      %s121 = sphi 0, %s119
      %s122 = sphi 0, %s121
      %s136 = sphi 0, %s122
      %s140 = sphi 0, %s140
      %s142 = sphi 0, %s140
      %s143 = sphi 0, %s142
      %s157 = sphi 0, %s143
      %s161 = sphi 0, %s161
      %s163 = sphi 0, %s161
      %s164 = sphi 0, %s163
      %s178 = sphi 0, %s164
      %s182 = sphi 0, %s182
      %s184 = sphi 0, %s182
      %s185 = sphi 0, %s184
      %s199 = sphi 0, %s185
      %s203 = sphi 0, %s203
      %s205 = sphi 0, %s203
      %s206 = sphi 0, %s205
      %s220 = sphi 0, %s206
      %s226 = sphi 0, %s228
      %s229 = sphi 0, %s226
      %s230 = sphi 0, %s229
      %s246 = sphi 0, %s230
    $region4: #{vnet_forward.15} parent=1 // loop_header_branch
      %20 = sbr.rel (%p18) target = $region8
    $region5: #{vnet_forward.15} parent=1 // loop_body
      %s22 = ssub.s32 %s17, 1
      %s23 = ssub.s32 %s17, 2
      %s24 = sadd.s32 %s17, 1
      %s25 = ssub.s32 %s17, %s24
      %p26 = scmp.eq.s32.totalorder %s25, 0
      %s28 = sadd.s32 %s27, 1
      %s29 = scalar_select %p26, %s27, %s28
      %p32 = pneg %p26
      %p33 = scmp.eq.s32.totalorder %s17, 1
      %p34 = por %p32, %p33
      %p35 = scmp.ne.s32.totalorder %s27, %s30
      %p36 = scmp.eq.s32.totalorder %s17, 0
      %p37 = por %p35, %p36
      %p38 = scmp.ne.s32.totalorder %s27, %s30
      %p39 = scmp.eq.s32.totalorder %s22, 1
      %p40 = por %p38, %p39
      %p41 = scmp.ne.s32.totalorder %s30, %s31
      %p42 = scmp.eq.s32.totalorder %s22, 0
      %p43 = por %p41, %p42
      %p44 = scmp.ne.s32.totalorder %s30, %s31
      %p45 = scmp.eq.s32.totalorder %s23, 1
      %p46 = por %p44, %p45
      %p48 = scmp.ne.s32.totalorder %s31, %s47
      %p49 = scmp.eq.s32.totalorder %s23, 0
      %p50 = por %p48, %p49
      %s51 = ssub.s32 %s17, %s24
      %p52 = scmp.eq.s32.totalorder %s51, 0
      %s54 = sadd.s32 %s53, 1
      %s55 = scalar_select %p52, %s53, %s54
      %p58 = pneg %p52
      %p59 = scmp.eq.s32.totalorder %s17, 1
      %p60 = por %p58, %p59
      %p61 = scmp.ne.s32.totalorder %s53, %s56
      %p62 = scmp.eq.s32.totalorder %s17, 0
      %p63 = por %p61, %p62
      %p64 = scmp.ne.s32.totalorder %s53, %s56
      %p65 = scmp.eq.s32.totalorder %s22, 1
      %p66 = por %p64, %p65
      %p67 = scmp.ne.s32.totalorder %s56, %s57
      %p68 = scmp.eq.s32.totalorder %s22, 0
      %p69 = por %p67, %p68
      %p70 = scmp.ne.s32.totalorder %s56, %s57
      %p71 = scmp.eq.s32.totalorder %s23, 1
      %p72 = por %p70, %p71
      %p74 = scmp.ne.s32.totalorder %s57, %s73
      %p75 = scmp.eq.s32.totalorder %s23, 0
      %p76 = por %p74, %p75
      %s78 = sadd.s32 %s77, 1
      %p81 = scmp.eq.s32.totalorder %s17, 1
      %p82 = scmp.ne.s32.totalorder %s77, %s79
      %p83 = scmp.eq.s32.totalorder %s17, 0
      %p84 = por %p82, %p83
      %p85 = scmp.ne.s32.totalorder %s77, %s79
      %p86 = scmp.eq.s32.totalorder %s22, 1
      %p87 = por %p85, %p86
      %p88 = scmp.ne.s32.totalorder %s79, %s80
      %p89 = scmp.eq.s32.totalorder %s22, 0
      %p90 = por %p88, %p89
      %p91 = scmp.ne.s32.totalorder %s79, %s80
      %p92 = scmp.eq.s32.totalorder %s23, 1
      %p93 = por %p91, %p92
      %p95 = scmp.ne.s32.totalorder %s80, %s94
      %p96 = scmp.eq.s32.totalorder %s23, 0
      %p97 = por %p95, %p96
      %s99 = sadd.s32 %s98, 1
      %p102 = scmp.eq.s32.totalorder %s17, 1
      %p103 = scmp.ne.s32.totalorder %s98, %s100
      %p104 = scmp.eq.s32.totalorder %s17, 0
      %p105 = por %p103, %p104
      %p106 = scmp.ne.s32.totalorder %s98, %s100
      %p107 = scmp.eq.s32.totalorder %s22, 1
      %p108 = por %p106, %p107
      %p109 = scmp.ne.s32.totalorder %s100, %s101
      %p110 = scmp.eq.s32.totalorder %s22, 0
      %p111 = por %p109, %p110
      %p112 = scmp.ne.s32.totalorder %s100, %s101
      %p113 = scmp.eq.s32.totalorder %s23, 1
      %p114 = por %p112, %p113
      %p116 = scmp.ne.s32.totalorder %s101, %s115
      %p117 = scmp.eq.s32.totalorder %s23, 0
      %p118 = por %p116, %p117
      %s120 = sadd.s32 %s119, 1
      %p123 = scmp.eq.s32.totalorder %s17, 1
      %p124 = scmp.ne.s32.totalorder %s119, %s121
      %p125 = scmp.eq.s32.totalorder %s17, 0
      %p126 = por %p124, %p125
      %p127 = scmp.ne.s32.totalorder %s119, %s121
      %p128 = scmp.eq.s32.totalorder %s22, 1
      %p129 = por %p127, %p128
      %p130 = scmp.ne.s32.totalorder %s121, %s122
      %p131 = scmp.eq.s32.totalorder %s22, 0
      %p132 = por %p130, %p131
      %p133 = scmp.ne.s32.totalorder %s121, %s122
      %p134 = scmp.eq.s32.totalorder %s23, 1
      %p135 = por %p133, %p134
      %p137 = scmp.ne.s32.totalorder %s122, %s136
      %p138 = scmp.eq.s32.totalorder %s23, 0
      %p139 = por %p137, %p138
      %s141 = sadd.s32 %s140, 1
      %p144 = scmp.eq.s32.totalorder %s17, 1
      %p145 = scmp.ne.s32.totalorder %s140, %s142
      %p146 = scmp.eq.s32.totalorder %s17, 0
      %p147 = por %p145, %p146
      %p148 = scmp.ne.s32.totalorder %s140, %s142
      %p149 = scmp.eq.s32.totalorder %s22, 1
      %p150 = por %p148, %p149
      %p151 = scmp.ne.s32.totalorder %s142, %s143
      %p152 = scmp.eq.s32.totalorder %s22, 0
      %p153 = por %p151, %p152
      %p154 = scmp.ne.s32.totalorder %s142, %s143
      %p155 = scmp.eq.s32.totalorder %s23, 1
      %p156 = por %p154, %p155
      %p158 = scmp.ne.s32.totalorder %s143, %s157
      %p159 = scmp.eq.s32.totalorder %s23, 0
      %p160 = por %p158, %p159
      %s162 = sadd.s32 %s161, 1
      %p165 = scmp.eq.s32.totalorder %s17, 1
      %p166 = scmp.ne.s32.totalorder %s161, %s163
      %p167 = scmp.eq.s32.totalorder %s17, 0
      %p168 = por %p166, %p167
      %p169 = scmp.ne.s32.totalorder %s161, %s163
      %p170 = scmp.eq.s32.totalorder %s22, 1
      %p171 = por %p169, %p170
      %p172 = scmp.ne.s32.totalorder %s163, %s164
      %p173 = scmp.eq.s32.totalorder %s22, 0
      %p174 = por %p172, %p173
      %p175 = scmp.ne.s32.totalorder %s163, %s164
      %p176 = scmp.eq.s32.totalorder %s23, 1
      %p177 = por %p175, %p176
      %p179 = scmp.ne.s32.totalorder %s164, %s178
      %p180 = scmp.eq.s32.totalorder %s23, 0
      %p181 = por %p179, %p180
      %s183 = sadd.s32 %s182, 1
      %p186 = scmp.eq.s32.totalorder %s17, 1
      %p187 = scmp.ne.s32.totalorder %s182, %s184
      %p188 = scmp.eq.s32.totalorder %s17, 0
      %p189 = por %p187, %p188
      %p190 = scmp.ne.s32.totalorder %s182, %s184
      %p191 = scmp.eq.s32.totalorder %s22, 1
      %p192 = por %p190, %p191
      %p193 = scmp.ne.s32.totalorder %s184, %s185
      %p194 = scmp.eq.s32.totalorder %s22, 0
      %p195 = por %p193, %p194
      %p196 = scmp.ne.s32.totalorder %s184, %s185
      %p197 = scmp.eq.s32.totalorder %s23, 1
      %p198 = por %p196, %p197
      %p200 = scmp.ne.s32.totalorder %s185, %s199
      %p201 = scmp.eq.s32.totalorder %s23, 0
      %p202 = por %p200, %p201
      %s204 = sadd.s32 %s203, 1
      %p207 = scmp.eq.s32.totalorder %s17, 1
      %p208 = scmp.ne.s32.totalorder %s203, %s205
      %p209 = scmp.eq.s32.totalorder %s17, 0
      %p210 = por %p208, %p209
      %p211 = scmp.ne.s32.totalorder %s203, %s205
      %p212 = scmp.eq.s32.totalorder %s22, 1
      %p213 = por %p211, %p212
      %p214 = scmp.ne.s32.totalorder %s205, %s206
      %p215 = scmp.eq.s32.totalorder %s22, 0
      %p216 = por %p214, %p215
      %p217 = scmp.ne.s32.totalorder %s205, %s206
      %p218 = scmp.eq.s32.totalorder %s23, 1
      %p219 = por %p217, %p218
      %p221 = scmp.ne.s32.totalorder %s206, %s220
      %p222 = scmp.eq.s32.totalorder %s23, 0
      %p223 = por %p221, %p222
      %s224 = ssub.s32 %s17, %s24
      %p225 = scmp.eq.s32.totalorder %s224, 0
      %s227 = sadd.s32 %s226, 1
      %s228 = scalar_select %p225, %s226, %s227
      %p231 = pneg %p225
      %p232 = scmp.eq.s32.totalorder %s17, 1
      %p233 = por %p231, %p232
      %p234 = scmp.ne.s32.totalorder %s226, %s229
      %p235 = scmp.eq.s32.totalorder %s17, 0
      %p236 = por %p234, %p235
      %p237 = scmp.ne.s32.totalorder %s226, %s229
      %p238 = scmp.eq.s32.totalorder %s22, 1
      %p239 = por %p237, %p238
      %p240 = scmp.ne.s32.totalorder %s229, %s230
      %p241 = scmp.eq.s32.totalorder %s22, 0
      %p242 = por %p240, %p241
      %p243 = scmp.ne.s32.totalorder %s229, %s230
      %p244 = scmp.eq.s32.totalorder %s23, 1
      %p245 = por %p243, %p244
      %p247 = scmp.ne.s32.totalorder %s230, %s246
      %p248 = scmp.eq.s32.totalorder %s23, 0
      %p249 = por %p247, %p248
      %p250 = scmp.le.s32.totalorder 1, %s17
      %p251 = scmp.lt.s32.totalorder %s17, 3
      %p252 = pnand %p250, %p251
      %p253 = pneg %p252
      // Predicated region
      $region9: #{vnet_forward.15} parent=5 // pred_check
        _
      $region10: #{vnet_forward.15} parent=5 // pred_check_branch
        %255 = sbr.rel (%p252) target = $region12
      $region11: #{vnet_forward.15} parent=5 // pred_region
        %s256 = ssub.s32 %s17, 1
        // Predicated region
        $region13: #{vnet_forward.15} parent=11 // pred_check
          %p257 = pneg %p90
        $region14: #{vnet_forward.15} parent=11 // pred_check_branch
          %259 = sbr.rel (%p257) target = $region16
        $region15: #{vnet_forward.15} parent=11 // pred_region
          _
        $region16: #{vnet_forward.15} parent=11 // pred_fallthru
          _
        // Predicated region
        $region17: #{vnet_forward.15} parent=11 // pred_check
          %p260 = pneg %p111
        $region18: #{vnet_forward.15} parent=11 // pred_check_branch
          %262 = sbr.rel (%p260) target = $region20
        $region19: #{vnet_forward.15} parent=11 // pred_region
          %264 = vsyncadd [#allocation3], 0
          %s265 = sshll.u32 %s3, 4
          %s266 = int_to_ptr.hbm [resolvable:$true] %s265
          %s267 = sshll.u32 [#allocation2], 4
          %s268 = int_to_ptr.vmem [resolvable:$true] %s267
          %273 = dma.hbm_to_vmem [thread:$0]  %s266, 1536, %s268, [#allocation3], 64, 64, 4
        $region20: #{vnet_forward.15} parent=11 // pred_fallthru
          _
        // Predicated region
        $region21: #{vnet_forward.15} parent=11 // pred_check
          %p274 = pneg %p132
        $region22: #{vnet_forward.15} parent=11 // pred_check_branch
          %276 = sbr.rel (%p274) target = $region24
        $region23: #{vnet_forward.15} parent=11 // pred_region
          _
        $region24: #{vnet_forward.15} parent=11 // pred_fallthru
          _
        // Predicated region
        $region25: #{vnet_forward.15} parent=11 // pred_check
          %p277 = pneg %p153
        $region26: #{vnet_forward.15} parent=11 // pred_check_branch
          %279 = sbr.rel (%p277) target = $region28
        $region27: #{vnet_forward.15} parent=11 // pred_region
          _
        $region28: #{vnet_forward.15} parent=11 // pred_fallthru
          _
        // Predicated region
        $region29: #{vnet_forward.15} parent=11 // pred_check
          %p280 = pneg %p174
        $region30: #{vnet_forward.15} parent=11 // pred_check_branch
          %282 = sbr.rel (%p280) target = $region32
        $region31: #{vnet_forward.15} parent=11 // pred_region
          %284 = vsyncadd [#allocation5], 0
          %s285 = sshll.u32 %s6, 4
          %s286 = int_to_ptr.hbm [resolvable:$true] %s285
          %s287 = sshll.u32 [#allocation4], 4
          %s288 = int_to_ptr.vmem [resolvable:$true] %s287
          %293 = dma.hbm_to_vmem [thread:$0]  %s286, 1536, %s288, [#allocation5], 64, 64, 4
        $region32: #{vnet_forward.15} parent=11 // pred_fallthru
          _
        // Predicated region
        $region33: #{vnet_forward.15} parent=11 // pred_check
          %p294 = pneg %p195
        $region34: #{vnet_forward.15} parent=11 // pred_check_branch
          %296 = sbr.rel (%p294) target = $region36
        $region35: #{vnet_forward.15} parent=11 // pred_region
          _
        $region36: #{vnet_forward.15} parent=11 // pred_fallthru
          _
        // Predicated region
        $region37: #{vnet_forward.15} parent=11 // pred_check
          %p297 = pneg %p216
        $region38: #{vnet_forward.15} parent=11 // pred_check_branch
          %299 = sbr.rel (%p297) target = $region40
        $region39: #{vnet_forward.15} parent=11 // pred_region
          _
        $region40: #{vnet_forward.15} parent=11 // pred_fallthru
          _
      $region12: #{vnet_forward.15} parent=5 // pred_fallthru
        _
      %p300 = scmp.lt.s32.totalorder %s17, 2
      // Predicated region
      $region41: #{vnet_forward.15} parent=5 // pred_check
        %p301 = pneg %p300
      $region42: #{vnet_forward.15} parent=5 // pred_check_branch
        %303 = sbr.rel (%p301) target = $region44
      $region43: #{vnet_forward.15} parent=5 // pred_region
        // Predicated region
        $region45: #{vnet_forward.15} parent=43 // pred_check
          %p304 = pneg %p37
        $region46: #{vnet_forward.15} parent=43 // pred_check_branch
          %306 = sbr.rel (%p304) target = $region48
        $region47: #{vnet_forward.15} parent=43 // pred_region
          %p307 = scmp.lt.s32.totalorder %s17, 1
          %s308 = scalar_select %p307, %s17, 1
          %s309 = smul.addr %s308, 4
          %s310 = scalar_lea.vmem %s0, %s309
        $region48: #{vnet_forward.15} parent=43 // pred_fallthru
          _
        // Predicated region
        $region49: #{vnet_forward.15} parent=43 // pred_check
          %p311 = pneg %p63
        $region50: #{vnet_forward.15} parent=43 // pred_check_branch
          %313 = sbr.rel (%p311) target = $region52
        $region51: #{vnet_forward.15} parent=43 // pred_region
          %p314 = scmp.lt.s32.totalorder %s17, 1
          %s315 = scalar_select %p314, %s17, 1
          %s316 = smul.addr %s315, 4
          %s317 = scalar_lea.vmem %s1, %s316
        $region52: #{vnet_forward.15} parent=43 // pred_fallthru
          _
      $region44: #{vnet_forward.15} parent=5 // pred_fallthru
        _
      %p318 = scmp.le.s32.totalorder 1, %s17
      %p319 = scmp.lt.s32.totalorder %s17, 3
      %p320 = pnand %p318, %p319
      %p321 = pneg %p320
      // Predicated region
      $region53: #{vnet_forward.15} parent=5 // pred_check
        _
      $region54: #{vnet_forward.15} parent=5 // pred_check_branch
        %323 = sbr.rel (%p320) target = $region56
      $region55: #{vnet_forward.15} parent=5 // pred_region
        %s324 = ssub.s32 %s17, 1
        // Predicated region
        $region57: #{vnet_forward.15} parent=55 // pred_check
          %p325 = pneg %p111
        $region58: #{vnet_forward.15} parent=55 // pred_check_branch
          %327 = sbr.rel (%p325) target = $region60
        $region59: #{vnet_forward.15} parent=55 // pred_region
          %329 = dma.done [#allocation3], 1536
        $region60: #{vnet_forward.15} parent=55 // pred_fallthru
          _
        // Predicated region
        $region61: #{vnet_forward.15} parent=55 // pred_check
          %p330 = pneg %p174
        $region62: #{vnet_forward.15} parent=55 // pred_check_branch
          %332 = sbr.rel (%p330) target = $region64
        $region63: #{vnet_forward.15} parent=55 // pred_region
          %334 = dma.done [#allocation5], 1536
        $region64: #{vnet_forward.15} parent=55 // pred_fallthru
          _
        %p335 = scmp.lt.s32.totalorder %s22, 1
        %s336 = scalar_select %p335, %s22, 1
        %s337 = smul.addr %s336, 4
        %s338 = scalar_lea.vmem %s0, %s337
        %p339 = pneg %p43
        %p340 = pneg %p40
        %p341 = scmp.lt.s32.totalorder %s22, 1
        %s342 = scalar_select %p341, %s22, 1
        %s343 = smul.addr %s342, 4
        %s344 = scalar_lea.vmem %s1, %s343
        %p345 = pneg %p69
        %p346 = pneg %p66
        %p347 = pneg %p90
        %p348 = pneg %p87
        %p349 = pneg %p111
        %p350 = pneg %p108
        %p351 = pneg %p132
        %p352 = pneg %p129
        %p353 = pneg %p153
        %p354 = pneg %p150
        %p355 = pneg %p174
        %p356 = pneg %p171
        %p357 = pneg %p195
        %p358 = pneg %p192
        %p359 = pneg %p216
        %p360 = pneg %p213
        %p361 = pneg %p242
        %p362 = pneg %p239
        %p363 = scmp.lt.s32.totalorder %s22, 1
        %s364 = scalar_select %p363, %s22, 1
        %s365 = smul.addr %s364, 4
        %s366 = scalar_lea.vmem %s9, %s365
        %p367 = scmp.lt.s32.totalorder %s22, 1
        %s368 = scalar_select %p367, %s22, 1
        %s369 = smul.addr %s368, 4
        %s370 = scalar_lea.vmem %s0, %s369
        %p371 = scmp.lt.s32.totalorder %s22, 1
        %s372 = scalar_select %p371, %s22, 1
        %s373 = smul.addr %s372, 4
        %s374 = scalar_lea.vmem %s1, %s373
        %p375 = scmp.lt.s32.totalorder %s22, 1
        %s376 = scalar_select %p375, %s22, 1
        %s377 = smul.addr %s376, 4
        %s378 = scalar_lea.vmem %s9, %s377
        %v380 = vld [vmem:[%s370] sm:$0xf]
        %v381 = vld [vmem:[%s374] sm:$0xf]
        %v382 = vlaneseq
        %v383 = vshrl.u32 %v382, 7
        %v384 = vlaneseq
        %v385 = vand.u32 %v384, 127
        %v386 = vsub.s32 %v383, 1
        %vm387 = vcmp.eq.s32.totalorder %v385, %v386
        %v388 = vsel %vm387, 1, 0
        %v389 = vcvt.s32.f32 %v388
        %v390 = vadd.s32 %v383, 1
        %vm391 = vcmp.eq.s32.totalorder %v385, %v390
        %v392 = vsel %vm391, 1, 0
        %v393 = vcvt.s32.f32 %v392
        %vm394 = vcmask 31744
        %v396 = vsel %vm394, %v389, 0
        %vm398 = vcmask 1043456
        %v400 = vsel %vm398, %v380, 0
        %402 = vmatpush.msra.mxu0 0.0
        %403 = vmatpush.msra.mxu0 0.0
        %404 = vmatpush.msra.mxu0 0.0
        %405 = vmatpush.msra.mxu0 0.0
        %406 = vmatpush.msra.mxu0 0.0
        %407 = vmatpush.msra.mxu0 0.0
        %408 = vmatpush.msra.mxu0 0.0
        %409 = vmatpush.msra.mxu0 0.0
        %410 = vmatpush.msra.mxu0 0.0
        %411 = vmatpush.msra.mxu0 0.0
        %412 = vmatpush.msra.mxu0 0.0
        %413 = vmatpush.msra.mxu0 0.0
        %414 = vmatpush.msra.mxu0 0.0
        %415 = vmatpush.msra.mxu0 0.0
        %416 = vmatpush.msra.mxu0 0.0
        %417 = vmatpush.msra.mxu0 %v400
        %418 = vmatmul.f32.gmra.mxu0 %v396
        %v419 = vpop.f32.mrf.mxu0
        %v420 = vadd.f32 0.0, %v419
        %421 = vdwg.mxu0
        %v423 = vsel %vm394, %v393, 0
        %425 = vmatpush.msra.mxu0 0.0
        %426 = vmatpush.msra.mxu0 0.0
        %427 = vmatpush.msra.mxu0 0.0
        %428 = vmatpush.msra.mxu0 0.0
        %429 = vmatpush.msra.mxu0 0.0
        %430 = vmatpush.msra.mxu0 0.0
        %431 = vmatpush.msra.mxu0 0.0
        %432 = vmatpush.msra.mxu0 0.0
        %433 = vmatpush.msra.mxu0 0.0
        %434 = vmatpush.msra.mxu0 0.0
        %435 = vmatpush.msra.mxu0 0.0
        %436 = vmatpush.msra.mxu0 0.0
        %437 = vmatpush.msra.mxu0 0.0
        %438 = vmatpush.msra.mxu0 0.0
        %439 = vmatpush.msra.mxu0 0.0
        %440 = vmatpush.msra.mxu0 %v400
        %441 = vmatmul.f32.gmra.mxu0 %v423
        %v442 = vpop.f32.mrf.mxu0
        %v443 = vadd.f32 0.0, %v442
        %444 = vdwg.mxu0
        %v445 = vpack.c.bf16 %v380, %v380
        %s446 = scalar_lea.vmem %s2, 32
        %v447 = vld [vmem:[%s446] sm:$0xf]
        %v448 = vld [vmem:[%s446 + $0x4] sm:$0xf]
        %v449 = vld [vmem:[%s446 + $0x8] sm:$0xf]
        %v450 = vld [vmem:[%s446 + $0xc] sm:$0xf]
        %v451 = vld [vmem:[%s446 + $0x10] sm:$0xf]
        %v452 = vld [vmem:[%s446 + $0x14] sm:$0xf]
        %v453 = vld [vmem:[%s446 + $0x18] sm:$0xf]
        %v454 = vld [vmem:[%s446 + $0x1c] sm:$0xf]
        %v455 = vpack.c.bf16 %v420, %v420
        %v456 = vld [vmem:[%s2] sm:$0xf]
        %v457 = vld [vmem:[%s2 + $0x4] sm:$0xf]
        %v458 = vld [vmem:[%s2 + $0x8] sm:$0xf]
        %v459 = vld [vmem:[%s2 + $0xc] sm:$0xf]
        %v460 = vld [vmem:[%s2 + $0x10] sm:$0xf]
        %v461 = vld [vmem:[%s2 + $0x14] sm:$0xf]
        %v462 = vld [vmem:[%s2 + $0x18] sm:$0xf]
        %v463 = vld [vmem:[%s2 + $0x1c] sm:$0xf]
        %v472 = vunpack.c.l.b16 %v456
        %v473 = vunpack.c.l.b16 %v457
        %v474 = vunpack.c.l.b16 %v458
        %v475 = vunpack.c.l.b16 %v459
        %v476 = vunpack.c.l.b16 %v460
        %v477 = vunpack.c.l.b16 %v461
        %v478 = vunpack.c.l.b16 %v462
        %v479 = vunpack.c.l.b16 %v463
        %v480 = vpack.c.b16 %v473, %v472
        %v481 = vpack.c.b16 %v475, %v474
        %v482 = vpack.c.b16 %v477, %v476
        %v483 = vpack.c.b16 %v479, %v478
        %vm488 = vcmask 523264
        %v490 = vsel %vm488, %v455, 0
        %492 = vmatpush.bf16.msra.mxu0 0
        %493 = vmatpush.bf16.msra.mxu0 0
        %494 = vmatpush.bf16.msra.mxu0 0
        %495 = vmatpush.bf16.msra.mxu0 0
        %496 = vmatpush.bf16.msra.mxu0 %v483
        %497 = vmatpush.bf16.msra.mxu0 %v482
        %498 = vmatpush.bf16.msra.mxu0 %v481
        %499 = vmatpush.bf16.msra.mxu0 %v480
        %500 = vmatmul.bf16.gmra.mxu0 %v490
        %v501 = vpop.f32.mrf.mxu0
        %v502 = vadd.f32 0.0, %v501
        %v503 = vpop.f32.mrf.mxu0
        %504 = vdwg.mxu0
        %v513 = vunpack.c.l.b16 %v447
        %v514 = vunpack.c.l.b16 %v448
        %v515 = vunpack.c.l.b16 %v449
        %v516 = vunpack.c.l.b16 %v450
        %v517 = vunpack.c.l.b16 %v451
        %v518 = vunpack.c.l.b16 %v452
        %v519 = vunpack.c.l.b16 %v453
        %v520 = vunpack.c.l.b16 %v454
        %v521 = vpack.c.b16 %v514, %v513
        %v522 = vpack.c.b16 %v516, %v515
        %v523 = vpack.c.b16 %v518, %v517
        %v524 = vpack.c.b16 %v520, %v519
        %v530 = vsel %vm488, %v445, 0
        %532 = vmatpush.bf16.msra.mxu0 0
        %533 = vmatpush.bf16.msra.mxu0 0
        %534 = vmatpush.bf16.msra.mxu0 0
        %535 = vmatpush.bf16.msra.mxu0 0
        %536 = vmatpush.bf16.msra.mxu0 %v524
        %537 = vmatpush.bf16.msra.mxu0 %v523
        %538 = vmatpush.bf16.msra.mxu0 %v522
        %539 = vmatpush.bf16.msra.mxu0 %v521
        %540 = vmatmul.bf16.gmra.mxu0 %v530
        %v541 = vpop.f32.mrf.mxu0
        %v542 = vadd.f32 %v502, %v541
        %v543 = vpop.f32.mrf.mxu0
        %544 = vdwg.mxu0
        %v545 = vpack.c.bf16 %v443, %v443
        %s546 = scalar_lea.vmem %s2, 64
        %v547 = vld [vmem:[%s546] sm:$0xf]
        %v548 = vld [vmem:[%s546 + $0x4] sm:$0xf]
        %v549 = vld [vmem:[%s546 + $0x8] sm:$0xf]
        %v550 = vld [vmem:[%s546 + $0xc] sm:$0xf]
        %v551 = vld [vmem:[%s546 + $0x10] sm:$0xf]
        %v552 = vld [vmem:[%s546 + $0x14] sm:$0xf]
        %v553 = vld [vmem:[%s546 + $0x18] sm:$0xf]
        %v554 = vld [vmem:[%s546 + $0x1c] sm:$0xf]
        %v563 = vunpack.c.l.b16 %v547
        %v564 = vunpack.c.l.b16 %v548
        %v565 = vunpack.c.l.b16 %v549
        %v566 = vunpack.c.l.b16 %v550
        %v567 = vunpack.c.l.b16 %v551
        %v568 = vunpack.c.l.b16 %v552
        %v569 = vunpack.c.l.b16 %v553
        %v570 = vunpack.c.l.b16 %v554
        %v571 = vpack.c.b16 %v564, %v563
        %v572 = vpack.c.b16 %v566, %v565
        %v573 = vpack.c.b16 %v568, %v567
        %v574 = vpack.c.b16 %v570, %v569
        %v580 = vsel %vm488, %v545, 0
        %582 = vmatpush.bf16.msra.mxu0 0
        %583 = vmatpush.bf16.msra.mxu0 0
        %584 = vmatpush.bf16.msra.mxu0 0
        %585 = vmatpush.bf16.msra.mxu0 0
        %586 = vmatpush.bf16.msra.mxu0 %v574
        %587 = vmatpush.bf16.msra.mxu0 %v573
        %588 = vmatpush.bf16.msra.mxu0 %v572
        %589 = vmatpush.bf16.msra.mxu0 %v571
        %590 = vmatmul.bf16.gmra.mxu0 %v580
        %v591 = vpop.f32.mrf.mxu0
        %v592 = vadd.f32 0.0, %v591
        %v593 = vpop.f32.mrf.mxu0
        %594 = vdwg.mxu0
        %v595 = vadd.f32 %v542, %v592
        %v597 = vsel %vm398, %v381, 0
        %599 = vmatpush.msra.mxu0 0.0
        %600 = vmatpush.msra.mxu0 0.0
        %601 = vmatpush.msra.mxu0 0.0
        %602 = vmatpush.msra.mxu0 0.0
        %603 = vmatpush.msra.mxu0 0.0
        %604 = vmatpush.msra.mxu0 0.0
        %605 = vmatpush.msra.mxu0 0.0
        %606 = vmatpush.msra.mxu0 0.0
        %607 = vmatpush.msra.mxu0 0.0
        %608 = vmatpush.msra.mxu0 0.0
        %609 = vmatpush.msra.mxu0 0.0
        %610 = vmatpush.msra.mxu0 0.0
        %611 = vmatpush.msra.mxu0 0.0
        %612 = vmatpush.msra.mxu0 0.0
        %613 = vmatpush.msra.mxu0 0.0
        %614 = vmatpush.msra.mxu0 %v597
        %615 = vmatmul.f32.gmra.mxu0 %v396
        %v616 = vpop.f32.mrf.mxu0
        %v617 = vadd.f32 0.0, %v616
        %618 = vdwg.mxu0
        %619 = vmatpush.msra.mxu0 0.0
        %620 = vmatpush.msra.mxu0 0.0
        %621 = vmatpush.msra.mxu0 0.0
        %622 = vmatpush.msra.mxu0 0.0
        %623 = vmatpush.msra.mxu0 0.0
        %624 = vmatpush.msra.mxu0 0.0
        %625 = vmatpush.msra.mxu0 0.0
        %626 = vmatpush.msra.mxu0 0.0
        %627 = vmatpush.msra.mxu0 0.0
        %628 = vmatpush.msra.mxu0 0.0
        %629 = vmatpush.msra.mxu0 0.0
        %630 = vmatpush.msra.mxu0 0.0
        %631 = vmatpush.msra.mxu0 0.0
        %632 = vmatpush.msra.mxu0 0.0
        %633 = vmatpush.msra.mxu0 0.0
        %634 = vmatpush.msra.mxu0 %v597
        %635 = vmatmul.f32.gmra.mxu0 %v423
        %v636 = vpop.f32.mrf.mxu0
        %v637 = vadd.f32 0.0, %v636
        %638 = vdwg.mxu0
        %v639 = vpack.c.bf16 %v381, %v381
        %s640 = scalar_lea.vmem [#allocation2], 32
        %v641 = vld [vmem:[%s640] sm:$0xf]
        %v642 = vld [vmem:[%s640 + $0x4] sm:$0xf]
        %v643 = vld [vmem:[%s640 + $0x8] sm:$0xf]
        %v644 = vld [vmem:[%s640 + $0xc] sm:$0xf]
        %v645 = vld [vmem:[%s640 + $0x10] sm:$0xf]
        %v646 = vld [vmem:[%s640 + $0x14] sm:$0xf]
        %v647 = vld [vmem:[%s640 + $0x18] sm:$0xf]
        %v648 = vld [vmem:[%s640 + $0x1c] sm:$0xf]
        %v649 = vpack.c.bf16 %v617, %v617
        %v650 = vld [vmem:[#allocation2] sm:$0xf]
        %v651 = vld [vmem:[#allocation2 + $0x4] sm:$0xf]
        %v652 = vld [vmem:[#allocation2 + $0x8] sm:$0xf]
        %v653 = vld [vmem:[#allocation2 + $0xc] sm:$0xf]
        %v654 = vld [vmem:[#allocation2 + $0x10] sm:$0xf]
        %v655 = vld [vmem:[#allocation2 + $0x14] sm:$0xf]
        %v656 = vld [vmem:[#allocation2 + $0x18] sm:$0xf]
        %v657 = vld [vmem:[#allocation2 + $0x1c] sm:$0xf]
        %v666 = vunpack.c.l.b16 %v650
        %v667 = vunpack.c.l.b16 %v651
        %v668 = vunpack.c.l.b16 %v652
        %v669 = vunpack.c.l.b16 %v653
        %v670 = vunpack.c.l.b16 %v654
        %v671 = vunpack.c.l.b16 %v655
        %v672 = vunpack.c.l.b16 %v656
        %v673 = vunpack.c.l.b16 %v657
        %v674 = vpack.c.b16 %v667, %v666
        %v675 = vpack.c.b16 %v669, %v668
        %v676 = vpack.c.b16 %v671, %v670
        %v677 = vpack.c.b16 %v673, %v672
        %v683 = vsel %vm488, %v649, 0
        %685 = vmatpush.bf16.msra.mxu0 0
        %686 = vmatpush.bf16.msra.mxu0 0
        %687 = vmatpush.bf16.msra.mxu0 0
        %688 = vmatpush.bf16.msra.mxu0 0
        %689 = vmatpush.bf16.msra.mxu0 %v677
        %690 = vmatpush.bf16.msra.mxu0 %v676
        %691 = vmatpush.bf16.msra.mxu0 %v675
        %692 = vmatpush.bf16.msra.mxu0 %v674
        %693 = vmatmul.bf16.gmra.mxu0 %v683
        %v694 = vpop.f32.mrf.mxu0
        %v695 = vadd.f32 0.0, %v694
        %v696 = vpop.f32.mrf.mxu0
        %697 = vdwg.mxu0
        %v706 = vunpack.c.l.b16 %v641
        %v707 = vunpack.c.l.b16 %v642
        %v708 = vunpack.c.l.b16 %v643
        %v709 = vunpack.c.l.b16 %v644
        %v710 = vunpack.c.l.b16 %v645
        %v711 = vunpack.c.l.b16 %v646
        %v712 = vunpack.c.l.b16 %v647
        %v713 = vunpack.c.l.b16 %v648
        %v714 = vpack.c.b16 %v707, %v706
        %v715 = vpack.c.b16 %v709, %v708
        %v716 = vpack.c.b16 %v711, %v710
        %v717 = vpack.c.b16 %v713, %v712
        %v723 = vsel %vm488, %v639, 0
        %725 = vmatpush.bf16.msra.mxu0 0
        %726 = vmatpush.bf16.msra.mxu0 0
        %727 = vmatpush.bf16.msra.mxu0 0
        %728 = vmatpush.bf16.msra.mxu0 0
        %729 = vmatpush.bf16.msra.mxu0 %v717
        %730 = vmatpush.bf16.msra.mxu0 %v716
        %731 = vmatpush.bf16.msra.mxu0 %v715
        %732 = vmatpush.bf16.msra.mxu0 %v714
        %733 = vmatmul.bf16.gmra.mxu0 %v723
        %v734 = vpop.f32.mrf.mxu0
        %v735 = vadd.f32 %v695, %v734
        %v736 = vpop.f32.mrf.mxu0
        %737 = vdwg.mxu0
        %v738 = vpack.c.bf16 %v637, %v637
        %s739 = scalar_lea.vmem [#allocation2], 64
        %v740 = vld [vmem:[%s739] sm:$0xf]
        %v741 = vld [vmem:[%s739 + $0x4] sm:$0xf]
        %v742 = vld [vmem:[%s739 + $0x8] sm:$0xf]
        %v743 = vld [vmem:[%s739 + $0xc] sm:$0xf]
        %v744 = vld [vmem:[%s739 + $0x10] sm:$0xf]
        %v745 = vld [vmem:[%s739 + $0x14] sm:$0xf]
        %v746 = vld [vmem:[%s739 + $0x18] sm:$0xf]
        %v747 = vld [vmem:[%s739 + $0x1c] sm:$0xf]
        %v756 = vunpack.c.l.b16 %v740
        %v757 = vunpack.c.l.b16 %v741
        %v758 = vunpack.c.l.b16 %v742
        %v759 = vunpack.c.l.b16 %v743
        %v760 = vunpack.c.l.b16 %v744
        %v761 = vunpack.c.l.b16 %v745
        %v762 = vunpack.c.l.b16 %v746
        %v763 = vunpack.c.l.b16 %v747
        %v764 = vpack.c.b16 %v757, %v756
        %v765 = vpack.c.b16 %v759, %v758
        %v766 = vpack.c.b16 %v761, %v760
        %v767 = vpack.c.b16 %v763, %v762
        %v773 = vsel %vm488, %v738, 0
        %775 = vmatpush.bf16.msra.mxu0 0
        %776 = vmatpush.bf16.msra.mxu0 0
        %777 = vmatpush.bf16.msra.mxu0 0
        %778 = vmatpush.bf16.msra.mxu0 0
        %779 = vmatpush.bf16.msra.mxu0 %v767
        %780 = vmatpush.bf16.msra.mxu0 %v766
        %781 = vmatpush.bf16.msra.mxu0 %v765
        %782 = vmatpush.bf16.msra.mxu0 %v764
        %783 = vmatmul.bf16.gmra.mxu0 %v773
        %v784 = vpop.f32.mrf.mxu0
        %v785 = vadd.f32 0.0, %v784
        %v786 = vpop.f32.mrf.mxu0
        %787 = vdwg.mxu0
        %v788 = vadd.f32 %v735, %v785
        %v789 = vadd.f32 %v595, %v788
        %v790 = vld [vmem:[%s4] sm:$0x1]
        %v792 = vperm.slane %v790, 0
        %v794 = vmul.f32 %v789, %v792
        %v795 = vld [vmem:[%s5] sm:$0x1]
        %v797 = vperm.slane %v795, 0
        %v799 = vadd.f32 %v794, %v797
        %v800 = vmax.f32 %v799, 0.0
        %v802 = vsel %vm398, %v800, 0
        %804 = vmatpush.msra.mxu0 0.0
        %805 = vmatpush.msra.mxu0 0.0
        %806 = vmatpush.msra.mxu0 0.0
        %807 = vmatpush.msra.mxu0 0.0
        %808 = vmatpush.msra.mxu0 0.0
        %809 = vmatpush.msra.mxu0 0.0
        %810 = vmatpush.msra.mxu0 0.0
        %811 = vmatpush.msra.mxu0 0.0
        %812 = vmatpush.msra.mxu0 0.0
        %813 = vmatpush.msra.mxu0 0.0
        %814 = vmatpush.msra.mxu0 0.0
        %815 = vmatpush.msra.mxu0 0.0
        %816 = vmatpush.msra.mxu0 0.0
        %817 = vmatpush.msra.mxu0 0.0
        %818 = vmatpush.msra.mxu0 0.0
        %819 = vmatpush.msra.mxu0 %v802
        %820 = vmatmul.f32.gmra.mxu0 %v396
        %v821 = vpop.f32.mrf.mxu0
        %v822 = vadd.f32 0.0, %v821
        %823 = vdwg.mxu0
        %824 = vmatpush.msra.mxu0 0.0
        %825 = vmatpush.msra.mxu0 0.0
        %826 = vmatpush.msra.mxu0 0.0
        %827 = vmatpush.msra.mxu0 0.0
        %828 = vmatpush.msra.mxu0 0.0
        %829 = vmatpush.msra.mxu0 0.0
        %830 = vmatpush.msra.mxu0 0.0
        %831 = vmatpush.msra.mxu0 0.0
        %832 = vmatpush.msra.mxu0 0.0
        %833 = vmatpush.msra.mxu0 0.0
        %834 = vmatpush.msra.mxu0 0.0
        %835 = vmatpush.msra.mxu0 0.0
        %836 = vmatpush.msra.mxu0 0.0
        %837 = vmatpush.msra.mxu0 0.0
        %838 = vmatpush.msra.mxu0 0.0
        %839 = vmatpush.msra.mxu0 %v802
        %840 = vmatmul.f32.gmra.mxu0 %v423
        %v841 = vpop.f32.mrf.mxu0
        %v842 = vadd.f32 0.0, %v841
        %843 = vdwg.mxu0
        %v844 = vpack.c.bf16 %v800, %v800
        %s845 = scalar_lea.vmem [#allocation4], 32
        %v846 = vld [vmem:[%s845] sm:$0xf]
        %v847 = vld [vmem:[%s845 + $0x4] sm:$0xf]
        %v848 = vld [vmem:[%s845 + $0x8] sm:$0xf]
        %v849 = vld [vmem:[%s845 + $0xc] sm:$0xf]
        %v850 = vld [vmem:[%s845 + $0x10] sm:$0xf]
        %v851 = vld [vmem:[%s845 + $0x14] sm:$0xf]
        %v852 = vld [vmem:[%s845 + $0x18] sm:$0xf]
        %v853 = vld [vmem:[%s845 + $0x1c] sm:$0xf]
        %v854 = vpack.c.bf16 %v822, %v822
        %v855 = vld [vmem:[#allocation4] sm:$0xf]
        %v856 = vld [vmem:[#allocation4 + $0x4] sm:$0xf]
        %v857 = vld [vmem:[#allocation4 + $0x8] sm:$0xf]
        %v858 = vld [vmem:[#allocation4 + $0xc] sm:$0xf]
        %v859 = vld [vmem:[#allocation4 + $0x10] sm:$0xf]
        %v860 = vld [vmem:[#allocation4 + $0x14] sm:$0xf]
        %v861 = vld [vmem:[#allocation4 + $0x18] sm:$0xf]
        %v862 = vld [vmem:[#allocation4 + $0x1c] sm:$0xf]
        %v871 = vunpack.c.l.b16 %v855
        %v872 = vunpack.c.l.b16 %v856
        %v873 = vunpack.c.l.b16 %v857
        %v874 = vunpack.c.l.b16 %v858
        %v875 = vunpack.c.l.b16 %v859
        %v876 = vunpack.c.l.b16 %v860
        %v877 = vunpack.c.l.b16 %v861
        %v878 = vunpack.c.l.b16 %v862
        %v879 = vpack.c.b16 %v872, %v871
        %v880 = vpack.c.b16 %v874, %v873
        %v881 = vpack.c.b16 %v876, %v875
        %v882 = vpack.c.b16 %v878, %v877
        %v888 = vsel %vm488, %v854, 0
        %890 = vmatpush.bf16.msra.mxu0 0
        %891 = vmatpush.bf16.msra.mxu0 0
        %892 = vmatpush.bf16.msra.mxu0 0
        %893 = vmatpush.bf16.msra.mxu0 0
        %894 = vmatpush.bf16.msra.mxu0 %v882
        %895 = vmatpush.bf16.msra.mxu0 %v881
        %896 = vmatpush.bf16.msra.mxu0 %v880
        %897 = vmatpush.bf16.msra.mxu0 %v879
        %898 = vmatmul.bf16.gmra.mxu0 %v888
        %v899 = vpop.f32.mrf.mxu0
        %v900 = vadd.f32 0.0, %v899
        %v901 = vpop.f32.mrf.mxu0
        %902 = vdwg.mxu0
        %v911 = vunpack.c.l.b16 %v846
        %v912 = vunpack.c.l.b16 %v847
        %v913 = vunpack.c.l.b16 %v848
        %v914 = vunpack.c.l.b16 %v849
        %v915 = vunpack.c.l.b16 %v850
        %v916 = vunpack.c.l.b16 %v851
        %v917 = vunpack.c.l.b16 %v852
        %v918 = vunpack.c.l.b16 %v853
        %v919 = vpack.c.b16 %v912, %v911
        %v920 = vpack.c.b16 %v914, %v913
        %v921 = vpack.c.b16 %v916, %v915
        %v922 = vpack.c.b16 %v918, %v917
        %v928 = vsel %vm488, %v844, 0
        %930 = vmatpush.bf16.msra.mxu0 0
        %931 = vmatpush.bf16.msra.mxu0 0
        %932 = vmatpush.bf16.msra.mxu0 0
        %933 = vmatpush.bf16.msra.mxu0 0
        %934 = vmatpush.bf16.msra.mxu0 %v922
        %935 = vmatpush.bf16.msra.mxu0 %v921
        %936 = vmatpush.bf16.msra.mxu0 %v920
        %937 = vmatpush.bf16.msra.mxu0 %v919
        %938 = vmatmul.bf16.gmra.mxu0 %v928
        %v939 = vpop.f32.mrf.mxu0
        %v940 = vadd.f32 %v900, %v939
        %v941 = vpop.f32.mrf.mxu0
        %942 = vdwg.mxu0
        %v943 = vpack.c.bf16 %v842, %v842
        %s944 = scalar_lea.vmem [#allocation4], 64
        %v945 = vld [vmem:[%s944] sm:$0xf]
        %v946 = vld [vmem:[%s944 + $0x4] sm:$0xf]
        %v947 = vld [vmem:[%s944 + $0x8] sm:$0xf]
        %v948 = vld [vmem:[%s944 + $0xc] sm:$0xf]
        %v949 = vld [vmem:[%s944 + $0x10] sm:$0xf]
        %v950 = vld [vmem:[%s944 + $0x14] sm:$0xf]
        %v951 = vld [vmem:[%s944 + $0x18] sm:$0xf]
        %v952 = vld [vmem:[%s944 + $0x1c] sm:$0xf]
        %v961 = vunpack.c.l.b16 %v945
        %v962 = vunpack.c.l.b16 %v946
        %v963 = vunpack.c.l.b16 %v947
        %v964 = vunpack.c.l.b16 %v948
        %v965 = vunpack.c.l.b16 %v949
        %v966 = vunpack.c.l.b16 %v950
        %v967 = vunpack.c.l.b16 %v951
        %v968 = vunpack.c.l.b16 %v952
        %v969 = vpack.c.b16 %v962, %v961
        %v970 = vpack.c.b16 %v964, %v963
        %v971 = vpack.c.b16 %v966, %v965
        %v972 = vpack.c.b16 %v968, %v967
        %v978 = vsel %vm488, %v943, 0
        %980 = vmatpush.bf16.msra.mxu0 0
        %981 = vmatpush.bf16.msra.mxu0 0
        %982 = vmatpush.bf16.msra.mxu0 0
        %983 = vmatpush.bf16.msra.mxu0 0
        %984 = vmatpush.bf16.msra.mxu0 %v972
        %985 = vmatpush.bf16.msra.mxu0 %v971
        %986 = vmatpush.bf16.msra.mxu0 %v970
        %987 = vmatpush.bf16.msra.mxu0 %v969
        %988 = vmatmul.bf16.gmra.mxu0 %v978
        %v989 = vpop.f32.mrf.mxu0
        %v990 = vadd.f32 0.0, %v989
        %v991 = vpop.f32.mrf.mxu0
        %992 = vdwg.mxu0
        %v993 = vadd.f32 %v940, %v990
        %v994 = vld [vmem:[%s7] sm:$0x1]
        %v996 = vperm.slane %v994, 0
        %v998 = vmul.f32 %v993, %v996
        %v999 = vld [vmem:[%s8] sm:$0x1]
        %v1001 = vperm.slane %v999, 0
        %v1003 = vadd.f32 %v998, %v1001
        %v1004 = vmax.f32 %v1003, 0.0
        %vm1005 = vcmask 519168
        %1006 = vst.msk [vmem:[%s378] sm:$0xf] %vm1005, %v1004
        %p1007 = scmp.lt.s32.totalorder %s22, 1
        %s1008 = scalar_select %p1007, %s22, 1
        %s1009 = smul.addr %s1008, 4
        %s1010 = scalar_lea.vmem %s9, %s1009
        // Predicated region
        $region65: #{vnet_forward.15} parent=55 // pred_check
          %p1011 = pneg %p239
        $region66: #{vnet_forward.15} parent=55 // pred_check_branch
          %1013 = sbr.rel (%p1011) target = $region68
        $region67: #{vnet_forward.15} parent=55 // pred_region
          _
        $region68: #{vnet_forward.15} parent=55 // pred_fallthru
          _
      $region56: #{vnet_forward.15} parent=5 // pred_fallthru
        _
      %p1014 = scmp.le.s32.totalorder 2, %s17
      // Predicated region
      $region69: #{vnet_forward.15} parent=5 // pred_check
        %p1015 = pneg %p1014
      $region70: #{vnet_forward.15} parent=5 // pred_check_branch
        %1017 = sbr.rel (%p1015) target = $region72
      $region71: #{vnet_forward.15} parent=5 // pred_region
        %s1018 = ssub.s32 %s17, 2
        // Predicated region
        $region73: #{vnet_forward.15} parent=71 // pred_check
          %p1019 = pneg %p245
        $region74: #{vnet_forward.15} parent=71 // pred_check_branch
          %1021 = sbr.rel (%p1019) target = $region76
        $region75: #{vnet_forward.15} parent=71 // pred_region
          %p1022 = scmp.lt.s32.totalorder %s23, 1
          %s1023 = scalar_select %p1022, %s23, 1
          %s1024 = smul.addr %s1023, 4
          %s1025 = scalar_lea.vmem %s9, %s1024
        $region76: #{vnet_forward.15} parent=71 // pred_fallthru
          _
      $region72: #{vnet_forward.15} parent=5 // pred_fallthru
        _
    $region6: #{vnet_forward.15} parent=1 // loop_footer
      %s21 = sadd.s32 1, %s17
    $region7: #{vnet_forward.15} parent=1 // loop_footer_branch
      %16 = sbr.rel target = $region3
    $region8: #{vnet_forward.15} parent=1 // loop_exit
      _
    %1026 = vsyncpa [#allocation3], 1
    %s1027 = scalar_lea.sflag [#allocation3], 1
    %1028 = vsyncpa %s1027, 1
    %1029 = vsyncpa [#allocation5], 1

// kernel: vnet_forward.17
$region0: #{vnet_forward.17}
  #allocation0 [shape = 'u32[]', space=smem, size = 0x4, offset = 0x4, fixed_abs, tag = 'smem constant byte address 0x4 - core index']
  #allocation1 [shape = 'u32[72,128]{1,0:T(1,128)}', space=vmem, size = 0x9000, scoped, tag = 'internal scratch']
  %s0 = inlined_call_operand.vmem [shape: f32[2,8,32], index: 0, kind: input, shape index: {}]
  %s1 = inlined_call_operand.vmem [shape: f32[2,8,32], index: 1, kind: input, shape index: {}]
  %s2 = inlined_call_operand.vmem [shape: bf16[3,32,32], index: 2, kind: input, shape index: {}]
  %s3 = inlined_call_operand.vmem [shape: bf16[3,32,32], index: 3, kind: input, shape index: {}]
  %s4 = inlined_call_operand.hbm [shape: f32[1,32], index: 4, kind: input, shape index: {}]
  %s5 = inlined_call_operand.hbm [shape: f32[1,32], index: 5, kind: input, shape index: {}]
  %s6 = inlined_call_operand.vmem [shape: bf16[3,32,32], index: 6, kind: input, shape index: {}]
  %s7 = inlined_call_operand.hbm [shape: f32[1,32], index: 7, kind: input, shape index: {}]
  %s8 = inlined_call_operand.hbm [shape: f32[1,32], index: 8, kind: input, shape index: {}]
  %s9 = inlined_call_operand.vmem [shape: f32[2,8,32], index: 9, kind: output, shape index: {}]
  %s10 = sld [smem:[#allocation0]]
  $region85: #{vnet_forward.17} parent=0
    _
  %s12 = ssub.s32 1, %s10
  %s13 = scalar_select 0, %s12, %s10
  $region1: #{vnet_forward.17} parent=0
    #allocation2 [shape = 'u8[512]{0}', space=vmem, size = 0x400, scoped, tag = 'input window, operand 4, single buffered']
    #allocation3 [shape = 's32[2]{0}', space=sflag, size = 0x8, scoped, tag = 'scoped memory for vnet_forward.17']
    #allocation4 [shape = 'u8[512]{0}', space=vmem, size = 0x400, scoped, tag = 'input window, operand 5, single buffered']
    #allocation5 [shape = 's32[1]{0}', space=sflag, size = 0x4, scoped, tag = 'scoped memory for vnet_forward.17']
    #allocation6 [shape = 'u8[512]{0}', space=vmem, size = 0x400, scoped, tag = 'input window, operand 7, single buffered']
    #allocation7 [shape = 'u8[512]{0}', space=vmem, size = 0x400, scoped, tag = 'input window, operand 8, single buffered']
    #allocation8 [shape = 's32[1]{0}', space=sflag, size = 0x4, scoped, tag = 'scoped memory for vnet_forward.17']
    %14 = vsyncpa [#allocation3], 0
    %15 = vsyncpa [#allocation5], 0
    %16 = vsyncpa [#allocation8], 0
    loop: start=0, step=1, limit=4
    $region2: #{vnet_forward.17} parent=1 // loop_pre_header
      _
    $region3: #{vnet_forward.17} parent=1 // loop_header
      %s18 = sphi 0, %s22
      %p19 = scmp.ge.s32.totalorder %s18, 4
      %s28 = sphi 0, %s30
      %s31 = sphi 0, %s28
      %s32 = sphi 0, %s31
      %s48 = sphi 0, %s32
      %s54 = sphi 0, %s56
      %s57 = sphi 0, %s54
      %s58 = sphi 0, %s57
      %s74 = sphi 0, %s58
      %s78 = sphi 0, %s78
      %s80 = sphi 0, %s78
      %s81 = sphi 0, %s80
      %s95 = sphi 0, %s81
      %s99 = sphi 0, %s99
      %s101 = sphi 0, %s99
      %s102 = sphi 0, %s101
      %s116 = sphi 0, %s102
      %s120 = sphi 0, %s120
      %s122 = sphi 0, %s120
      %s123 = sphi 0, %s122
      %s137 = sphi 0, %s123
      %s141 = sphi 0, %s141
      %s143 = sphi 0, %s141
      %s144 = sphi 0, %s143
      %s158 = sphi 0, %s144
      %s162 = sphi 0, %s162
      %s164 = sphi 0, %s162
      %s165 = sphi 0, %s164
      %s179 = sphi 0, %s165
      %s183 = sphi 0, %s183
      %s185 = sphi 0, %s183
      %s186 = sphi 0, %s185
      %s200 = sphi 0, %s186
      %s204 = sphi 0, %s204
      %s206 = sphi 0, %s204
      %s207 = sphi 0, %s206
      %s221 = sphi 0, %s207
      %s227 = sphi 0, %s229
      %s230 = sphi 0, %s227
      %s231 = sphi 0, %s230
      %s247 = sphi 0, %s231
    $region4: #{vnet_forward.17} parent=1 // loop_header_branch
      %21 = sbr.rel (%p19) target = $region8
    $region5: #{vnet_forward.17} parent=1 // loop_body
      %s23 = ssub.s32 %s18, 1
      %s24 = ssub.s32 %s18, 2
      %s25 = sadd.s32 %s18, 1
      %s26 = ssub.s32 %s18, %s25
      %p27 = scmp.eq.s32.totalorder %s26, 0
      %s29 = sadd.s32 %s28, 1
      %s30 = scalar_select %p27, %s28, %s29
      %p33 = pneg %p27
      %p34 = scmp.eq.s32.totalorder %s18, 1
      %p35 = por %p33, %p34
      %p36 = scmp.ne.s32.totalorder %s28, %s31
      %p37 = scmp.eq.s32.totalorder %s18, 0
      %p38 = por %p36, %p37
      %p39 = scmp.ne.s32.totalorder %s28, %s31
      %p40 = scmp.eq.s32.totalorder %s23, 1
      %p41 = por %p39, %p40
      %p42 = scmp.ne.s32.totalorder %s31, %s32
      %p43 = scmp.eq.s32.totalorder %s23, 0
      %p44 = por %p42, %p43
      %p45 = scmp.ne.s32.totalorder %s31, %s32
      %p46 = scmp.eq.s32.totalorder %s24, 1
      %p47 = por %p45, %p46
      %p49 = scmp.ne.s32.totalorder %s32, %s48
      %p50 = scmp.eq.s32.totalorder %s24, 0
      %p51 = por %p49, %p50
      %s52 = ssub.s32 %s18, %s25
      %p53 = scmp.eq.s32.totalorder %s52, 0
      %s55 = sadd.s32 %s54, 1
      %s56 = scalar_select %p53, %s54, %s55
      %p59 = pneg %p53
      %p60 = scmp.eq.s32.totalorder %s18, 1
      %p61 = por %p59, %p60
      %p62 = scmp.ne.s32.totalorder %s54, %s57
      %p63 = scmp.eq.s32.totalorder %s18, 0
      %p64 = por %p62, %p63
      %p65 = scmp.ne.s32.totalorder %s54, %s57
      %p66 = scmp.eq.s32.totalorder %s23, 1
      %p67 = por %p65, %p66
      %p68 = scmp.ne.s32.totalorder %s57, %s58
      %p69 = scmp.eq.s32.totalorder %s23, 0
      %p70 = por %p68, %p69
      %p71 = scmp.ne.s32.totalorder %s57, %s58
      %p72 = scmp.eq.s32.totalorder %s24, 1
      %p73 = por %p71, %p72
      %p75 = scmp.ne.s32.totalorder %s58, %s74
      %p76 = scmp.eq.s32.totalorder %s24, 0
      %p77 = por %p75, %p76
      %s79 = sadd.s32 %s78, 1
      %p82 = scmp.eq.s32.totalorder %s18, 1
      %p83 = scmp.ne.s32.totalorder %s78, %s80
      %p84 = scmp.eq.s32.totalorder %s18, 0
      %p85 = por %p83, %p84
      %p86 = scmp.ne.s32.totalorder %s78, %s80
      %p87 = scmp.eq.s32.totalorder %s23, 1
      %p88 = por %p86, %p87
      %p89 = scmp.ne.s32.totalorder %s80, %s81
      %p90 = scmp.eq.s32.totalorder %s23, 0
      %p91 = por %p89, %p90
      %p92 = scmp.ne.s32.totalorder %s80, %s81
      %p93 = scmp.eq.s32.totalorder %s24, 1
      %p94 = por %p92, %p93
      %p96 = scmp.ne.s32.totalorder %s81, %s95
      %p97 = scmp.eq.s32.totalorder %s24, 0
      %p98 = por %p96, %p97
      %s100 = sadd.s32 %s99, 1
      %p103 = scmp.eq.s32.totalorder %s18, 1
      %p104 = scmp.ne.s32.totalorder %s99, %s101
      %p105 = scmp.eq.s32.totalorder %s18, 0
      %p106 = por %p104, %p105
      %p107 = scmp.ne.s32.totalorder %s99, %s101
      %p108 = scmp.eq.s32.totalorder %s23, 1
      %p109 = por %p107, %p108
      %p110 = scmp.ne.s32.totalorder %s101, %s102
      %p111 = scmp.eq.s32.totalorder %s23, 0
      %p112 = por %p110, %p111
      %p113 = scmp.ne.s32.totalorder %s101, %s102
      %p114 = scmp.eq.s32.totalorder %s24, 1
      %p115 = por %p113, %p114
      %p117 = scmp.ne.s32.totalorder %s102, %s116
      %p118 = scmp.eq.s32.totalorder %s24, 0
      %p119 = por %p117, %p118
      %s121 = sadd.s32 %s120, 1
      %p124 = scmp.eq.s32.totalorder %s18, 1
      %p125 = scmp.ne.s32.totalorder %s120, %s122
      %p126 = scmp.eq.s32.totalorder %s18, 0
      %p127 = por %p125, %p126
      %p128 = scmp.ne.s32.totalorder %s120, %s122
      %p129 = scmp.eq.s32.totalorder %s23, 1
      %p130 = por %p128, %p129
      %p131 = scmp.ne.s32.totalorder %s122, %s123
      %p132 = scmp.eq.s32.totalorder %s23, 0
      %p133 = por %p131, %p132
      %p134 = scmp.ne.s32.totalorder %s122, %s123
      %p135 = scmp.eq.s32.totalorder %s24, 1
      %p136 = por %p134, %p135
      %p138 = scmp.ne.s32.totalorder %s123, %s137
      %p139 = scmp.eq.s32.totalorder %s24, 0
      %p140 = por %p138, %p139
      %s142 = sadd.s32 %s141, 1
      %p145 = scmp.eq.s32.totalorder %s18, 1
      %p146 = scmp.ne.s32.totalorder %s141, %s143
      %p147 = scmp.eq.s32.totalorder %s18, 0
      %p148 = por %p146, %p147
      %p149 = scmp.ne.s32.totalorder %s141, %s143
      %p150 = scmp.eq.s32.totalorder %s23, 1
      %p151 = por %p149, %p150
      %p152 = scmp.ne.s32.totalorder %s143, %s144
      %p153 = scmp.eq.s32.totalorder %s23, 0
      %p154 = por %p152, %p153
      %p155 = scmp.ne.s32.totalorder %s143, %s144
      %p156 = scmp.eq.s32.totalorder %s24, 1
      %p157 = por %p155, %p156
      %p159 = scmp.ne.s32.totalorder %s144, %s158
      %p160 = scmp.eq.s32.totalorder %s24, 0
      %p161 = por %p159, %p160
      %s163 = sadd.s32 %s162, 1
      %p166 = scmp.eq.s32.totalorder %s18, 1
      %p167 = scmp.ne.s32.totalorder %s162, %s164
      %p168 = scmp.eq.s32.totalorder %s18, 0
      %p169 = por %p167, %p168
      %p170 = scmp.ne.s32.totalorder %s162, %s164
      %p171 = scmp.eq.s32.totalorder %s23, 1
      %p172 = por %p170, %p171
      %p173 = scmp.ne.s32.totalorder %s164, %s165
      %p174 = scmp.eq.s32.totalorder %s23, 0
      %p175 = por %p173, %p174
      %p176 = scmp.ne.s32.totalorder %s164, %s165
      %p177 = scmp.eq.s32.totalorder %s24, 1
      %p178 = por %p176, %p177
      %p180 = scmp.ne.s32.totalorder %s165, %s179
      %p181 = scmp.eq.s32.totalorder %s24, 0
      %p182 = por %p180, %p181
      %s184 = sadd.s32 %s183, 1
      %p187 = scmp.eq.s32.totalorder %s18, 1
      %p188 = scmp.ne.s32.totalorder %s183, %s185
      %p189 = scmp.eq.s32.totalorder %s18, 0
      %p190 = por %p188, %p189
      %p191 = scmp.ne.s32.totalorder %s183, %s185
      %p192 = scmp.eq.s32.totalorder %s23, 1
      %p193 = por %p191, %p192
      %p194 = scmp.ne.s32.totalorder %s185, %s186
      %p195 = scmp.eq.s32.totalorder %s23, 0
      %p196 = por %p194, %p195
      %p197 = scmp.ne.s32.totalorder %s185, %s186
      %p198 = scmp.eq.s32.totalorder %s24, 1
      %p199 = por %p197, %p198
      %p201 = scmp.ne.s32.totalorder %s186, %s200
      %p202 = scmp.eq.s32.totalorder %s24, 0
      %p203 = por %p201, %p202
      %s205 = sadd.s32 %s204, 1
      %p208 = scmp.eq.s32.totalorder %s18, 1
      %p209 = scmp.ne.s32.totalorder %s204, %s206
      %p210 = scmp.eq.s32.totalorder %s18, 0
      %p211 = por %p209, %p210
      %p212 = scmp.ne.s32.totalorder %s204, %s206
      %p213 = scmp.eq.s32.totalorder %s23, 1
      %p214 = por %p212, %p213
      %p215 = scmp.ne.s32.totalorder %s206, %s207
      %p216 = scmp.eq.s32.totalorder %s23, 0
      %p217 = por %p215, %p216
      %p218 = scmp.ne.s32.totalorder %s206, %s207
      %p219 = scmp.eq.s32.totalorder %s24, 1
      %p220 = por %p218, %p219
      %p222 = scmp.ne.s32.totalorder %s207, %s221
      %p223 = scmp.eq.s32.totalorder %s24, 0
      %p224 = por %p222, %p223
      %s225 = ssub.s32 %s18, %s25
      %p226 = scmp.eq.s32.totalorder %s225, 0
      %s228 = sadd.s32 %s227, 1
      %s229 = scalar_select %p226, %s227, %s228
      %p232 = pneg %p226
      %p233 = scmp.eq.s32.totalorder %s18, 1
      %p234 = por %p232, %p233
      %p235 = scmp.ne.s32.totalorder %s227, %s230
      %p236 = scmp.eq.s32.totalorder %s18, 0
      %p237 = por %p235, %p236
      %p238 = scmp.ne.s32.totalorder %s227, %s230
      %p239 = scmp.eq.s32.totalorder %s23, 1
      %p240 = por %p238, %p239
      %p241 = scmp.ne.s32.totalorder %s230, %s231
      %p242 = scmp.eq.s32.totalorder %s23, 0
      %p243 = por %p241, %p242
      %p244 = scmp.ne.s32.totalorder %s230, %s231
      %p245 = scmp.eq.s32.totalorder %s24, 1
      %p246 = por %p244, %p245
      %p248 = scmp.ne.s32.totalorder %s231, %s247
      %p249 = scmp.eq.s32.totalorder %s24, 0
      %p250 = por %p248, %p249
      %p251 = scmp.le.s32.totalorder 1, %s18
      %p252 = scmp.lt.s32.totalorder %s18, 3
      %p253 = pnand %p251, %p252
      %p254 = pneg %p253
      // Predicated region
      $region9: #{vnet_forward.17} parent=5 // pred_check
        _
      $region10: #{vnet_forward.17} parent=5 // pred_check_branch
        %256 = sbr.rel (%p253) target = $region12
      $region11: #{vnet_forward.17} parent=5 // pred_region
        %s257 = ssub.s32 %s18, 1
        // Predicated region
        $region13: #{vnet_forward.17} parent=11 // pred_check
          %p258 = pneg %p91
        $region14: #{vnet_forward.17} parent=11 // pred_check_branch
          %260 = sbr.rel (%p258) target = $region16
        $region15: #{vnet_forward.17} parent=11 // pred_region
          _
        $region16: #{vnet_forward.17} parent=11 // pred_fallthru
          _
        // Predicated region
        $region17: #{vnet_forward.17} parent=11 // pred_check
          %p261 = pneg %p112
        $region18: #{vnet_forward.17} parent=11 // pred_check_branch
          %263 = sbr.rel (%p261) target = $region20
        $region19: #{vnet_forward.17} parent=11 // pred_region
          _
        $region20: #{vnet_forward.17} parent=11 // pred_fallthru
          _
        // Predicated region
        $region21: #{vnet_forward.17} parent=11 // pred_check
          %p264 = pneg %p133
        $region22: #{vnet_forward.17} parent=11 // pred_check_branch
          %266 = sbr.rel (%p264) target = $region24
        $region23: #{vnet_forward.17} parent=11 // pred_region
          %268 = vsyncadd [#allocation3], 0
          %s270 = sshll.u32 %s4, 4
          %s271 = int_to_ptr.hbm [resolvable:$true] %s270
          %s272 = sshll.u32 [#allocation2], 4
          %s273 = int_to_ptr.vmem [resolvable:$true] %s272
          %275 = dma.hbm_to_vmem [thread:$0]  %s271, 16, %s273, [#allocation3]
        $region24: #{vnet_forward.17} parent=11 // pred_fallthru
          _
        // Predicated region
        $region25: #{vnet_forward.17} parent=11 // pred_check
          %p276 = pneg %p154
        $region26: #{vnet_forward.17} parent=11 // pred_check_branch
          %278 = sbr.rel (%p276) target = $region28
        $region27: #{vnet_forward.17} parent=11 // pred_region
          %280 = vsyncadd [#allocation5], 0
          %s282 = sshll.u32 %s5, 4
          %s283 = int_to_ptr.hbm [resolvable:$true] %s282
          %s284 = sshll.u32 [#allocation4], 4
          %s285 = int_to_ptr.vmem [resolvable:$true] %s284
          %287 = dma.hbm_to_vmem [thread:$0]  %s283, 16, %s285, [#allocation5]
        $region28: #{vnet_forward.17} parent=11 // pred_fallthru
          _
        // Predicated region
        $region29: #{vnet_forward.17} parent=11 // pred_check
          %p288 = pneg %p175
        $region30: #{vnet_forward.17} parent=11 // pred_check_branch
          %290 = sbr.rel (%p288) target = $region32
        $region31: #{vnet_forward.17} parent=11 // pred_region
          _
        $region32: #{vnet_forward.17} parent=11 // pred_fallthru
          _
        // Predicated region
        $region33: #{vnet_forward.17} parent=11 // pred_check
          %p291 = pneg %p196
        $region34: #{vnet_forward.17} parent=11 // pred_check_branch
          %293 = sbr.rel (%p291) target = $region36
        $region35: #{vnet_forward.17} parent=11 // pred_region
          %295 = vsyncadd [#allocation5], 0
          %s297 = sshll.u32 %s7, 4
          %s298 = int_to_ptr.hbm [resolvable:$true] %s297
          %s299 = sshll.u32 [#allocation6], 4
          %s300 = int_to_ptr.vmem [resolvable:$true] %s299
          %302 = dma.hbm_to_vmem [thread:$0]  %s298, 16, %s300, [#allocation5]
        $region36: #{vnet_forward.17} parent=11 // pred_fallthru
          _
        // Predicated region
        $region37: #{vnet_forward.17} parent=11 // pred_check
          %p303 = pneg %p217
        $region38: #{vnet_forward.17} parent=11 // pred_check_branch
          %305 = sbr.rel (%p303) target = $region40
        $region39: #{vnet_forward.17} parent=11 // pred_region
          %307 = vsyncadd [#allocation8], 0
          %s309 = sshll.u32 %s8, 4
          %s310 = int_to_ptr.hbm [resolvable:$true] %s309
          %s311 = sshll.u32 [#allocation7], 4
          %s312 = int_to_ptr.vmem [resolvable:$true] %s311
          %314 = dma.hbm_to_vmem [thread:$0]  %s310, 16, %s312, [#allocation8]
        $region40: #{vnet_forward.17} parent=11 // pred_fallthru
          _
      $region12: #{vnet_forward.17} parent=5 // pred_fallthru
        _
      %p315 = scmp.lt.s32.totalorder %s18, 2
      // Predicated region
      $region41: #{vnet_forward.17} parent=5 // pred_check
        %p316 = pneg %p315
      $region42: #{vnet_forward.17} parent=5 // pred_check_branch
        %318 = sbr.rel (%p316) target = $region44
      $region43: #{vnet_forward.17} parent=5 // pred_region
        // Predicated region
        $region45: #{vnet_forward.17} parent=43 // pred_check
          %p319 = pneg %p38
        $region46: #{vnet_forward.17} parent=43 // pred_check_branch
          %321 = sbr.rel (%p319) target = $region48
        $region47: #{vnet_forward.17} parent=43 // pred_region
          %p322 = scmp.lt.s32.totalorder %s18, 1
          %s323 = scalar_select %p322, %s18, 1
          %s324 = smul.addr %s323, 8
          %s325 = scalar_lea.vmem %s0, %s324
        $region48: #{vnet_forward.17} parent=43 // pred_fallthru
          _
        // Predicated region
        $region49: #{vnet_forward.17} parent=43 // pred_check
          %p326 = pneg %p64
        $region50: #{vnet_forward.17} parent=43 // pred_check_branch
          %328 = sbr.rel (%p326) target = $region52
        $region51: #{vnet_forward.17} parent=43 // pred_region
          %p329 = scmp.lt.s32.totalorder %s18, 1
          %s330 = scalar_select %p329, %s18, 1
          %s331 = smul.addr %s330, 8
          %s332 = scalar_lea.vmem %s1, %s331
        $region52: #{vnet_forward.17} parent=43 // pred_fallthru
          _
      $region44: #{vnet_forward.17} parent=5 // pred_fallthru
        _
      %p333 = scmp.le.s32.totalorder 1, %s18
      %p334 = scmp.lt.s32.totalorder %s18, 3
      %p335 = pnand %p333, %p334
      %p336 = pneg %p335
      // Predicated region
      $region53: #{vnet_forward.17} parent=5 // pred_check
        _
      $region54: #{vnet_forward.17} parent=5 // pred_check_branch
        %338 = sbr.rel (%p335) target = $region56
      $region55: #{vnet_forward.17} parent=5 // pred_region
        %s339 = ssub.s32 %s18, 1
        // Predicated region
        $region57: #{vnet_forward.17} parent=55 // pred_check
          %p340 = pneg %p133
        $region58: #{vnet_forward.17} parent=55 // pred_check_branch
          %342 = sbr.rel (%p340) target = $region60
        $region59: #{vnet_forward.17} parent=55 // pred_region
          %344 = dma.done [#allocation3], 16
        $region60: #{vnet_forward.17} parent=55 // pred_fallthru
          _
        // Predicated region
        $region61: #{vnet_forward.17} parent=55 // pred_check
          %p345 = pneg %p154
        $region62: #{vnet_forward.17} parent=55 // pred_check_branch
          %347 = sbr.rel (%p345) target = $region64
        $region63: #{vnet_forward.17} parent=55 // pred_region
          %349 = dma.done [#allocation5], 16
        $region64: #{vnet_forward.17} parent=55 // pred_fallthru
          _
        // Predicated region
        $region65: #{vnet_forward.17} parent=55 // pred_check
          %p350 = pneg %p196
        $region66: #{vnet_forward.17} parent=55 // pred_check_branch
          %352 = sbr.rel (%p350) target = $region68
        $region67: #{vnet_forward.17} parent=55 // pred_region
          %354 = dma.done [#allocation5], 16
        $region68: #{vnet_forward.17} parent=55 // pred_fallthru
          _
        // Predicated region
        $region69: #{vnet_forward.17} parent=55 // pred_check
          %p355 = pneg %p217
        $region70: #{vnet_forward.17} parent=55 // pred_check_branch
          %357 = sbr.rel (%p355) target = $region72
        $region71: #{vnet_forward.17} parent=55 // pred_region
          %359 = dma.done [#allocation8], 16
        $region72: #{vnet_forward.17} parent=55 // pred_fallthru
          _
        %p360 = scmp.lt.s32.totalorder %s23, 1
        %s361 = scalar_select %p360, %s23, 1
        %s362 = smul.addr %s361, 8
        %s363 = scalar_lea.vmem %s0, %s362
        %p364 = pneg %p44
        %p365 = pneg %p41
        %p366 = scmp.lt.s32.totalorder %s23, 1
        %s367 = scalar_select %p366, %s23, 1
        %s368 = smul.addr %s367, 8
        %s369 = scalar_lea.vmem %s1, %s368
        %p370 = pneg %p70
        %p371 = pneg %p67
        %p372 = pneg %p91
        %p373 = pneg %p88
        %p374 = pneg %p112
        %p375 = pneg %p109
        %p376 = pneg %p133
        %p377 = pneg %p130
        %p378 = pneg %p154
        %p379 = pneg %p151
        %p380 = pneg %p175
        %p381 = pneg %p172
        %p382 = pneg %p196
        %p383 = pneg %p193
        %p384 = pneg %p217
        %p385 = pneg %p214
        %p386 = pneg %p243
        %p387 = pneg %p240
        %p388 = scmp.lt.s32.totalorder %s23, 1
        %s389 = scalar_select %p388, %s23, 1
        %s390 = smul.addr %s389, 8
        %s391 = scalar_lea.vmem %s9, %s390
        %p392 = scmp.lt.s32.totalorder %s23, 1
        %s393 = scalar_select %p392, %s23, 1
        %s394 = smul.addr %s393, 8
        %s395 = scalar_lea.vmem %s0, %s394
        %p396 = scmp.lt.s32.totalorder %s23, 1
        %s397 = scalar_select %p396, %s23, 1
        %s398 = smul.addr %s397, 8
        %s399 = scalar_lea.vmem %s1, %s398
        %p400 = scmp.lt.s32.totalorder %s23, 1
        %s401 = scalar_select %p400, %s23, 1
        %s402 = smul.addr %s401, 8
        %s403 = scalar_lea.vmem %s9, %s402
        %v405 = vld [vmem:[%s395] sm:$0xff]
        %v406 = vld [vmem:[%s399] sm:$0xff]
        %v407 = vlaneseq
        %v408 = vshrl.u32 %v407, 7
        %v409 = vlaneseq
        %v410 = vand.u32 %v409, 127
        %v411 = vsub.s32 %v408, 1
        %vm412 = vcmp.eq.s32.totalorder %v410, %v411
        %v413 = vsel %vm412, 1, 0
        %v414 = vcvt.s32.f32 %v413
        %v415 = vadd.s32 %v408, 1
        %vm416 = vcmp.eq.s32.totalorder %v410, %v415
        %v417 = vsel %vm416, 1, 0
        %v418 = vcvt.s32.f32 %v417
        %vm419 = vcmask 64512
        %v421 = vsel %vm419, %v414, 0
        %423 = vmatpush.msra.mxu0 0.0
        %424 = vmatpush.msra.mxu0 0.0
        %425 = vmatpush.msra.mxu0 0.0
        %426 = vmatpush.msra.mxu0 0.0
        %427 = vmatpush.msra.mxu0 0.0
        %428 = vmatpush.msra.mxu0 0.0
        %429 = vmatpush.msra.mxu0 0.0
        %430 = vmatpush.msra.mxu0 0.0
        %431 = vmatpush.msra.mxu0 0.0
        %432 = vmatpush.msra.mxu0 0.0
        %433 = vmatpush.msra.mxu0 0.0
        %434 = vmatpush.msra.mxu0 0.0
        %435 = vmatpush.msra.mxu0 0.0
        %436 = vmatpush.msra.mxu0 0.0
        %437 = vmatpush.msra.mxu0 0.0
        %438 = vmatpush.msra.mxu0 %v405
        %439 = vmatmul.f32.gmra.mxu0 %v421
        %v440 = vpop.f32.mrf.mxu0
        %v441 = vadd.f32 0.0, %v440
        %442 = vdwg.mxu0
        %v444 = vsel %vm419, %v418, 0
        %446 = vmatpush.msra.mxu0 0.0
        %447 = vmatpush.msra.mxu0 0.0
        %448 = vmatpush.msra.mxu0 0.0
        %449 = vmatpush.msra.mxu0 0.0
        %450 = vmatpush.msra.mxu0 0.0
        %451 = vmatpush.msra.mxu0 0.0
        %452 = vmatpush.msra.mxu0 0.0
        %453 = vmatpush.msra.mxu0 0.0
        %454 = vmatpush.msra.mxu0 0.0
        %455 = vmatpush.msra.mxu0 0.0
        %456 = vmatpush.msra.mxu0 0.0
        %457 = vmatpush.msra.mxu0 0.0
        %458 = vmatpush.msra.mxu0 0.0
        %459 = vmatpush.msra.mxu0 0.0
        %460 = vmatpush.msra.mxu0 0.0
        %461 = vmatpush.msra.mxu0 %v405
        %462 = vmatmul.f32.gmra.mxu0 %v444
        %v463 = vpop.f32.mrf.mxu0
        %v464 = vadd.f32 0.0, %v463
        %465 = vdwg.mxu0
        %v466 = vpack.c.bf16 %v405, %v405
        %s467 = scalar_lea.vmem %s2, 16
        %v468 = vld [vmem:[%s467] sm:$0xf]
        %v469 = vld [vmem:[%s467 + $0x4] sm:$0xf]
        %v470 = vld [vmem:[%s467 + $0x8] sm:$0xf]
        %v471 = vld [vmem:[%s467 + $0xc] sm:$0xf]
        %v472 = vpack.c.bf16 %v441, %v441
        %v473 = vld [vmem:[%s2] sm:$0xf]
        %v474 = vld [vmem:[%s2 + $0x4] sm:$0xf]
        %v475 = vld [vmem:[%s2 + $0x8] sm:$0xf]
        %v476 = vld [vmem:[%s2 + $0xc] sm:$0xf]
        %v481 = vunpack.c.l.b16 %v473
        %v482 = vunpack.c.l.b16 %v474
        %v483 = vunpack.c.l.b16 %v475
        %v484 = vunpack.c.l.b16 %v476
        %v485 = vpack.c.b16 %v482, %v481
        %v486 = vpack.c.b16 %v484, %v483
        %vm489 = vcmask 261120
        %v491 = vsel %vm489, %v472, 0
        %493 = vmatpush.bf16.msra.mxu0 0
        %494 = vmatpush.bf16.msra.mxu0 0
        %495 = vmatpush.bf16.msra.mxu0 0
        %496 = vmatpush.bf16.msra.mxu0 0
        %497 = vmatpush.bf16.msra.mxu0 0
        %498 = vmatpush.bf16.msra.mxu0 0
        %499 = vmatpush.bf16.msra.mxu0 %v486
        %500 = vmatpush.bf16.msra.mxu0 %v485
        %501 = vmatmul.bf16.gmra.mxu0 %v491
        %v502 = vpop.f32.mrf.mxu0
        %v503 = vadd.f32 0.0, %v502
        %v504 = vpop.f32.mrf.mxu0
        %505 = vdwg.mxu0
        %v510 = vunpack.c.l.b16 %v468
        %v511 = vunpack.c.l.b16 %v469
        %v512 = vunpack.c.l.b16 %v470
        %v513 = vunpack.c.l.b16 %v471
        %v514 = vpack.c.b16 %v511, %v510
        %v515 = vpack.c.b16 %v513, %v512
        %v519 = vsel %vm489, %v466, 0
        %521 = vmatpush.bf16.msra.mxu0 0
        %522 = vmatpush.bf16.msra.mxu0 0
        %523 = vmatpush.bf16.msra.mxu0 0
        %524 = vmatpush.bf16.msra.mxu0 0
        %525 = vmatpush.bf16.msra.mxu0 0
        %526 = vmatpush.bf16.msra.mxu0 0
        %527 = vmatpush.bf16.msra.mxu0 %v515
        %528 = vmatpush.bf16.msra.mxu0 %v514
        %529 = vmatmul.bf16.gmra.mxu0 %v519
        %v530 = vpop.f32.mrf.mxu0
        %v531 = vadd.f32 %v503, %v530
        %v532 = vpop.f32.mrf.mxu0
        %533 = vdwg.mxu0
        %v534 = vpack.c.bf16 %v464, %v464
        %s535 = scalar_lea.vmem %s2, 32
        %v536 = vld [vmem:[%s535] sm:$0xf]
        %v537 = vld [vmem:[%s535 + $0x4] sm:$0xf]
        %v538 = vld [vmem:[%s535 + $0x8] sm:$0xf]
        %v539 = vld [vmem:[%s535 + $0xc] sm:$0xf]
        %v544 = vunpack.c.l.b16 %v536
        %v545 = vunpack.c.l.b16 %v537
        %v546 = vunpack.c.l.b16 %v538
        %v547 = vunpack.c.l.b16 %v539
        %v548 = vpack.c.b16 %v545, %v544
        %v549 = vpack.c.b16 %v547, %v546
        %v553 = vsel %vm489, %v534, 0
        %555 = vmatpush.bf16.msra.mxu0 0
        %556 = vmatpush.bf16.msra.mxu0 0
        %557 = vmatpush.bf16.msra.mxu0 0
        %558 = vmatpush.bf16.msra.mxu0 0
        %559 = vmatpush.bf16.msra.mxu0 0
        %560 = vmatpush.bf16.msra.mxu0 0
        %561 = vmatpush.bf16.msra.mxu0 %v549
        %562 = vmatpush.bf16.msra.mxu0 %v548
        %563 = vmatmul.bf16.gmra.mxu0 %v553
        %v564 = vpop.f32.mrf.mxu0
        %v565 = vadd.f32 0.0, %v564
        %v566 = vpop.f32.mrf.mxu0
        %567 = vdwg.mxu0
        %v568 = vadd.f32 %v531, %v565
        %569 = vmatpush.msra.mxu0 0.0
        %570 = vmatpush.msra.mxu0 0.0
        %571 = vmatpush.msra.mxu0 0.0
        %572 = vmatpush.msra.mxu0 0.0
        %573 = vmatpush.msra.mxu0 0.0
        %574 = vmatpush.msra.mxu0 0.0
        %575 = vmatpush.msra.mxu0 0.0
        %576 = vmatpush.msra.mxu0 0.0
        %577 = vmatpush.msra.mxu0 0.0
        %578 = vmatpush.msra.mxu0 0.0
        %579 = vmatpush.msra.mxu0 0.0
        %580 = vmatpush.msra.mxu0 0.0
        %581 = vmatpush.msra.mxu0 0.0
        %582 = vmatpush.msra.mxu0 0.0
        %583 = vmatpush.msra.mxu0 0.0
        %584 = vmatpush.msra.mxu0 %v406
        %585 = vmatmul.f32.gmra.mxu0 %v421
        %v586 = vpop.f32.mrf.mxu0
        %v587 = vadd.f32 0.0, %v586
        %588 = vdwg.mxu0
        %589 = vmatpush.msra.mxu0 0.0
        %590 = vmatpush.msra.mxu0 0.0
        %591 = vmatpush.msra.mxu0 0.0
        %592 = vmatpush.msra.mxu0 0.0
        %593 = vmatpush.msra.mxu0 0.0
        %594 = vmatpush.msra.mxu0 0.0
        %595 = vmatpush.msra.mxu0 0.0
        %596 = vmatpush.msra.mxu0 0.0
        %597 = vmatpush.msra.mxu0 0.0
        %598 = vmatpush.msra.mxu0 0.0
        %599 = vmatpush.msra.mxu0 0.0
        %600 = vmatpush.msra.mxu0 0.0
        %601 = vmatpush.msra.mxu0 0.0
        %602 = vmatpush.msra.mxu0 0.0
        %603 = vmatpush.msra.mxu0 0.0
        %604 = vmatpush.msra.mxu0 %v406
        %605 = vmatmul.f32.gmra.mxu0 %v444
        %v606 = vpop.f32.mrf.mxu0
        %v607 = vadd.f32 0.0, %v606
        %608 = vdwg.mxu0
        %v609 = vpack.c.bf16 %v406, %v406
        %s610 = scalar_lea.vmem %s3, 16
        %v611 = vld [vmem:[%s610] sm:$0xf]
        %v612 = vld [vmem:[%s610 + $0x4] sm:$0xf]
        %v613 = vld [vmem:[%s610 + $0x8] sm:$0xf]
        %v614 = vld [vmem:[%s610 + $0xc] sm:$0xf]
        %v615 = vpack.c.bf16 %v587, %v587
        %v616 = vld [vmem:[%s3] sm:$0xf]
        %v617 = vld [vmem:[%s3 + $0x4] sm:$0xf]
        %v618 = vld [vmem:[%s3 + $0x8] sm:$0xf]
        %v619 = vld [vmem:[%s3 + $0xc] sm:$0xf]
        %v624 = vunpack.c.l.b16 %v616
        %v625 = vunpack.c.l.b16 %v617
        %v626 = vunpack.c.l.b16 %v618
        %v627 = vunpack.c.l.b16 %v619
        %v628 = vpack.c.b16 %v625, %v624
        %v629 = vpack.c.b16 %v627, %v626
        %v633 = vsel %vm489, %v615, 0
        %635 = vmatpush.bf16.msra.mxu0 0
        %636 = vmatpush.bf16.msra.mxu0 0
        %637 = vmatpush.bf16.msra.mxu0 0
        %638 = vmatpush.bf16.msra.mxu0 0
        %639 = vmatpush.bf16.msra.mxu0 0
        %640 = vmatpush.bf16.msra.mxu0 0
        %641 = vmatpush.bf16.msra.mxu0 %v629
        %642 = vmatpush.bf16.msra.mxu0 %v628
        %643 = vmatmul.bf16.gmra.mxu0 %v633
        %v644 = vpop.f32.mrf.mxu0
        %v645 = vadd.f32 0.0, %v644
        %v646 = vpop.f32.mrf.mxu0
        %647 = vdwg.mxu0
        %v652 = vunpack.c.l.b16 %v611
        %v653 = vunpack.c.l.b16 %v612
        %v654 = vunpack.c.l.b16 %v613
        %v655 = vunpack.c.l.b16 %v614
        %v656 = vpack.c.b16 %v653, %v652
        %v657 = vpack.c.b16 %v655, %v654
        %v661 = vsel %vm489, %v609, 0
        %663 = vmatpush.bf16.msra.mxu0 0
        %664 = vmatpush.bf16.msra.mxu0 0
        %665 = vmatpush.bf16.msra.mxu0 0
        %666 = vmatpush.bf16.msra.mxu0 0
        %667 = vmatpush.bf16.msra.mxu0 0
        %668 = vmatpush.bf16.msra.mxu0 0
        %669 = vmatpush.bf16.msra.mxu0 %v657
        %670 = vmatpush.bf16.msra.mxu0 %v656
        %671 = vmatmul.bf16.gmra.mxu0 %v661
        %v672 = vpop.f32.mrf.mxu0
        %v673 = vadd.f32 %v645, %v672
        %v674 = vpop.f32.mrf.mxu0
        %675 = vdwg.mxu0
        %v676 = vpack.c.bf16 %v607, %v607
        %s677 = scalar_lea.vmem %s3, 32
        %v678 = vld [vmem:[%s677] sm:$0xf]
        %v679 = vld [vmem:[%s677 + $0x4] sm:$0xf]
        %v680 = vld [vmem:[%s677 + $0x8] sm:$0xf]
        %v681 = vld [vmem:[%s677 + $0xc] sm:$0xf]
        %v686 = vunpack.c.l.b16 %v678
        %v687 = vunpack.c.l.b16 %v679
        %v688 = vunpack.c.l.b16 %v680
        %v689 = vunpack.c.l.b16 %v681
        %v690 = vpack.c.b16 %v687, %v686
        %v691 = vpack.c.b16 %v689, %v688
        %v695 = vsel %vm489, %v676, 0
        %697 = vmatpush.bf16.msra.mxu0 0
        %698 = vmatpush.bf16.msra.mxu0 0
        %699 = vmatpush.bf16.msra.mxu0 0
        %700 = vmatpush.bf16.msra.mxu0 0
        %701 = vmatpush.bf16.msra.mxu0 0
        %702 = vmatpush.bf16.msra.mxu0 0
        %703 = vmatpush.bf16.msra.mxu0 %v691
        %704 = vmatpush.bf16.msra.mxu0 %v690
        %705 = vmatmul.bf16.gmra.mxu0 %v695
        %v706 = vpop.f32.mrf.mxu0
        %v707 = vadd.f32 0.0, %v706
        %v708 = vpop.f32.mrf.mxu0
        %709 = vdwg.mxu0
        %v710 = vadd.f32 %v673, %v707
        %v711 = vadd.f32 %v568, %v710
        %v712 = vld [vmem:[#allocation2] sm:$0x1]
        %v714 = vperm.slane %v712, 0
        %v716 = vmul.f32 %v711, %v714
        %v717 = vld [vmem:[#allocation4] sm:$0x1]
        %v719 = vperm.slane %v717, 0
        %v721 = vadd.f32 %v716, %v719
        %v722 = vmax.f32 %v721, 0.0
        %723 = vmatpush.msra.mxu0 0.0
        %724 = vmatpush.msra.mxu0 0.0
        %725 = vmatpush.msra.mxu0 0.0
        %726 = vmatpush.msra.mxu0 0.0
        %727 = vmatpush.msra.mxu0 0.0
        %728 = vmatpush.msra.mxu0 0.0
        %729 = vmatpush.msra.mxu0 0.0
        %730 = vmatpush.msra.mxu0 0.0
        %731 = vmatpush.msra.mxu0 0.0
        %732 = vmatpush.msra.mxu0 0.0
        %733 = vmatpush.msra.mxu0 0.0
        %734 = vmatpush.msra.mxu0 0.0
        %735 = vmatpush.msra.mxu0 0.0
        %736 = vmatpush.msra.mxu0 0.0
        %737 = vmatpush.msra.mxu0 0.0
        %738 = vmatpush.msra.mxu0 %v722
        %739 = vmatmul.f32.gmra.mxu0 %v421
        %v740 = vpop.f32.mrf.mxu0
        %v741 = vadd.f32 0.0, %v740
        %742 = vdwg.mxu0
        %743 = vmatpush.msra.mxu0 0.0
        %744 = vmatpush.msra.mxu0 0.0
        %745 = vmatpush.msra.mxu0 0.0
        %746 = vmatpush.msra.mxu0 0.0
        %747 = vmatpush.msra.mxu0 0.0
        %748 = vmatpush.msra.mxu0 0.0
        %749 = vmatpush.msra.mxu0 0.0
        %750 = vmatpush.msra.mxu0 0.0
        %751 = vmatpush.msra.mxu0 0.0
        %752 = vmatpush.msra.mxu0 0.0
        %753 = vmatpush.msra.mxu0 0.0
        %754 = vmatpush.msra.mxu0 0.0
        %755 = vmatpush.msra.mxu0 0.0
        %756 = vmatpush.msra.mxu0 0.0
        %757 = vmatpush.msra.mxu0 0.0
        %758 = vmatpush.msra.mxu0 %v722
        %759 = vmatmul.f32.gmra.mxu0 %v444
        %v760 = vpop.f32.mrf.mxu0
        %v761 = vadd.f32 0.0, %v760
        %762 = vdwg.mxu0
        %v763 = vpack.c.bf16 %v722, %v722
        %s764 = scalar_lea.vmem %s6, 16
        %v765 = vld [vmem:[%s764] sm:$0xf]
        %v766 = vld [vmem:[%s764 + $0x4] sm:$0xf]
        %v767 = vld [vmem:[%s764 + $0x8] sm:$0xf]
        %v768 = vld [vmem:[%s764 + $0xc] sm:$0xf]
        %v769 = vpack.c.bf16 %v741, %v741
        %v770 = vld [vmem:[%s6] sm:$0xf]
        %v771 = vld [vmem:[%s6 + $0x4] sm:$0xf]
        %v772 = vld [vmem:[%s6 + $0x8] sm:$0xf]
        %v773 = vld [vmem:[%s6 + $0xc] sm:$0xf]
        %v778 = vunpack.c.l.b16 %v770
        %v779 = vunpack.c.l.b16 %v771
        %v780 = vunpack.c.l.b16 %v772
        %v781 = vunpack.c.l.b16 %v773
        %v782 = vpack.c.b16 %v779, %v778
        %v783 = vpack.c.b16 %v781, %v780
        %v787 = vsel %vm489, %v769, 0
        %789 = vmatpush.bf16.msra.mxu0 0
        %790 = vmatpush.bf16.msra.mxu0 0
        %791 = vmatpush.bf16.msra.mxu0 0
        %792 = vmatpush.bf16.msra.mxu0 0
        %793 = vmatpush.bf16.msra.mxu0 0
        %794 = vmatpush.bf16.msra.mxu0 0
        %795 = vmatpush.bf16.msra.mxu0 %v783
        %796 = vmatpush.bf16.msra.mxu0 %v782
        %797 = vmatmul.bf16.gmra.mxu0 %v787
        %v798 = vpop.f32.mrf.mxu0
        %v799 = vadd.f32 0.0, %v798
        %v800 = vpop.f32.mrf.mxu0
        %801 = vdwg.mxu0
        %v806 = vunpack.c.l.b16 %v765
        %v807 = vunpack.c.l.b16 %v766
        %v808 = vunpack.c.l.b16 %v767
        %v809 = vunpack.c.l.b16 %v768
        %v810 = vpack.c.b16 %v807, %v806
        %v811 = vpack.c.b16 %v809, %v808
        %v815 = vsel %vm489, %v763, 0
        %817 = vmatpush.bf16.msra.mxu0 0
        %818 = vmatpush.bf16.msra.mxu0 0
        %819 = vmatpush.bf16.msra.mxu0 0
        %820 = vmatpush.bf16.msra.mxu0 0
        %821 = vmatpush.bf16.msra.mxu0 0
        %822 = vmatpush.bf16.msra.mxu0 0
        %823 = vmatpush.bf16.msra.mxu0 %v811
        %824 = vmatpush.bf16.msra.mxu0 %v810
        %825 = vmatmul.bf16.gmra.mxu0 %v815
        %v826 = vpop.f32.mrf.mxu0
        %v827 = vadd.f32 %v799, %v826
        %v828 = vpop.f32.mrf.mxu0
        %829 = vdwg.mxu0
        %v830 = vpack.c.bf16 %v761, %v761
        %s831 = scalar_lea.vmem %s6, 32
        %v832 = vld [vmem:[%s831] sm:$0xf]
        %v833 = vld [vmem:[%s831 + $0x4] sm:$0xf]
        %v834 = vld [vmem:[%s831 + $0x8] sm:$0xf]
        %v835 = vld [vmem:[%s831 + $0xc] sm:$0xf]
        %v840 = vunpack.c.l.b16 %v832
        %v841 = vunpack.c.l.b16 %v833
        %v842 = vunpack.c.l.b16 %v834
        %v843 = vunpack.c.l.b16 %v835
        %v844 = vpack.c.b16 %v841, %v840
        %v845 = vpack.c.b16 %v843, %v842
        %v849 = vsel %vm489, %v830, 0
        %851 = vmatpush.bf16.msra.mxu0 0
        %852 = vmatpush.bf16.msra.mxu0 0
        %853 = vmatpush.bf16.msra.mxu0 0
        %854 = vmatpush.bf16.msra.mxu0 0
        %855 = vmatpush.bf16.msra.mxu0 0
        %856 = vmatpush.bf16.msra.mxu0 0
        %857 = vmatpush.bf16.msra.mxu0 %v845
        %858 = vmatpush.bf16.msra.mxu0 %v844
        %859 = vmatmul.bf16.gmra.mxu0 %v849
        %v860 = vpop.f32.mrf.mxu0
        %v861 = vadd.f32 0.0, %v860
        %v862 = vpop.f32.mrf.mxu0
        %863 = vdwg.mxu0
        %v864 = vadd.f32 %v827, %v861
        %v865 = vld [vmem:[#allocation6] sm:$0x1]
        %v867 = vperm.slane %v865, 0
        %v869 = vmul.f32 %v864, %v867
        %v870 = vld [vmem:[#allocation7] sm:$0x1]
        %v872 = vperm.slane %v870, 0
        %v874 = vadd.f32 %v869, %v872
        %v875 = vmax.f32 %v874, 0.0
        %876 = vst.msk [vmem:[%s403] sm:$0xff] %vm489, %v875
        %p877 = scmp.lt.s32.totalorder %s23, 1
        %s878 = scalar_select %p877, %s23, 1
        %s879 = smul.addr %s878, 8
        %s880 = scalar_lea.vmem %s9, %s879
        // Predicated region
        $region73: #{vnet_forward.17} parent=55 // pred_check
          %p881 = pneg %p240
        $region74: #{vnet_forward.17} parent=55 // pred_check_branch
          %883 = sbr.rel (%p881) target = $region76
        $region75: #{vnet_forward.17} parent=55 // pred_region
          _
        $region76: #{vnet_forward.17} parent=55 // pred_fallthru
          _
      $region56: #{vnet_forward.17} parent=5 // pred_fallthru
        _
      %p884 = scmp.le.s32.totalorder 2, %s18
      // Predicated region
      $region77: #{vnet_forward.17} parent=5 // pred_check
        %p885 = pneg %p884
      $region78: #{vnet_forward.17} parent=5 // pred_check_branch
        %887 = sbr.rel (%p885) target = $region80
      $region79: #{vnet_forward.17} parent=5 // pred_region
        %s888 = ssub.s32 %s18, 2
        // Predicated region
        $region81: #{vnet_forward.17} parent=79 // pred_check
          %p889 = pneg %p246
        $region82: #{vnet_forward.17} parent=79 // pred_check_branch
          %891 = sbr.rel (%p889) target = $region84
        $region83: #{vnet_forward.17} parent=79 // pred_region
          %p892 = scmp.lt.s32.totalorder %s24, 1
          %s893 = scalar_select %p892, %s24, 1
          %s894 = smul.addr %s893, 8
          %s895 = scalar_lea.vmem %s9, %s894
        $region84: #{vnet_forward.17} parent=79 // pred_fallthru
          _
      $region80: #{vnet_forward.17} parent=5 // pred_fallthru
        _
    $region6: #{vnet_forward.17} parent=1 // loop_footer
      %s22 = sadd.s32 1, %s18
    $region7: #{vnet_forward.17} parent=1 // loop_footer_branch
      %17 = sbr.rel target = $region3
    $region8: #{vnet_forward.17} parent=1 // loop_exit
      _
    %896 = vsyncpa [#allocation3], 1
    %s897 = scalar_lea.sflag [#allocation3], 1
    %898 = vsyncpa %s897, 1
    %899 = vsyncpa [#allocation5], 1
    %900 = vsyncpa [#allocation8], 1

// kernel: vnet_forward.18
$region0: #{vnet_forward.18}
  #allocation0 [shape = 'u32[]', space=smem, size = 0x4, offset = 0x4, fixed_abs, tag = 'smem constant byte address 0x4 - core index']
  #allocation1 [shape = 'u32[72,128]{1,0:T(1,128)}', space=vmem, size = 0x9000, scoped, tag = 'internal scratch']
  %s0 = inlined_call_operand.vmem [shape: f32[2,8,32], index: 0, kind: input, shape index: {}]
  %s1 = inlined_call_operand.vmem [shape: bf16[2,32,16], index: 1, kind: input, shape index: {}]
  %s2 = inlined_call_operand.vmem [shape: f32[1,16], index: 2, kind: input, shape index: {}]
  %s3 = inlined_call_operand.vmem [shape: f32[2,8,2,16], index: 3, kind: output, shape index: {}]
  %s4 = sld [smem:[#allocation0]]
  $region45: #{vnet_forward.18} parent=0
    _
  %s6 = ssub.s32 1, %s4
  %s7 = scalar_select 0, %s6, %s4
  loop: start=0, step=1, limit=4
  $region2: #{vnet_forward.18} parent=0 // loop_pre_header
    _
  $region3: #{vnet_forward.18} parent=0 // loop_header
    %s9 = sphi 0, %s13
    %p10 = scmp.ge.s32.totalorder %s9, 4
    %s19 = sphi 0, %s21
    %s22 = sphi 0, %s19
    %s23 = sphi 0, %s22
    %s39 = sphi 0, %s23
    %s43 = sphi 0, %s43
    %s45 = sphi 0, %s43
    %s46 = sphi 0, %s45
    %s60 = sphi 0, %s46
    %s64 = sphi 0, %s64
    %s66 = sphi 0, %s64
    %s67 = sphi 0, %s66
    %s81 = sphi 0, %s67
    %s87 = sphi 0, %s89
    %s90 = sphi 0, %s87
    %s91 = sphi 0, %s90
    %s107 = sphi 0, %s91
  $region4: #{vnet_forward.18} parent=0 // loop_header_branch
    %12 = sbr.rel (%p10) target = $region8
  $region5: #{vnet_forward.18} parent=0 // loop_body
    %s14 = ssub.s32 %s9, 1
    %s15 = ssub.s32 %s9, 2
    %s16 = sadd.s32 %s9, 1
    %s17 = ssub.s32 %s9, %s16
    %p18 = scmp.eq.s32.totalorder %s17, 0
    %s20 = sadd.s32 %s19, 1
    %s21 = scalar_select %p18, %s19, %s20
    %p24 = pneg %p18
    %p25 = scmp.eq.s32.totalorder %s9, 1
    %p26 = por %p24, %p25
    %p27 = scmp.ne.s32.totalorder %s19, %s22
    %p28 = scmp.eq.s32.totalorder %s9, 0
    %p29 = por %p27, %p28
    %p30 = scmp.ne.s32.totalorder %s19, %s22
    %p31 = scmp.eq.s32.totalorder %s14, 1
    %p32 = por %p30, %p31
    %p33 = scmp.ne.s32.totalorder %s22, %s23
    %p34 = scmp.eq.s32.totalorder %s14, 0
    %p35 = por %p33, %p34
    %p36 = scmp.ne.s32.totalorder %s22, %s23
    %p37 = scmp.eq.s32.totalorder %s15, 1
    %p38 = por %p36, %p37
    %p40 = scmp.ne.s32.totalorder %s23, %s39
    %p41 = scmp.eq.s32.totalorder %s15, 0
    %p42 = por %p40, %p41
    %s44 = sadd.s32 %s43, 1
    %p47 = scmp.eq.s32.totalorder %s9, 1
    %p48 = scmp.ne.s32.totalorder %s43, %s45
    %p49 = scmp.eq.s32.totalorder %s9, 0
    %p50 = por %p48, %p49
    %p51 = scmp.ne.s32.totalorder %s43, %s45
    %p52 = scmp.eq.s32.totalorder %s14, 1
    %p53 = por %p51, %p52
    %p54 = scmp.ne.s32.totalorder %s45, %s46
    %p55 = scmp.eq.s32.totalorder %s14, 0
    %p56 = por %p54, %p55
    %p57 = scmp.ne.s32.totalorder %s45, %s46
    %p58 = scmp.eq.s32.totalorder %s15, 1
    %p59 = por %p57, %p58
    %p61 = scmp.ne.s32.totalorder %s46, %s60
    %p62 = scmp.eq.s32.totalorder %s15, 0
    %p63 = por %p61, %p62
    %s65 = sadd.s32 %s64, 1
    %p68 = scmp.eq.s32.totalorder %s9, 1
    %p69 = scmp.ne.s32.totalorder %s64, %s66
    %p70 = scmp.eq.s32.totalorder %s9, 0
    %p71 = por %p69, %p70
    %p72 = scmp.ne.s32.totalorder %s64, %s66
    %p73 = scmp.eq.s32.totalorder %s14, 1
    %p74 = por %p72, %p73
    %p75 = scmp.ne.s32.totalorder %s66, %s67
    %p76 = scmp.eq.s32.totalorder %s14, 0
    %p77 = por %p75, %p76
    %p78 = scmp.ne.s32.totalorder %s66, %s67
    %p79 = scmp.eq.s32.totalorder %s15, 1
    %p80 = por %p78, %p79
    %p82 = scmp.ne.s32.totalorder %s67, %s81
    %p83 = scmp.eq.s32.totalorder %s15, 0
    %p84 = por %p82, %p83
    %s85 = ssub.s32 %s9, %s16
    %p86 = scmp.eq.s32.totalorder %s85, 0
    %s88 = sadd.s32 %s87, 1
    %s89 = scalar_select %p86, %s87, %s88
    %p92 = pneg %p86
    %p93 = scmp.eq.s32.totalorder %s9, 1
    %p94 = por %p92, %p93
    %p95 = scmp.ne.s32.totalorder %s87, %s90
    %p96 = scmp.eq.s32.totalorder %s9, 0
    %p97 = por %p95, %p96
    %p98 = scmp.ne.s32.totalorder %s87, %s90
    %p99 = scmp.eq.s32.totalorder %s14, 1
    %p100 = por %p98, %p99
    %p101 = scmp.ne.s32.totalorder %s90, %s91
    %p102 = scmp.eq.s32.totalorder %s14, 0
    %p103 = por %p101, %p102
    %p104 = scmp.ne.s32.totalorder %s90, %s91
    %p105 = scmp.eq.s32.totalorder %s15, 1
    %p106 = por %p104, %p105
    %p108 = scmp.ne.s32.totalorder %s91, %s107
    %p109 = scmp.eq.s32.totalorder %s15, 0
    %p110 = por %p108, %p109
    %p111 = scmp.le.s32.totalorder 1, %s9
    %p112 = scmp.lt.s32.totalorder %s9, 3
    %p113 = pnand %p111, %p112
    %p114 = pneg %p113
    // Predicated region
    $region9: #{vnet_forward.18} parent=5 // pred_check
      _
    $region10: #{vnet_forward.18} parent=5 // pred_check_branch
      %116 = sbr.rel (%p113) target = $region12
    $region11: #{vnet_forward.18} parent=5 // pred_region
      %s117 = ssub.s32 %s9, 1
      // Predicated region
      $region13: #{vnet_forward.18} parent=11 // pred_check
        %p118 = pneg %p56
      $region14: #{vnet_forward.18} parent=11 // pred_check_branch
        %120 = sbr.rel (%p118) target = $region16
      $region15: #{vnet_forward.18} parent=11 // pred_region
        _
      $region16: #{vnet_forward.18} parent=11 // pred_fallthru
        _
      // Predicated region
      $region17: #{vnet_forward.18} parent=11 // pred_check
        %p121 = pneg %p77
      $region18: #{vnet_forward.18} parent=11 // pred_check_branch
        %123 = sbr.rel (%p121) target = $region20
      $region19: #{vnet_forward.18} parent=11 // pred_region
        _
      $region20: #{vnet_forward.18} parent=11 // pred_fallthru
        _
    $region12: #{vnet_forward.18} parent=5 // pred_fallthru
      _
    %p124 = scmp.lt.s32.totalorder %s9, 2
    // Predicated region
    $region21: #{vnet_forward.18} parent=5 // pred_check
      %p125 = pneg %p124
    $region22: #{vnet_forward.18} parent=5 // pred_check_branch
      %127 = sbr.rel (%p125) target = $region24
    $region23: #{vnet_forward.18} parent=5 // pred_region
      // Predicated region
      $region25: #{vnet_forward.18} parent=23 // pred_check
        %p128 = pneg %p29
      $region26: #{vnet_forward.18} parent=23 // pred_check_branch
        %130 = sbr.rel (%p128) target = $region28
      $region27: #{vnet_forward.18} parent=23 // pred_region
        %p131 = scmp.lt.s32.totalorder %s9, 1
        %s132 = scalar_select %p131, %s9, 1
        %s133 = smul.addr %s132, 8
        %s134 = scalar_lea.vmem %s0, %s133
      $region28: #{vnet_forward.18} parent=23 // pred_fallthru
        _
    $region24: #{vnet_forward.18} parent=5 // pred_fallthru
      _
    %p135 = scmp.le.s32.totalorder 1, %s9
    %p136 = scmp.lt.s32.totalorder %s9, 3
    %p137 = pnand %p135, %p136
    %p138 = pneg %p137
    // Predicated region
    $region29: #{vnet_forward.18} parent=5 // pred_check
      _
    $region30: #{vnet_forward.18} parent=5 // pred_check_branch
      %140 = sbr.rel (%p137) target = $region32
    $region31: #{vnet_forward.18} parent=5 // pred_region
      %s141 = ssub.s32 %s9, 1
      %p142 = scmp.lt.s32.totalorder %s14, 1
      %s143 = scalar_select %p142, %s14, 1
      %s144 = smul.addr %s143, 8
      %s145 = scalar_lea.vmem %s0, %s144
      %p146 = pneg %p35
      %p147 = pneg %p32
      %p148 = pneg %p56
      %p149 = pneg %p53
      %p150 = pneg %p77
      %p151 = pneg %p74
      %p152 = pneg %p103
      %p153 = pneg %p100
      %p154 = scmp.lt.s32.totalorder %s14, 1
      %s155 = scalar_select %p154, %s14, 1
      %s156 = smul.addr %s155, 8
      %s157 = smul.addr %s156, 2
      %s158 = scalar_lea.vmem %s3, %s157
      %p159 = scmp.lt.s32.totalorder %s14, 1
      %s160 = scalar_select %p159, %s14, 1
      %s161 = smul.addr %s160, 8
      %s162 = scalar_lea.vmem %s0, %s161
      %p163 = scmp.lt.s32.totalorder %s14, 1
      %s164 = scalar_select %p163, %s14, 1
      %s165 = smul.addr %s164, 8
      %s166 = smul.addr %s165, 2
      %s167 = scalar_lea.vmem %s3, %s166
      %v169 = vld [vmem:[%s162] sm:$0xff]
      %v170 = vpack.c.bf16 %v169, %v169
      %v171 = vld [vmem:[%s2] sm:$0x1]
      %v172 = vld [vmem:[%s1] sm:$0xf]
      %v173 = vld [vmem:[%s1 + $0x4] sm:$0xf]
      %v174 = vld [vmem:[%s1 + $0x8] sm:$0xf]
      %v175 = vld [vmem:[%s1 + $0xc] sm:$0xf]
      %v177 = vperm.slane %v171, 0
      %v183 = vunpack.c.l.b16 %v172
      %v184 = vunpack.c.l.b16 %v173
      %v185 = vunpack.c.l.b16 %v174
      %v186 = vunpack.c.l.b16 %v175
      %v187 = vpack.c.b16 %v184, %v183
      %v188 = vpack.c.b16 %v186, %v185
      %vm191 = vcmask 261120
      %v193 = vsel %vm191, %v170, 0
      %195 = vmatpush.bf16.msra.mxu0 0
      %196 = vmatpush.bf16.msra.mxu0 0
      %197 = vmatpush.bf16.msra.mxu0 0
      %198 = vmatpush.bf16.msra.mxu0 0
      %199 = vmatpush.bf16.msra.mxu0 0
      %200 = vmatpush.bf16.msra.mxu0 0
      %201 = vmatpush.bf16.msra.mxu0 %v188
      %202 = vmatpush.bf16.msra.mxu0 %v187
      %203 = vmatmul.bf16.gmra.mxu0 %v193
      %v204 = vpop.f32.mrf.mxu0
      %v205 = vadd.f32 %v177, %v204
      %v206 = vpop.f32.mrf.mxu0
      %207 = vdwg.mxu0
      %s208 = scalar_lea.vmem %s1, 16
      %v209 = vld [vmem:[%s208] sm:$0xf]
      %v210 = vld [vmem:[%s208 + $0x4] sm:$0xf]
      %v211 = vld [vmem:[%s208 + $0x8] sm:$0xf]
      %v212 = vld [vmem:[%s208 + $0xc] sm:$0xf]
      %v217 = vunpack.c.l.b16 %v209
      %v218 = vunpack.c.l.b16 %v210
      %v219 = vunpack.c.l.b16 %v211
      %v220 = vunpack.c.l.b16 %v212
      %v221 = vpack.c.b16 %v218, %v217
      %v222 = vpack.c.b16 %v220, %v219
      %225 = vmatpush.bf16.msra.mxu0 0
      %226 = vmatpush.bf16.msra.mxu0 0
      %227 = vmatpush.bf16.msra.mxu0 0
      %228 = vmatpush.bf16.msra.mxu0 0
      %229 = vmatpush.bf16.msra.mxu0 0
      %230 = vmatpush.bf16.msra.mxu0 0
      %231 = vmatpush.bf16.msra.mxu0 %v222
      %232 = vmatpush.bf16.msra.mxu0 %v221
      %233 = vmatmul.bf16.gmra.mxu0 %v193
      %v234 = vpop.f32.mrf.mxu0
      %v235 = vadd.f32 %v177, %v234
      %v236 = vpop.f32.mrf.mxu0
      %237 = vdwg.mxu0
      %v239 = vrot.slane %v205, 1
      %v240 = vrot.slane %v205, 2
      %v241 = vrot.slane %v205, 3
      %v242 = vrot.slane %v205, 4
      %v243 = vrot.slane %v205, 5
      %v244 = vrot.slane %v205, 6
      %v245 = vrot.slane %v205, 7
      %vm253 = vcmask 122880
      %254 = vst.msk [vmem:[%s167] sm:$0x1] %vm253, %v205
      %255 = vst.msk [vmem:[%s167 + $0x2] sm:$0x1] %vm253, %v239
      %256 = vst.msk [vmem:[%s167 + $0x4] sm:$0x1] %vm253, %v240
      %257 = vst.msk [vmem:[%s167 + $0x6] sm:$0x1] %vm253, %v241
      %258 = vst.msk [vmem:[%s167 + $0x8] sm:$0x1] %vm253, %v242
      %259 = vst.msk [vmem:[%s167 + $0xa] sm:$0x1] %vm253, %v243
      %260 = vst.msk [vmem:[%s167 + $0xc] sm:$0x1] %vm253, %v244
      %261 = vst.msk [vmem:[%s167 + $0xe] sm:$0x1] %vm253, %v245
      %v263 = vrot.slane %v235, 1
      %v264 = vrot.slane %v235, 2
      %v265 = vrot.slane %v235, 3
      %v266 = vrot.slane %v235, 4
      %v267 = vrot.slane %v235, 5
      %v268 = vrot.slane %v235, 6
      %v269 = vrot.slane %v235, 7
      %277 = vst.msk [vmem:[%s167 + $0x1] sm:$0x1] %vm253, %v235
      %278 = vst.msk [vmem:[%s167 + $0x3] sm:$0x1] %vm253, %v263
      %279 = vst.msk [vmem:[%s167 + $0x5] sm:$0x1] %vm253, %v264
      %280 = vst.msk [vmem:[%s167 + $0x7] sm:$0x1] %vm253, %v265
      %281 = vst.msk [vmem:[%s167 + $0x9] sm:$0x1] %vm253, %v266
      %282 = vst.msk [vmem:[%s167 + $0xb] sm:$0x1] %vm253, %v267
      %283 = vst.msk [vmem:[%s167 + $0xd] sm:$0x1] %vm253, %v268
      %284 = vst.msk [vmem:[%s167 + $0xf] sm:$0x1] %vm253, %v269
      %p285 = scmp.lt.s32.totalorder %s14, 1
      %s286 = scalar_select %p285, %s14, 1
      %s287 = smul.addr %s286, 8
      %s288 = smul.addr %s287, 2
      %s289 = scalar_lea.vmem %s3, %s288
      // Predicated region
      $region33: #{vnet_forward.18} parent=31 // pred_check
        %p290 = pneg %p100
      $region34: #{vnet_forward.18} parent=31 // pred_check_branch
        %292 = sbr.rel (%p290) target = $region36
      $region35: #{vnet_forward.18} parent=31 // pred_region
        _
      $region36: #{vnet_forward.18} parent=31 // pred_fallthru
        _
    $region32: #{vnet_forward.18} parent=5 // pred_fallthru
      _
    %p293 = scmp.le.s32.totalorder 2, %s9
    // Predicated region
    $region37: #{vnet_forward.18} parent=5 // pred_check
      %p294 = pneg %p293
    $region38: #{vnet_forward.18} parent=5 // pred_check_branch
      %296 = sbr.rel (%p294) target = $region40
    $region39: #{vnet_forward.18} parent=5 // pred_region
      %s297 = ssub.s32 %s9, 2
      // Predicated region
      $region41: #{vnet_forward.18} parent=39 // pred_check
        %p298 = pneg %p106
      $region42: #{vnet_forward.18} parent=39 // pred_check_branch
        %300 = sbr.rel (%p298) target = $region44
      $region43: #{vnet_forward.18} parent=39 // pred_region
        %p301 = scmp.lt.s32.totalorder %s15, 1
        %s302 = scalar_select %p301, %s15, 1
        %s303 = smul.addr %s302, 8
        %s304 = smul.addr %s303, 2
        %s305 = scalar_lea.vmem %s3, %s304
      $region44: #{vnet_forward.18} parent=39 // pred_fallthru
        _
    $region40: #{vnet_forward.18} parent=5 // pred_fallthru
      _
  $region6: #{vnet_forward.18} parent=0 // loop_footer
    %s13 = sadd.s32 1, %s9
  $region7: #{vnet_forward.18} parent=0 // loop_footer_branch
    %8 = sbr.rel target = $region3
  $region8: #{vnet_forward.18} parent=0 // loop_exit
    _

// kernel: vnet_forward.19
$region0: #{vnet_forward.19}
  #allocation0 [shape = 'u32[]', space=smem, size = 0x4, offset = 0x4, fixed_abs, tag = 'smem constant byte address 0x4 - core index']
  #allocation1 [shape = 'u32[72,128]{1,0:T(1,128)}', space=vmem, size = 0x9000, scoped, tag = 'internal scratch']
  #allocation2 [shape = 'f32[1,1]{1,0:T(1,128)S(1)}', space=vmem, size = 0x200, scoped, tag = 'scoped memory for vnet_forward.19']
  %s0 = inlined_call_operand.vmem [shape: f32[2,16,16], index: 0, kind: input, shape index: {}]
  %s1 = inlined_call_operand.vmem [shape: f32[2,16,16], index: 1, kind: input, shape index: {}]
  %s2 = inlined_call_operand.vmem [shape: bf16[3,16,16], index: 2, kind: input, shape index: {}]
  %s3 = inlined_call_operand.vmem [shape: bf16[3,16,16], index: 3, kind: input, shape index: {}]
  %s4 = inlined_call_operand.vmem [shape: f32[1,16], index: 4, kind: input, shape index: {}]
  %s5 = inlined_call_operand.vmem [shape: f32[1,16], index: 5, kind: input, shape index: {}]
  %s6 = inlined_call_operand.hbm [shape: bf16[3,16,16], index: 6, kind: input, shape index: {}]
  %s7 = inlined_call_operand.vmem [shape: f32[1,16], index: 7, kind: input, shape index: {}]
  %s8 = inlined_call_operand.vmem [shape: f32[1,16], index: 8, kind: input, shape index: {}]
  %s9 = inlined_call_operand.vmem [shape: f32[16,1], index: 9, kind: input, shape index: {}]
  %s10 = inlined_call_operand.<no memory space> [shape: f32[1,1], index: 10, kind: input, shape index: {}]
  %s11 = inlined_call_operand.vmem [shape: f32[2,16,1], index: 11, kind: output, shape index: {}]
  %s12 = sld [smem:[#allocation0]]
  $region81: #{vnet_forward.19} parent=0
    _
  %s14 = ssub.s32 1, %s12
  %s15 = scalar_select 0, %s14, %s12
  %v16 = vstv %s10
  %17 = vst [vmem:[#allocation2] sm:$0x1] %v16
  $region1: #{vnet_forward.19} parent=0
    #allocation3 [shape = 'u8[12288]{0}', space=vmem, size = 0x3000, scoped, tag = 'input window, operand 6, single buffered']
    #allocation4 [shape = 's32[2]{0}', space=sflag, size = 0x8, scoped, tag = 'scoped memory for vnet_forward.19']
    %18 = vsyncpa [#allocation4], 0
    loop: start=0, step=1, limit=4
    $region2: #{vnet_forward.19} parent=1 // loop_pre_header
      _
    $region3: #{vnet_forward.19} parent=1 // loop_header
      %s20 = sphi 0, %s24
      %p21 = scmp.ge.s32.totalorder %s20, 4
      %s30 = sphi 0, %s32
      %s33 = sphi 0, %s30
      %s34 = sphi 0, %s33
      %s50 = sphi 0, %s34
      %s56 = sphi 0, %s58
      %s59 = sphi 0, %s56
      %s60 = sphi 0, %s59
      %s76 = sphi 0, %s60
      %s80 = sphi 0, %s80
      %s82 = sphi 0, %s80
      %s83 = sphi 0, %s82
      %s97 = sphi 0, %s83
      %s101 = sphi 0, %s101
      %s103 = sphi 0, %s101
      %s104 = sphi 0, %s103
      %s118 = sphi 0, %s104
      %s122 = sphi 0, %s122
      %s124 = sphi 0, %s122
      %s125 = sphi 0, %s124
      %s139 = sphi 0, %s125
      %s143 = sphi 0, %s143
      %s145 = sphi 0, %s143
      %s146 = sphi 0, %s145
      %s160 = sphi 0, %s146
      %s164 = sphi 0, %s164
      %s166 = sphi 0, %s164
      %s167 = sphi 0, %s166
      %s181 = sphi 0, %s167
      %s185 = sphi 0, %s185
      %s187 = sphi 0, %s185
      %s188 = sphi 0, %s187
      %s202 = sphi 0, %s188
      %s206 = sphi 0, %s206
      %s208 = sphi 0, %s206
      %s209 = sphi 0, %s208
      %s223 = sphi 0, %s209
      %s227 = sphi 0, %s227
      %s229 = sphi 0, %s227
      %s230 = sphi 0, %s229
      %s244 = sphi 0, %s230
      %s248 = sphi 0, %s248
      %s250 = sphi 0, %s248
      %s251 = sphi 0, %s250
      %s265 = sphi 0, %s251
      %s271 = sphi 0, %s273
      %s274 = sphi 0, %s271
      %s275 = sphi 0, %s274
      %s291 = sphi 0, %s275
    $region4: #{vnet_forward.19} parent=1 // loop_header_branch
      %23 = sbr.rel (%p21) target = $region8
    $region5: #{vnet_forward.19} parent=1 // loop_body
      %s25 = ssub.s32 %s20, 1
      %s26 = ssub.s32 %s20, 2
      %s27 = sadd.s32 %s20, 1
      %s28 = ssub.s32 %s20, %s27
      %p29 = scmp.eq.s32.totalorder %s28, 0
      %s31 = sadd.s32 %s30, 1
      %s32 = scalar_select %p29, %s30, %s31
      %p35 = pneg %p29
      %p36 = scmp.eq.s32.totalorder %s20, 1
      %p37 = por %p35, %p36
      %p38 = scmp.ne.s32.totalorder %s30, %s33
      %p39 = scmp.eq.s32.totalorder %s20, 0
      %p40 = por %p38, %p39
      %p41 = scmp.ne.s32.totalorder %s30, %s33
      %p42 = scmp.eq.s32.totalorder %s25, 1
      %p43 = por %p41, %p42
      %p44 = scmp.ne.s32.totalorder %s33, %s34
      %p45 = scmp.eq.s32.totalorder %s25, 0
      %p46 = por %p44, %p45
      %p47 = scmp.ne.s32.totalorder %s33, %s34
      %p48 = scmp.eq.s32.totalorder %s26, 1
      %p49 = por %p47, %p48
      %p51 = scmp.ne.s32.totalorder %s34, %s50
      %p52 = scmp.eq.s32.totalorder %s26, 0
      %p53 = por %p51, %p52
      %s54 = ssub.s32 %s20, %s27
      %p55 = scmp.eq.s32.totalorder %s54, 0
      %s57 = sadd.s32 %s56, 1
      %s58 = scalar_select %p55, %s56, %s57
      %p61 = pneg %p55
      %p62 = scmp.eq.s32.totalorder %s20, 1
      %p63 = por %p61, %p62
      %p64 = scmp.ne.s32.totalorder %s56, %s59
      %p65 = scmp.eq.s32.totalorder %s20, 0
      %p66 = por %p64, %p65
      %p67 = scmp.ne.s32.totalorder %s56, %s59
      %p68 = scmp.eq.s32.totalorder %s25, 1
      %p69 = por %p67, %p68
      %p70 = scmp.ne.s32.totalorder %s59, %s60
      %p71 = scmp.eq.s32.totalorder %s25, 0
      %p72 = por %p70, %p71
      %p73 = scmp.ne.s32.totalorder %s59, %s60
      %p74 = scmp.eq.s32.totalorder %s26, 1
      %p75 = por %p73, %p74
      %p77 = scmp.ne.s32.totalorder %s60, %s76
      %p78 = scmp.eq.s32.totalorder %s26, 0
      %p79 = por %p77, %p78
      %s81 = sadd.s32 %s80, 1
      %p84 = scmp.eq.s32.totalorder %s20, 1
      %p85 = scmp.ne.s32.totalorder %s80, %s82
      %p86 = scmp.eq.s32.totalorder %s20, 0
      %p87 = por %p85, %p86
      %p88 = scmp.ne.s32.totalorder %s80, %s82
      %p89 = scmp.eq.s32.totalorder %s25, 1
      %p90 = por %p88, %p89
      %p91 = scmp.ne.s32.totalorder %s82, %s83
      %p92 = scmp.eq.s32.totalorder %s25, 0
      %p93 = por %p91, %p92
      %p94 = scmp.ne.s32.totalorder %s82, %s83
      %p95 = scmp.eq.s32.totalorder %s26, 1
      %p96 = por %p94, %p95
      %p98 = scmp.ne.s32.totalorder %s83, %s97
      %p99 = scmp.eq.s32.totalorder %s26, 0
      %p100 = por %p98, %p99
      %s102 = sadd.s32 %s101, 1
      %p105 = scmp.eq.s32.totalorder %s20, 1
      %p106 = scmp.ne.s32.totalorder %s101, %s103
      %p107 = scmp.eq.s32.totalorder %s20, 0
      %p108 = por %p106, %p107
      %p109 = scmp.ne.s32.totalorder %s101, %s103
      %p110 = scmp.eq.s32.totalorder %s25, 1
      %p111 = por %p109, %p110
      %p112 = scmp.ne.s32.totalorder %s103, %s104
      %p113 = scmp.eq.s32.totalorder %s25, 0
      %p114 = por %p112, %p113
      %p115 = scmp.ne.s32.totalorder %s103, %s104
      %p116 = scmp.eq.s32.totalorder %s26, 1
      %p117 = por %p115, %p116
      %p119 = scmp.ne.s32.totalorder %s104, %s118
      %p120 = scmp.eq.s32.totalorder %s26, 0
      %p121 = por %p119, %p120
      %s123 = sadd.s32 %s122, 1
      %p126 = scmp.eq.s32.totalorder %s20, 1
      %p127 = scmp.ne.s32.totalorder %s122, %s124
      %p128 = scmp.eq.s32.totalorder %s20, 0
      %p129 = por %p127, %p128
      %p130 = scmp.ne.s32.totalorder %s122, %s124
      %p131 = scmp.eq.s32.totalorder %s25, 1
      %p132 = por %p130, %p131
      %p133 = scmp.ne.s32.totalorder %s124, %s125
      %p134 = scmp.eq.s32.totalorder %s25, 0
      %p135 = por %p133, %p134
      %p136 = scmp.ne.s32.totalorder %s124, %s125
      %p137 = scmp.eq.s32.totalorder %s26, 1
      %p138 = por %p136, %p137
      %p140 = scmp.ne.s32.totalorder %s125, %s139
      %p141 = scmp.eq.s32.totalorder %s26, 0
      %p142 = por %p140, %p141
      %s144 = sadd.s32 %s143, 1
      %p147 = scmp.eq.s32.totalorder %s20, 1
      %p148 = scmp.ne.s32.totalorder %s143, %s145
      %p149 = scmp.eq.s32.totalorder %s20, 0
      %p150 = por %p148, %p149
      %p151 = scmp.ne.s32.totalorder %s143, %s145
      %p152 = scmp.eq.s32.totalorder %s25, 1
      %p153 = por %p151, %p152
      %p154 = scmp.ne.s32.totalorder %s145, %s146
      %p155 = scmp.eq.s32.totalorder %s25, 0
      %p156 = por %p154, %p155
      %p157 = scmp.ne.s32.totalorder %s145, %s146
      %p158 = scmp.eq.s32.totalorder %s26, 1
      %p159 = por %p157, %p158
      %p161 = scmp.ne.s32.totalorder %s146, %s160
      %p162 = scmp.eq.s32.totalorder %s26, 0
      %p163 = por %p161, %p162
      %s165 = sadd.s32 %s164, 1
      %p168 = scmp.eq.s32.totalorder %s20, 1
      %p169 = scmp.ne.s32.totalorder %s164, %s166
      %p170 = scmp.eq.s32.totalorder %s20, 0
      %p171 = por %p169, %p170
      %p172 = scmp.ne.s32.totalorder %s164, %s166
      %p173 = scmp.eq.s32.totalorder %s25, 1
      %p174 = por %p172, %p173
      %p175 = scmp.ne.s32.totalorder %s166, %s167
      %p176 = scmp.eq.s32.totalorder %s25, 0
      %p177 = por %p175, %p176
      %p178 = scmp.ne.s32.totalorder %s166, %s167
      %p179 = scmp.eq.s32.totalorder %s26, 1
      %p180 = por %p178, %p179
      %p182 = scmp.ne.s32.totalorder %s167, %s181
      %p183 = scmp.eq.s32.totalorder %s26, 0
      %p184 = por %p182, %p183
      %s186 = sadd.s32 %s185, 1
      %p189 = scmp.eq.s32.totalorder %s20, 1
      %p190 = scmp.ne.s32.totalorder %s185, %s187
      %p191 = scmp.eq.s32.totalorder %s20, 0
      %p192 = por %p190, %p191
      %p193 = scmp.ne.s32.totalorder %s185, %s187
      %p194 = scmp.eq.s32.totalorder %s25, 1
      %p195 = por %p193, %p194
      %p196 = scmp.ne.s32.totalorder %s187, %s188
      %p197 = scmp.eq.s32.totalorder %s25, 0
      %p198 = por %p196, %p197
      %p199 = scmp.ne.s32.totalorder %s187, %s188
      %p200 = scmp.eq.s32.totalorder %s26, 1
      %p201 = por %p199, %p200
      %p203 = scmp.ne.s32.totalorder %s188, %s202
      %p204 = scmp.eq.s32.totalorder %s26, 0
      %p205 = por %p203, %p204
      %s207 = sadd.s32 %s206, 1
      %p210 = scmp.eq.s32.totalorder %s20, 1
      %p211 = scmp.ne.s32.totalorder %s206, %s208
      %p212 = scmp.eq.s32.totalorder %s20, 0
      %p213 = por %p211, %p212
      %p214 = scmp.ne.s32.totalorder %s206, %s208
      %p215 = scmp.eq.s32.totalorder %s25, 1
      %p216 = por %p214, %p215
      %p217 = scmp.ne.s32.totalorder %s208, %s209
      %p218 = scmp.eq.s32.totalorder %s25, 0
      %p219 = por %p217, %p218
      %p220 = scmp.ne.s32.totalorder %s208, %s209
      %p221 = scmp.eq.s32.totalorder %s26, 1
      %p222 = por %p220, %p221
      %p224 = scmp.ne.s32.totalorder %s209, %s223
      %p225 = scmp.eq.s32.totalorder %s26, 0
      %p226 = por %p224, %p225
      %s228 = sadd.s32 %s227, 1
      %p231 = scmp.eq.s32.totalorder %s20, 1
      %p232 = scmp.ne.s32.totalorder %s227, %s229
      %p233 = scmp.eq.s32.totalorder %s20, 0
      %p234 = por %p232, %p233
      %p235 = scmp.ne.s32.totalorder %s227, %s229
      %p236 = scmp.eq.s32.totalorder %s25, 1
      %p237 = por %p235, %p236
      %p238 = scmp.ne.s32.totalorder %s229, %s230
      %p239 = scmp.eq.s32.totalorder %s25, 0
      %p240 = por %p238, %p239
      %p241 = scmp.ne.s32.totalorder %s229, %s230
      %p242 = scmp.eq.s32.totalorder %s26, 1
      %p243 = por %p241, %p242
      %p245 = scmp.ne.s32.totalorder %s230, %s244
      %p246 = scmp.eq.s32.totalorder %s26, 0
      %p247 = por %p245, %p246
      %s249 = sadd.s32 %s248, 1
      %p252 = scmp.eq.s32.totalorder %s20, 1
      %p253 = scmp.ne.s32.totalorder %s248, %s250
      %p254 = scmp.eq.s32.totalorder %s20, 0
      %p255 = por %p253, %p254
      %p256 = scmp.ne.s32.totalorder %s248, %s250
      %p257 = scmp.eq.s32.totalorder %s25, 1
      %p258 = por %p256, %p257
      %p259 = scmp.ne.s32.totalorder %s250, %s251
      %p260 = scmp.eq.s32.totalorder %s25, 0
      %p261 = por %p259, %p260
      %p262 = scmp.ne.s32.totalorder %s250, %s251
      %p263 = scmp.eq.s32.totalorder %s26, 1
      %p264 = por %p262, %p263
      %p266 = scmp.ne.s32.totalorder %s251, %s265
      %p267 = scmp.eq.s32.totalorder %s26, 0
      %p268 = por %p266, %p267
      %s269 = ssub.s32 %s20, %s27
      %p270 = scmp.eq.s32.totalorder %s269, 0
      %s272 = sadd.s32 %s271, 1
      %s273 = scalar_select %p270, %s271, %s272
      %p276 = pneg %p270
      %p277 = scmp.eq.s32.totalorder %s20, 1
      %p278 = por %p276, %p277
      %p279 = scmp.ne.s32.totalorder %s271, %s274
      %p280 = scmp.eq.s32.totalorder %s20, 0
      %p281 = por %p279, %p280
      %p282 = scmp.ne.s32.totalorder %s271, %s274
      %p283 = scmp.eq.s32.totalorder %s25, 1
      %p284 = por %p282, %p283
      %p285 = scmp.ne.s32.totalorder %s274, %s275
      %p286 = scmp.eq.s32.totalorder %s25, 0
      %p287 = por %p285, %p286
      %p288 = scmp.ne.s32.totalorder %s274, %s275
      %p289 = scmp.eq.s32.totalorder %s26, 1
      %p290 = por %p288, %p289
      %p292 = scmp.ne.s32.totalorder %s275, %s291
      %p293 = scmp.eq.s32.totalorder %s26, 0
      %p294 = por %p292, %p293
      %p295 = scmp.le.s32.totalorder 1, %s20
      %p296 = scmp.lt.s32.totalorder %s20, 3
      %p297 = pnand %p295, %p296
      %p298 = pneg %p297
      // Predicated region
      $region9: #{vnet_forward.19} parent=5 // pred_check
        _
      $region10: #{vnet_forward.19} parent=5 // pred_check_branch
        %300 = sbr.rel (%p297) target = $region12
      $region11: #{vnet_forward.19} parent=5 // pred_region
        %s301 = ssub.s32 %s20, 1
        // Predicated region
        $region13: #{vnet_forward.19} parent=11 // pred_check
          %p302 = pneg %p93
        $region14: #{vnet_forward.19} parent=11 // pred_check_branch
          %304 = sbr.rel (%p302) target = $region16
        $region15: #{vnet_forward.19} parent=11 // pred_region
          _
        $region16: #{vnet_forward.19} parent=11 // pred_fallthru
          _
        // Predicated region
        $region17: #{vnet_forward.19} parent=11 // pred_check
          %p305 = pneg %p114
        $region18: #{vnet_forward.19} parent=11 // pred_check_branch
          %307 = sbr.rel (%p305) target = $region20
        $region19: #{vnet_forward.19} parent=11 // pred_region
          _
        $region20: #{vnet_forward.19} parent=11 // pred_fallthru
          _
        // Predicated region
        $region21: #{vnet_forward.19} parent=11 // pred_check
          %p308 = pneg %p135
        $region22: #{vnet_forward.19} parent=11 // pred_check_branch
          %310 = sbr.rel (%p308) target = $region24
        $region23: #{vnet_forward.19} parent=11 // pred_region
          _
        $region24: #{vnet_forward.19} parent=11 // pred_fallthru
          _
        // Predicated region
        $region25: #{vnet_forward.19} parent=11 // pred_check
          %p311 = pneg %p156
        $region26: #{vnet_forward.19} parent=11 // pred_check_branch
          %313 = sbr.rel (%p311) target = $region28
        $region27: #{vnet_forward.19} parent=11 // pred_region
          _
        $region28: #{vnet_forward.19} parent=11 // pred_fallthru
          _
        // Predicated region
        $region29: #{vnet_forward.19} parent=11 // pred_check
          %p314 = pneg %p177
        $region30: #{vnet_forward.19} parent=11 // pred_check_branch
          %316 = sbr.rel (%p314) target = $region32
        $region31: #{vnet_forward.19} parent=11 // pred_region
          %318 = vsyncadd [#allocation4], 0
          %s319 = sshll.u32 %s6, 4
          %s320 = int_to_ptr.hbm [resolvable:$true] %s319
          %s321 = sshll.u32 [#allocation3], 4
          %s322 = int_to_ptr.vmem [resolvable:$true] %s321
          %327 = dma.hbm_to_vmem [thread:$0]  %s320, 384, %s322, [#allocation4], 64, 64, 4
        $region32: #{vnet_forward.19} parent=11 // pred_fallthru
          _
        // Predicated region
        $region33: #{vnet_forward.19} parent=11 // pred_check
          %p328 = pneg %p198
        $region34: #{vnet_forward.19} parent=11 // pred_check_branch
          %330 = sbr.rel (%p328) target = $region36
        $region35: #{vnet_forward.19} parent=11 // pred_region
          _
        $region36: #{vnet_forward.19} parent=11 // pred_fallthru
          _
        // Predicated region
        $region37: #{vnet_forward.19} parent=11 // pred_check
          %p331 = pneg %p219
        $region38: #{vnet_forward.19} parent=11 // pred_check_branch
          %333 = sbr.rel (%p331) target = $region40
        $region39: #{vnet_forward.19} parent=11 // pred_region
          _
        $region40: #{vnet_forward.19} parent=11 // pred_fallthru
          _
        // Predicated region
        $region41: #{vnet_forward.19} parent=11 // pred_check
          %p334 = pneg %p240
        $region42: #{vnet_forward.19} parent=11 // pred_check_branch
          %336 = sbr.rel (%p334) target = $region44
        $region43: #{vnet_forward.19} parent=11 // pred_region
          _
        $region44: #{vnet_forward.19} parent=11 // pred_fallthru
          _
        // Predicated region
        $region45: #{vnet_forward.19} parent=11 // pred_check
          %p337 = pneg %p261
        $region46: #{vnet_forward.19} parent=11 // pred_check_branch
          %339 = sbr.rel (%p337) target = $region48
        $region47: #{vnet_forward.19} parent=11 // pred_region
          _
        $region48: #{vnet_forward.19} parent=11 // pred_fallthru
          _
      $region12: #{vnet_forward.19} parent=5 // pred_fallthru
        _
      %p340 = scmp.lt.s32.totalorder %s20, 2
      // Predicated region
      $region49: #{vnet_forward.19} parent=5 // pred_check
        %p341 = pneg %p340
      $region50: #{vnet_forward.19} parent=5 // pred_check_branch
        %343 = sbr.rel (%p341) target = $region52
      $region51: #{vnet_forward.19} parent=5 // pred_region
        // Predicated region
        $region53: #{vnet_forward.19} parent=51 // pred_check
          %p344 = pneg %p40
        $region54: #{vnet_forward.19} parent=51 // pred_check_branch
          %346 = sbr.rel (%p344) target = $region56
        $region55: #{vnet_forward.19} parent=51 // pred_region
          %p347 = scmp.lt.s32.totalorder %s20, 1
          %s348 = scalar_select %p347, %s20, 1
          %s349 = smul.addr %s348, 2
          %s350 = smul.addr %s349, 8
          %s351 = scalar_lea.vmem %s0, %s350
        $region56: #{vnet_forward.19} parent=51 // pred_fallthru
          _
        // Predicated region
        $region57: #{vnet_forward.19} parent=51 // pred_check
          %p352 = pneg %p66
        $region58: #{vnet_forward.19} parent=51 // pred_check_branch
          %354 = sbr.rel (%p352) target = $region60
        $region59: #{vnet_forward.19} parent=51 // pred_region
          %p355 = scmp.lt.s32.totalorder %s20, 1
          %s356 = scalar_select %p355, %s20, 1
          %s357 = smul.addr %s356, 2
          %s358 = smul.addr %s357, 8
          %s359 = scalar_lea.vmem %s1, %s358
        $region60: #{vnet_forward.19} parent=51 // pred_fallthru
          _
      $region52: #{vnet_forward.19} parent=5 // pred_fallthru
        _
      %p360 = scmp.le.s32.totalorder 1, %s20
      %p361 = scmp.lt.s32.totalorder %s20, 3
      %p362 = pnand %p360, %p361
      %p363 = pneg %p362
      // Predicated region
      $region61: #{vnet_forward.19} parent=5 // pred_check
        _
      $region62: #{vnet_forward.19} parent=5 // pred_check_branch
        %365 = sbr.rel (%p362) target = $region64
      $region63: #{vnet_forward.19} parent=5 // pred_region
        %s366 = ssub.s32 %s20, 1
        // Predicated region
        $region65: #{vnet_forward.19} parent=63 // pred_check
          %p367 = pneg %p177
        $region66: #{vnet_forward.19} parent=63 // pred_check_branch
          %369 = sbr.rel (%p367) target = $region68
        $region67: #{vnet_forward.19} parent=63 // pred_region
          %371 = dma.done [#allocation4], 384
        $region68: #{vnet_forward.19} parent=63 // pred_fallthru
          _
        %p372 = scmp.lt.s32.totalorder %s25, 1
        %s373 = scalar_select %p372, %s25, 1
        %s374 = smul.addr %s373, 2
        %s375 = smul.addr %s374, 8
        %s376 = scalar_lea.vmem %s0, %s375
        %p377 = pneg %p46
        %p378 = pneg %p43
        %p379 = scmp.lt.s32.totalorder %s25, 1
        %s380 = scalar_select %p379, %s25, 1
        %s381 = smul.addr %s380, 2
        %s382 = smul.addr %s381, 8
        %s383 = scalar_lea.vmem %s1, %s382
        %p384 = pneg %p72
        %p385 = pneg %p69
        %p386 = pneg %p93
        %p387 = pneg %p90
        %p388 = pneg %p114
        %p389 = pneg %p111
        %p390 = pneg %p135
        %p391 = pneg %p132
        %p392 = pneg %p156
        %p393 = pneg %p153
        %p394 = pneg %p177
        %p395 = pneg %p174
        %p396 = pneg %p198
        %p397 = pneg %p195
        %p398 = pneg %p219
        %p399 = pneg %p216
        %p400 = pneg %p240
        %p401 = pneg %p237
        %p402 = pneg %p261
        %p403 = pneg %p258
        %p404 = pneg %p287
        %p405 = pneg %p284
        %p406 = scmp.lt.s32.totalorder %s25, 1
        %s407 = scalar_select %p406, %s25, 1
        %s408 = smul.addr %s407, 2
        %s409 = smul.addr %s408, 8
        %s410 = scalar_lea.vmem %s11, %s409
        %p411 = scmp.lt.s32.totalorder %s25, 1
        %s412 = scalar_select %p411, %s25, 1
        %s413 = smul.addr %s412, 2
        %s414 = smul.addr %s413, 8
        %s415 = scalar_lea.vmem %s0, %s414
        %p416 = scmp.lt.s32.totalorder %s25, 1
        %s417 = scalar_select %p416, %s25, 1
        %s418 = smul.addr %s417, 2
        %s419 = smul.addr %s418, 8
        %s420 = scalar_lea.vmem %s1, %s419
        %p421 = scmp.lt.s32.totalorder %s25, 1
        %s422 = scalar_select %p421, %s25, 1
        %s423 = smul.addr %s422, 2
        %s424 = smul.addr %s423, 8
        %s425 = scalar_lea.vmem %s11, %s424
        %v427 = vld [vmem:[%s415] sm:$0xff]
        %v428 = vld [vmem:[%s415 + $0x8] sm:$0xff]
        %v429 = vld [vmem:[%s420] sm:$0xff]
        %v430 = vld [vmem:[%s420 + $0x8] sm:$0xff]
        %v431 = vlaneseq
        %v432 = vshrl.u32 %v431, 7
        %v433 = vadd.s32 %v432, 8
        %v434 = vlaneseq
        %v435 = vand.u32 %v434, 127
        %v436 = vsub.s32 %v432, 1
        %v437 = vsub.s32 %v433, 1
        %vm438 = vcmp.eq.s32.totalorder %v435, %v436
        %vm439 = vcmp.eq.s32.totalorder %v435, %v437
        %v440 = vsel %vm438, 1, 0
        %v441 = vsel %vm439, 1, 0
        %v442 = vcvt.s32.f32 %v440
        %v443 = vcvt.s32.f32 %v441
        %v444 = vadd.s32 %v432, 1
        %v445 = vadd.s32 %v433, 1
        %vm446 = vcmp.eq.s32.totalorder %v435, %v444
        %vm447 = vcmp.eq.s32.totalorder %v435, %v445
        %v448 = vsel %vm446, 1, 0
        %v449 = vsel %vm447, 1, 0
        %v450 = vcvt.s32.f32 %v448
        %v451 = vcvt.s32.f32 %v449
        %vm452 = vcmask 130048
        %v454 = vsel %vm452, %v442, 0
        %v457 = vsel %vm452, %v443, 0
        %459 = vmatpush.msra.mxu0 0.0
        %460 = vmatpush.msra.mxu0 0.0
        %461 = vmatpush.msra.mxu0 0.0
        %462 = vmatpush.msra.mxu0 0.0
        %463 = vmatpush.msra.mxu0 0.0
        %464 = vmatpush.msra.mxu0 0.0
        %465 = vmatpush.msra.mxu0 0.0
        %466 = vmatpush.msra.mxu0 0.0
        %467 = vmatpush.msra.mxu0 0.0
        %468 = vmatpush.msra.mxu0 0.0
        %469 = vmatpush.msra.mxu0 0.0
        %470 = vmatpush.msra.mxu0 0.0
        %471 = vmatpush.msra.mxu0 0.0
        %472 = vmatpush.msra.mxu0 0.0
        %473 = vmatpush.msra.mxu0 %v428
        %474 = vmatpush.msra.mxu0 %v427
        %475 = vmatmul.f32.gmra.mxu0 %v454
        %v476 = vpop.f32.mrf.mxu0
        %v477 = vadd.f32 0.0, %v476
        %478 = vmatmul.f32.gmra.mxu0 %v457
        %v479 = vpop.f32.mrf.mxu0
        %v480 = vadd.f32 0.0, %v479
        %481 = vdwg.mxu0
        %v483 = vsel %vm452, %v450, 0
        %v486 = vsel %vm452, %v451, 0
        %488 = vmatpush.msra.mxu0 0.0
        %489 = vmatpush.msra.mxu0 0.0
        %490 = vmatpush.msra.mxu0 0.0
        %491 = vmatpush.msra.mxu0 0.0
        %492 = vmatpush.msra.mxu0 0.0
        %493 = vmatpush.msra.mxu0 0.0
        %494 = vmatpush.msra.mxu0 0.0
        %495 = vmatpush.msra.mxu0 0.0
        %496 = vmatpush.msra.mxu0 0.0
        %497 = vmatpush.msra.mxu0 0.0
        %498 = vmatpush.msra.mxu0 0.0
        %499 = vmatpush.msra.mxu0 0.0
        %500 = vmatpush.msra.mxu0 0.0
        %501 = vmatpush.msra.mxu0 0.0
        %502 = vmatpush.msra.mxu0 %v428
        %503 = vmatpush.msra.mxu0 %v427
        %504 = vmatmul.f32.gmra.mxu0 %v483
        %v505 = vpop.f32.mrf.mxu0
        %v506 = vadd.f32 0.0, %v505
        %507 = vmatmul.f32.gmra.mxu0 %v486
        %v508 = vpop.f32.mrf.mxu0
        %v509 = vadd.f32 0.0, %v508
        %510 = vdwg.mxu0
        %v511 = vpack.c.bf16 %v428, %v427
        %s512 = scalar_lea.vmem %s2, 8
        %v513 = vld [vmem:[%s512] sm:$0xf]
        %v514 = vld [vmem:[%s512 + $0x4] sm:$0xf]
        %v515 = vpack.c.bf16 %v480, %v477
        %v516 = vld [vmem:[%s2] sm:$0xf]
        %v517 = vld [vmem:[%s2 + $0x4] sm:$0xf]
        %v520 = vunpack.c.l.b16 %v516
        %v521 = vunpack.c.l.b16 %v517
        %v522 = vpack.c.b16 %v521, %v520
        %v525 = vsel %vm452, %v515, 0
        %527 = vmatpush.bf16.msra.mxu0 0
        %528 = vmatpush.bf16.msra.mxu0 0
        %529 = vmatpush.bf16.msra.mxu0 0
        %530 = vmatpush.bf16.msra.mxu0 0
        %531 = vmatpush.bf16.msra.mxu0 0
        %532 = vmatpush.bf16.msra.mxu0 0
        %533 = vmatpush.bf16.msra.mxu0 0
        %534 = vmatpush.bf16.msra.mxu0 %v522
        %535 = vmatmul.bf16.gmra.mxu0 %v525
        %v536 = vpop.f32.mrf.mxu0
        %v537 = vadd.f32 0.0, %v536
        %v538 = vpop.f32.mrf.mxu0
        %v539 = vadd.f32 0.0, %v538
        %540 = vdwg.mxu0
        %v543 = vunpack.c.l.b16 %v513
        %v544 = vunpack.c.l.b16 %v514
        %v545 = vpack.c.b16 %v544, %v543
        %v548 = vsel %vm452, %v511, 0
        %550 = vmatpush.bf16.msra.mxu0 0
        %551 = vmatpush.bf16.msra.mxu0 0
        %552 = vmatpush.bf16.msra.mxu0 0
        %553 = vmatpush.bf16.msra.mxu0 0
        %554 = vmatpush.bf16.msra.mxu0 0
        %555 = vmatpush.bf16.msra.mxu0 0
        %556 = vmatpush.bf16.msra.mxu0 0
        %557 = vmatpush.bf16.msra.mxu0 %v545
        %558 = vmatmul.bf16.gmra.mxu0 %v548
        %v559 = vpop.f32.mrf.mxu0
        %v560 = vadd.f32 %v537, %v559
        %v561 = vpop.f32.mrf.mxu0
        %v562 = vadd.f32 %v539, %v561
        %563 = vdwg.mxu0
        %v564 = vpack.c.bf16 %v509, %v506
        %s565 = scalar_lea.vmem %s2, 16
        %v566 = vld [vmem:[%s565] sm:$0xf]
        %v567 = vld [vmem:[%s565 + $0x4] sm:$0xf]
        %v570 = vunpack.c.l.b16 %v566
        %v571 = vunpack.c.l.b16 %v567
        %v572 = vpack.c.b16 %v571, %v570
        %v575 = vsel %vm452, %v564, 0
        %577 = vmatpush.bf16.msra.mxu0 0
        %578 = vmatpush.bf16.msra.mxu0 0
        %579 = vmatpush.bf16.msra.mxu0 0
        %580 = vmatpush.bf16.msra.mxu0 0
        %581 = vmatpush.bf16.msra.mxu0 0
        %582 = vmatpush.bf16.msra.mxu0 0
        %583 = vmatpush.bf16.msra.mxu0 0
        %584 = vmatpush.bf16.msra.mxu0 %v572
        %585 = vmatmul.bf16.gmra.mxu0 %v575
        %v586 = vpop.f32.mrf.mxu0
        %v587 = vadd.f32 0.0, %v586
        %v588 = vpop.f32.mrf.mxu0
        %v589 = vadd.f32 0.0, %v588
        %590 = vdwg.mxu0
        %v591 = vadd.f32 %v560, %v587
        %v592 = vadd.f32 %v562, %v589
        %593 = vmatpush.msra.mxu0 0.0
        %594 = vmatpush.msra.mxu0 0.0
        %595 = vmatpush.msra.mxu0 0.0
        %596 = vmatpush.msra.mxu0 0.0
        %597 = vmatpush.msra.mxu0 0.0
        %598 = vmatpush.msra.mxu0 0.0
        %599 = vmatpush.msra.mxu0 0.0
        %600 = vmatpush.msra.mxu0 0.0
        %601 = vmatpush.msra.mxu0 0.0
        %602 = vmatpush.msra.mxu0 0.0
        %603 = vmatpush.msra.mxu0 0.0
        %604 = vmatpush.msra.mxu0 0.0
        %605 = vmatpush.msra.mxu0 0.0
        %606 = vmatpush.msra.mxu0 0.0
        %607 = vmatpush.msra.mxu0 %v430
        %608 = vmatpush.msra.mxu0 %v429
        %609 = vmatmul.f32.gmra.mxu0 %v454
        %v610 = vpop.f32.mrf.mxu0
        %v611 = vadd.f32 0.0, %v610
        %612 = vmatmul.f32.gmra.mxu0 %v457
        %v613 = vpop.f32.mrf.mxu0
        %v614 = vadd.f32 0.0, %v613
        %615 = vdwg.mxu0
        %616 = vmatpush.msra.mxu0 0.0
        %617 = vmatpush.msra.mxu0 0.0
        %618 = vmatpush.msra.mxu0 0.0
        %619 = vmatpush.msra.mxu0 0.0
        %620 = vmatpush.msra.mxu0 0.0
        %621 = vmatpush.msra.mxu0 0.0
        %622 = vmatpush.msra.mxu0 0.0
        %623 = vmatpush.msra.mxu0 0.0
        %624 = vmatpush.msra.mxu0 0.0
        %625 = vmatpush.msra.mxu0 0.0
        %626 = vmatpush.msra.mxu0 0.0
        %627 = vmatpush.msra.mxu0 0.0
        %628 = vmatpush.msra.mxu0 0.0
        %629 = vmatpush.msra.mxu0 0.0
        %630 = vmatpush.msra.mxu0 %v430
        %631 = vmatpush.msra.mxu0 %v429
        %632 = vmatmul.f32.gmra.mxu0 %v483
        %v633 = vpop.f32.mrf.mxu0
        %v634 = vadd.f32 0.0, %v633
        %635 = vmatmul.f32.gmra.mxu0 %v486
        %v636 = vpop.f32.mrf.mxu0
        %v637 = vadd.f32 0.0, %v636
        %638 = vdwg.mxu0
        %v639 = vpack.c.bf16 %v430, %v429
        %s640 = scalar_lea.vmem %s3, 8
        %v641 = vld [vmem:[%s640] sm:$0xf]
        %v642 = vld [vmem:[%s640 + $0x4] sm:$0xf]
        %v643 = vpack.c.bf16 %v614, %v611
        %v644 = vld [vmem:[%s3] sm:$0xf]
        %v645 = vld [vmem:[%s3 + $0x4] sm:$0xf]
        %v648 = vunpack.c.l.b16 %v644
        %v649 = vunpack.c.l.b16 %v645
        %v650 = vpack.c.b16 %v649, %v648
        %v653 = vsel %vm452, %v643, 0
        %655 = vmatpush.bf16.msra.mxu0 0
        %656 = vmatpush.bf16.msra.mxu0 0
        %657 = vmatpush.bf16.msra.mxu0 0
        %658 = vmatpush.bf16.msra.mxu0 0
        %659 = vmatpush.bf16.msra.mxu0 0
        %660 = vmatpush.bf16.msra.mxu0 0
        %661 = vmatpush.bf16.msra.mxu0 0
        %662 = vmatpush.bf16.msra.mxu0 %v650
        %663 = vmatmul.bf16.gmra.mxu0 %v653
        %v664 = vpop.f32.mrf.mxu0
        %v665 = vadd.f32 0.0, %v664
        %v666 = vpop.f32.mrf.mxu0
        %v667 = vadd.f32 0.0, %v666
        %668 = vdwg.mxu0
        %v671 = vunpack.c.l.b16 %v641
        %v672 = vunpack.c.l.b16 %v642
        %v673 = vpack.c.b16 %v672, %v671
        %v676 = vsel %vm452, %v639, 0
        %678 = vmatpush.bf16.msra.mxu0 0
        %679 = vmatpush.bf16.msra.mxu0 0
        %680 = vmatpush.bf16.msra.mxu0 0
        %681 = vmatpush.bf16.msra.mxu0 0
        %682 = vmatpush.bf16.msra.mxu0 0
        %683 = vmatpush.bf16.msra.mxu0 0
        %684 = vmatpush.bf16.msra.mxu0 0
        %685 = vmatpush.bf16.msra.mxu0 %v673
        %686 = vmatmul.bf16.gmra.mxu0 %v676
        %v687 = vpop.f32.mrf.mxu0
        %v688 = vadd.f32 %v665, %v687
        %v689 = vpop.f32.mrf.mxu0
        %v690 = vadd.f32 %v667, %v689
        %691 = vdwg.mxu0
        %v692 = vpack.c.bf16 %v637, %v634
        %s693 = scalar_lea.vmem %s3, 16
        %v694 = vld [vmem:[%s693] sm:$0xf]
        %v695 = vld [vmem:[%s693 + $0x4] sm:$0xf]
        %v698 = vunpack.c.l.b16 %v694
        %v699 = vunpack.c.l.b16 %v695
        %v700 = vpack.c.b16 %v699, %v698
        %v703 = vsel %vm452, %v692, 0
        %705 = vmatpush.bf16.msra.mxu0 0
        %706 = vmatpush.bf16.msra.mxu0 0
        %707 = vmatpush.bf16.msra.mxu0 0
        %708 = vmatpush.bf16.msra.mxu0 0
        %709 = vmatpush.bf16.msra.mxu0 0
        %710 = vmatpush.bf16.msra.mxu0 0
        %711 = vmatpush.bf16.msra.mxu0 0
        %712 = vmatpush.bf16.msra.mxu0 %v700
        %713 = vmatmul.bf16.gmra.mxu0 %v703
        %v714 = vpop.f32.mrf.mxu0
        %v715 = vadd.f32 0.0, %v714
        %v716 = vpop.f32.mrf.mxu0
        %v717 = vadd.f32 0.0, %v716
        %718 = vdwg.mxu0
        %v719 = vadd.f32 %v688, %v715
        %v720 = vadd.f32 %v690, %v717
        %v721 = vadd.f32 %v591, %v719
        %v722 = vadd.f32 %v592, %v720
        %v723 = vld [vmem:[%s4] sm:$0x1]
        %v725 = vperm.slane %v723, 0
        %v727 = vmul.f32 %v721, %v725
        %v728 = vmul.f32 %v722, %v725
        %v729 = vld [vmem:[%s5] sm:$0x1]
        %v731 = vperm.slane %v729, 0
        %v733 = vadd.f32 %v727, %v731
        %v734 = vadd.f32 %v728, %v731
        %v735 = vmax.f32 %v733, 0.0
        %v736 = vmax.f32 %v734, 0.0
        %737 = vmatpush.msra.mxu0 0.0
        %738 = vmatpush.msra.mxu0 0.0
        %739 = vmatpush.msra.mxu0 0.0
        %740 = vmatpush.msra.mxu0 0.0
        %741 = vmatpush.msra.mxu0 0.0
        %742 = vmatpush.msra.mxu0 0.0
        %743 = vmatpush.msra.mxu0 0.0
        %744 = vmatpush.msra.mxu0 0.0
        %745 = vmatpush.msra.mxu0 0.0
        %746 = vmatpush.msra.mxu0 0.0
        %747 = vmatpush.msra.mxu0 0.0
        %748 = vmatpush.msra.mxu0 0.0
        %749 = vmatpush.msra.mxu0 0.0
        %750 = vmatpush.msra.mxu0 0.0
        %751 = vmatpush.msra.mxu0 %v736
        %752 = vmatpush.msra.mxu0 %v735
        %753 = vmatmul.f32.gmra.mxu0 %v454
        %v754 = vpop.f32.mrf.mxu0
        %v755 = vadd.f32 0.0, %v754
        %756 = vmatmul.f32.gmra.mxu0 %v457
        %v757 = vpop.f32.mrf.mxu0
        %v758 = vadd.f32 0.0, %v757
        %759 = vdwg.mxu0
        %760 = vmatpush.msra.mxu0 0.0
        %761 = vmatpush.msra.mxu0 0.0
        %762 = vmatpush.msra.mxu0 0.0
        %763 = vmatpush.msra.mxu0 0.0
        %764 = vmatpush.msra.mxu0 0.0
        %765 = vmatpush.msra.mxu0 0.0
        %766 = vmatpush.msra.mxu0 0.0
        %767 = vmatpush.msra.mxu0 0.0
        %768 = vmatpush.msra.mxu0 0.0
        %769 = vmatpush.msra.mxu0 0.0
        %770 = vmatpush.msra.mxu0 0.0
        %771 = vmatpush.msra.mxu0 0.0
        %772 = vmatpush.msra.mxu0 0.0
        %773 = vmatpush.msra.mxu0 0.0
        %774 = vmatpush.msra.mxu0 %v736
        %775 = vmatpush.msra.mxu0 %v735
        %776 = vmatmul.f32.gmra.mxu0 %v483
        %v777 = vpop.f32.mrf.mxu0
        %v778 = vadd.f32 0.0, %v777
        %779 = vmatmul.f32.gmra.mxu0 %v486
        %v780 = vpop.f32.mrf.mxu0
        %v781 = vadd.f32 0.0, %v780
        %782 = vdwg.mxu0
        %v783 = vpack.c.bf16 %v736, %v735
        %s784 = scalar_lea.vmem [#allocation3], 8
        %v785 = vld [vmem:[%s784] sm:$0xf]
        %v786 = vld [vmem:[%s784 + $0x4] sm:$0xf]
        %v787 = vpack.c.bf16 %v758, %v755
        %v788 = vld [vmem:[#allocation3] sm:$0xf]
        %v789 = vld [vmem:[#allocation3 + $0x4] sm:$0xf]
        %v792 = vunpack.c.l.b16 %v788
        %v793 = vunpack.c.l.b16 %v789
        %v794 = vpack.c.b16 %v793, %v792
        %v797 = vsel %vm452, %v787, 0
        %799 = vmatpush.bf16.msra.mxu0 0
        %800 = vmatpush.bf16.msra.mxu0 0
        %801 = vmatpush.bf16.msra.mxu0 0
        %802 = vmatpush.bf16.msra.mxu0 0
        %803 = vmatpush.bf16.msra.mxu0 0
        %804 = vmatpush.bf16.msra.mxu0 0
        %805 = vmatpush.bf16.msra.mxu0 0
        %806 = vmatpush.bf16.msra.mxu0 %v794
        %807 = vmatmul.bf16.gmra.mxu0 %v797
        %v808 = vpop.f32.mrf.mxu0
        %v809 = vadd.f32 0.0, %v808
        %v810 = vpop.f32.mrf.mxu0
        %v811 = vadd.f32 0.0, %v810
        %812 = vdwg.mxu0
        %v815 = vunpack.c.l.b16 %v785
        %v816 = vunpack.c.l.b16 %v786
        %v817 = vpack.c.b16 %v816, %v815
        %v820 = vsel %vm452, %v783, 0
        %822 = vmatpush.bf16.msra.mxu0 0
        %823 = vmatpush.bf16.msra.mxu0 0
        %824 = vmatpush.bf16.msra.mxu0 0
        %825 = vmatpush.bf16.msra.mxu0 0
        %826 = vmatpush.bf16.msra.mxu0 0
        %827 = vmatpush.bf16.msra.mxu0 0
        %828 = vmatpush.bf16.msra.mxu0 0
        %829 = vmatpush.bf16.msra.mxu0 %v817
        %830 = vmatmul.bf16.gmra.mxu0 %v820
        %v831 = vpop.f32.mrf.mxu0
        %v832 = vadd.f32 %v809, %v831
        %v833 = vpop.f32.mrf.mxu0
        %v834 = vadd.f32 %v811, %v833
        %835 = vdwg.mxu0
        %v836 = vpack.c.bf16 %v781, %v778
        %s837 = scalar_lea.vmem [#allocation3], 16
        %v838 = vld [vmem:[%s837] sm:$0xf]
        %v839 = vld [vmem:[%s837 + $0x4] sm:$0xf]
        %v842 = vunpack.c.l.b16 %v838
        %v843 = vunpack.c.l.b16 %v839
        %v844 = vpack.c.b16 %v843, %v842
        %v847 = vsel %vm452, %v836, 0
        %849 = vmatpush.bf16.msra.mxu0 0
        %850 = vmatpush.bf16.msra.mxu0 0
        %851 = vmatpush.bf16.msra.mxu0 0
        %852 = vmatpush.bf16.msra.mxu0 0
        %853 = vmatpush.bf16.msra.mxu0 0
        %854 = vmatpush.bf16.msra.mxu0 0
        %855 = vmatpush.bf16.msra.mxu0 0
        %856 = vmatpush.bf16.msra.mxu0 %v844
        %857 = vmatmul.bf16.gmra.mxu0 %v847
        %v858 = vpop.f32.mrf.mxu0
        %v859 = vadd.f32 0.0, %v858
        %v860 = vpop.f32.mrf.mxu0
        %v861 = vadd.f32 0.0, %v860
        %862 = vdwg.mxu0
        %v863 = vadd.f32 %v832, %v859
        %v864 = vadd.f32 %v834, %v861
        %v865 = vld [vmem:[%s7] sm:$0x1]
        %v867 = vperm.slane %v865, 0
        %v869 = vmul.f32 %v863, %v867
        %v870 = vmul.f32 %v864, %v867
        %v871 = vld [vmem:[%s8] sm:$0x1]
        %v873 = vperm.slane %v871, 0
        %v875 = vadd.f32 %v869, %v873
        %v876 = vadd.f32 %v870, %v873
        %v877 = vmax.f32 %v875, 0.0
        %v878 = vmax.f32 %v876, 0.0
        %v879 = vld [vmem:[%s9] sm:$0xff]
        %v880 = vld [vmem:[%s9 + $0x8] sm:$0xff]
        %v881 = vld [vmem:[#allocation2] sm:$0x1]
        %v883 = vperm.slane %v881, 0
        %v886 = vsel %vm452, %v877, 0
        %v889 = vsel %vm452, %v878, 0
        %891 = vmatpush.msra.mxu0 0.0
        %892 = vmatpush.msra.mxu0 0.0
        %893 = vmatpush.msra.mxu0 0.0
        %894 = vmatpush.msra.mxu0 0.0
        %895 = vmatpush.msra.mxu0 0.0
        %896 = vmatpush.msra.mxu0 0.0
        %897 = vmatpush.msra.mxu0 0.0
        %898 = vmatpush.msra.mxu0 0.0
        %899 = vmatpush.msra.mxu0 0.0
        %900 = vmatpush.msra.mxu0 0.0
        %901 = vmatpush.msra.mxu0 0.0
        %902 = vmatpush.msra.mxu0 0.0
        %903 = vmatpush.msra.mxu0 0.0
        %904 = vmatpush.msra.mxu0 0.0
        %905 = vmatpush.msra.mxu0 %v880
        %906 = vmatpush.msra.mxu0 %v879
        %907 = vmatmul.f32.gmra.mxu0 %v886
        %v908 = vpop.f32.mrf.mxu0
        %v909 = vadd.f32 %v883, %v908
        %910 = vmatmul.f32.gmra.mxu0 %v889
        %v911 = vpop.f32.mrf.mxu0
        %v912 = vadd.f32 %v883, %v911
        %913 = vdwg.mxu0
        %vm914 = vcmask 7168
        %915 = vst.msk [vmem:[%s425] sm:$0xff] %vm914, %v909
        %916 = vst.msk [vmem:[%s425 + $0x8] sm:$0xff] %vm914, %v912
        %p917 = scmp.lt.s32.totalorder %s25, 1
        %s918 = scalar_select %p917, %s25, 1
        %s919 = smul.addr %s918, 2
        %s920 = smul.addr %s919, 8
        %s921 = scalar_lea.vmem %s11, %s920
        // Predicated region
        $region69: #{vnet_forward.19} parent=63 // pred_check
          %p922 = pneg %p284
        $region70: #{vnet_forward.19} parent=63 // pred_check_branch
          %924 = sbr.rel (%p922) target = $region72
        $region71: #{vnet_forward.19} parent=63 // pred_region
          _
        $region72: #{vnet_forward.19} parent=63 // pred_fallthru
          _
      $region64: #{vnet_forward.19} parent=5 // pred_fallthru
        _
      %p925 = scmp.le.s32.totalorder 2, %s20
      // Predicated region
      $region73: #{vnet_forward.19} parent=5 // pred_check
        %p926 = pneg %p925
      $region74: #{vnet_forward.19} parent=5 // pred_check_branch
        %928 = sbr.rel (%p926) target = $region76
      $region75: #{vnet_forward.19} parent=5 // pred_region
        %s929 = ssub.s32 %s20, 2
        // Predicated region
        $region77: #{vnet_forward.19} parent=75 // pred_check
          %p930 = pneg %p290
        $region78: #{vnet_forward.19} parent=75 // pred_check_branch
          %932 = sbr.rel (%p930) target = $region80
        $region79: #{vnet_forward.19} parent=75 // pred_region
          %p933 = scmp.lt.s32.totalorder %s26, 1
          %s934 = scalar_select %p933, %s26, 1
          %s935 = smul.addr %s934, 2
          %s936 = smul.addr %s935, 8
          %s937 = scalar_lea.vmem %s11, %s936
        $region80: #{vnet_forward.19} parent=75 // pred_fallthru
          _
      $region76: #{vnet_forward.19} parent=5 // pred_fallthru
        _
    $region6: #{vnet_forward.19} parent=1 // loop_footer
      %s24 = sadd.s32 1, %s20
    $region7: #{vnet_forward.19} parent=1 // loop_footer_branch
      %19 = sbr.rel target = $region3
    $region8: #{vnet_forward.19} parent=1 // loop_exit
      _
    %938 = vsyncpa [#allocation4], 1
    %s939 = scalar_lea.sflag [#allocation4], 1
    %940 = vsyncpa %s939, 1

</llo_original>
